<compile_context>
chip_gen: v7x
topology: tpu7x:2x2x1
jax: 0.10.0
libtpu: 0.0.40
codegen_flags: <defaults>
</compile_context>

<pallas_src>
import functools
import math

import jax
import jax.numpy as jnp
from jax.experimental import pallas as pl
from jax.experimental.pallas import tpu as pltpu

N_HEADS = 8
LN_EPS = 1e-5


# ----------------------------- in-kernel math -------------------------------

def _layernorm(x, g, b, eps):
    mu = jnp.mean(x, axis=-1, keepdims=True)
    xc = x - mu
    var = jnp.mean(xc * xc, axis=-1, keepdims=True)
    return xc * jax.lax.rsqrt(var + eps) * g + b


def _attention(qkv, bias, *, n_heads, tb, seq):
    """Head-batched self-attention.

    qkv:  (TB*S, 3E) bf16, Q columns already pre-scaled by 1/sqrt(dh).
    bias: (TB, 1, S) f32 additive key-padding bias.
    Returns (TB*S, E) f32.
    """
    _, three_e = qkv.shape
    E = three_e // 3
    dh = E // n_heads

    # TODO(synk): for large S, switch to flash-style KV tiling (online softmax)
    # instead of materializing the (H, S, S) score tensor.
    rows = []
    for t in range(tb):                                   # static, tiny TB
        r = slice(t * seq, (t + 1) * seq)
        q = jnp.stack([qkv[r, h * dh:(h + 1) * dh] for h in range(n_heads)], axis=0)
        k = jnp.stack([qkv[r, E + h * dh:E + (h + 1) * dh] for h in range(n_heads)], axis=0)
        v = jnp.stack([qkv[r, 2 * E + h * dh:2 * E + (h + 1) * dh] for h in range(n_heads)], axis=0)

        # scores: batched over heads, contract dh           -> (H, S, S) f32
        s = jax.lax.dot_general(q, k, (((2,), (2,)), ((0,), (0,))),
                                preferred_element_type=jnp.float32)
        s = s + bias[t]                                    # (1,S) -> broadcast over (H,S,S) keys
        m = jnp.max(s, axis=-1, keepdims=True)
        p = jnp.exp(s - m)
        p = p * pl.reciprocal(jnp.sum(p, axis=-1, keepdims=True), approx=True)

        # PV: batched over heads, contract keys             -> (H, S, dh) f32
        o = jax.lax.dot_general(p.astype(jnp.bfloat16), v, (((2,), (1,)), ((0,), (0,))),
                                preferred_element_type=jnp.float32)
        rows.append(jnp.concatenate([o[h] for h in range(n_heads)], axis=-1))  # (S, E)
    return rows[0] if tb == 1 else jnp.concatenate(rows, axis=0)


def _layer(h, bias, in_w, in_b, out_w, out_b, ff1_w, ff1_b, ff2_w, ff2_b,
           ln1_g, ln1_b, ln2_g, ln2_b, *, n_heads, eps, tb, seq):
    """One post-LN transformer encoder layer on a (TB*S, E) f32 slab."""
    # ---- multi-head self-attention ----
    qkv = jnp.dot(h.astype(jnp.bfloat16), in_w,
                  preferred_element_type=jnp.float32) + in_b          # (TB*S, 3E) f32
    attn = _attention(qkv.astype(jnp.bfloat16), bias,                 # single bf16 cast
                      n_heads=n_heads, tb=tb, seq=seq)
    a = jnp.dot(attn.astype(jnp.bfloat16), out_w,
                preferred_element_type=jnp.float32) + out_b
    y1 = _layernorm(h + a, ln1_g, ln1_b, eps)

    # ---- feed-forward (FF zero-padded to a 128 multiple; padding is exact) ----
    f = jnp.maximum(jnp.dot(y1.astype(jnp.bfloat16), ff1_w,
                            preferred_element_type=jnp.float32) + ff1_b, 0.0)
    f2 = jnp.dot(f.astype(jnp.bfloat16), ff2_w,
                 preferred_element_type=jnp.float32) + ff2_b
    return _layernorm(y1 + f2, ln2_g, ln2_b, eps)


# ------------------------------ fused Pallas kernel --------------------------

def _encoder_kernel(x_ref, bias_ref, proj_w, proj_b,
                    in_w, in_b, out_w, out_b, ff1_w, ff1_b, ff2_w, ff2_b,
                    ln1_g, ln1_b, ln2_g, ln2_b,
                    node_ref, graph_ref, *, n_layers, n_heads, eps):
    tb, seq, d = x_ref.shape
    E = proj_w.shape[1]

    # input projection + ReLU (fused; no separate launch / HBM round-trip)
    x = x_ref[...].reshape(tb * seq, d)
    h = jnp.dot(x.astype(jnp.bfloat16), proj_w[...],
                preferred_element_type=jnp.float32) + proj_b[...]
    h = jnp.maximum(h, 0.0)                                           # (TB*S, E)

    bias = bias_ref[...]                                              # (TB, 1, S)

    # all encoder layers in one kernel body; weights indexed statically
    for l in range(n_layers):
        h = _layer(h, bias,
                   in_w[l], in_b[l], out_w[l], out_b[l],
                   ff1_w[l], ff1_b[l], ff2_w[l], ff2_b[l],
                   ln1_g[l], ln1_b[l], ln2_g[l], ln2_b[l],
                   n_heads=n_heads, eps=eps, tb=tb, seq=seq)

    y = h.reshape(tb, seq, E)
    node_ref[...] = y
    graph_ref[...] = jnp.mean(y, axis=1, keepdims=True)               # fused seq-mean


# ------------------------------ parameter init -------------------------------

def _init_linear(key, out_dim, in_dim):
    kw, kb = jax.random.split(key)
    bound = 1.0 / math.sqrt(in_dim)
    w = jax.random.uniform(kw, (out_dim, in_dim), jnp.float32, -bound, bound)
    b = jax.random.uniform(kb, (out_dim,), jnp.float32, -bound, bound)
    return w, b


def init_params(key, input_dim, hidden, ff, n_layers):
    """PyTorch-layout (out, in) float32 parameters."""
    keys = jax.random.split(key, 1 + n_layers)
    proj_w, proj_b = _init_linear(keys[0], hidden, input_dim)
    layers = []
    for l in range(n_layers):
        ks = jax.random.split(keys[1 + l], 4)
        in_w, in_b = _init_linear(ks[0], 3 * hidden, hidden)     # MHA in_proj
        out_w, out_b = _init_linear(ks[1], hidden, hidden)       # MHA out_proj
        ff1_w, ff1_b = _init_linear(ks[2], ff, hidden)           # linear1
        ff2_w, ff2_b = _init_linear(ks[3], hidden, ff)           # linear2
        layers.append(dict(
            in_w=in_w, in_b=in_b, out_w=out_w, out_b=out_b,
            ff1_w=ff1_w, ff1_b=ff1_b, ff2_w=ff2_w, ff2_b=ff2_b,
            ln1_g=jnp.ones((hidden,), jnp.float32),
            ln1_b=jnp.zeros((hidden,), jnp.float32),
            ln2_g=jnp.ones((hidden,), jnp.float32),
            ln2_b=jnp.zeros((hidden,), jnp.float32),
        ))
    return dict(proj_w=proj_w, proj_b=proj_b, layers=layers)


def _round_up(v, m):
    return ((v + m - 1) // m) * m


def prepare_params(params):
    """One-time prep: transpose weights to (in, out), fold 1/sqrt(dh) into the
    Q part of in_proj, pad FF to a 128 multiple, cast matmul weights to bf16,
    stack per-layer params along a leading L dim, biases/LN params -> (1,dim)."""
    E = params["proj_w"].shape[0]
    dh = E // N_HEADS
    scale = 1.0 / math.sqrt(dh)

    prep = dict(
        proj_w=params["proj_w"].T.astype(jnp.bfloat16),              # (D, E)
        proj_b=params["proj_b"].reshape(1, -1).astype(jnp.float32),
    )
    names = ("in_w", "in_b", "out_w", "out_b", "ff1_w", "ff1_b", "ff2_w",
             "ff2_b", "ln1_g", "ln1_b", "ln2_g", "ln2_b")
    stacked = {k: [] for k in names}
    for layer in params["layers"]:
        ff = layer["ff1_w"].shape[0]
        ffp = _round_up(ff, 128)                                     # 192 -> 256
        in_w = layer["in_w"].at[:E, :].multiply(scale)               # fold attn scale into Q
        in_b = layer["in_b"].at[:E].multiply(scale)
        ff1_w = jnp.zeros((E, ffp), jnp.float32).at[:, :ff].set(layer["ff1_w"].T)
        ff1_b = jnp.zeros((1, ffp), jnp.float32).at[:, :ff].set(layer["ff1_b"])
        ff2_w = jnp.zeros((ffp, E), jnp.float32).at[:ff, :].set(layer["ff2_w"].T)
        stacked["in_w"].append(in_w.T.astype(jnp.bfloat16))          # (E, 3E)
        stacked["in_b"].append(in_b.reshape(1, -1))
        stacked["out_w"].append(layer["out_w"].T.astype(jnp.bfloat16))  # (E, E)
        stacked["out_b"].append(layer["out_b"].reshape(1, -1))
        stacked["ff1_w"].append(ff1_w.astype(jnp.bfloat16))          # (E, FFp)
        stacked["ff1_b"].append(ff1_b)
        stacked["ff2_w"].append(ff2_w.astype(jnp.bfloat16))          # (FFp, E)
        stacked["ff2_b"].append(layer["ff2_b"].reshape(1, -1))
        stacked["ln1_g"].append(layer["ln1_g"].reshape(1, -1))
        stacked["ln1_b"].append(layer["ln1_b"].reshape(1, -1))
        stacked["ln2_g"].append(layer["ln2_g"].reshape(1, -1))
        stacked["ln2_b"].append(layer["ln2_b"].reshape(1, -1))
    prep.update({k: jnp.stack(v, axis=0) for k, v in stacked.items()})
    return prep


# -------------------------------- forward pass --------------------------------

def transformer_encoder_forward(prep, x, mask, *, batch_tile=1):
    """x: (S, N, input_dim) f32; mask: (N, S) bool (True = padded key).
    batch_tile: batch elements per grid step (TB*S rows per matmul). Keep
    N // batch_tile >= 2 so v7x's second TensorCore stays busy."""
    S, N, D = x.shape
    E = prep["proj_w"].shape[1]
    L = prep["in_w"].shape[0]
    TB = batch_tile
    assert N % TB == 0

    # batch-first internal layout -> every activation block is lane-dense (S, E)
    xb = jnp.transpose(x, (1, 0, 2))                                  # (N, S, D)
    # key-padding mask -> additive bias once, (N, 1, S); no per-head duplication
    bias = jnp.where(mask, -1e30, 0.0).astype(jnp.float32).reshape(N, 1, S)

    weights = (prep["proj_w"], prep["proj_b"],
               prep["in_w"], prep["in_b"], prep["out_w"], prep["out_b"],
               prep["ff1_w"], prep["ff1_b"], prep["ff2_w"], prep["ff2_b"],
               prep["ln1_g"], prep["ln1_b"], prep["ln2_g"], prep["ln2_b"])

    def _const_spec(a):
        # full-array block, constant index map -> DMA'd once, resident in VMEM
        # TODO(synk): for TB-scaled variants on v7x, drop weight buffering to
        # pipeline_mode=pl.Buffered(1) to halve the weight VMEM footprint.
        if a.ndim == 2:
            return pl.BlockSpec(a.shape, lambda b: (0, 0))
        return pl.BlockSpec(a.shape, lambda b: (0, 0, 0))

    in_specs = [
        pl.BlockSpec((TB, S, D), lambda b: (b, 0, 0)),                # raw input
        pl.BlockSpec((TB, 1, S), lambda b: (b, 0, 0)),                # mask bias
    ] + [_const_spec(a) for a in weights]
    out_specs = (
        pl.BlockSpec((TB, S, E), lambda b: (b, 0, 0)),                # node embeddings
        pl.BlockSpec((TB, 1, E), lambda b: (b, 0, 0)),                # per-graph mean
    )

    node_bf, graph = pl.pallas_call(
        functools.partial(_encoder_kernel, n_layers=L, n_heads=N_HEADS, eps=LN_EPS),
        out_shape=(jax.ShapeDtypeStruct((N, S, E), jnp.float32),
                   jax.ShapeDtypeStruct((N, 1, E), jnp.float32)),
        grid=(N // TB,),
        in_specs=in_specs,
        out_specs=out_specs,
        compiler_params=pltpu.CompilerParams(
            dimension_semantics=("parallel",),
            vmem_limit_bytes=32 * 1024 * 1024),
    )(xb, bias, *weights)

    # TODO(synk): emit (S, N, E) directly from the kernel once (S, 1, E) output
    # blocks (non-tile-aligned second-minor dim) are safe on all generations;
    # for now this is a single tiny XLA transpose around one launch.
    node_embeddings = jnp.transpose(node_bf, (1, 0, 2))               # (S, N, E)
    graph_embeddings = graph.reshape(N, E)                            # mean over seq
    return node_embeddings, graph_embeddings


# ------------------------------------ main ------------------------------------

if __name__ == "__main__":
    S, N = 8, 2           # seq len, batch
    INPUT_DIM = 16
    HIDDEN = 128          # module default (divisible by nhead=8)
    FF = 192              # module default dim_feedforward (zero-padded to 256)
    N_LAYERS = 3

    key = jax.random.PRNGKey(0)
    k_par, k_x = jax.random.split(key)
    params = init_params(k_par, INPUT_DIM, HIDDEN, FF, N_LAYERS)
    prep = prepare_params(params)     # one-time weight layout / dtype prep

    x = jax.random.normal(k_x, (S, N, INPUT_DIM), jnp.float32)
    lengths = jnp.array([S, S - 3])                     # batch 1 has 3 padded positions
    mask = jnp.arange(S)[None, :] >= lengths[:, None]   # (N, S) bool, True = pad

    fwd = jax.jit(transformer_encoder_forward)
    node_emb, graph_emb = fwd(prep, x, mask)
    jax.block_until_ready((node_emb, graph_emb))

    assert node_emb.shape == (S, N, HIDDEN)
    assert graph_emb.shape == (N, HIDDEN)
    assert jnp.all(jnp.isfinite(node_emb)) and jnp.all(jnp.isfinite(graph_emb))
    print("KERNEL_OK")
</pallas_src>

<mosaic_0001>
module attributes {stable_mosaic.version = 11 : i64} {
  func.func @_encoder_kernel(%arg0: i32, %arg1: memref<1x8x16xf32, #tpu.memory_space<vmem>>, %arg2: memref<1x1x8xf32, #tpu.memory_space<vmem>>, %arg3: memref<16x128xbf16, #tpu.memory_space<vmem>>, %arg4: memref<1x128xf32, #tpu.memory_space<vmem>>, %arg5: memref<3x128x384xbf16, #tpu.memory_space<vmem>>, %arg6: memref<3x1x384xf32, #tpu.memory_space<vmem>>, %arg7: memref<3x128x128xbf16, #tpu.memory_space<vmem>>, %arg8: memref<3x1x128xf32, #tpu.memory_space<vmem>>, %arg9: memref<3x128x256xbf16, #tpu.memory_space<vmem>>, %arg10: memref<3x1x256xf32, #tpu.memory_space<vmem>>, %arg11: memref<3x256x128xbf16, #tpu.memory_space<vmem>>, %arg12: memref<3x1x128xf32, #tpu.memory_space<vmem>>, %arg13: memref<3x1x128xf32, #tpu.memory_space<vmem>>, %arg14: memref<3x1x128xf32, #tpu.memory_space<vmem>>, %arg15: memref<3x1x128xf32, #tpu.memory_space<vmem>>, %arg16: memref<3x1x128xf32, #tpu.memory_space<vmem>>, %arg17: memref<1x8x128xf32, #tpu.memory_space<vmem>>, %arg18: memref<1x1x128xf32, #tpu.memory_space<vmem>>) attributes {dimension_semantics = [#tpu.dimension_semantics<parallel>], iteration_bounds = array<i64: 2>, scalar_prefetch = 0 : i64, scratch_operands = 0 : i64, tpu.core_type = #tpu.core_type<tc>, window_params = [{transform_indices = @transform_0, window_bounds = array<i64: 1, 8, 16>}, {transform_indices = @transform_1, window_bounds = array<i64: 1, 1, 8>}, {pipeline_mode = #tpu.pipeline_mode<synchronous>, transform_indices = @transform_2, window_bounds = array<i64: 16, 128>}, {pipeline_mode = #tpu.pipeline_mode<synchronous>, transform_indices = @transform_3, window_bounds = array<i64: 1, 128>}, {pipeline_mode = #tpu.pipeline_mode<synchronous>, transform_indices = @transform_4, window_bounds = array<i64: 3, 128, 384>}, {pipeline_mode = #tpu.pipeline_mode<synchronous>, transform_indices = @transform_5, window_bounds = array<i64: 3, 1, 384>}, {pipeline_mode = #tpu.pipeline_mode<synchronous>, transform_indices = @transform_6, window_bounds = array<i64: 3, 128, 128>}, {pipeline_mode = #tpu.pipeline_mode<synchronous>, transform_indices = @transform_7, window_bounds = array<i64: 3, 1, 128>}, {pipeline_mode = #tpu.pipeline_mode<synchronous>, transform_indices = @transform_8, window_bounds = array<i64: 3, 128, 256>}, {pipeline_mode = #tpu.pipeline_mode<synchronous>, transform_indices = @transform_9, window_bounds = array<i64: 3, 1, 256>}, {pipeline_mode = #tpu.pipeline_mode<synchronous>, transform_indices = @transform_10, window_bounds = array<i64: 3, 256, 128>}, {pipeline_mode = #tpu.pipeline_mode<synchronous>, transform_indices = @transform_11, window_bounds = array<i64: 3, 1, 128>}, {pipeline_mode = #tpu.pipeline_mode<synchronous>, transform_indices = @transform_12, window_bounds = array<i64: 3, 1, 128>}, {pipeline_mode = #tpu.pipeline_mode<synchronous>, transform_indices = @transform_13, window_bounds = array<i64: 3, 1, 128>}, {pipeline_mode = #tpu.pipeline_mode<synchronous>, transform_indices = @transform_14, window_bounds = array<i64: 3, 1, 128>}, {pipeline_mode = #tpu.pipeline_mode<synchronous>, transform_indices = @transform_15, window_bounds = array<i64: 3, 1, 128>}, {transform_indices = @transform_16, window_bounds = array<i64: 1, 8, 128>}, {transform_indices = @transform_17, window_bounds = array<i64: 1, 1, 128>}]} {
    %c0 = arith.constant 0 : index
    %c0_0 = arith.constant 0 : index
    %c0_1 = arith.constant 0 : index
    %0 = vector.load %arg1[%c0, %c0_0, %c0_1] : memref<1x8x16xf32, #tpu.memory_space<vmem>>, vector<1x8x16xf32>
    %1 = vector.shape_cast %0 : vector<1x8x16xf32> to vector<8x16xf32>
    %2 = arith.truncf %1 : vector<8x16xf32> to vector<8x16xbf16>
    %c0_2 = arith.constant 0 : index
    %c0_3 = arith.constant 0 : index
    %3 = vector.load %arg3[%c0_2, %c0_3] : memref<16x128xbf16, #tpu.memory_space<vmem>>, vector<16x128xbf16>
    %cst = arith.constant dense<0.000000e+00> : vector<8x128xf32>
    %4 = tpu.matmul %2, %3, %cst {dimension_numbers = #tpu.dot_dimension_numbers<[1], [0], [0], [1], [0, 0, 1, 1], [], []>} : vector<8x16xbf16>, vector<16x128xbf16>, vector<8x128xf32> -> vector<8x128xf32>
    %c0_4 = arith.constant 0 : index
    %c0_5 = arith.constant 0 : index
    %5 = vector.load %arg4[%c0_4, %c0_5] : memref<1x128xf32, #tpu.memory_space<vmem>>, vector<1x128xf32>
    %6 = vector.broadcast %5 : vector<1x128xf32> to vector<8x128xf32>
    %7 = arith.addf %4, %6 : vector<8x128xf32>
    %cst_6 = arith.constant 0.000000e+00 : f32
    %8 = vector.broadcast %cst_6 : f32 to vector<8x128xf32>
    %9 = arith.maximumf %7, %8 : vector<8x128xf32>
    %c0_7 = arith.constant 0 : index
    %c0_8 = arith.constant 0 : index
    %c0_9 = arith.constant 0 : index
    %10 = vector.load %arg2[%c0_7, %c0_8, %c0_9] : memref<1x1x8xf32, #tpu.memory_space<vmem>>, vector<1x1x8xf32>
    %c0_10 = arith.constant 0 : index
    %c0_11 = arith.constant 0 : index
    %c0_12 = arith.constant 0 : index
    %11 = vector.load %arg5[%c0_10, %c0_11, %c0_12] : memref<3x128x384xbf16, #tpu.memory_space<vmem>>, vector<1x128x384xbf16>
    %12 = vector.shape_cast %11 : vector<1x128x384xbf16> to vector<128x384xbf16>
    %c0_13 = arith.constant 0 : index
    %c0_14 = arith.constant 0 : index
    %c0_15 = arith.constant 0 : index
    %13 = vector.load %arg6[%c0_13, %c0_14, %c0_15] : memref<3x1x384xf32, #tpu.memory_space<vmem>>, vector<1x1x384xf32>
    %14 = vector.shape_cast %13 : vector<1x1x384xf32> to vector<1x384xf32>
    %c0_16 = arith.constant 0 : index
    %c0_17 = arith.constant 0 : index
    %c0_18 = arith.constant 0 : index
    %15 = vector.load %arg7[%c0_16, %c0_17, %c0_18] : memref<3x128x128xbf16, #tpu.memory_space<vmem>>, vector<1x128x128xbf16>
    %16 = vector.shape_cast %15 : vector<1x128x128xbf16> to vector<128x128xbf16>
    %c0_19 = arith.constant 0 : index
    %c0_20 = arith.constant 0 : index
    %c0_21 = arith.constant 0 : index
    %17 = vector.load %arg8[%c0_19, %c0_20, %c0_21] : memref<3x1x128xf32, #tpu.memory_space<vmem>>, vector<1x1x128xf32>
    %18 = vector.shape_cast %17 : vector<1x1x128xf32> to vector<1x128xf32>
    %c0_22 = arith.constant 0 : index
    %c0_23 = arith.constant 0 : index
    %c0_24 = arith.constant 0 : index
    %19 = vector.load %arg9[%c0_22, %c0_23, %c0_24] : memref<3x128x256xbf16, #tpu.memory_space<vmem>>, vector<1x128x256xbf16>
    %20 = vector.shape_cast %19 : vector<1x128x256xbf16> to vector<128x256xbf16>
    %c0_25 = arith.constant 0 : index
    %c0_26 = arith.constant 0 : index
    %c0_27 = arith.constant 0 : index
    %21 = vector.load %arg10[%c0_25, %c0_26, %c0_27] : memref<3x1x256xf32, #tpu.memory_space<vmem>>, vector<1x1x256xf32>
    %22 = vector.shape_cast %21 : vector<1x1x256xf32> to vector<1x256xf32>
    %c0_28 = arith.constant 0 : index
    %c0_29 = arith.constant 0 : index
    %c0_30 = arith.constant 0 : index
    %23 = vector.load %arg11[%c0_28, %c0_29, %c0_30] : memref<3x256x128xbf16, #tpu.memory_space<vmem>>, vector<1x256x128xbf16>
    %24 = vector.shape_cast %23 : vector<1x256x128xbf16> to vector<256x128xbf16>
    %c0_31 = arith.constant 0 : index
    %c0_32 = arith.constant 0 : index
    %c0_33 = arith.constant 0 : index
    %25 = vector.load %arg12[%c0_31, %c0_32, %c0_33] : memref<3x1x128xf32, #tpu.memory_space<vmem>>, vector<1x1x128xf32>
    %26 = vector.shape_cast %25 : vector<1x1x128xf32> to vector<1x128xf32>
    %c0_34 = arith.constant 0 : index
    %c0_35 = arith.constant 0 : index
    %c0_36 = arith.constant 0 : index
    %27 = vector.load %arg13[%c0_34, %c0_35, %c0_36] : memref<3x1x128xf32, #tpu.memory_space<vmem>>, vector<1x1x128xf32>
    %28 = vector.shape_cast %27 : vector<1x1x128xf32> to vector<1x128xf32>
    %c0_37 = arith.constant 0 : index
    %c0_38 = arith.constant 0 : index
    %c0_39 = arith.constant 0 : index
    %29 = vector.load %arg14[%c0_37, %c0_38, %c0_39] : memref<3x1x128xf32, #tpu.memory_space<vmem>>, vector<1x1x128xf32>
    %30 = vector.shape_cast %29 : vector<1x1x128xf32> to vector<1x128xf32>
    %c0_40 = arith.constant 0 : index
    %c0_41 = arith.constant 0 : index
    %c0_42 = arith.constant 0 : index
    %31 = vector.load %arg15[%c0_40, %c0_41, %c0_42] : memref<3x1x128xf32, #tpu.memory_space<vmem>>, vector<1x1x128xf32>
    %32 = vector.shape_cast %31 : vector<1x1x128xf32> to vector<1x128xf32>
    %c0_43 = arith.constant 0 : index
    %c0_44 = arith.constant 0 : index
    %c0_45 = arith.constant 0 : index
    %33 = vector.load %arg16[%c0_43, %c0_44, %c0_45] : memref<3x1x128xf32, #tpu.memory_space<vmem>>, vector<1x1x128xf32>
    %34 = vector.shape_cast %33 : vector<1x1x128xf32> to vector<1x128xf32>
    %35 = arith.truncf %9 : vector<8x128xf32> to vector<8x128xbf16>
    %cst_46 = arith.constant dense<0.000000e+00> : vector<8x384xf32>
    %36 = tpu.matmul %35, %12, %cst_46 {dimension_numbers = #tpu.dot_dimension_numbers<[1], [0], [0], [1], [0, 0, 1, 1], [], []>} : vector<8x128xbf16>, vector<128x384xbf16>, vector<8x384xf32> -> vector<8x384xf32>
    %37 = vector.broadcast %14 : vector<1x384xf32> to vector<8x384xf32>
    %38 = arith.addf %36, %37 : vector<8x384xf32>
    %39 = arith.truncf %38 : vector<8x384xf32> to vector<8x384xbf16>
    %40 = vector.extract_strided_slice %39 {offsets = [0, 0], sizes = [8, 16], strides = [1, 1]} : vector<8x384xbf16> to vector<8x16xbf16>
    %41 = vector.extract_strided_slice %39 {offsets = [0, 16], sizes = [8, 16], strides = [1, 1]} : vector<8x384xbf16> to vector<8x16xbf16>
    %42 = vector.extract_strided_slice %39 {offsets = [0, 32], sizes = [8, 16], strides = [1, 1]} : vector<8x384xbf16> to vector<8x16xbf16>
    %43 = vector.extract_strided_slice %39 {offsets = [0, 48], sizes = [8, 16], strides = [1, 1]} : vector<8x384xbf16> to vector<8x16xbf16>
    %44 = vector.extract_strided_slice %39 {offsets = [0, 64], sizes = [8, 16], strides = [1, 1]} : vector<8x384xbf16> to vector<8x16xbf16>
    %45 = vector.extract_strided_slice %39 {offsets = [0, 80], sizes = [8, 16], strides = [1, 1]} : vector<8x384xbf16> to vector<8x16xbf16>
    %46 = vector.extract_strided_slice %39 {offsets = [0, 96], sizes = [8, 16], strides = [1, 1]} : vector<8x384xbf16> to vector<8x16xbf16>
    %47 = vector.extract_strided_slice %39 {offsets = [0, 112], sizes = [8, 16], strides = [1, 1]} : vector<8x384xbf16> to vector<8x16xbf16>
    %48 = vector.shape_cast %40 : vector<8x16xbf16> to vector<1x8x16xbf16>
    %49 = vector.shape_cast %41 : vector<8x16xbf16> to vector<1x8x16xbf16>
    %50 = vector.shape_cast %42 : vector<8x16xbf16> to vector<1x8x16xbf16>
    %51 = vector.shape_cast %43 : vector<8x16xbf16> to vector<1x8x16xbf16>
    %52 = vector.shape_cast %44 : vector<8x16xbf16> to vector<1x8x16xbf16>
    %53 = vector.shape_cast %45 : vector<8x16xbf16> to vector<1x8x16xbf16>
    %54 = vector.shape_cast %46 : vector<8x16xbf16> to vector<1x8x16xbf16>
    %55 = vector.shape_cast %47 : vector<8x16xbf16> to vector<1x8x16xbf16>
    %56 = tpu.concatenate %48, %49, %50, %51, %52, %53, %54, %55 in 0 : vector<1x8x16xbf16>, vector<1x8x16xbf16>, vector<1x8x16xbf16>, vector<1x8x16xbf16>, vector<1x8x16xbf16>, vector<1x8x16xbf16>, vector<1x8x16xbf16>, vector<1x8x16xbf16> -> vector<8x8x16xbf16>
    %57 = vector.extract_strided_slice %39 {offsets = [0, 128], sizes = [8, 16], strides = [1, 1]} : vector<8x384xbf16> to vector<8x16xbf16>
    %58 = vector.extract_strided_slice %39 {offsets = [0, 144], sizes = [8, 16], strides = [1, 1]} : vector<8x384xbf16> to vector<8x16xbf16>
    %59 = vector.extract_strided_slice %39 {offsets = [0, 160], sizes = [8, 16], strides = [1, 1]} : vector<8x384xbf16> to vector<8x16xbf16>
    %60 = vector.extract_strided_slice %39 {offsets = [0, 176], sizes = [8, 16], strides = [1, 1]} : vector<8x384xbf16> to vector<8x16xbf16>
    %61 = vector.extract_strided_slice %39 {offsets = [0, 192], sizes = [8, 16], strides = [1, 1]} : vector<8x384xbf16> to vector<8x16xbf16>
    %62 = vector.extract_strided_slice %39 {offsets = [0, 208], sizes = [8, 16], strides = [1, 1]} : vector<8x384xbf16> to vector<8x16xbf16>
    %63 = vector.extract_strided_slice %39 {offsets = [0, 224], sizes = [8, 16], strides = [1, 1]} : vector<8x384xbf16> to vector<8x16xbf16>
    %64 = vector.extract_strided_slice %39 {offsets = [0, 240], sizes = [8, 16], strides = [1, 1]} : vector<8x384xbf16> to vector<8x16xbf16>
    %65 = vector.shape_cast %57 : vector<8x16xbf16> to vector<1x8x16xbf16>
    %66 = vector.shape_cast %58 : vector<8x16xbf16> to vector<1x8x16xbf16>
    %67 = vector.shape_cast %59 : vector<8x16xbf16> to vector<1x8x16xbf16>
    %68 = vector.shape_cast %60 : vector<8x16xbf16> to vector<1x8x16xbf16>
    %69 = vector.shape_cast %61 : vector<8x16xbf16> to vector<1x8x16xbf16>
    %70 = vector.shape_cast %62 : vector<8x16xbf16> to vector<1x8x16xbf16>
    %71 = vector.shape_cast %63 : vector<8x16xbf16> to vector<1x8x16xbf16>
    %72 = vector.shape_cast %64 : vector<8x16xbf16> to vector<1x8x16xbf16>
    %73 = tpu.concatenate %65, %66, %67, %68, %69, %70, %71, %72 in 0 : vector<1x8x16xbf16>, vector<1x8x16xbf16>, vector<1x8x16xbf16>, vector<1x8x16xbf16>, vector<1x8x16xbf16>, vector<1x8x16xbf16>, vector<1x8x16xbf16>, vector<1x8x16xbf16> -> vector<8x8x16xbf16>
    %74 = vector.extract_strided_slice %39 {offsets = [0, 256], sizes = [8, 16], strides = [1, 1]} : vector<8x384xbf16> to vector<8x16xbf16>
    %75 = vector.extract_strided_slice %39 {offsets = [0, 272], sizes = [8, 16], strides = [1, 1]} : vector<8x384xbf16> to vector<8x16xbf16>
    %76 = vector.extract_strided_slice %39 {offsets = [0, 288], sizes = [8, 16], strides = [1, 1]} : vector<8x384xbf16> to vector<8x16xbf16>
    %77 = vector.extract_strided_slice %39 {offsets = [0, 304], sizes = [8, 16], strides = [1, 1]} : vector<8x384xbf16> to vector<8x16xbf16>
    %78 = vector.extract_strided_slice %39 {offsets = [0, 320], sizes = [8, 16], strides = [1, 1]} : vector<8x384xbf16> to vector<8x16xbf16>
    %79 = vector.extract_strided_slice %39 {offsets = [0, 336], sizes = [8, 16], strides = [1, 1]} : vector<8x384xbf16> to vector<8x16xbf16>
    %80 = vector.extract_strided_slice %39 {offsets = [0, 352], sizes = [8, 16], strides = [1, 1]} : vector<8x384xbf16> to vector<8x16xbf16>
    %81 = vector.extract_strided_slice %39 {offsets = [0, 368], sizes = [8, 16], strides = [1, 1]} : vector<8x384xbf16> to vector<8x16xbf16>
    %82 = vector.shape_cast %74 : vector<8x16xbf16> to vector<1x8x16xbf16>
    %83 = vector.shape_cast %75 : vector<8x16xbf16> to vector<1x8x16xbf16>
    %84 = vector.shape_cast %76 : vector<8x16xbf16> to vector<1x8x16xbf16>
    %85 = vector.shape_cast %77 : vector<8x16xbf16> to vector<1x8x16xbf16>
    %86 = vector.shape_cast %78 : vector<8x16xbf16> to vector<1x8x16xbf16>
    %87 = vector.shape_cast %79 : vector<8x16xbf16> to vector<1x8x16xbf16>
    %88 = vector.shape_cast %80 : vector<8x16xbf16> to vector<1x8x16xbf16>
    %89 = vector.shape_cast %81 : vector<8x16xbf16> to vector<1x8x16xbf16>
    %90 = tpu.concatenate %82, %83, %84, %85, %86, %87, %88, %89 in 0 : vector<1x8x16xbf16>, vector<1x8x16xbf16>, vector<1x8x16xbf16>, vector<1x8x16xbf16>, vector<1x8x16xbf16>, vector<1x8x16xbf16>, vector<1x8x16xbf16>, vector<1x8x16xbf16> -> vector<8x8x16xbf16>
    %cst_47 = arith.constant dense<0.000000e+00> : vector<8x8x8xf32>
    %91 = tpu.matmul %56, %73, %cst_47 {dimension_numbers = #tpu.dot_dimension_numbers<[2], [2], [1], [1], [0, 0, 0, 1, 1, 1], [0], [0]>} : vector<8x8x16xbf16>, vector<8x8x16xbf16>, vector<8x8x8xf32> -> vector<8x8x8xf32>
    %92 = vector.shape_cast %10 : vector<1x1x8xf32> to vector<1x8xf32>
    %93 = vector.shape_cast %92 : vector<1x8xf32> to vector<1x1x8xf32>
    %94 = vector.broadcast %93 : vector<1x1x8xf32> to vector<8x8x8xf32>
    %95 = arith.addf %91, %94 : vector<8x8x8xf32>
    %cst_48 = arith.constant dense<0xFF800000> : vector<8x8xf32>
    %96 = vector.multi_reduction <maximumf>, %95, %cst_48 [2] : vector<8x8x8xf32> to vector<8x8xf32>
    %97 = vector.shape_cast %96 : vector<8x8xf32> to vector<8x8x1xf32>
    %98 = vector.broadcast %97 : vector<8x8x1xf32> to vector<8x8x8xf32>
    %99 = arith.subf %95, %98 : vector<8x8x8xf32>
    %100 = math.exp %99 : vector<8x8x8xf32>
    %cst_49 = arith.constant dense<0.000000e+00> : vector<8x8xf32>
    %101 = vector.multi_reduction <add>, %100, %cst_49 [2] : vector<8x8x8xf32> to vector<8x8xf32>
    %102 = vector.shape_cast %101 : vector<8x8xf32> to vector<8x8x1xf32>
    %103 = tpu.reciprocal %102 {approx = true} : vector<8x8x1xf32> -> vector<8x8x1xf32>
    %104 = vector.broadcast %103 : vector<8x8x1xf32> to vector<8x8x8xf32>
    %105 = arith.mulf %100, %104 : vector<8x8x8xf32>
    %106 = arith.truncf %105 : vector<8x8x8xf32> to vector<8x8x8xbf16>
    %cst_50 = arith.constant dense<0.000000e+00> : vector<8x8x16xf32>
    %107 = tpu.matmul %106, %90, %cst_50 {dimension_numbers = #tpu.dot_dimension_numbers<[2], [1], [1], [2], [0, 0, 0, 1, 1, 2], [0], [0]>} : vector<8x8x8xbf16>, vector<8x8x16xbf16>, vector<8x8x16xf32> -> vector<8x8x16xf32>
    %108 = vector.extract_strided_slice %107 {offsets = [0, 0, 0], sizes = [1, 8, 16], strides = [1, 1, 1]} : vector<8x8x16xf32> to vector<1x8x16xf32>
    %109 = vector.shape_cast %108 : vector<1x8x16xf32> to vector<8x16xf32>
    %110 = vector.extract_strided_slice %107 {offsets = [1, 0, 0], sizes = [1, 8, 16], strides = [1, 1, 1]} : vector<8x8x16xf32> to vector<1x8x16xf32>
    %111 = vector.shape_cast %110 : vector<1x8x16xf32> to vector<8x16xf32>
    %112 = vector.extract_strided_slice %107 {offsets = [2, 0, 0], sizes = [1, 8, 16], strides = [1, 1, 1]} : vector<8x8x16xf32> to vector<1x8x16xf32>
    %113 = vector.shape_cast %112 : vector<1x8x16xf32> to vector<8x16xf32>
    %114 = vector.extract_strided_slice %107 {offsets = [3, 0, 0], sizes = [1, 8, 16], strides = [1, 1, 1]} : vector<8x8x16xf32> to vector<1x8x16xf32>
    %115 = vector.shape_cast %114 : vector<1x8x16xf32> to vector<8x16xf32>
    %116 = vector.extract_strided_slice %107 {offsets = [4, 0, 0], sizes = [1, 8, 16], strides = [1, 1, 1]} : vector<8x8x16xf32> to vector<1x8x16xf32>
    %117 = vector.shape_cast %116 : vector<1x8x16xf32> to vector<8x16xf32>
    %118 = vector.extract_strided_slice %107 {offsets = [5, 0, 0], sizes = [1, 8, 16], strides = [1, 1, 1]} : vector<8x8x16xf32> to vector<1x8x16xf32>
    %119 = vector.shape_cast %118 : vector<1x8x16xf32> to vector<8x16xf32>
    %120 = vector.extract_strided_slice %107 {offsets = [6, 0, 0], sizes = [1, 8, 16], strides = [1, 1, 1]} : vector<8x8x16xf32> to vector<1x8x16xf32>
    %121 = vector.shape_cast %120 : vector<1x8x16xf32> to vector<8x16xf32>
    %122 = vector.extract_strided_slice %107 {offsets = [7, 0, 0], sizes = [1, 8, 16], strides = [1, 1, 1]} : vector<8x8x16xf32> to vector<1x8x16xf32>
    %123 = vector.shape_cast %122 : vector<1x8x16xf32> to vector<8x16xf32>
    %124 = tpu.concatenate %109, %111, %113, %115, %117, %119, %121, %123 in 1 : vector<8x16xf32>, vector<8x16xf32>, vector<8x16xf32>, vector<8x16xf32>, vector<8x16xf32>, vector<8x16xf32>, vector<8x16xf32>, vector<8x16xf32> -> vector<8x128xf32>
    %125 = arith.truncf %124 : vector<8x128xf32> to vector<8x128xbf16>
    %cst_51 = arith.constant dense<0.000000e+00> : vector<8x128xf32>
    %126 = tpu.matmul %125, %16, %cst_51 {dimension_numbers = #tpu.dot_dimension_numbers<[1], [0], [0], [1], [0, 0, 1, 1], [], []>} : vector<8x128xbf16>, vector<128x128xbf16>, vector<8x128xf32> -> vector<8x128xf32>
    %127 = vector.broadcast %18 : vector<1x128xf32> to vector<8x128xf32>
    %128 = arith.addf %126, %127 : vector<8x128xf32>
    %129 = arith.addf %9, %128 : vector<8x128xf32>
    %cst_52 = arith.constant dense<0.000000e+00> : vector<8xf32>
    %130 = vector.multi_reduction <add>, %129, %cst_52 [1] : vector<8x128xf32> to vector<8xf32>
    %131 = vector.shape_cast %130 : vector<8xf32> to vector<8x1xf32>
    %cst_53 = arith.constant 1.280000e+02 : f32
    %132 = vector.broadcast %cst_53 : f32 to vector<8x1xf32>
    %133 = arith.divf %131, %132 : vector<8x1xf32>
    %134 = vector.broadcast %133 : vector<8x1xf32> to vector<8x128xf32>
    %135 = arith.subf %129, %134 : vector<8x128xf32>
    %136 = arith.mulf %135, %135 : vector<8x128xf32>
    %cst_54 = arith.constant dense<0.000000e+00> : vector<8xf32>
    %137 = vector.multi_reduction <add>, %136, %cst_54 [1] : vector<8x128xf32> to vector<8xf32>
    %138 = vector.shape_cast %137 : vector<8xf32> to vector<8x1xf32>
    %cst_55 = arith.constant 1.280000e+02 : f32
    %139 = vector.broadcast %cst_55 : f32 to vector<8x1xf32>
    %140 = arith.divf %138, %139 : vector<8x1xf32>
    %cst_56 = arith.constant 9.99999974E-6 : f32
    %141 = vector.broadcast %cst_56 : f32 to vector<8x1xf32>
    %142 = arith.addf %140, %141 : vector<8x1xf32>
    %143 = math.rsqrt %142 : vector<8x1xf32>
    %144 = vector.broadcast %143 : vector<8x1xf32> to vector<8x128xf32>
    %145 = arith.mulf %135, %144 : vector<8x128xf32>
    %146 = vector.broadcast %28 : vector<1x128xf32> to vector<8x128xf32>
    %147 = arith.mulf %145, %146 : vector<8x128xf32>
    %148 = vector.broadcast %30 : vector<1x128xf32> to vector<8x128xf32>
    %149 = arith.addf %147, %148 : vector<8x128xf32>
    %150 = arith.truncf %149 : vector<8x128xf32> to vector<8x128xbf16>
    %cst_57 = arith.constant dense<0.000000e+00> : vector<8x256xf32>
    %151 = tpu.matmul %150, %20, %cst_57 {dimension_numbers = #tpu.dot_dimension_numbers<[1], [0], [0], [1], [0, 0, 1, 1], [], []>} : vector<8x128xbf16>, vector<128x256xbf16>, vector<8x256xf32> -> vector<8x256xf32>
    %152 = vector.broadcast %22 : vector<1x256xf32> to vector<8x256xf32>
    %153 = arith.addf %151, %152 : vector<8x256xf32>
    %cst_58 = arith.constant 0.000000e+00 : f32
    %154 = vector.broadcast %cst_58 : f32 to vector<8x256xf32>
    %155 = arith.maximumf %153, %154 : vector<8x256xf32>
    %156 = arith.truncf %155 : vector<8x256xf32> to vector<8x256xbf16>
    %cst_59 = arith.constant dense<0.000000e+00> : vector<8x128xf32>
    %157 = tpu.matmul %156, %24, %cst_59 {dimension_numbers = #tpu.dot_dimension_numbers<[1], [0], [0], [1], [0, 0, 1, 1], [], []>} : vector<8x256xbf16>, vector<256x128xbf16>, vector<8x128xf32> -> vector<8x128xf32>
    %158 = vector.broadcast %26 : vector<1x128xf32> to vector<8x128xf32>
    %159 = arith.addf %157, %158 : vector<8x128xf32>
    %160 = arith.addf %149, %159 : vector<8x128xf32>
    %cst_60 = arith.constant dense<0.000000e+00> : vector<8xf32>
    %161 = vector.multi_reduction <add>, %160, %cst_60 [1] : vector<8x128xf32> to vector<8xf32>
    %162 = vector.shape_cast %161 : vector<8xf32> to vector<8x1xf32>
    %cst_61 = arith.constant 1.280000e+02 : f32
    %163 = vector.broadcast %cst_61 : f32 to vector<8x1xf32>
    %164 = arith.divf %162, %163 : vector<8x1xf32>
    %165 = vector.broadcast %164 : vector<8x1xf32> to vector<8x128xf32>
    %166 = arith.subf %160, %165 : vector<8x128xf32>
    %167 = arith.mulf %166, %166 : vector<8x128xf32>
    %cst_62 = arith.constant dense<0.000000e+00> : vector<8xf32>
    %168 = vector.multi_reduction <add>, %167, %cst_62 [1] : vector<8x128xf32> to vector<8xf32>
    %169 = vector.shape_cast %168 : vector<8xf32> to vector<8x1xf32>
    %cst_63 = arith.constant 1.280000e+02 : f32
    %170 = vector.broadcast %cst_63 : f32 to vector<8x1xf32>
    %171 = arith.divf %169, %170 : vector<8x1xf32>
    %cst_64 = arith.constant 9.99999974E-6 : f32
    %172 = vector.broadcast %cst_64 : f32 to vector<8x1xf32>
    %173 = arith.addf %171, %172 : vector<8x1xf32>
    %174 = math.rsqrt %173 : vector<8x1xf32>
    %175 = vector.broadcast %174 : vector<8x1xf32> to vector<8x128xf32>
    %176 = arith.mulf %166, %175 : vector<8x128xf32>
    %177 = vector.broadcast %32 : vector<1x128xf32> to vector<8x128xf32>
    %178 = arith.mulf %176, %177 : vector<8x128xf32>
    %179 = vector.broadcast %34 : vector<1x128xf32> to vector<8x128xf32>
    %180 = arith.addf %178, %179 : vector<8x128xf32>
    %c1 = arith.constant 1 : index
    %c0_65 = arith.constant 0 : index
    %c0_66 = arith.constant 0 : index
    %181 = vector.load %arg5[%c1, %c0_65, %c0_66] : memref<3x128x384xbf16, #tpu.memory_space<vmem>>, vector<1x128x384xbf16>
    %182 = vector.shape_cast %181 : vector<1x128x384xbf16> to vector<128x384xbf16>
    %c1_67 = arith.constant 1 : index
    %c0_68 = arith.constant 0 : index
    %c0_69 = arith.constant 0 : index
    %183 = vector.load %arg6[%c1_67, %c0_68, %c0_69] : memref<3x1x384xf32, #tpu.memory_space<vmem>>, vector<1x1x384xf32>
    %184 = vector.shape_cast %183 : vector<1x1x384xf32> to vector<1x384xf32>
    %c1_70 = arith.constant 1 : index
    %c0_71 = arith.constant 0 : index
    %c0_72 = arith.constant 0 : index
    %185 = vector.load %arg7[%c1_70, %c0_71, %c0_72] : memref<3x128x128xbf16, #tpu.memory_space<vmem>>, vector<1x128x128xbf16>
    %186 = vector.shape_cast %185 : vector<1x128x128xbf16> to vector<128x128xbf16>
    %c1_73 = arith.constant 1 : index
    %c0_74 = arith.constant 0 : index
    %c0_75 = arith.constant 0 : index
    %187 = vector.load %arg8[%c1_73, %c0_74, %c0_75] : memref<3x1x128xf32, #tpu.memory_space<vmem>>, vector<1x1x128xf32>
    %188 = vector.shape_cast %187 : vector<1x1x128xf32> to vector<1x128xf32>
    %c1_76 = arith.constant 1 : index
    %c0_77 = arith.constant 0 : index
    %c0_78 = arith.constant 0 : index
    %189 = vector.load %arg9[%c1_76, %c0_77, %c0_78] : memref<3x128x256xbf16, #tpu.memory_space<vmem>>, vector<1x128x256xbf16>
    %190 = vector.shape_cast %189 : vector<1x128x256xbf16> to vector<128x256xbf16>
    %c1_79 = arith.constant 1 : index
    %c0_80 = arith.constant 0 : index
    %c0_81 = arith.constant 0 : index
    %191 = vector.load %arg10[%c1_79, %c0_80, %c0_81] : memref<3x1x256xf32, #tpu.memory_space<vmem>>, vector<1x1x256xf32>
    %192 = vector.shape_cast %191 : vector<1x1x256xf32> to vector<1x256xf32>
    %c1_82 = arith.constant 1 : index
    %c0_83 = arith.constant 0 : index
    %c0_84 = arith.constant 0 : index
    %193 = vector.load %arg11[%c1_82, %c0_83, %c0_84] : memref<3x256x128xbf16, #tpu.memory_space<vmem>>, vector<1x256x128xbf16>
    %194 = vector.shape_cast %193 : vector<1x256x128xbf16> to vector<256x128xbf16>
    %c1_85 = arith.constant 1 : index
    %c0_86 = arith.constant 0 : index
    %c0_87 = arith.constant 0 : index
    %195 = vector.load %arg12[%c1_85, %c0_86, %c0_87] : memref<3x1x128xf32, #tpu.memory_space<vmem>>, vector<1x1x128xf32>
    %196 = vector.shape_cast %195 : vector<1x1x128xf32> to vector<1x128xf32>
    %c1_88 = arith.constant 1 : index
    %c0_89 = arith.constant 0 : index
    %c0_90 = arith.constant 0 : index
    %197 = vector.load %arg13[%c1_88, %c0_89, %c0_90] : memref<3x1x128xf32, #tpu.memory_space<vmem>>, vector<1x1x128xf32>
    %198 = vector.shape_cast %197 : vector<1x1x128xf32> to vector<1x128xf32>
    %c1_91 = arith.constant 1 : index
    %c0_92 = arith.constant 0 : index
    %c0_93 = arith.constant 0 : index
    %199 = vector.load %arg14[%c1_91, %c0_92, %c0_93] : memref<3x1x128xf32, #tpu.memory_space<vmem>>, vector<1x1x128xf32>
    %200 = vector.shape_cast %199 : vector<1x1x128xf32> to vector<1x128xf32>
    %c1_94 = arith.constant 1 : index
    %c0_95 = arith.constant 0 : index
    %c0_96 = arith.constant 0 : index
    %201 = vector.load %arg15[%c1_94, %c0_95, %c0_96] : memref<3x1x128xf32, #tpu.memory_space<vmem>>, vector<1x1x128xf32>
    %202 = vector.shape_cast %201 : vector<1x1x128xf32> to vector<1x128xf32>
    %c1_97 = arith.constant 1 : index
    %c0_98 = arith.constant 0 : index
    %c0_99 = arith.constant 0 : index
    %203 = vector.load %arg16[%c1_97, %c0_98, %c0_99] : memref<3x1x128xf32, #tpu.memory_space<vmem>>, vector<1x1x128xf32>
    %204 = vector.shape_cast %203 : vector<1x1x128xf32> to vector<1x128xf32>
    %205 = arith.truncf %180 : vector<8x128xf32> to vector<8x128xbf16>
    %cst_100 = arith.constant dense<0.000000e+00> : vector<8x384xf32>
    %206 = tpu.matmul %205, %182, %cst_100 {dimension_numbers = #tpu.dot_dimension_numbers<[1], [0], [0], [1], [0, 0, 1, 1], [], []>} : vector<8x128xbf16>, vector<128x384xbf16>, vector<8x384xf32> -> vector<8x384xf32>
    %207 = vector.broadcast %184 : vector<1x384xf32> to vector<8x384xf32>
    %208 = arith.addf %206, %207 : vector<8x384xf32>
    %209 = arith.truncf %208 : vector<8x384xf32> to vector<8x384xbf16>
    %210 = vector.extract_strided_slice %209 {offsets = [0, 0], sizes = [8, 16], strides = [1, 1]} : vector<8x384xbf16> to vector<8x16xbf16>
    %211 = vector.extract_strided_slice %209 {offsets = [0, 16], sizes = [8, 16], strides = [1, 1]} : vector<8x384xbf16> to vector<8x16xbf16>
    %212 = vector.extract_strided_slice %209 {offsets = [0, 32], sizes = [8, 16], strides = [1, 1]} : vector<8x384xbf16> to vector<8x16xbf16>
    %213 = vector.extract_strided_slice %209 {offsets = [0, 48], sizes = [8, 16], strides = [1, 1]} : vector<8x384xbf16> to vector<8x16xbf16>
    %214 = vector.extract_strided_slice %209 {offsets = [0, 64], sizes = [8, 16], strides = [1, 1]} : vector<8x384xbf16> to vector<8x16xbf16>
    %215 = vector.extract_strided_slice %209 {offsets = [0, 80], sizes = [8, 16], strides = [1, 1]} : vector<8x384xbf16> to vector<8x16xbf16>
    %216 = vector.extract_strided_slice %209 {offsets = [0, 96], sizes = [8, 16], strides = [1, 1]} : vector<8x384xbf16> to vector<8x16xbf16>
    %217 = vector.extract_strided_slice %209 {offsets = [0, 112], sizes = [8, 16], strides = [1, 1]} : vector<8x384xbf16> to vector<8x16xbf16>
    %218 = vector.shape_cast %210 : vector<8x16xbf16> to vector<1x8x16xbf16>
    %219 = vector.shape_cast %211 : vector<8x16xbf16> to vector<1x8x16xbf16>
    %220 = vector.shape_cast %212 : vector<8x16xbf16> to vector<1x8x16xbf16>
    %221 = vector.shape_cast %213 : vector<8x16xbf16> to vector<1x8x16xbf16>
    %222 = vector.shape_cast %214 : vector<8x16xbf16> to vector<1x8x16xbf16>
    %223 = vector.shape_cast %215 : vector<8x16xbf16> to vector<1x8x16xbf16>
    %224 = vector.shape_cast %216 : vector<8x16xbf16> to vector<1x8x16xbf16>
    %225 = vector.shape_cast %217 : vector<8x16xbf16> to vector<1x8x16xbf16>
    %226 = tpu.concatenate %218, %219, %220, %221, %222, %223, %224, %225 in 0 : vector<1x8x16xbf16>, vector<1x8x16xbf16>, vector<1x8x16xbf16>, vector<1x8x16xbf16>, vector<1x8x16xbf16>, vector<1x8x16xbf16>, vector<1x8x16xbf16>, vector<1x8x16xbf16> -> vector<8x8x16xbf16>
    %227 = vector.extract_strided_slice %209 {offsets = [0, 128], sizes = [8, 16], strides = [1, 1]} : vector<8x384xbf16> to vector<8x16xbf16>
    %228 = vector.extract_strided_slice %209 {offsets = [0, 144], sizes = [8, 16], strides = [1, 1]} : vector<8x384xbf16> to vector<8x16xbf16>
    %229 = vector.extract_strided_slice %209 {offsets = [0, 160], sizes = [8, 16], strides = [1, 1]} : vector<8x384xbf16> to vector<8x16xbf16>
    %230 = vector.extract_strided_slice %209 {offsets = [0, 176], sizes = [8, 16], strides = [1, 1]} : vector<8x384xbf16> to vector<8x16xbf16>
    %231 = vector.extract_strided_slice %209 {offsets = [0, 192], sizes = [8, 16], strides = [1, 1]} : vector<8x384xbf16> to vector<8x16xbf16>
    %232 = vector.extract_strided_slice %209 {offsets = [0, 208], sizes = [8, 16], strides = [1, 1]} : vector<8x384xbf16> to vector<8x16xbf16>
    %233 = vector.extract_strided_slice %209 {offsets = [0, 224], sizes = [8, 16], strides = [1, 1]} : vector<8x384xbf16> to vector<8x16xbf16>
    %234 = vector.extract_strided_slice %209 {offsets = [0, 240], sizes = [8, 16], strides = [1, 1]} : vector<8x384xbf16> to vector<8x16xbf16>
    %235 = vector.shape_cast %227 : vector<8x16xbf16> to vector<1x8x16xbf16>
    %236 = vector.shape_cast %228 : vector<8x16xbf16> to vector<1x8x16xbf16>
    %237 = vector.shape_cast %229 : vector<8x16xbf16> to vector<1x8x16xbf16>
    %238 = vector.shape_cast %230 : vector<8x16xbf16> to vector<1x8x16xbf16>
    %239 = vector.shape_cast %231 : vector<8x16xbf16> to vector<1x8x16xbf16>
    %240 = vector.shape_cast %232 : vector<8x16xbf16> to vector<1x8x16xbf16>
    %241 = vector.shape_cast %233 : vector<8x16xbf16> to vector<1x8x16xbf16>
    %242 = vector.shape_cast %234 : vector<8x16xbf16> to vector<1x8x16xbf16>
    %243 = tpu.concatenate %235, %236, %237, %238, %239, %240, %241, %242 in 0 : vector<1x8x16xbf16>, vector<1x8x16xbf16>, vector<1x8x16xbf16>, vector<1x8x16xbf16>, vector<1x8x16xbf16>, vector<1x8x16xbf16>, vector<1x8x16xbf16>, vector<1x8x16xbf16> -> vector<8x8x16xbf16>
    %244 = vector.extract_strided_slice %209 {offsets = [0, 256], sizes = [8, 16], strides = [1, 1]} : vector<8x384xbf16> to vector<8x16xbf16>
    %245 = vector.extract_strided_slice %209 {offsets = [0, 272], sizes = [8, 16], strides = [1, 1]} : vector<8x384xbf16> to vector<8x16xbf16>
    %246 = vector.extract_strided_slice %209 {offsets = [0, 288], sizes = [8, 16], strides = [1, 1]} : vector<8x384xbf16> to vector<8x16xbf16>
    %247 = vector.extract_strided_slice %209 {offsets = [0, 304], sizes = [8, 16], strides = [1, 1]} : vector<8x384xbf16> to vector<8x16xbf16>
    %248 = vector.extract_strided_slice %209 {offsets = [0, 320], sizes = [8, 16], strides = [1, 1]} : vector<8x384xbf16> to vector<8x16xbf16>
    %249 = vector.extract_strided_slice %209 {offsets = [0, 336], sizes = [8, 16], strides = [1, 1]} : vector<8x384xbf16> to vector<8x16xbf16>
    %250 = vector.extract_strided_slice %209 {offsets = [0, 352], sizes = [8, 16], strides = [1, 1]} : vector<8x384xbf16> to vector<8x16xbf16>
    %251 = vector.extract_strided_slice %209 {offsets = [0, 368], sizes = [8, 16], strides = [1, 1]} : vector<8x384xbf16> to vector<8x16xbf16>
    %252 = vector.shape_cast %244 : vector<8x16xbf16> to vector<1x8x16xbf16>
    %253 = vector.shape_cast %245 : vector<8x16xbf16> to vector<1x8x16xbf16>
    %254 = vector.shape_cast %246 : vector<8x16xbf16> to vector<1x8x16xbf16>
    %255 = vector.shape_cast %247 : vector<8x16xbf16> to vector<1x8x16xbf16>
    %256 = vector.shape_cast %248 : vector<8x16xbf16> to vector<1x8x16xbf16>
    %257 = vector.shape_cast %249 : vector<8x16xbf16> to vector<1x8x16xbf16>
    %258 = vector.shape_cast %250 : vector<8x16xbf16> to vector<1x8x16xbf16>
    %259 = vector.shape_cast %251 : vector<8x16xbf16> to vector<1x8x16xbf16>
    %260 = tpu.concatenate %252, %253, %254, %255, %256, %257, %258, %259 in 0 : vector<1x8x16xbf16>, vector<1x8x16xbf16>, vector<1x8x16xbf16>, vector<1x8x16xbf16>, vector<1x8x16xbf16>, vector<1x8x16xbf16>, vector<1x8x16xbf16>, vector<1x8x16xbf16> -> vector<8x8x16xbf16>
    %cst_101 = arith.constant dense<0.000000e+00> : vector<8x8x8xf32>
    %261 = tpu.matmul %226, %243, %cst_101 {dimension_numbers = #tpu.dot_dimension_numbers<[2], [2], [1], [1], [0, 0, 0, 1, 1, 1], [0], [0]>} : vector<8x8x16xbf16>, vector<8x8x16xbf16>, vector<8x8x8xf32> -> vector<8x8x8xf32>
    %262 = vector.shape_cast %10 : vector<1x1x8xf32> to vector<1x8xf32>
    %263 = vector.shape_cast %262 : vector<1x8xf32> to vector<1x1x8xf32>
    %264 = vector.broadcast %263 : vector<1x1x8xf32> to vector<8x8x8xf32>
    %265 = arith.addf %261, %264 : vector<8x8x8xf32>
    %cst_102 = arith.constant dense<0xFF800000> : vector<8x8xf32>
    %266 = vector.multi_reduction <maximumf>, %265, %cst_102 [2] : vector<8x8x8xf32> to vector<8x8xf32>
    %267 = vector.shape_cast %266 : vector<8x8xf32> to vector<8x8x1xf32>
    %268 = vector.broadcast %267 : vector<8x8x1xf32> to vector<8x8x8xf32>
    %269 = arith.subf %265, %268 : vector<8x8x8xf32>
    %270 = math.exp %269 : vector<8x8x8xf32>
    %cst_103 = arith.constant dense<0.000000e+00> : vector<8x8xf32>
    %271 = vector.multi_reduction <add>, %270, %cst_103 [2] : vector<8x8x8xf32> to vector<8x8xf32>
    %272 = vector.shape_cast %271 : vector<8x8xf32> to vector<8x8x1xf32>
    %273 = tpu.reciprocal %272 {approx = true} : vector<8x8x1xf32> -> vector<8x8x1xf32>
    %274 = vector.broadcast %273 : vector<8x8x1xf32> to vector<8x8x8xf32>
    %275 = arith.mulf %270, %274 : vector<8x8x8xf32>
    %276 = arith.truncf %275 : vector<8x8x8xf32> to vector<8x8x8xbf16>
    %cst_104 = arith.constant dense<0.000000e+00> : vector<8x8x16xf32>
    %277 = tpu.matmul %276, %260, %cst_104 {dimension_numbers = #tpu.dot_dimension_numbers<[2], [1], [1], [2], [0, 0, 0, 1, 1, 2], [0], [0]>} : vector<8x8x8xbf16>, vector<8x8x16xbf16>, vector<8x8x16xf32> -> vector<8x8x16xf32>
    %278 = vector.extract_strided_slice %277 {offsets = [0, 0, 0], sizes = [1, 8, 16], strides = [1, 1, 1]} : vector<8x8x16xf32> to vector<1x8x16xf32>
    %279 = vector.shape_cast %278 : vector<1x8x16xf32> to vector<8x16xf32>
    %280 = vector.extract_strided_slice %277 {offsets = [1, 0, 0], sizes = [1, 8, 16], strides = [1, 1, 1]} : vector<8x8x16xf32> to vector<1x8x16xf32>
    %281 = vector.shape_cast %280 : vector<1x8x16xf32> to vector<8x16xf32>
    %282 = vector.extract_strided_slice %277 {offsets = [2, 0, 0], sizes = [1, 8, 16], strides = [1, 1, 1]} : vector<8x8x16xf32> to vector<1x8x16xf32>
    %283 = vector.shape_cast %282 : vector<1x8x16xf32> to vector<8x16xf32>
    %284 = vector.extract_strided_slice %277 {offsets = [3, 0, 0], sizes = [1, 8, 16], strides = [1, 1, 1]} : vector<8x8x16xf32> to vector<1x8x16xf32>
    %285 = vector.shape_cast %284 : vector<1x8x16xf32> to vector<8x16xf32>
    %286 = vector.extract_strided_slice %277 {offsets = [4, 0, 0], sizes = [1, 8, 16], strides = [1, 1, 1]} : vector<8x8x16xf32> to vector<1x8x16xf32>
    %287 = vector.shape_cast %286 : vector<1x8x16xf32> to vector<8x16xf32>
    %288 = vector.extract_strided_slice %277 {offsets = [5, 0, 0], sizes = [1, 8, 16], strides = [1, 1, 1]} : vector<8x8x16xf32> to vector<1x8x16xf32>
    %289 = vector.shape_cast %288 : vector<1x8x16xf32> to vector<8x16xf32>
    %290 = vector.extract_strided_slice %277 {offsets = [6, 0, 0], sizes = [1, 8, 16], strides = [1, 1, 1]} : vector<8x8x16xf32> to vector<1x8x16xf32>
    %291 = vector.shape_cast %290 : vector<1x8x16xf32> to vector<8x16xf32>
    %292 = vector.extract_strided_slice %277 {offsets = [7, 0, 0], sizes = [1, 8, 16], strides = [1, 1, 1]} : vector<8x8x16xf32> to vector<1x8x16xf32>
    %293 = vector.shape_cast %292 : vector<1x8x16xf32> to vector<8x16xf32>
    %294 = tpu.concatenate %279, %281, %283, %285, %287, %289, %291, %293 in 1 : vector<8x16xf32>, vector<8x16xf32>, vector<8x16xf32>, vector<8x16xf32>, vector<8x16xf32>, vector<8x16xf32>, vector<8x16xf32>, vector<8x16xf32> -> vector<8x128xf32>
    %295 = arith.truncf %294 : vector<8x128xf32> to vector<8x128xbf16>
    %cst_105 = arith.constant dense<0.000000e+00> : vector<8x128xf32>
    %296 = tpu.matmul %295, %186, %cst_105 {dimension_numbers = #tpu.dot_dimension_numbers<[1], [0], [0], [1], [0, 0, 1, 1], [], []>} : vector<8x128xbf16>, vector<128x128xbf16>, vector<8x128xf32> -> vector<8x128xf32>
    %297 = vector.broadcast %188 : vector<1x128xf32> to vector<8x128xf32>
    %298 = arith.addf %296, %297 : vector<8x128xf32>
    %299 = arith.addf %180, %298 : vector<8x128xf32>
    %cst_106 = arith.constant dense<0.000000e+00> : vector<8xf32>
    %300 = vector.multi_reduction <add>, %299, %cst_106 [1] : vector<8x128xf32> to vector<8xf32>
    %301 = vector.shape_cast %300 : vector<8xf32> to vector<8x1xf32>
    %cst_107 = arith.constant 1.280000e+02 : f32
    %302 = vector.broadcast %cst_107 : f32 to vector<8x1xf32>
    %303 = arith.divf %301, %302 : vector<8x1xf32>
    %304 = vector.broadcast %303 : vector<8x1xf32> to vector<8x128xf32>
    %305 = arith.subf %299, %304 : vector<8x128xf32>
    %306 = arith.mulf %305, %305 : vector<8x128xf32>
    %cst_108 = arith.constant dense<0.000000e+00> : vector<8xf32>
    %307 = vector.multi_reduction <add>, %306, %cst_108 [1] : vector<8x128xf32> to vector<8xf32>
    %308 = vector.shape_cast %307 : vector<8xf32> to vector<8x1xf32>
    %cst_109 = arith.constant 1.280000e+02 : f32
    %309 = vector.broadcast %cst_109 : f32 to vector<8x1xf32>
    %310 = arith.divf %308, %309 : vector<8x1xf32>
    %cst_110 = arith.constant 9.99999974E-6 : f32
    %311 = vector.broadcast %cst_110 : f32 to vector<8x1xf32>
    %312 = arith.addf %310, %311 : vector<8x1xf32>
    %313 = math.rsqrt %312 : vector<8x1xf32>
    %314 = vector.broadcast %313 : vector<8x1xf32> to vector<8x128xf32>
    %315 = arith.mulf %305, %314 : vector<8x128xf32>
    %316 = vector.broadcast %198 : vector<1x128xf32> to vector<8x128xf32>
    %317 = arith.mulf %315, %316 : vector<8x128xf32>
    %318 = vector.broadcast %200 : vector<1x128xf32> to vector<8x128xf32>
    %319 = arith.addf %317, %318 : vector<8x128xf32>
    %320 = arith.truncf %319 : vector<8x128xf32> to vector<8x128xbf16>
    %cst_111 = arith.constant dense<0.000000e+00> : vector<8x256xf32>
    %321 = tpu.matmul %320, %190, %cst_111 {dimension_numbers = #tpu.dot_dimension_numbers<[1], [0], [0], [1], [0, 0, 1, 1], [], []>} : vector<8x128xbf16>, vector<128x256xbf16>, vector<8x256xf32> -> vector<8x256xf32>
    %322 = vector.broadcast %192 : vector<1x256xf32> to vector<8x256xf32>
    %323 = arith.addf %321, %322 : vector<8x256xf32>
    %cst_112 = arith.constant 0.000000e+00 : f32
    %324 = vector.broadcast %cst_112 : f32 to vector<8x256xf32>
    %325 = arith.maximumf %323, %324 : vector<8x256xf32>
    %326 = arith.truncf %325 : vector<8x256xf32> to vector<8x256xbf16>
    %cst_113 = arith.constant dense<0.000000e+00> : vector<8x128xf32>
    %327 = tpu.matmul %326, %194, %cst_113 {dimension_numbers = #tpu.dot_dimension_numbers<[1], [0], [0], [1], [0, 0, 1, 1], [], []>} : vector<8x256xbf16>, vector<256x128xbf16>, vector<8x128xf32> -> vector<8x128xf32>
    %328 = vector.broadcast %196 : vector<1x128xf32> to vector<8x128xf32>
    %329 = arith.addf %327, %328 : vector<8x128xf32>
    %330 = arith.addf %319, %329 : vector<8x128xf32>
    %cst_114 = arith.constant dense<0.000000e+00> : vector<8xf32>
    %331 = vector.multi_reduction <add>, %330, %cst_114 [1] : vector<8x128xf32> to vector<8xf32>
    %332 = vector.shape_cast %331 : vector<8xf32> to vector<8x1xf32>
    %cst_115 = arith.constant 1.280000e+02 : f32
    %333 = vector.broadcast %cst_115 : f32 to vector<8x1xf32>
    %334 = arith.divf %332, %333 : vector<8x1xf32>
    %335 = vector.broadcast %334 : vector<8x1xf32> to vector<8x128xf32>
    %336 = arith.subf %330, %335 : vector<8x128xf32>
    %337 = arith.mulf %336, %336 : vector<8x128xf32>
    %cst_116 = arith.constant dense<0.000000e+00> : vector<8xf32>
    %338 = vector.multi_reduction <add>, %337, %cst_116 [1] : vector<8x128xf32> to vector<8xf32>
    %339 = vector.shape_cast %338 : vector<8xf32> to vector<8x1xf32>
    %cst_117 = arith.constant 1.280000e+02 : f32
    %340 = vector.broadcast %cst_117 : f32 to vector<8x1xf32>
    %341 = arith.divf %339, %340 : vector<8x1xf32>
    %cst_118 = arith.constant 9.99999974E-6 : f32
    %342 = vector.broadcast %cst_118 : f32 to vector<8x1xf32>
    %343 = arith.addf %341, %342 : vector<8x1xf32>
    %344 = math.rsqrt %343 : vector<8x1xf32>
    %345 = vector.broadcast %344 : vector<8x1xf32> to vector<8x128xf32>
    %346 = arith.mulf %336, %345 : vector<8x128xf32>
    %347 = vector.broadcast %202 : vector<1x128xf32> to vector<8x128xf32>
    %348 = arith.mulf %346, %347 : vector<8x128xf32>
    %349 = vector.broadcast %204 : vector<1x128xf32> to vector<8x128xf32>
    %350 = arith.addf %348, %349 : vector<8x128xf32>
    %c2 = arith.constant 2 : index
    %c0_119 = arith.constant 0 : index
    %c0_120 = arith.constant 0 : index
    %351 = vector.load %arg5[%c2, %c0_119, %c0_120] : memref<3x128x384xbf16, #tpu.memory_space<vmem>>, vector<1x128x384xbf16>
    %352 = vector.shape_cast %351 : vector<1x128x384xbf16> to vector<128x384xbf16>
    %c2_121 = arith.constant 2 : index
    %c0_122 = arith.constant 0 : index
    %c0_123 = arith.constant 0 : index
    %353 = vector.load %arg6[%c2_121, %c0_122, %c0_123] : memref<3x1x384xf32, #tpu.memory_space<vmem>>, vector<1x1x384xf32>
    %354 = vector.shape_cast %353 : vector<1x1x384xf32> to vector<1x384xf32>
    %c2_124 = arith.constant 2 : index
    %c0_125 = arith.constant 0 : index
    %c0_126 = arith.constant 0 : index
    %355 = vector.load %arg7[%c2_124, %c0_125, %c0_126] : memref<3x128x128xbf16, #tpu.memory_space<vmem>>, vector<1x128x128xbf16>
    %356 = vector.shape_cast %355 : vector<1x128x128xbf16> to vector<128x128xbf16>
    %c2_127 = arith.constant 2 : index
    %c0_128 = arith.constant 0 : index
    %c0_129 = arith.constant 0 : index
    %357 = vector.load %arg8[%c2_127, %c0_128, %c0_129] : memref<3x1x128xf32, #tpu.memory_space<vmem>>, vector<1x1x128xf32>
    %358 = vector.shape_cast %357 : vector<1x1x128xf32> to vector<1x128xf32>
    %c2_130 = arith.constant 2 : index
    %c0_131 = arith.constant 0 : index
    %c0_132 = arith.constant 0 : index
    %359 = vector.load %arg9[%c2_130, %c0_131, %c0_132] : memref<3x128x256xbf16, #tpu.memory_space<vmem>>, vector<1x128x256xbf16>
    %360 = vector.shape_cast %359 : vector<1x128x256xbf16> to vector<128x256xbf16>
    %c2_133 = arith.constant 2 : index
    %c0_134 = arith.constant 0 : index
    %c0_135 = arith.constant 0 : index
    %361 = vector.load %arg10[%c2_133, %c0_134, %c0_135] : memref<3x1x256xf32, #tpu.memory_space<vmem>>, vector<1x1x256xf32>
    %362 = vector.shape_cast %361 : vector<1x1x256xf32> to vector<1x256xf32>
    %c2_136 = arith.constant 2 : index
    %c0_137 = arith.constant 0 : index
    %c0_138 = arith.constant 0 : index
    %363 = vector.load %arg11[%c2_136, %c0_137, %c0_138] : memref<3x256x128xbf16, #tpu.memory_space<vmem>>, vector<1x256x128xbf16>
    %364 = vector.shape_cast %363 : vector<1x256x128xbf16> to vector<256x128xbf16>
    %c2_139 = arith.constant 2 : index
    %c0_140 = arith.constant 0 : index
    %c0_141 = arith.constant 0 : index
    %365 = vector.load %arg12[%c2_139, %c0_140, %c0_141] : memref<3x1x128xf32, #tpu.memory_space<vmem>>, vector<1x1x128xf32>
    %366 = vector.shape_cast %365 : vector<1x1x128xf32> to vector<1x128xf32>
    %c2_142 = arith.constant 2 : index
    %c0_143 = arith.constant 0 : index
    %c0_144 = arith.constant 0 : index
    %367 = vector.load %arg13[%c2_142, %c0_143, %c0_144] : memref<3x1x128xf32, #tpu.memory_space<vmem>>, vector<1x1x128xf32>
    %368 = vector.shape_cast %367 : vector<1x1x128xf32> to vector<1x128xf32>
    %c2_145 = arith.constant 2 : index
    %c0_146 = arith.constant 0 : index
    %c0_147 = arith.constant 0 : index
    %369 = vector.load %arg14[%c2_145, %c0_146, %c0_147] : memref<3x1x128xf32, #tpu.memory_space<vmem>>, vector<1x1x128xf32>
    %370 = vector.shape_cast %369 : vector<1x1x128xf32> to vector<1x128xf32>
    %c2_148 = arith.constant 2 : index
    %c0_149 = arith.constant 0 : index
    %c0_150 = arith.constant 0 : index
    %371 = vector.load %arg15[%c2_148, %c0_149, %c0_150] : memref<3x1x128xf32, #tpu.memory_space<vmem>>, vector<1x1x128xf32>
    %372 = vector.shape_cast %371 : vector<1x1x128xf32> to vector<1x128xf32>
    %c2_151 = arith.constant 2 : index
    %c0_152 = arith.constant 0 : index
    %c0_153 = arith.constant 0 : index
    %373 = vector.load %arg16[%c2_151, %c0_152, %c0_153] : memref<3x1x128xf32, #tpu.memory_space<vmem>>, vector<1x1x128xf32>
    %374 = vector.shape_cast %373 : vector<1x1x128xf32> to vector<1x128xf32>
    %375 = arith.truncf %350 : vector<8x128xf32> to vector<8x128xbf16>
    %cst_154 = arith.constant dense<0.000000e+00> : vector<8x384xf32>
    %376 = tpu.matmul %375, %352, %cst_154 {dimension_numbers = #tpu.dot_dimension_numbers<[1], [0], [0], [1], [0, 0, 1, 1], [], []>} : vector<8x128xbf16>, vector<128x384xbf16>, vector<8x384xf32> -> vector<8x384xf32>
    %377 = vector.broadcast %354 : vector<1x384xf32> to vector<8x384xf32>
    %378 = arith.addf %376, %377 : vector<8x384xf32>
    %379 = arith.truncf %378 : vector<8x384xf32> to vector<8x384xbf16>
    %380 = vector.extract_strided_slice %379 {offsets = [0, 0], sizes = [8, 16], strides = [1, 1]} : vector<8x384xbf16> to vector<8x16xbf16>
    %381 = vector.extract_strided_slice %379 {offsets = [0, 16], sizes = [8, 16], strides = [1, 1]} : vector<8x384xbf16> to vector<8x16xbf16>
    %382 = vector.extract_strided_slice %379 {offsets = [0, 32], sizes = [8, 16], strides = [1, 1]} : vector<8x384xbf16> to vector<8x16xbf16>
    %383 = vector.extract_strided_slice %379 {offsets = [0, 48], sizes = [8, 16], strides = [1, 1]} : vector<8x384xbf16> to vector<8x16xbf16>
    %384 = vector.extract_strided_slice %379 {offsets = [0, 64], sizes = [8, 16], strides = [1, 1]} : vector<8x384xbf16> to vector<8x16xbf16>
    %385 = vector.extract_strided_slice %379 {offsets = [0, 80], sizes = [8, 16], strides = [1, 1]} : vector<8x384xbf16> to vector<8x16xbf16>
    %386 = vector.extract_strided_slice %379 {offsets = [0, 96], sizes = [8, 16], strides = [1, 1]} : vector<8x384xbf16> to vector<8x16xbf16>
    %387 = vector.extract_strided_slice %379 {offsets = [0, 112], sizes = [8, 16], strides = [1, 1]} : vector<8x384xbf16> to vector<8x16xbf16>
    %388 = vector.shape_cast %380 : vector<8x16xbf16> to vector<1x8x16xbf16>
    %389 = vector.shape_cast %381 : vector<8x16xbf16> to vector<1x8x16xbf16>
    %390 = vector.shape_cast %382 : vector<8x16xbf16> to vector<1x8x16xbf16>
    %391 = vector.shape_cast %383 : vector<8x16xbf16> to vector<1x8x16xbf16>
    %392 = vector.shape_cast %384 : vector<8x16xbf16> to vector<1x8x16xbf16>
    %393 = vector.shape_cast %385 : vector<8x16xbf16> to vector<1x8x16xbf16>
    %394 = vector.shape_cast %386 : vector<8x16xbf16> to vector<1x8x16xbf16>
    %395 = vector.shape_cast %387 : vector<8x16xbf16> to vector<1x8x16xbf16>
    %396 = tpu.concatenate %388, %389, %390, %391, %392, %393, %394, %395 in 0 : vector<1x8x16xbf16>, vector<1x8x16xbf16>, vector<1x8x16xbf16>, vector<1x8x16xbf16>, vector<1x8x16xbf16>, vector<1x8x16xbf16>, vector<1x8x16xbf16>, vector<1x8x16xbf16> -> vector<8x8x16xbf16>
    %397 = vector.extract_strided_slice %379 {offsets = [0, 128], sizes = [8, 16], strides = [1, 1]} : vector<8x384xbf16> to vector<8x16xbf16>
    %398 = vector.extract_strided_slice %379 {offsets = [0, 144], sizes = [8, 16], strides = [1, 1]} : vector<8x384xbf16> to vector<8x16xbf16>
    %399 = vector.extract_strided_slice %379 {offsets = [0, 160], sizes = [8, 16], strides = [1, 1]} : vector<8x384xbf16> to vector<8x16xbf16>
    %400 = vector.extract_strided_slice %379 {offsets = [0, 176], sizes = [8, 16], strides = [1, 1]} : vector<8x384xbf16> to vector<8x16xbf16>
    %401 = vector.extract_strided_slice %379 {offsets = [0, 192], sizes = [8, 16], strides = [1, 1]} : vector<8x384xbf16> to vector<8x16xbf16>
    %402 = vector.extract_strided_slice %379 {offsets = [0, 208], sizes = [8, 16], strides = [1, 1]} : vector<8x384xbf16> to vector<8x16xbf16>
    %403 = vector.extract_strided_slice %379 {offsets = [0, 224], sizes = [8, 16], strides = [1, 1]} : vector<8x384xbf16> to vector<8x16xbf16>
    %404 = vector.extract_strided_slice %379 {offsets = [0, 240], sizes = [8, 16], strides = [1, 1]} : vector<8x384xbf16> to vector<8x16xbf16>
    %405 = vector.shape_cast %397 : vector<8x16xbf16> to vector<1x8x16xbf16>
    %406 = vector.shape_cast %398 : vector<8x16xbf16> to vector<1x8x16xbf16>
    %407 = vector.shape_cast %399 : vector<8x16xbf16> to vector<1x8x16xbf16>
    %408 = vector.shape_cast %400 : vector<8x16xbf16> to vector<1x8x16xbf16>
    %409 = vector.shape_cast %401 : vector<8x16xbf16> to vector<1x8x16xbf16>
    %410 = vector.shape_cast %402 : vector<8x16xbf16> to vector<1x8x16xbf16>
    %411 = vector.shape_cast %403 : vector<8x16xbf16> to vector<1x8x16xbf16>
    %412 = vector.shape_cast %404 : vector<8x16xbf16> to vector<1x8x16xbf16>
    %413 = tpu.concatenate %405, %406, %407, %408, %409, %410, %411, %412 in 0 : vector<1x8x16xbf16>, vector<1x8x16xbf16>, vector<1x8x16xbf16>, vector<1x8x16xbf16>, vector<1x8x16xbf16>, vector<1x8x16xbf16>, vector<1x8x16xbf16>, vector<1x8x16xbf16> -> vector<8x8x16xbf16>
    %414 = vector.extract_strided_slice %379 {offsets = [0, 256], sizes = [8, 16], strides = [1, 1]} : vector<8x384xbf16> to vector<8x16xbf16>
    %415 = vector.extract_strided_slice %379 {offsets = [0, 272], sizes = [8, 16], strides = [1, 1]} : vector<8x384xbf16> to vector<8x16xbf16>
    %416 = vector.extract_strided_slice %379 {offsets = [0, 288], sizes = [8, 16], strides = [1, 1]} : vector<8x384xbf16> to vector<8x16xbf16>
    %417 = vector.extract_strided_slice %379 {offsets = [0, 304], sizes = [8, 16], strides = [1, 1]} : vector<8x384xbf16> to vector<8x16xbf16>
    %418 = vector.extract_strided_slice %379 {offsets = [0, 320], sizes = [8, 16], strides = [1, 1]} : vector<8x384xbf16> to vector<8x16xbf16>
    %419 = vector.extract_strided_slice %379 {offsets = [0, 336], sizes = [8, 16], strides = [1, 1]} : vector<8x384xbf16> to vector<8x16xbf16>
    %420 = vector.extract_strided_slice %379 {offsets = [0, 352], sizes = [8, 16], strides = [1, 1]} : vector<8x384xbf16> to vector<8x16xbf16>
    %421 = vector.extract_strided_slice %379 {offsets = [0, 368], sizes = [8, 16], strides = [1, 1]} : vector<8x384xbf16> to vector<8x16xbf16>
    %422 = vector.shape_cast %414 : vector<8x16xbf16> to vector<1x8x16xbf16>
    %423 = vector.shape_cast %415 : vector<8x16xbf16> to vector<1x8x16xbf16>
    %424 = vector.shape_cast %416 : vector<8x16xbf16> to vector<1x8x16xbf16>
    %425 = vector.shape_cast %417 : vector<8x16xbf16> to vector<1x8x16xbf16>
    %426 = vector.shape_cast %418 : vector<8x16xbf16> to vector<1x8x16xbf16>
    %427 = vector.shape_cast %419 : vector<8x16xbf16> to vector<1x8x16xbf16>
    %428 = vector.shape_cast %420 : vector<8x16xbf16> to vector<1x8x16xbf16>
    %429 = vector.shape_cast %421 : vector<8x16xbf16> to vector<1x8x16xbf16>
    %430 = tpu.concatenate %422, %423, %424, %425, %426, %427, %428, %429 in 0 : vector<1x8x16xbf16>, vector<1x8x16xbf16>, vector<1x8x16xbf16>, vector<1x8x16xbf16>, vector<1x8x16xbf16>, vector<1x8x16xbf16>, vector<1x8x16xbf16>, vector<1x8x16xbf16> -> vector<8x8x16xbf16>
    %cst_155 = arith.constant dense<0.000000e+00> : vector<8x8x8xf32>
    %431 = tpu.matmul %396, %413, %cst_155 {dimension_numbers = #tpu.dot_dimension_numbers<[2], [2], [1], [1], [0, 0, 0, 1, 1, 1], [0], [0]>} : vector<8x8x16xbf16>, vector<8x8x16xbf16>, vector<8x8x8xf32> -> vector<8x8x8xf32>
    %432 = vector.shape_cast %10 : vector<1x1x8xf32> to vector<1x8xf32>
    %433 = vector.shape_cast %432 : vector<1x8xf32> to vector<1x1x8xf32>
    %434 = vector.broadcast %433 : vector<1x1x8xf32> to vector<8x8x8xf32>
    %435 = arith.addf %431, %434 : vector<8x8x8xf32>
    %cst_156 = arith.constant dense<0xFF800000> : vector<8x8xf32>
    %436 = vector.multi_reduction <maximumf>, %435, %cst_156 [2] : vector<8x8x8xf32> to vector<8x8xf32>
    %437 = vector.shape_cast %436 : vector<8x8xf32> to vector<8x8x1xf32>
    %438 = vector.broadcast %437 : vector<8x8x1xf32> to vector<8x8x8xf32>
    %439 = arith.subf %435, %438 : vector<8x8x8xf32>
    %440 = math.exp %439 : vector<8x8x8xf32>
    %cst_157 = arith.constant dense<0.000000e+00> : vector<8x8xf32>
    %441 = vector.multi_reduction <add>, %440, %cst_157 [2] : vector<8x8x8xf32> to vector<8x8xf32>
    %442 = vector.shape_cast %441 : vector<8x8xf32> to vector<8x8x1xf32>
    %443 = tpu.reciprocal %442 {approx = true} : vector<8x8x1xf32> -> vector<8x8x1xf32>
    %444 = vector.broadcast %443 : vector<8x8x1xf32> to vector<8x8x8xf32>
    %445 = arith.mulf %440, %444 : vector<8x8x8xf32>
    %446 = arith.truncf %445 : vector<8x8x8xf32> to vector<8x8x8xbf16>
    %cst_158 = arith.constant dense<0.000000e+00> : vector<8x8x16xf32>
    %447 = tpu.matmul %446, %430, %cst_158 {dimension_numbers = #tpu.dot_dimension_numbers<[2], [1], [1], [2], [0, 0, 0, 1, 1, 2], [0], [0]>} : vector<8x8x8xbf16>, vector<8x8x16xbf16>, vector<8x8x16xf32> -> vector<8x8x16xf32>
    %448 = vector.extract_strided_slice %447 {offsets = [0, 0, 0], sizes = [1, 8, 16], strides = [1, 1, 1]} : vector<8x8x16xf32> to vector<1x8x16xf32>
    %449 = vector.shape_cast %448 : vector<1x8x16xf32> to vector<8x16xf32>
    %450 = vector.extract_strided_slice %447 {offsets = [1, 0, 0], sizes = [1, 8, 16], strides = [1, 1, 1]} : vector<8x8x16xf32> to vector<1x8x16xf32>
    %451 = vector.shape_cast %450 : vector<1x8x16xf32> to vector<8x16xf32>
    %452 = vector.extract_strided_slice %447 {offsets = [2, 0, 0], sizes = [1, 8, 16], strides = [1, 1, 1]} : vector<8x8x16xf32> to vector<1x8x16xf32>
    %453 = vector.shape_cast %452 : vector<1x8x16xf32> to vector<8x16xf32>
    %454 = vector.extract_strided_slice %447 {offsets = [3, 0, 0], sizes = [1, 8, 16], strides = [1, 1, 1]} : vector<8x8x16xf32> to vector<1x8x16xf32>
    %455 = vector.shape_cast %454 : vector<1x8x16xf32> to vector<8x16xf32>
    %456 = vector.extract_strided_slice %447 {offsets = [4, 0, 0], sizes = [1, 8, 16], strides = [1, 1, 1]} : vector<8x8x16xf32> to vector<1x8x16xf32>
    %457 = vector.shape_cast %456 : vector<1x8x16xf32> to vector<8x16xf32>
    %458 = vector.extract_strided_slice %447 {offsets = [5, 0, 0], sizes = [1, 8, 16], strides = [1, 1, 1]} : vector<8x8x16xf32> to vector<1x8x16xf32>
    %459 = vector.shape_cast %458 : vector<1x8x16xf32> to vector<8x16xf32>
    %460 = vector.extract_strided_slice %447 {offsets = [6, 0, 0], sizes = [1, 8, 16], strides = [1, 1, 1]} : vector<8x8x16xf32> to vector<1x8x16xf32>
    %461 = vector.shape_cast %460 : vector<1x8x16xf32> to vector<8x16xf32>
    %462 = vector.extract_strided_slice %447 {offsets = [7, 0, 0], sizes = [1, 8, 16], strides = [1, 1, 1]} : vector<8x8x16xf32> to vector<1x8x16xf32>
    %463 = vector.shape_cast %462 : vector<1x8x16xf32> to vector<8x16xf32>
    %464 = tpu.concatenate %449, %451, %453, %455, %457, %459, %461, %463 in 1 : vector<8x16xf32>, vector<8x16xf32>, vector<8x16xf32>, vector<8x16xf32>, vector<8x16xf32>, vector<8x16xf32>, vector<8x16xf32>, vector<8x16xf32> -> vector<8x128xf32>
    %465 = arith.truncf %464 : vector<8x128xf32> to vector<8x128xbf16>
    %cst_159 = arith.constant dense<0.000000e+00> : vector<8x128xf32>
    %466 = tpu.matmul %465, %356, %cst_159 {dimension_numbers = #tpu.dot_dimension_numbers<[1], [0], [0], [1], [0, 0, 1, 1], [], []>} : vector<8x128xbf16>, vector<128x128xbf16>, vector<8x128xf32> -> vector<8x128xf32>
    %467 = vector.broadcast %358 : vector<1x128xf32> to vector<8x128xf32>
    %468 = arith.addf %466, %467 : vector<8x128xf32>
    %469 = arith.addf %350, %468 : vector<8x128xf32>
    %cst_160 = arith.constant dense<0.000000e+00> : vector<8xf32>
    %470 = vector.multi_reduction <add>, %469, %cst_160 [1] : vector<8x128xf32> to vector<8xf32>
    %471 = vector.shape_cast %470 : vector<8xf32> to vector<8x1xf32>
    %cst_161 = arith.constant 1.280000e+02 : f32
    %472 = vector.broadcast %cst_161 : f32 to vector<8x1xf32>
    %473 = arith.divf %471, %472 : vector<8x1xf32>
    %474 = vector.broadcast %473 : vector<8x1xf32> to vector<8x128xf32>
    %475 = arith.subf %469, %474 : vector<8x128xf32>
    %476 = arith.mulf %475, %475 : vector<8x128xf32>
    %cst_162 = arith.constant dense<0.000000e+00> : vector<8xf32>
    %477 = vector.multi_reduction <add>, %476, %cst_162 [1] : vector<8x128xf32> to vector<8xf32>
    %478 = vector.shape_cast %477 : vector<8xf32> to vector<8x1xf32>
    %cst_163 = arith.constant 1.280000e+02 : f32
    %479 = vector.broadcast %cst_163 : f32 to vector<8x1xf32>
    %480 = arith.divf %478, %479 : vector<8x1xf32>
    %cst_164 = arith.constant 9.99999974E-6 : f32
    %481 = vector.broadcast %cst_164 : f32 to vector<8x1xf32>
    %482 = arith.addf %480, %481 : vector<8x1xf32>
    %483 = math.rsqrt %482 : vector<8x1xf32>
    %484 = vector.broadcast %483 : vector<8x1xf32> to vector<8x128xf32>
    %485 = arith.mulf %475, %484 : vector<8x128xf32>
    %486 = vector.broadcast %368 : vector<1x128xf32> to vector<8x128xf32>
    %487 = arith.mulf %485, %486 : vector<8x128xf32>
    %488 = vector.broadcast %370 : vector<1x128xf32> to vector<8x128xf32>
    %489 = arith.addf %487, %488 : vector<8x128xf32>
    %490 = arith.truncf %489 : vector<8x128xf32> to vector<8x128xbf16>
    %cst_165 = arith.constant dense<0.000000e+00> : vector<8x256xf32>
    %491 = tpu.matmul %490, %360, %cst_165 {dimension_numbers = #tpu.dot_dimension_numbers<[1], [0], [0], [1], [0, 0, 1, 1], [], []>} : vector<8x128xbf16>, vector<128x256xbf16>, vector<8x256xf32> -> vector<8x256xf32>
    %492 = vector.broadcast %362 : vector<1x256xf32> to vector<8x256xf32>
    %493 = arith.addf %491, %492 : vector<8x256xf32>
    %cst_166 = arith.constant 0.000000e+00 : f32
    %494 = vector.broadcast %cst_166 : f32 to vector<8x256xf32>
    %495 = arith.maximumf %493, %494 : vector<8x256xf32>
    %496 = arith.truncf %495 : vector<8x256xf32> to vector<8x256xbf16>
    %cst_167 = arith.constant dense<0.000000e+00> : vector<8x128xf32>
    %497 = tpu.matmul %496, %364, %cst_167 {dimension_numbers = #tpu.dot_dimension_numbers<[1], [0], [0], [1], [0, 0, 1, 1], [], []>} : vector<8x256xbf16>, vector<256x128xbf16>, vector<8x128xf32> -> vector<8x128xf32>
    %498 = vector.broadcast %366 : vector<1x128xf32> to vector<8x128xf32>
    %499 = arith.addf %497, %498 : vector<8x128xf32>
    %500 = arith.addf %489, %499 : vector<8x128xf32>
    %cst_168 = arith.constant dense<0.000000e+00> : vector<8xf32>
    %501 = vector.multi_reduction <add>, %500, %cst_168 [1] : vector<8x128xf32> to vector<8xf32>
    %502 = vector.shape_cast %501 : vector<8xf32> to vector<8x1xf32>
    %cst_169 = arith.constant 1.280000e+02 : f32
    %503 = vector.broadcast %cst_169 : f32 to vector<8x1xf32>
    %504 = arith.divf %502, %503 : vector<8x1xf32>
    %505 = vector.broadcast %504 : vector<8x1xf32> to vector<8x128xf32>
    %506 = arith.subf %500, %505 : vector<8x128xf32>
    %507 = arith.mulf %506, %506 : vector<8x128xf32>
    %cst_170 = arith.constant dense<0.000000e+00> : vector<8xf32>
    %508 = vector.multi_reduction <add>, %507, %cst_170 [1] : vector<8x128xf32> to vector<8xf32>
    %509 = vector.shape_cast %508 : vector<8xf32> to vector<8x1xf32>
    %cst_171 = arith.constant 1.280000e+02 : f32
    %510 = vector.broadcast %cst_171 : f32 to vector<8x1xf32>
    %511 = arith.divf %509, %510 : vector<8x1xf32>
    %cst_172 = arith.constant 9.99999974E-6 : f32
    %512 = vector.broadcast %cst_172 : f32 to vector<8x1xf32>
    %513 = arith.addf %511, %512 : vector<8x1xf32>
    %514 = math.rsqrt %513 : vector<8x1xf32>
    %515 = vector.broadcast %514 : vector<8x1xf32> to vector<8x128xf32>
    %516 = arith.mulf %506, %515 : vector<8x128xf32>
    %517 = vector.broadcast %372 : vector<1x128xf32> to vector<8x128xf32>
    %518 = arith.mulf %516, %517 : vector<8x128xf32>
    %519 = vector.broadcast %374 : vector<1x128xf32> to vector<8x128xf32>
    %520 = arith.addf %518, %519 : vector<8x128xf32>
    %521 = vector.shape_cast %520 : vector<8x128xf32> to vector<1x8x128xf32>
    %c0_173 = arith.constant 0 : index
    %c0_174 = arith.constant 0 : index
    %c0_175 = arith.constant 0 : index
    %522 = vector.load %arg17[%c0_173, %c0_174, %c0_175] : memref<1x8x128xf32, #tpu.memory_space<vmem>>, vector<1x8x128xf32>
    tpu.vector_store %arg17[%c0_173, %c0_174, %c0_175], %521 {strides = array<i32>} : memref<1x8x128xf32, #tpu.memory_space<vmem>>, vector<1x8x128xf32>,
    %cst_176 = arith.constant dense<0.000000e+00> : vector<1x128xf32>
    %523 = vector.multi_reduction <add>, %521, %cst_176 [1] : vector<1x8x128xf32> to vector<1x128xf32>
    %524 = vector.shape_cast %523 : vector<1x128xf32> to vector<1x1x128xf32>
    %cst_177 = arith.constant 8.000000e+00 : f32
    %525 = vector.broadcast %cst_177 : f32 to vector<1x1x128xf32>
    %526 = arith.divf %524, %525 : vector<1x1x128xf32>
    %c0_178 = arith.constant 0 : index
    %c0_179 = arith.constant 0 : index
    %c0_180 = arith.constant 0 : index
    %527 = vector.load %arg18[%c0_178, %c0_179, %c0_180] : memref<1x1x128xf32, #tpu.memory_space<vmem>>, vector<1x1x128xf32>
    tpu.vector_store %arg18[%c0_178, %c0_179, %c0_180], %526 {strides = array<i32>} : memref<1x1x128xf32, #tpu.memory_space<vmem>>, vector<1x1x128xf32>,
    return
  }
  func.func @transform_0(%arg0: i32) -> (i32, i32, i32) {
    %c0_i32 = arith.constant 0 : i32
    %c0_i32_0 = arith.constant 0 : i32
    %c0_i32_1 = arith.constant 0 : i32
    return %arg0, %c0_i32, %c0_i32_0 : i32, i32, i32
  }
  func.func @transform_1(%arg0: i32) -> (i32, i32, i32) {
    %c0_i32 = arith.constant 0 : i32
    %c0_i32_0 = arith.constant 0 : i32
    %c0_i32_1 = arith.constant 0 : i32
    return %arg0, %c0_i32, %c0_i32_0 : i32, i32, i32
  }
  func.func @transform_2(%arg0: i32) -> (i32, i32) {
    %c0_i32 = arith.constant 0 : i32
    %c0_i32_0 = arith.constant 0 : i32
    %c0_i32_1 = arith.constant 0 : i32
    return %c0_i32, %c0_i32_0 : i32, i32
  }
  func.func @transform_3(%arg0: i32) -> (i32, i32) {
    %c0_i32 = arith.constant 0 : i32
    %c0_i32_0 = arith.constant 0 : i32
    %c0_i32_1 = arith.constant 0 : i32
    return %c0_i32, %c0_i32_0 : i32, i32
  }
  func.func @transform_4(%arg0: i32) -> (i32, i32, i32) {
    %c0_i32 = arith.constant 0 : i32
    %c0_i32_0 = arith.constant 0 : i32
    %c0_i32_1 = arith.constant 0 : i32
    %c0_i32_2 = arith.constant 0 : i32
    return %c0_i32, %c0_i32_0, %c0_i32_1 : i32, i32, i32
  }
  func.func @transform_5(%arg0: i32) -> (i32, i32, i32) {
    %c0_i32 = arith.constant 0 : i32
    %c0_i32_0 = arith.constant 0 : i32
    %c0_i32_1 = arith.constant 0 : i32
    %c0_i32_2 = arith.constant 0 : i32
    return %c0_i32, %c0_i32_0, %c0_i32_1 : i32, i32, i32
  }
  func.func @transform_6(%arg0: i32) -> (i32, i32, i32) {
    %c0_i32 = arith.constant 0 : i32
    %c0_i32_0 = arith.constant 0 : i32
    %c0_i32_1 = arith.constant 0 : i32
    %c0_i32_2 = arith.constant 0 : i32
    return %c0_i32, %c0_i32_0, %c0_i32_1 : i32, i32, i32
  }
  func.func @transform_7(%arg0: i32) -> (i32, i32, i32) {
    %c0_i32 = arith.constant 0 : i32
    %c0_i32_0 = arith.constant 0 : i32
    %c0_i32_1 = arith.constant 0 : i32
    %c0_i32_2 = arith.constant 0 : i32
    return %c0_i32, %c0_i32_0, %c0_i32_1 : i32, i32, i32
  }
  func.func @transform_8(%arg0: i32) -> (i32, i32, i32) {
    %c0_i32 = arith.constant 0 : i32
    %c0_i32_0 = arith.constant 0 : i32
    %c0_i32_1 = arith.constant 0 : i32
    %c0_i32_2 = arith.constant 0 : i32
    return %c0_i32, %c0_i32_0, %c0_i32_1 : i32, i32, i32
  }
  func.func @transform_9(%arg0: i32) -> (i32, i32, i32) {
    %c0_i32 = arith.constant 0 : i32
    %c0_i32_0 = arith.constant 0 : i32
    %c0_i32_1 = arith.constant 0 : i32
    %c0_i32_2 = arith.constant 0 : i32
    return %c0_i32, %c0_i32_0, %c0_i32_1 : i32, i32, i32
  }
  func.func @transform_10(%arg0: i32) -> (i32, i32, i32) {
    %c0_i32 = arith.constant 0 : i32
    %c0_i32_0 = arith.constant 0 : i32
    %c0_i32_1 = arith.constant 0 : i32
    %c0_i32_2 = arith.constant 0 : i32
    return %c0_i32, %c0_i32_0, %c0_i32_1 : i32, i32, i32
  }
  func.func @transform_11(%arg0: i32) -> (i32, i32, i32) {
    %c0_i32 = arith.constant 0 : i32
    %c0_i32_0 = arith.constant 0 : i32
    %c0_i32_1 = arith.constant 0 : i32
    %c0_i32_2 = arith.constant 0 : i32
    return %c0_i32, %c0_i32_0, %c0_i32_1 : i32, i32, i32
  }
  func.func @transform_12(%arg0: i32) -> (i32, i32, i32) {
    %c0_i32 = arith.constant 0 : i32
    %c0_i32_0 = arith.constant 0 : i32
    %c0_i32_1 = arith.constant 0 : i32
    %c0_i32_2 = arith.constant 0 : i32
    return %c0_i32, %c0_i32_0, %c0_i32_1 : i32, i32, i32
  }
  func.func @transform_13(%arg0: i32) -> (i32, i32, i32) {
    %c0_i32 = arith.constant 0 : i32
    %c0_i32_0 = arith.constant 0 : i32
    %c0_i32_1 = arith.constant 0 : i32
    %c0_i32_2 = arith.constant 0 : i32
    return %c0_i32, %c0_i32_0, %c0_i32_1 : i32, i32, i32
  }
  func.func @transform_14(%arg0: i32) -> (i32, i32, i32) {
    %c0_i32 = arith.constant 0 : i32
    %c0_i32_0 = arith.constant 0 : i32
    %c0_i32_1 = arith.constant 0 : i32
    %c0_i32_2 = arith.constant 0 : i32
    return %c0_i32, %c0_i32_0, %c0_i32_1 : i32, i32, i32
  }
  func.func @transform_15(%arg0: i32) -> (i32, i32, i32) {
    %c0_i32 = arith.constant 0 : i32
    %c0_i32_0 = arith.constant 0 : i32
    %c0_i32_1 = arith.constant 0 : i32
    %c0_i32_2 = arith.constant 0 : i32
    return %c0_i32, %c0_i32_0, %c0_i32_1 : i32, i32, i32
  }
  func.func @transform_16(%arg0: i32) -> (i32, i32, i32) {
    %c0_i32 = arith.constant 0 : i32
    %c0_i32_0 = arith.constant 0 : i32
    %c0_i32_1 = arith.constant 0 : i32
    return %arg0, %c0_i32, %c0_i32_0 : i32, i32, i32
  }
  func.func @transform_17(%arg0: i32) -> (i32, i32, i32) {
    %c0_i32 = arith.constant 0 : i32
    %c0_i32_0 = arith.constant 0 : i32
    %c0_i32_1 = arith.constant 0 : i32
    return %arg0, %c0_i32, %c0_i32_0 : i32, i32, i32
  }
}

</mosaic_0001>

<llo_original>
// kernel: transformer_encoder_forward.1
$region0: #{transformer_encoder_forward.1}
  #allocation0 [shape = 'u32[]', space=smem, size = 0x4, offset = 0x4, fixed_abs, tag = 'smem constant byte address 0x4 - core index']
  #allocation1 [shape = 'u32[144,128]{1,0:T(1,128)}', space=vmem, size = 0x12000, scoped, tag = 'internal scratch']
  %s0 = inlined_call_operand.vmem [shape: f32[2,8,16], index: 0, kind: input, shape index: {}]
  %s1 = inlined_call_operand.vmem [shape: f32[2,1,8], index: 1, kind: input, shape index: {}]
  %s2 = inlined_call_operand.vmem [shape: bf16[16,128], index: 2, kind: input, shape index: {}]
  %s3 = inlined_call_operand.vmem [shape: f32[1,128], index: 3, kind: input, shape index: {}]
  %s4 = inlined_call_operand.hbm [shape: bf16[3,128,384], index: 4, kind: input, shape index: {}]
  %s5 = inlined_call_operand.vmem [shape: f32[3,1,384], index: 5, kind: input, shape index: {}]
  %s6 = inlined_call_operand.hbm [shape: bf16[3,128,128], index: 6, kind: input, shape index: {}]
  %s7 = inlined_call_operand.vmem [shape: f32[3,1,128], index: 7, kind: input, shape index: {}]
  %s8 = inlined_call_operand.hbm [shape: bf16[3,128,256], index: 8, kind: input, shape index: {}]
  %s9 = inlined_call_operand.vmem [shape: f32[3,1,256], index: 9, kind: input, shape index: {}]
  %s10 = inlined_call_operand.hbm [shape: bf16[3,256,128], index: 10, kind: input, shape index: {}]
  %s11 = inlined_call_operand.vmem [shape: f32[3,1,128], index: 11, kind: input, shape index: {}]
  %s12 = inlined_call_operand.vmem [shape: f32[3,1,128], index: 12, kind: input, shape index: {}]
  %s13 = inlined_call_operand.vmem [shape: f32[3,1,128], index: 13, kind: input, shape index: {}]
  %s14 = inlined_call_operand.vmem [shape: f32[3,1,128], index: 14, kind: input, shape index: {}]
  %s15 = inlined_call_operand.vmem [shape: f32[3,1,128], index: 15, kind: input, shape index: {}]
  %s16 = inlined_call_operand.vmem [shape: f32[2,8,128], index: 16, kind: output, shape index: {0}]
  %s17 = inlined_call_operand.hbm [shape: f32[2,1,128], index: 17, kind: output, shape index: {1}]
  %18 = xla_tuple %s16, %s17
  %s19 = sld [smem:[#allocation0]]
  $region121: #{transformer_encoder_forward.1} parent=0
    _
  %s21 = ssub.s32 1, %s19
  %s22 = scalar_select 0, %s21, %s19
  $region1: #{transformer_encoder_forward.1} parent=0
    #allocation2 [shape = 'u8[294912]{0}', space=vmem, size = 0x48000, scoped, tag = 'input window, operand 4, single buffered']
    #allocation3 [shape = 's32[2]{0}', space=sflag, size = 0x8, scoped, tag = 'scoped memory for transformer_encoder_forward.1']
    #allocation4 [shape = 's32[2]{0}', space=sflag, size = 0x8, scoped, tag = 'scoped memory for transformer_encoder_forward.1']
    #allocation5 [shape = 'u8[98304]{0}', space=vmem, size = 0x18000, scoped, tag = 'input window, operand 6, single buffered']
    #allocation6 [shape = 's32[1]{0}', space=sflag, size = 0x4, scoped, tag = 'scoped memory for transformer_encoder_forward.1']
    #allocation7 [shape = 'u8[196608]{0}', space=vmem, size = 0x30000, scoped, tag = 'input window, operand 8, single buffered']
    #allocation8 [shape = 'u8[196608]{0}', space=vmem, size = 0x30000, scoped, tag = 'input window, operand 10, single buffered']
    #allocation9 [shape = 's32[1]{0}', space=sflag, size = 0x4, scoped, tag = 'scoped memory for transformer_encoder_forward.1']
    #allocation10 [shape = 'u8[1024]{0}', space=vmem, size = 0x400, scoped, tag = 'output window, operand 1']
    %23 = vsyncpa [#allocation3], 0
    %24 = vsyncpa [#allocation6], 0
    %25 = vsyncpa [#allocation9], 0
    %26 = vsyncpa [#allocation4], 0
    %s27 = scalar_lea.sflag [#allocation4], 1
    %28 = vsyncpa %s27, 0
    loop: start=0, step=1, limit=4
    $region2: #{transformer_encoder_forward.1} parent=1 // loop_pre_header
      _
    $region3: #{transformer_encoder_forward.1} parent=1 // loop_header
      %s30 = sphi 0, %s34
      %p31 = scmp.ge.s32.totalorder %s30, 4
      %s40 = sphi 0, %s42
      %s43 = sphi 0, %s40
      %s44 = sphi 0, %s43
      %s60 = sphi 0, %s44
      %s66 = sphi 0, %s68
      %s69 = sphi 0, %s66
      %s70 = sphi 0, %s69
      %s86 = sphi 0, %s70
      %s90 = sphi 0, %s90
      %s92 = sphi 0, %s90
      %s93 = sphi 0, %s92
      %s107 = sphi 0, %s93
      %s111 = sphi 0, %s111
      %s113 = sphi 0, %s111
      %s114 = sphi 0, %s113
      %s128 = sphi 0, %s114
      %s132 = sphi 0, %s132
      %s134 = sphi 0, %s132
      %s135 = sphi 0, %s134
      %s149 = sphi 0, %s135
      %s153 = sphi 0, %s153
      %s155 = sphi 0, %s153
      %s156 = sphi 0, %s155
      %s170 = sphi 0, %s156
      %s174 = sphi 0, %s174
      %s176 = sphi 0, %s174
      %s177 = sphi 0, %s176
      %s191 = sphi 0, %s177
      %s195 = sphi 0, %s195
      %s197 = sphi 0, %s195
      %s198 = sphi 0, %s197
      %s212 = sphi 0, %s198
      %s216 = sphi 0, %s216
      %s218 = sphi 0, %s216
      %s219 = sphi 0, %s218
      %s233 = sphi 0, %s219
      %s237 = sphi 0, %s237
      %s239 = sphi 0, %s237
      %s240 = sphi 0, %s239
      %s254 = sphi 0, %s240
      %s258 = sphi 0, %s258
      %s260 = sphi 0, %s258
      %s261 = sphi 0, %s260
      %s275 = sphi 0, %s261
      %s279 = sphi 0, %s279
      %s281 = sphi 0, %s279
      %s282 = sphi 0, %s281
      %s296 = sphi 0, %s282
      %s300 = sphi 0, %s300
      %s302 = sphi 0, %s300
      %s303 = sphi 0, %s302
      %s317 = sphi 0, %s303
      %s321 = sphi 0, %s321
      %s323 = sphi 0, %s321
      %s324 = sphi 0, %s323
      %s338 = sphi 0, %s324
      %s342 = sphi 0, %s342
      %s344 = sphi 0, %s342
      %s345 = sphi 0, %s344
      %s359 = sphi 0, %s345
      %s363 = sphi 0, %s363
      %s365 = sphi 0, %s363
      %s366 = sphi 0, %s365
      %s380 = sphi 0, %s366
      %s386 = sphi 0, %s388
      %s389 = sphi 0, %s386
      %s390 = sphi 0, %s389
      %s406 = sphi 0, %s390
      %s412 = sphi 0, %s414
      %s415 = sphi 0, %s412
      %s416 = sphi 0, %s415
      %s432 = sphi 0, %s416
    $region4: #{transformer_encoder_forward.1} parent=1 // loop_header_branch
      %33 = sbr.rel (%p31) target = $region8
    $region5: #{transformer_encoder_forward.1} parent=1 // loop_body
      %s35 = ssub.s32 %s30, 1
      %s36 = ssub.s32 %s30, 2
      %s37 = sadd.s32 %s30, 1
      %s38 = ssub.s32 %s30, %s37
      %p39 = scmp.eq.s32.totalorder %s38, 0
      %s41 = sadd.s32 %s40, 1
      %s42 = scalar_select %p39, %s40, %s41
      %p45 = pneg %p39
      %p46 = scmp.eq.s32.totalorder %s30, 1
      %p47 = por %p45, %p46
      %p48 = scmp.ne.s32.totalorder %s40, %s43
      %p49 = scmp.eq.s32.totalorder %s30, 0
      %p50 = por %p48, %p49
      %p51 = scmp.ne.s32.totalorder %s40, %s43
      %p52 = scmp.eq.s32.totalorder %s35, 1
      %p53 = por %p51, %p52
      %p54 = scmp.ne.s32.totalorder %s43, %s44
      %p55 = scmp.eq.s32.totalorder %s35, 0
      %p56 = por %p54, %p55
      %p57 = scmp.ne.s32.totalorder %s43, %s44
      %p58 = scmp.eq.s32.totalorder %s36, 1
      %p59 = por %p57, %p58
      %p61 = scmp.ne.s32.totalorder %s44, %s60
      %p62 = scmp.eq.s32.totalorder %s36, 0
      %p63 = por %p61, %p62
      %s64 = ssub.s32 %s30, %s37
      %p65 = scmp.eq.s32.totalorder %s64, 0
      %s67 = sadd.s32 %s66, 1
      %s68 = scalar_select %p65, %s66, %s67
      %p71 = pneg %p65
      %p72 = scmp.eq.s32.totalorder %s30, 1
      %p73 = por %p71, %p72
      %p74 = scmp.ne.s32.totalorder %s66, %s69
      %p75 = scmp.eq.s32.totalorder %s30, 0
      %p76 = por %p74, %p75
      %p77 = scmp.ne.s32.totalorder %s66, %s69
      %p78 = scmp.eq.s32.totalorder %s35, 1
      %p79 = por %p77, %p78
      %p80 = scmp.ne.s32.totalorder %s69, %s70
      %p81 = scmp.eq.s32.totalorder %s35, 0
      %p82 = por %p80, %p81
      %p83 = scmp.ne.s32.totalorder %s69, %s70
      %p84 = scmp.eq.s32.totalorder %s36, 1
      %p85 = por %p83, %p84
      %p87 = scmp.ne.s32.totalorder %s70, %s86
      %p88 = scmp.eq.s32.totalorder %s36, 0
      %p89 = por %p87, %p88
      %s91 = sadd.s32 %s90, 1
      %p94 = scmp.eq.s32.totalorder %s30, 1
      %p95 = scmp.ne.s32.totalorder %s90, %s92
      %p96 = scmp.eq.s32.totalorder %s30, 0
      %p97 = por %p95, %p96
      %p98 = scmp.ne.s32.totalorder %s90, %s92
      %p99 = scmp.eq.s32.totalorder %s35, 1
      %p100 = por %p98, %p99
      %p101 = scmp.ne.s32.totalorder %s92, %s93
      %p102 = scmp.eq.s32.totalorder %s35, 0
      %p103 = por %p101, %p102
      %p104 = scmp.ne.s32.totalorder %s92, %s93
      %p105 = scmp.eq.s32.totalorder %s36, 1
      %p106 = por %p104, %p105
      %p108 = scmp.ne.s32.totalorder %s93, %s107
      %p109 = scmp.eq.s32.totalorder %s36, 0
      %p110 = por %p108, %p109
      %s112 = sadd.s32 %s111, 1
      %p115 = scmp.eq.s32.totalorder %s30, 1
      %p116 = scmp.ne.s32.totalorder %s111, %s113
      %p117 = scmp.eq.s32.totalorder %s30, 0
      %p118 = por %p116, %p117
      %p119 = scmp.ne.s32.totalorder %s111, %s113
      %p120 = scmp.eq.s32.totalorder %s35, 1
      %p121 = por %p119, %p120
      %p122 = scmp.ne.s32.totalorder %s113, %s114
      %p123 = scmp.eq.s32.totalorder %s35, 0
      %p124 = por %p122, %p123
      %p125 = scmp.ne.s32.totalorder %s113, %s114
      %p126 = scmp.eq.s32.totalorder %s36, 1
      %p127 = por %p125, %p126
      %p129 = scmp.ne.s32.totalorder %s114, %s128
      %p130 = scmp.eq.s32.totalorder %s36, 0
      %p131 = por %p129, %p130
      %s133 = sadd.s32 %s132, 1
      %p136 = scmp.eq.s32.totalorder %s30, 1
      %p137 = scmp.ne.s32.totalorder %s132, %s134
      %p138 = scmp.eq.s32.totalorder %s30, 0
      %p139 = por %p137, %p138
      %p140 = scmp.ne.s32.totalorder %s132, %s134
      %p141 = scmp.eq.s32.totalorder %s35, 1
      %p142 = por %p140, %p141
      %p143 = scmp.ne.s32.totalorder %s134, %s135
      %p144 = scmp.eq.s32.totalorder %s35, 0
      %p145 = por %p143, %p144
      %p146 = scmp.ne.s32.totalorder %s134, %s135
      %p147 = scmp.eq.s32.totalorder %s36, 1
      %p148 = por %p146, %p147
      %p150 = scmp.ne.s32.totalorder %s135, %s149
      %p151 = scmp.eq.s32.totalorder %s36, 0
      %p152 = por %p150, %p151
      %s154 = sadd.s32 %s153, 1
      %p157 = scmp.eq.s32.totalorder %s30, 1
      %p158 = scmp.ne.s32.totalorder %s153, %s155
      %p159 = scmp.eq.s32.totalorder %s30, 0
      %p160 = por %p158, %p159
      %p161 = scmp.ne.s32.totalorder %s153, %s155
      %p162 = scmp.eq.s32.totalorder %s35, 1
      %p163 = por %p161, %p162
      %p164 = scmp.ne.s32.totalorder %s155, %s156
      %p165 = scmp.eq.s32.totalorder %s35, 0
      %p166 = por %p164, %p165
      %p167 = scmp.ne.s32.totalorder %s155, %s156
      %p168 = scmp.eq.s32.totalorder %s36, 1
      %p169 = por %p167, %p168
      %p171 = scmp.ne.s32.totalorder %s156, %s170
      %p172 = scmp.eq.s32.totalorder %s36, 0
      %p173 = por %p171, %p172
      %s175 = sadd.s32 %s174, 1
      %p178 = scmp.eq.s32.totalorder %s30, 1
      %p179 = scmp.ne.s32.totalorder %s174, %s176
      %p180 = scmp.eq.s32.totalorder %s30, 0
      %p181 = por %p179, %p180
      %p182 = scmp.ne.s32.totalorder %s174, %s176
      %p183 = scmp.eq.s32.totalorder %s35, 1
      %p184 = por %p182, %p183
      %p185 = scmp.ne.s32.totalorder %s176, %s177
      %p186 = scmp.eq.s32.totalorder %s35, 0
      %p187 = por %p185, %p186
      %p188 = scmp.ne.s32.totalorder %s176, %s177
      %p189 = scmp.eq.s32.totalorder %s36, 1
      %p190 = por %p188, %p189
      %p192 = scmp.ne.s32.totalorder %s177, %s191
      %p193 = scmp.eq.s32.totalorder %s36, 0
      %p194 = por %p192, %p193
      %s196 = sadd.s32 %s195, 1
      %p199 = scmp.eq.s32.totalorder %s30, 1
      %p200 = scmp.ne.s32.totalorder %s195, %s197
      %p201 = scmp.eq.s32.totalorder %s30, 0
      %p202 = por %p200, %p201
      %p203 = scmp.ne.s32.totalorder %s195, %s197
      %p204 = scmp.eq.s32.totalorder %s35, 1
      %p205 = por %p203, %p204
      %p206 = scmp.ne.s32.totalorder %s197, %s198
      %p207 = scmp.eq.s32.totalorder %s35, 0
      %p208 = por %p206, %p207
      %p209 = scmp.ne.s32.totalorder %s197, %s198
      %p210 = scmp.eq.s32.totalorder %s36, 1
      %p211 = por %p209, %p210
      %p213 = scmp.ne.s32.totalorder %s198, %s212
      %p214 = scmp.eq.s32.totalorder %s36, 0
      %p215 = por %p213, %p214
      %s217 = sadd.s32 %s216, 1
      %p220 = scmp.eq.s32.totalorder %s30, 1
      %p221 = scmp.ne.s32.totalorder %s216, %s218
      %p222 = scmp.eq.s32.totalorder %s30, 0
      %p223 = por %p221, %p222
      %p224 = scmp.ne.s32.totalorder %s216, %s218
      %p225 = scmp.eq.s32.totalorder %s35, 1
      %p226 = por %p224, %p225
      %p227 = scmp.ne.s32.totalorder %s218, %s219
      %p228 = scmp.eq.s32.totalorder %s35, 0
      %p229 = por %p227, %p228
      %p230 = scmp.ne.s32.totalorder %s218, %s219
      %p231 = scmp.eq.s32.totalorder %s36, 1
      %p232 = por %p230, %p231
      %p234 = scmp.ne.s32.totalorder %s219, %s233
      %p235 = scmp.eq.s32.totalorder %s36, 0
      %p236 = por %p234, %p235
      %s238 = sadd.s32 %s237, 1
      %p241 = scmp.eq.s32.totalorder %s30, 1
      %p242 = scmp.ne.s32.totalorder %s237, %s239
      %p243 = scmp.eq.s32.totalorder %s30, 0
      %p244 = por %p242, %p243
      %p245 = scmp.ne.s32.totalorder %s237, %s239
      %p246 = scmp.eq.s32.totalorder %s35, 1
      %p247 = por %p245, %p246
      %p248 = scmp.ne.s32.totalorder %s239, %s240
      %p249 = scmp.eq.s32.totalorder %s35, 0
      %p250 = por %p248, %p249
      %p251 = scmp.ne.s32.totalorder %s239, %s240
      %p252 = scmp.eq.s32.totalorder %s36, 1
      %p253 = por %p251, %p252
      %p255 = scmp.ne.s32.totalorder %s240, %s254
      %p256 = scmp.eq.s32.totalorder %s36, 0
      %p257 = por %p255, %p256
      %s259 = sadd.s32 %s258, 1
      %p262 = scmp.eq.s32.totalorder %s30, 1
      %p263 = scmp.ne.s32.totalorder %s258, %s260
      %p264 = scmp.eq.s32.totalorder %s30, 0
      %p265 = por %p263, %p264
      %p266 = scmp.ne.s32.totalorder %s258, %s260
      %p267 = scmp.eq.s32.totalorder %s35, 1
      %p268 = por %p266, %p267
      %p269 = scmp.ne.s32.totalorder %s260, %s261
      %p270 = scmp.eq.s32.totalorder %s35, 0
      %p271 = por %p269, %p270
      %p272 = scmp.ne.s32.totalorder %s260, %s261
      %p273 = scmp.eq.s32.totalorder %s36, 1
      %p274 = por %p272, %p273
      %p276 = scmp.ne.s32.totalorder %s261, %s275
      %p277 = scmp.eq.s32.totalorder %s36, 0
      %p278 = por %p276, %p277
      %s280 = sadd.s32 %s279, 1
      %p283 = scmp.eq.s32.totalorder %s30, 1
      %p284 = scmp.ne.s32.totalorder %s279, %s281
      %p285 = scmp.eq.s32.totalorder %s30, 0
      %p286 = por %p284, %p285
      %p287 = scmp.ne.s32.totalorder %s279, %s281
      %p288 = scmp.eq.s32.totalorder %s35, 1
      %p289 = por %p287, %p288
      %p290 = scmp.ne.s32.totalorder %s281, %s282
      %p291 = scmp.eq.s32.totalorder %s35, 0
      %p292 = por %p290, %p291
      %p293 = scmp.ne.s32.totalorder %s281, %s282
      %p294 = scmp.eq.s32.totalorder %s36, 1
      %p295 = por %p293, %p294
      %p297 = scmp.ne.s32.totalorder %s282, %s296
      %p298 = scmp.eq.s32.totalorder %s36, 0
      %p299 = por %p297, %p298
      %s301 = sadd.s32 %s300, 1
      %p304 = scmp.eq.s32.totalorder %s30, 1
      %p305 = scmp.ne.s32.totalorder %s300, %s302
      %p306 = scmp.eq.s32.totalorder %s30, 0
      %p307 = por %p305, %p306
      %p308 = scmp.ne.s32.totalorder %s300, %s302
      %p309 = scmp.eq.s32.totalorder %s35, 1
      %p310 = por %p308, %p309
      %p311 = scmp.ne.s32.totalorder %s302, %s303
      %p312 = scmp.eq.s32.totalorder %s35, 0
      %p313 = por %p311, %p312
      %p314 = scmp.ne.s32.totalorder %s302, %s303
      %p315 = scmp.eq.s32.totalorder %s36, 1
      %p316 = por %p314, %p315
      %p318 = scmp.ne.s32.totalorder %s303, %s317
      %p319 = scmp.eq.s32.totalorder %s36, 0
      %p320 = por %p318, %p319
      %s322 = sadd.s32 %s321, 1
      %p325 = scmp.eq.s32.totalorder %s30, 1
      %p326 = scmp.ne.s32.totalorder %s321, %s323
      %p327 = scmp.eq.s32.totalorder %s30, 0
      %p328 = por %p326, %p327
      %p329 = scmp.ne.s32.totalorder %s321, %s323
      %p330 = scmp.eq.s32.totalorder %s35, 1
      %p331 = por %p329, %p330
      %p332 = scmp.ne.s32.totalorder %s323, %s324
      %p333 = scmp.eq.s32.totalorder %s35, 0
      %p334 = por %p332, %p333
      %p335 = scmp.ne.s32.totalorder %s323, %s324
      %p336 = scmp.eq.s32.totalorder %s36, 1
      %p337 = por %p335, %p336
      %p339 = scmp.ne.s32.totalorder %s324, %s338
      %p340 = scmp.eq.s32.totalorder %s36, 0
      %p341 = por %p339, %p340
      %s343 = sadd.s32 %s342, 1
      %p346 = scmp.eq.s32.totalorder %s30, 1
      %p347 = scmp.ne.s32.totalorder %s342, %s344
      %p348 = scmp.eq.s32.totalorder %s30, 0
      %p349 = por %p347, %p348
      %p350 = scmp.ne.s32.totalorder %s342, %s344
      %p351 = scmp.eq.s32.totalorder %s35, 1
      %p352 = por %p350, %p351
      %p353 = scmp.ne.s32.totalorder %s344, %s345
      %p354 = scmp.eq.s32.totalorder %s35, 0
      %p355 = por %p353, %p354
      %p356 = scmp.ne.s32.totalorder %s344, %s345
      %p357 = scmp.eq.s32.totalorder %s36, 1
      %p358 = por %p356, %p357
      %p360 = scmp.ne.s32.totalorder %s345, %s359
      %p361 = scmp.eq.s32.totalorder %s36, 0
      %p362 = por %p360, %p361
      %s364 = sadd.s32 %s363, 1
      %p367 = scmp.eq.s32.totalorder %s30, 1
      %p368 = scmp.ne.s32.totalorder %s363, %s365
      %p369 = scmp.eq.s32.totalorder %s30, 0
      %p370 = por %p368, %p369
      %p371 = scmp.ne.s32.totalorder %s363, %s365
      %p372 = scmp.eq.s32.totalorder %s35, 1
      %p373 = por %p371, %p372
      %p374 = scmp.ne.s32.totalorder %s365, %s366
      %p375 = scmp.eq.s32.totalorder %s35, 0
      %p376 = por %p374, %p375
      %p377 = scmp.ne.s32.totalorder %s365, %s366
      %p378 = scmp.eq.s32.totalorder %s36, 1
      %p379 = por %p377, %p378
      %p381 = scmp.ne.s32.totalorder %s366, %s380
      %p382 = scmp.eq.s32.totalorder %s36, 0
      %p383 = por %p381, %p382
      %s384 = ssub.s32 %s30, %s37
      %p385 = scmp.eq.s32.totalorder %s384, 0
      %s387 = sadd.s32 %s386, 1
      %s388 = scalar_select %p385, %s386, %s387
      %p391 = pneg %p385
      %p392 = scmp.eq.s32.totalorder %s30, 1
      %p393 = por %p391, %p392
      %p394 = scmp.ne.s32.totalorder %s386, %s389
      %p395 = scmp.eq.s32.totalorder %s30, 0
      %p396 = por %p394, %p395
      %p397 = scmp.ne.s32.totalorder %s386, %s389
      %p398 = scmp.eq.s32.totalorder %s35, 1
      %p399 = por %p397, %p398
      %p400 = scmp.ne.s32.totalorder %s389, %s390
      %p401 = scmp.eq.s32.totalorder %s35, 0
      %p402 = por %p400, %p401
      %p403 = scmp.ne.s32.totalorder %s389, %s390
      %p404 = scmp.eq.s32.totalorder %s36, 1
      %p405 = por %p403, %p404
      %p407 = scmp.ne.s32.totalorder %s390, %s406
      %p408 = scmp.eq.s32.totalorder %s36, 0
      %p409 = por %p407, %p408
      %s410 = ssub.s32 %s30, %s37
      %p411 = scmp.eq.s32.totalorder %s410, 0
      %s413 = sadd.s32 %s412, 1
      %s414 = scalar_select %p411, %s412, %s413
      %p417 = pneg %p411
      %p418 = scmp.eq.s32.totalorder %s30, 1
      %p419 = por %p417, %p418
      %p420 = scmp.ne.s32.totalorder %s412, %s415
      %p421 = scmp.eq.s32.totalorder %s30, 0
      %p422 = por %p420, %p421
      %p423 = scmp.ne.s32.totalorder %s412, %s415
      %p424 = scmp.eq.s32.totalorder %s35, 1
      %p425 = por %p423, %p424
      %p426 = scmp.ne.s32.totalorder %s415, %s416
      %p427 = scmp.eq.s32.totalorder %s35, 0
      %p428 = por %p426, %p427
      %p429 = scmp.ne.s32.totalorder %s415, %s416
      %p430 = scmp.eq.s32.totalorder %s36, 1
      %p431 = por %p429, %p430
      %p433 = scmp.ne.s32.totalorder %s416, %s432
      %p434 = scmp.eq.s32.totalorder %s36, 0
      %p435 = por %p433, %p434
      %p436 = scmp.le.s32.totalorder 1, %s30
      %p437 = scmp.lt.s32.totalorder %s30, 3
      %p438 = pnand %p436, %p437
      %p439 = pneg %p438
      // Predicated region
      $region9: #{transformer_encoder_forward.1} parent=5 // pred_check
        _
      $region10: #{transformer_encoder_forward.1} parent=5 // pred_check_branch
        %441 = sbr.rel (%p438) target = $region12
      $region11: #{transformer_encoder_forward.1} parent=5 // pred_region
        %s442 = ssub.s32 %s30, 1
        // Predicated region
        $region13: #{transformer_encoder_forward.1} parent=11 // pred_check
          %p443 = pneg %p103
        $region14: #{transformer_encoder_forward.1} parent=11 // pred_check_branch
          %445 = sbr.rel (%p443) target = $region16
        $region15: #{transformer_encoder_forward.1} parent=11 // pred_region
          _
        $region16: #{transformer_encoder_forward.1} parent=11 // pred_fallthru
          _
        // Predicated region
        $region17: #{transformer_encoder_forward.1} parent=11 // pred_check
          %p446 = pneg %p124
        $region18: #{transformer_encoder_forward.1} parent=11 // pred_check_branch
          %448 = sbr.rel (%p446) target = $region20
        $region19: #{transformer_encoder_forward.1} parent=11 // pred_region
          _
        $region20: #{transformer_encoder_forward.1} parent=11 // pred_fallthru
          _
        // Predicated region
        $region21: #{transformer_encoder_forward.1} parent=11 // pred_check
          %p449 = pneg %p145
        $region22: #{transformer_encoder_forward.1} parent=11 // pred_check_branch
          %451 = sbr.rel (%p449) target = $region24
        $region23: #{transformer_encoder_forward.1} parent=11 // pred_region
          %s453 = ssub.s32 9216, 9216
          %454 = vsyncadd [#allocation3], %s453
          %s455 = sshll.u32 [#allocation2], 4
          %s456 = int_to_ptr.vmem [resolvable:$true] %s455
          %461 = dma.hbm_to_vmem [thread:$0]  %s4, 9216, %s456, [#allocation3], 192, 192, 12
        $region24: #{transformer_encoder_forward.1} parent=11 // pred_fallthru
          _
        // Predicated region
        $region25: #{transformer_encoder_forward.1} parent=11 // pred_check
          %p462 = pneg %p166
        $region26: #{transformer_encoder_forward.1} parent=11 // pred_check_branch
          %464 = sbr.rel (%p462) target = $region28
        $region27: #{transformer_encoder_forward.1} parent=11 // pred_region
          _
        $region28: #{transformer_encoder_forward.1} parent=11 // pred_fallthru
          _
        // Predicated region
        $region29: #{transformer_encoder_forward.1} parent=11 // pred_check
          %p465 = pneg %p187
        $region30: #{transformer_encoder_forward.1} parent=11 // pred_check_branch
          %467 = sbr.rel (%p465) target = $region32
        $region31: #{transformer_encoder_forward.1} parent=11 // pred_region
          %s469 = ssub.s32 3072, 3072
          %470 = vsyncadd [#allocation6], %s469
          %s471 = sshll.u32 [#allocation5], 4
          %s472 = int_to_ptr.vmem [resolvable:$true] %s471
          %477 = dma.hbm_to_vmem [thread:$0]  %s6, 3072, %s472, [#allocation6], 64, 64, 4
        $region32: #{transformer_encoder_forward.1} parent=11 // pred_fallthru
          _
        // Predicated region
        $region33: #{transformer_encoder_forward.1} parent=11 // pred_check
          %p478 = pneg %p208
        $region34: #{transformer_encoder_forward.1} parent=11 // pred_check_branch
          %480 = sbr.rel (%p478) target = $region36
        $region35: #{transformer_encoder_forward.1} parent=11 // pred_region
          _
        $region36: #{transformer_encoder_forward.1} parent=11 // pred_fallthru
          _
        // Predicated region
        $region37: #{transformer_encoder_forward.1} parent=11 // pred_check
          %p481 = pneg %p229
        $region38: #{transformer_encoder_forward.1} parent=11 // pred_check_branch
          %483 = sbr.rel (%p481) target = $region40
        $region39: #{transformer_encoder_forward.1} parent=11 // pred_region
          %s485 = ssub.s32 6144, 6144
          %486 = vsyncadd [#allocation6], %s485
          %s487 = sshll.u32 [#allocation7], 4
          %s488 = int_to_ptr.vmem [resolvable:$true] %s487
          %493 = dma.hbm_to_vmem [thread:$0]  %s8, 6144, %s488, [#allocation6], 128, 128, 8
        $region40: #{transformer_encoder_forward.1} parent=11 // pred_fallthru
          _
        // Predicated region
        $region41: #{transformer_encoder_forward.1} parent=11 // pred_check
          %p494 = pneg %p250
        $region42: #{transformer_encoder_forward.1} parent=11 // pred_check_branch
          %496 = sbr.rel (%p494) target = $region44
        $region43: #{transformer_encoder_forward.1} parent=11 // pred_region
          _
        $region44: #{transformer_encoder_forward.1} parent=11 // pred_fallthru
          _
        // Predicated region
        $region45: #{transformer_encoder_forward.1} parent=11 // pred_check
          %p497 = pneg %p271
        $region46: #{transformer_encoder_forward.1} parent=11 // pred_check_branch
          %499 = sbr.rel (%p497) target = $region48
        $region47: #{transformer_encoder_forward.1} parent=11 // pred_region
          %s501 = ssub.s32 6144, 6144
          %502 = vsyncadd [#allocation9], %s501
          %s503 = sshll.u32 [#allocation8], 4
          %s504 = int_to_ptr.vmem [resolvable:$true] %s503
          %509 = dma.hbm_to_vmem [thread:$0]  %s10, 6144, %s504, [#allocation9], 64, 64, 4
        $region48: #{transformer_encoder_forward.1} parent=11 // pred_fallthru
          _
        // Predicated region
        $region49: #{transformer_encoder_forward.1} parent=11 // pred_check
          %p510 = pneg %p292
        $region50: #{transformer_encoder_forward.1} parent=11 // pred_check_branch
          %512 = sbr.rel (%p510) target = $region52
        $region51: #{transformer_encoder_forward.1} parent=11 // pred_region
          _
        $region52: #{transformer_encoder_forward.1} parent=11 // pred_fallthru
          _
        // Predicated region
        $region53: #{transformer_encoder_forward.1} parent=11 // pred_check
          %p513 = pneg %p313
        $region54: #{transformer_encoder_forward.1} parent=11 // pred_check_branch
          %515 = sbr.rel (%p513) target = $region56
        $region55: #{transformer_encoder_forward.1} parent=11 // pred_region
          _
        $region56: #{transformer_encoder_forward.1} parent=11 // pred_fallthru
          _
        // Predicated region
        $region57: #{transformer_encoder_forward.1} parent=11 // pred_check
          %p516 = pneg %p334
        $region58: #{transformer_encoder_forward.1} parent=11 // pred_check_branch
          %518 = sbr.rel (%p516) target = $region60
        $region59: #{transformer_encoder_forward.1} parent=11 // pred_region
          _
        $region60: #{transformer_encoder_forward.1} parent=11 // pred_fallthru
          _
        // Predicated region
        $region61: #{transformer_encoder_forward.1} parent=11 // pred_check
          %p519 = pneg %p355
        $region62: #{transformer_encoder_forward.1} parent=11 // pred_check_branch
          %521 = sbr.rel (%p519) target = $region64
        $region63: #{transformer_encoder_forward.1} parent=11 // pred_region
          _
        $region64: #{transformer_encoder_forward.1} parent=11 // pred_fallthru
          _
        // Predicated region
        $region65: #{transformer_encoder_forward.1} parent=11 // pred_check
          %p522 = pneg %p376
        $region66: #{transformer_encoder_forward.1} parent=11 // pred_check_branch
          %524 = sbr.rel (%p522) target = $region68
        $region67: #{transformer_encoder_forward.1} parent=11 // pred_region
          _
        $region68: #{transformer_encoder_forward.1} parent=11 // pred_fallthru
          _
      $region12: #{transformer_encoder_forward.1} parent=5 // pred_fallthru
        _
      %p525 = scmp.lt.s32.totalorder %s30, 2
      // Predicated region
      $region69: #{transformer_encoder_forward.1} parent=5 // pred_check
        %p526 = pneg %p525
      $region70: #{transformer_encoder_forward.1} parent=5 // pred_check_branch
        %528 = sbr.rel (%p526) target = $region72
      $region71: #{transformer_encoder_forward.1} parent=5 // pred_region
        // Predicated region
        $region73: #{transformer_encoder_forward.1} parent=71 // pred_check
          %p529 = pneg %p50
        $region74: #{transformer_encoder_forward.1} parent=71 // pred_check_branch
          %531 = sbr.rel (%p529) target = $region76
        $region75: #{transformer_encoder_forward.1} parent=71 // pred_region
          %p532 = scmp.lt.s32.totalorder %s30, 1
          %s533 = scalar_select %p532, %s30, 1
          %s534 = smul.addr %s533, 8
          %s535 = scalar_lea.vmem %s0, %s534
        $region76: #{transformer_encoder_forward.1} parent=71 // pred_fallthru
          _
        // Predicated region
        $region77: #{transformer_encoder_forward.1} parent=71 // pred_check
          %p536 = pneg %p76
        $region78: #{transformer_encoder_forward.1} parent=71 // pred_check_branch
          %538 = sbr.rel (%p536) target = $region80
        $region79: #{transformer_encoder_forward.1} parent=71 // pred_region
          %p539 = scmp.lt.s32.totalorder %s30, 1
          %s540 = scalar_select %p539, %s30, 1
          %s541 = scalar_lea.vmem %s1, %s540
        $region80: #{transformer_encoder_forward.1} parent=71 // pred_fallthru
          _
      $region72: #{transformer_encoder_forward.1} parent=5 // pred_fallthru
        _
      %p542 = scmp.le.s32.totalorder 1, %s30
      %p543 = scmp.lt.s32.totalorder %s30, 3
      %p544 = pnand %p542, %p543
      %p545 = pneg %p544
      // Predicated region
      $region81: #{transformer_encoder_forward.1} parent=5 // pred_check
        _
      $region82: #{transformer_encoder_forward.1} parent=5 // pred_check_branch
        %547 = sbr.rel (%p544) target = $region84
      $region83: #{transformer_encoder_forward.1} parent=5 // pred_region
        %s548 = ssub.s32 %s30, 1
        // Predicated region
        $region85: #{transformer_encoder_forward.1} parent=83 // pred_check
          %p549 = pneg %p145
        $region86: #{transformer_encoder_forward.1} parent=83 // pred_check_branch
          %551 = sbr.rel (%p549) target = $region88
        $region87: #{transformer_encoder_forward.1} parent=83 // pred_region
          %552 = dma.done [#allocation3], 9216
        $region88: #{transformer_encoder_forward.1} parent=83 // pred_fallthru
          _
        // Predicated region
        $region89: #{transformer_encoder_forward.1} parent=83 // pred_check
          %p553 = pneg %p187
        $region90: #{transformer_encoder_forward.1} parent=83 // pred_check_branch
          %555 = sbr.rel (%p553) target = $region92
        $region91: #{transformer_encoder_forward.1} parent=83 // pred_region
          %556 = dma.done [#allocation6], 3072
        $region92: #{transformer_encoder_forward.1} parent=83 // pred_fallthru
          _
        // Predicated region
        $region93: #{transformer_encoder_forward.1} parent=83 // pred_check
          %p557 = pneg %p229
        $region94: #{transformer_encoder_forward.1} parent=83 // pred_check_branch
          %559 = sbr.rel (%p557) target = $region96
        $region95: #{transformer_encoder_forward.1} parent=83 // pred_region
          %560 = dma.done [#allocation6], 6144
        $region96: #{transformer_encoder_forward.1} parent=83 // pred_fallthru
          _
        // Predicated region
        $region97: #{transformer_encoder_forward.1} parent=83 // pred_check
          %p561 = pneg %p271
        $region98: #{transformer_encoder_forward.1} parent=83 // pred_check_branch
          %563 = sbr.rel (%p561) target = $region100
        $region99: #{transformer_encoder_forward.1} parent=83 // pred_region
          %564 = dma.done [#allocation9], 6144
        $region100: #{transformer_encoder_forward.1} parent=83 // pred_fallthru
          _
        %p565 = scmp.lt.s32.totalorder %s35, 1
        %s566 = scalar_select %p565, %s35, 1
        %s567 = smul.addr %s566, 8
        %s568 = scalar_lea.vmem %s0, %s567
        %p569 = pneg %p56
        %p570 = pneg %p53
        %p571 = scmp.lt.s32.totalorder %s35, 1
        %s572 = scalar_select %p571, %s35, 1
        %s573 = scalar_lea.vmem %s1, %s572
        %p574 = pneg %p82
        %p575 = pneg %p79
        %p576 = pneg %p103
        %p577 = pneg %p100
        %p578 = pneg %p124
        %p579 = pneg %p121
        %p580 = pneg %p145
        %p581 = pneg %p142
        %p582 = pneg %p166
        %p583 = pneg %p163
        %p584 = pneg %p187
        %p585 = pneg %p184
        %p586 = pneg %p208
        %p587 = pneg %p205
        %p588 = pneg %p229
        %p589 = pneg %p226
        %p590 = pneg %p250
        %p591 = pneg %p247
        %p592 = pneg %p271
        %p593 = pneg %p268
        %p594 = pneg %p292
        %p595 = pneg %p289
        %p596 = pneg %p313
        %p597 = pneg %p310
        %p598 = pneg %p334
        %p599 = pneg %p331
        %p600 = pneg %p355
        %p601 = pneg %p352
        %p602 = pneg %p376
        %p603 = pneg %p373
        %p604 = pneg %p402
        %p605 = pneg %p399
        %p606 = scmp.lt.s32.totalorder %s35, 1
        %s607 = scalar_select %p606, %s35, 1
        %s608 = smul.addr %s607, 8
        %s609 = scalar_lea.vmem %s16, %s608
        %p610 = pneg %p428
        %p611 = pneg %p425
        %s612 = sand.u32 %s415, 1
        %s613 = scalar_lea.sflag [#allocation4], %s612
        %s614 = sand.u32 %s415, 1
        %s615 = scalar_lea.vmem [#allocation10], %s614
        %p616 = scmp.lt.s32.totalorder %s35, 1
        %s617 = scalar_select %p616, %s35, 1
        %s618 = smul.addr %s617, 8
        %s619 = scalar_lea.vmem %s0, %s618
        %p620 = scmp.lt.s32.totalorder %s35, 1
        %s621 = scalar_select %p620, %s35, 1
        %s622 = scalar_lea.vmem %s1, %s621
        %p623 = scmp.lt.s32.totalorder %s35, 1
        %s624 = scalar_select %p623, %s35, 1
        %s625 = smul.addr %s624, 8
        %s626 = scalar_lea.vmem %s16, %s625
        %v628 = vld [vmem:[%s619] sm:$0xff]
        %v629 = vpack.c.bf16 %v628, %v628
        %v630 = vld [vmem:[%s2] sm:$0xf]
        %v631 = vld [vmem:[%s2 + $0x4] sm:$0xf]
        %v632 = vld [vmem:[%s3] sm:$0x1]
        %v634 = vlaneseq
        %v635 = vshrl.u32 %v634, 7
        %v636 = vsub.s32 0, %v635
        %v637 = vrot.slane %v632, %v636
        %v641 = vunpack.c.l.b16 %v630
        %v642 = vunpack.c.l.b16 %v631
        %v643 = vpack.c.b16 %v642, %v641
        %vm645 = vcmask 130048
        %v647 = vsel %vm645, %v629, 0
        %649 = vmatprep.subr.bf16.mxu0 0
        %650 = vmatpush1.bf16.msra.mxu0 %v643
        %651 = vmatprep.subr.bf16.mxu0 0
        %652 = vmatpush1.bf16.msra.mxu0 0
        %653 = vmatprep.subr.bf16.mxu0 0
        %654 = vmatpush1.bf16.msra.mxu0 0
        %655 = vmatprep.subr.bf16.mxu0 0
        %656 = vmatpush1.bf16.msra.mxu0 0
        %657 = vmatprep.subr.bf16.mxu0 0
        %658 = vmatpush1.bf16.msra.mxu0 0
        %659 = vmatprep.subr.bf16.mxu0 0
        %660 = vmatpush1.bf16.msra.mxu0 0
        %661 = vmatprep.subr.bf16.mxu0 0
        %662 = vmatpush1.bf16.msra.mxu0 0
        %663 = vmatprep.subr.bf16.mxu0 0
        %664 = vmatpush1.bf16.msra.mxu0 0
        %665 = vmatprep.subr.bf16.mxu0 0
        %666 = vmatpush1.bf16.msra.mxu0 0
        %667 = vmatprep.subr.bf16.mxu0 0
        %668 = vmatpush1.bf16.msra.mxu0 0
        %669 = vmatprep.subr.bf16.mxu0 0
        %670 = vmatpush1.bf16.msra.mxu0 0
        %671 = vmatprep.subr.bf16.mxu0 0
        %672 = vmatpush1.bf16.msra.mxu0 0
        %673 = vmatprep.subr.bf16.mxu0 0
        %674 = vmatpush1.bf16.msra.mxu0 0
        %675 = vmatprep.subr.bf16.mxu0 0
        %676 = vmatpush1.bf16.msra.mxu0 0
        %677 = vmatprep.subr.bf16.mxu0 0
        %678 = vmatpush1.bf16.msra.mxu0 0
        %679 = vmatprep.subr.bf16.mxu0 0
        %680 = vmatpush1.bf16.msra.mxu0 0
        %681 = vmatprep.mubr.bf16.mxu0 0
        %682 = vmatmul.mubr.bf16.gmra.mrb[0].mxu0 %v647
        %v683 = vpop.f32.mrb[0].mxu0
        %v684 = vadd.f32 %v637, %v683
        %v685 = vpop.f32.mrb[0].mxu0
        %v686 = vpop.f32.mrb[0].mxu0
        %v687 = vpop.f32.mrb[0].mxu0
        %688 = vdwg.mxu0
        %v689 = vmax.f32 %v684, 0.0
        %v690 = vld [vmem:[%s622] sm:$0x1]
        %v691 = vld [vmem:[#allocation2] sm:$0xff]
        %v692 = vld [vmem:[#allocation2 + $0x8] sm:$0xf]
        %v693 = vld [vmem:[#allocation2 + $0xc] sm:$0xff]
        %v694 = vld [vmem:[#allocation2 + $0x14] sm:$0xf]
        %v695 = vld [vmem:[#allocation2 + $0x18] sm:$0xff]
        %v696 = vld [vmem:[#allocation2 + $0x20] sm:$0xf]
        %v697 = vld [vmem:[#allocation2 + $0x24] sm:$0xff]
        %v698 = vld [vmem:[#allocation2 + $0x2c] sm:$0xf]
        %v699 = vld [vmem:[#allocation2 + $0x30] sm:$0xff]
        %v700 = vld [vmem:[#allocation2 + $0x38] sm:$0xf]
        %v701 = vld [vmem:[#allocation2 + $0x3c] sm:$0xff]
        %v702 = vld [vmem:[#allocation2 + $0x44] sm:$0xf]
        %v703 = vld [vmem:[#allocation2 + $0x48] sm:$0xff]
        %v704 = vld [vmem:[#allocation2 + $0x50] sm:$0xf]
        %v705 = vld [vmem:[#allocation2 + $0x54] sm:$0xff]
        %v706 = vld [vmem:[#allocation2 + $0x5c] sm:$0xf]
        %v707 = vld [vmem:[#allocation2 + $0x60] sm:$0xff]
        %v708 = vld [vmem:[#allocation2 + $0x68] sm:$0xf]
        %v709 = vld [vmem:[#allocation2 + $0x6c] sm:$0xff]
        %v710 = vld [vmem:[#allocation2 + $0x74] sm:$0xf]
        %v711 = vld [vmem:[#allocation2 + $0x78] sm:$0xff]
        %v712 = vld [vmem:[#allocation2 + $0x80] sm:$0xf]
        %v713 = vld [vmem:[#allocation2 + $0x84] sm:$0xff]
        %v714 = vld [vmem:[#allocation2 + $0x8c] sm:$0xf]
        %v715 = vld [vmem:[#allocation2 + $0x90] sm:$0xff]
        %v716 = vld [vmem:[#allocation2 + $0x98] sm:$0xf]
        %v717 = vld [vmem:[#allocation2 + $0x9c] sm:$0xff]
        %v718 = vld [vmem:[#allocation2 + $0xa4] sm:$0xf]
        %v719 = vld [vmem:[#allocation2 + $0xa8] sm:$0xff]
        %v720 = vld [vmem:[#allocation2 + $0xb0] sm:$0xf]
        %v721 = vld [vmem:[#allocation2 + $0xb4] sm:$0xff]
        %v722 = vld [vmem:[#allocation2 + $0xbc] sm:$0xf]
        %v723 = vld [vmem:[%s5] sm:$0x7]
        %v724 = vld [vmem:[#allocation5] sm:$0xf]
        %v725 = vld [vmem:[#allocation5 + $0x4] sm:$0xf]
        %v726 = vld [vmem:[#allocation5 + $0x8] sm:$0xf]
        %v727 = vld [vmem:[#allocation5 + $0xc] sm:$0xf]
        %v728 = vld [vmem:[#allocation5 + $0x10] sm:$0xf]
        %v729 = vld [vmem:[#allocation5 + $0x14] sm:$0xf]
        %v730 = vld [vmem:[#allocation5 + $0x18] sm:$0xf]
        %v731 = vld [vmem:[#allocation5 + $0x1c] sm:$0xf]
        %v732 = vld [vmem:[#allocation5 + $0x20] sm:$0xf]
        %v733 = vld [vmem:[#allocation5 + $0x24] sm:$0xf]
        %v734 = vld [vmem:[#allocation5 + $0x28] sm:$0xf]
        %v735 = vld [vmem:[#allocation5 + $0x2c] sm:$0xf]
        %v736 = vld [vmem:[#allocation5 + $0x30] sm:$0xf]
        %v737 = vld [vmem:[#allocation5 + $0x34] sm:$0xf]
        %v738 = vld [vmem:[#allocation5 + $0x38] sm:$0xf]
        %v739 = vld [vmem:[#allocation5 + $0x3c] sm:$0xf]
        %v740 = vld [vmem:[%s7] sm:$0x1]
        %v741 = vld [vmem:[#allocation7] sm:$0xff]
        %v742 = vld [vmem:[#allocation7 + $0x8] sm:$0xff]
        %v743 = vld [vmem:[#allocation7 + $0x10] sm:$0xff]
        %v744 = vld [vmem:[#allocation7 + $0x18] sm:$0xff]
        %v745 = vld [vmem:[#allocation7 + $0x20] sm:$0xff]
        %v746 = vld [vmem:[#allocation7 + $0x28] sm:$0xff]
        %v747 = vld [vmem:[#allocation7 + $0x30] sm:$0xff]
        %v748 = vld [vmem:[#allocation7 + $0x38] sm:$0xff]
        %v749 = vld [vmem:[#allocation7 + $0x40] sm:$0xff]
        %v750 = vld [vmem:[#allocation7 + $0x48] sm:$0xff]
        %v751 = vld [vmem:[#allocation7 + $0x50] sm:$0xff]
        %v752 = vld [vmem:[#allocation7 + $0x58] sm:$0xff]
        %v753 = vld [vmem:[#allocation7 + $0x60] sm:$0xff]
        %v754 = vld [vmem:[#allocation7 + $0x68] sm:$0xff]
        %v755 = vld [vmem:[#allocation7 + $0x70] sm:$0xff]
        %v756 = vld [vmem:[#allocation7 + $0x78] sm:$0xff]
        %v757 = vld [vmem:[%s9] sm:$0x3]
        %v758 = vld [vmem:[#allocation8] sm:$0xf]
        %v759 = vld [vmem:[#allocation8 + $0x4] sm:$0xf]
        %v760 = vld [vmem:[#allocation8 + $0x8] sm:$0xf]
        %v761 = vld [vmem:[#allocation8 + $0xc] sm:$0xf]
        %v762 = vld [vmem:[#allocation8 + $0x10] sm:$0xf]
        %v763 = vld [vmem:[#allocation8 + $0x14] sm:$0xf]
        %v764 = vld [vmem:[#allocation8 + $0x18] sm:$0xf]
        %v765 = vld [vmem:[#allocation8 + $0x1c] sm:$0xf]
        %v766 = vld [vmem:[#allocation8 + $0x20] sm:$0xf]
        %v767 = vld [vmem:[#allocation8 + $0x24] sm:$0xf]
        %v768 = vld [vmem:[#allocation8 + $0x28] sm:$0xf]
        %v769 = vld [vmem:[#allocation8 + $0x2c] sm:$0xf]
        %v770 = vld [vmem:[#allocation8 + $0x30] sm:$0xf]
        %v771 = vld [vmem:[#allocation8 + $0x34] sm:$0xf]
        %v772 = vld [vmem:[#allocation8 + $0x38] sm:$0xf]
        %v773 = vld [vmem:[#allocation8 + $0x3c] sm:$0xf]
        %v774 = vld [vmem:[#allocation8 + $0x40] sm:$0xf]
        %v775 = vld [vmem:[#allocation8 + $0x44] sm:$0xf]
        %v776 = vld [vmem:[#allocation8 + $0x48] sm:$0xf]
        %v777 = vld [vmem:[#allocation8 + $0x4c] sm:$0xf]
        %v778 = vld [vmem:[#allocation8 + $0x50] sm:$0xf]
        %v779 = vld [vmem:[#allocation8 + $0x54] sm:$0xf]
        %v780 = vld [vmem:[#allocation8 + $0x58] sm:$0xf]
        %v781 = vld [vmem:[#allocation8 + $0x5c] sm:$0xf]
        %v782 = vld [vmem:[#allocation8 + $0x60] sm:$0xf]
        %v783 = vld [vmem:[#allocation8 + $0x64] sm:$0xf]
        %v784 = vld [vmem:[#allocation8 + $0x68] sm:$0xf]
        %v785 = vld [vmem:[#allocation8 + $0x6c] sm:$0xf]
        %v786 = vld [vmem:[#allocation8 + $0x70] sm:$0xf]
        %v787 = vld [vmem:[#allocation8 + $0x74] sm:$0xf]
        %v788 = vld [vmem:[#allocation8 + $0x78] sm:$0xf]
        %v789 = vld [vmem:[#allocation8 + $0x7c] sm:$0xf]
        %v790 = vld [vmem:[%s11] sm:$0x1]
        %v791 = vld [vmem:[%s12] sm:$0x1]
        %v792 = vld [vmem:[%s13] sm:$0x1]
        %v793 = vld [vmem:[%s14] sm:$0x1]
        %v794 = vld [vmem:[%s15] sm:$0x1]
        %v795 = vpack.c.bf16 %v689, %v689
        %v797 = vlaneseq
        %v798 = vshrl.u32 %v797, 7
        %v799 = vsub.s32 0, %v798
        %v800 = vrot.slane %v723, %v799
        %v801 = vlaneseq
        %v802 = vshrl.u32 %v801, 7
        %v803 = vsub.s32 1, %v802
        %v804 = vrot.slane %v723, %v803
        %v805 = vlaneseq
        %v806 = vshrl.u32 %v805, 7
        %v807 = vsub.s32 2, %v806
        %v808 = vrot.slane %v723, %v807
        %v844 = vunpack.c.l.b16 %v691
        %v845 = vunpack.c.h.b16 %v691
        %v846 = vunpack.c.l.b16 %v692
        %v847 = vunpack.c.l.b16 %v693
        %v848 = vunpack.c.h.b16 %v693
        %v849 = vunpack.c.l.b16 %v694
        %v850 = vunpack.c.l.b16 %v695
        %v851 = vunpack.c.h.b16 %v695
        %v852 = vunpack.c.l.b16 %v696
        %v853 = vunpack.c.l.b16 %v697
        %v854 = vunpack.c.h.b16 %v697
        %v855 = vunpack.c.l.b16 %v698
        %v856 = vunpack.c.l.b16 %v699
        %v857 = vunpack.c.h.b16 %v699
        %v858 = vunpack.c.l.b16 %v700
        %v859 = vunpack.c.l.b16 %v701
        %v860 = vunpack.c.h.b16 %v701
        %v861 = vunpack.c.l.b16 %v702
        %v862 = vunpack.c.l.b16 %v703
        %v863 = vunpack.c.h.b16 %v703
        %v864 = vunpack.c.l.b16 %v704
        %v865 = vunpack.c.l.b16 %v705
        %v866 = vunpack.c.h.b16 %v705
        %v867 = vunpack.c.l.b16 %v706
        %v868 = vunpack.c.l.b16 %v707
        %v869 = vunpack.c.h.b16 %v707
        %v870 = vunpack.c.l.b16 %v708
        %v871 = vunpack.c.l.b16 %v709
        %v872 = vunpack.c.h.b16 %v709
        %v873 = vunpack.c.l.b16 %v710
        %v874 = vunpack.c.l.b16 %v711
        %v875 = vunpack.c.h.b16 %v711
        %v876 = vunpack.c.l.b16 %v712
        %v877 = vunpack.c.l.b16 %v713
        %v878 = vunpack.c.h.b16 %v713
        %v879 = vunpack.c.l.b16 %v714
        %v880 = vunpack.c.l.b16 %v715
        %v881 = vunpack.c.h.b16 %v715
        %v882 = vunpack.c.l.b16 %v716
        %v883 = vunpack.c.l.b16 %v717
        %v884 = vunpack.c.h.b16 %v717
        %v885 = vunpack.c.l.b16 %v718
        %v886 = vunpack.c.l.b16 %v719
        %v887 = vunpack.c.h.b16 %v719
        %v888 = vunpack.c.l.b16 %v720
        %v889 = vunpack.c.l.b16 %v721
        %v890 = vunpack.c.h.b16 %v721
        %v891 = vunpack.c.l.b16 %v722
        %v892 = vpack.c.b16 %v847, %v844
        %v893 = vpack.c.b16 %v848, %v845
        %v894 = vpack.c.b16 %v849, %v846
        %v895 = vpack.c.b16 %v853, %v850
        %v896 = vpack.c.b16 %v854, %v851
        %v897 = vpack.c.b16 %v855, %v852
        %v898 = vpack.c.b16 %v859, %v856
        %v899 = vpack.c.b16 %v860, %v857
        %v900 = vpack.c.b16 %v861, %v858
        %v901 = vpack.c.b16 %v865, %v862
        %v902 = vpack.c.b16 %v866, %v863
        %v903 = vpack.c.b16 %v867, %v864
        %v904 = vpack.c.b16 %v871, %v868
        %v905 = vpack.c.b16 %v872, %v869
        %v906 = vpack.c.b16 %v873, %v870
        %v907 = vpack.c.b16 %v877, %v874
        %v908 = vpack.c.b16 %v878, %v875
        %v909 = vpack.c.b16 %v879, %v876
        %v910 = vpack.c.b16 %v883, %v880
        %v911 = vpack.c.b16 %v884, %v881
        %v912 = vpack.c.b16 %v885, %v882
        %v913 = vpack.c.b16 %v889, %v886
        %v914 = vpack.c.b16 %v890, %v887
        %v915 = vpack.c.b16 %v891, %v888
        %940 = vmatprep.subr.bf16.mxu0 %v893
        %941 = vmatpush1.bf16.msra.mxu0 %v892
        %942 = vmatprep.subr.bf16.mxu0 %v896
        %943 = vmatpush1.bf16.msra.mxu0 %v895
        %944 = vmatprep.subr.bf16.mxu0 %v899
        %945 = vmatpush1.bf16.msra.mxu0 %v898
        %946 = vmatprep.subr.bf16.mxu0 %v902
        %947 = vmatpush1.bf16.msra.mxu0 %v901
        %948 = vmatprep.subr.bf16.mxu0 %v905
        %949 = vmatpush1.bf16.msra.mxu0 %v904
        %950 = vmatprep.subr.bf16.mxu0 %v908
        %951 = vmatpush1.bf16.msra.mxu0 %v907
        %952 = vmatprep.subr.bf16.mxu0 %v911
        %953 = vmatpush1.bf16.msra.mxu0 %v910
        %954 = vmatprep.subr.bf16.mxu0 %v914
        %955 = vmatpush1.bf16.msra.mxu0 %v913
        %956 = vmatprep.subr.bf16.mxu0 0
        %957 = vmatpush1.bf16.msra.mxu0 0
        %958 = vmatprep.subr.bf16.mxu0 0
        %959 = vmatpush1.bf16.msra.mxu0 0
        %960 = vmatprep.subr.bf16.mxu0 0
        %961 = vmatpush1.bf16.msra.mxu0 0
        %962 = vmatprep.subr.bf16.mxu0 0
        %963 = vmatpush1.bf16.msra.mxu0 0
        %964 = vmatprep.subr.bf16.mxu0 0
        %965 = vmatpush1.bf16.msra.mxu0 0
        %966 = vmatprep.subr.bf16.mxu0 0
        %967 = vmatpush1.bf16.msra.mxu0 0
        %968 = vmatprep.subr.bf16.mxu0 0
        %969 = vmatpush1.bf16.msra.mxu0 0
        %970 = vmatprep.subr.bf16.mxu0 0
        %971 = vmatpush1.bf16.msra.mxu0 0
        %972 = vmatprep.mubr.bf16.mxu0 0
        %973 = vmatmul.mubr.bf16.gmra.mrb[0].mxu0 %v795
        %v974 = vpop.f32.mrb[0].mxu0
        %v975 = vadd.f32 %v800, %v974
        %v976 = vpop.f32.mrb[0].mxu0
        %v977 = vadd.f32 %v804, %v976
        %v978 = vpop.f32.mrb[0].mxu0
        %v979 = vpop.f32.mrb[0].mxu0
        %980 = vdwg.mxu0
        %981 = vmatprep.subr.bf16.mxu0 0
        %982 = vmatpush1.bf16.msra.mxu0 %v894
        %983 = vmatprep.subr.bf16.mxu0 0
        %984 = vmatpush1.bf16.msra.mxu0 %v897
        %985 = vmatprep.subr.bf16.mxu0 0
        %986 = vmatpush1.bf16.msra.mxu0 %v900
        %987 = vmatprep.subr.bf16.mxu0 0
        %988 = vmatpush1.bf16.msra.mxu0 %v903
        %989 = vmatprep.subr.bf16.mxu0 0
        %990 = vmatpush1.bf16.msra.mxu0 %v906
        %991 = vmatprep.subr.bf16.mxu0 0
        %992 = vmatpush1.bf16.msra.mxu0 %v909
        %993 = vmatprep.subr.bf16.mxu0 0
        %994 = vmatpush1.bf16.msra.mxu0 %v912
        %995 = vmatprep.subr.bf16.mxu0 0
        %996 = vmatpush1.bf16.msra.mxu0 %v915
        %997 = vmatprep.subr.bf16.mxu0 0
        %998 = vmatpush1.bf16.msra.mxu0 0
        %999 = vmatprep.subr.bf16.mxu0 0
        %1000 = vmatpush1.bf16.msra.mxu0 0
        %1001 = vmatprep.subr.bf16.mxu0 0
        %1002 = vmatpush1.bf16.msra.mxu0 0
        %1003 = vmatprep.subr.bf16.mxu0 0
        %1004 = vmatpush1.bf16.msra.mxu0 0
        %1005 = vmatprep.subr.bf16.mxu0 0
        %1006 = vmatpush1.bf16.msra.mxu0 0
        %1007 = vmatprep.subr.bf16.mxu0 0
        %1008 = vmatpush1.bf16.msra.mxu0 0
        %1009 = vmatprep.subr.bf16.mxu0 0
        %1010 = vmatpush1.bf16.msra.mxu0 0
        %1011 = vmatprep.subr.bf16.mxu0 0
        %1012 = vmatpush1.bf16.msra.mxu0 0
        %1013 = vmatprep.mubr.bf16.mxu0 0
        %1014 = vmatmul.mubr.bf16.gmra.mrb[0].mxu0 %v795
        %v1015 = vpop.f32.mrb[0].mxu0
        %v1016 = vadd.f32 %v808, %v1015
        %v1017 = vpop.f32.mrb[0].mxu0
        %v1018 = vpop.f32.mrb[0].mxu0
        %v1019 = vpop.f32.mrb[0].mxu0
        %1020 = vdwg.mxu0
        %v1021 = vpack.c.bf16 %v975, %v975
        %v1022 = vpack.c.bf16 %v977, %v977
        %v1023 = vpack.c.bf16 %v1016, %v1016
        %1025 = vrot.lane.b32.xlu0 %v1021, 112
        %v1026 = vpop.permute.xlu0 %1025
        %1027 = vrot.lane.b32.xlu0 %v1021, 96
        %v1028 = vpop.permute.xlu0 %1027
        %1029 = vrot.lane.b32.xlu0 %v1021, 80
        %v1030 = vpop.permute.xlu0 %1029
        %1031 = vrot.lane.b32.xlu0 %v1021, 64
        %v1032 = vpop.permute.xlu0 %1031
        %1033 = vrot.lane.b32.xlu0 %v1021, 48
        %v1034 = vpop.permute.xlu0 %1033
        %1035 = vrot.lane.b32.xlu0 %v1021, 32
        %v1036 = vpop.permute.xlu0 %1035
        %1037 = vrot.lane.b32.xlu0 %v1021, 16
        %v1038 = vpop.permute.xlu0 %1037
        %1040 = vrot.lane.b32.xlu0 %v1022, 112
        %v1041 = vpop.permute.xlu0 %1040
        %1042 = vrot.lane.b32.xlu0 %v1022, 96
        %v1043 = vpop.permute.xlu0 %1042
        %1044 = vrot.lane.b32.xlu0 %v1022, 80
        %v1045 = vpop.permute.xlu0 %1044
        %1046 = vrot.lane.b32.xlu0 %v1022, 64
        %v1047 = vpop.permute.xlu0 %1046
        %1048 = vrot.lane.b32.xlu0 %v1022, 48
        %v1049 = vpop.permute.xlu0 %1048
        %1050 = vrot.lane.b32.xlu0 %v1022, 32
        %v1051 = vpop.permute.xlu0 %1050
        %1052 = vrot.lane.b32.xlu0 %v1022, 16
        %v1053 = vpop.permute.xlu0 %1052
        %1055 = vrot.lane.b32.xlu0 %v1023, 112
        %v1056 = vpop.permute.xlu0 %1055
        %1057 = vrot.lane.b32.xlu0 %v1023, 96
        %v1058 = vpop.permute.xlu0 %1057
        %1059 = vrot.lane.b32.xlu0 %v1023, 80
        %v1060 = vpop.permute.xlu0 %1059
        %1061 = vrot.lane.b32.xlu0 %v1023, 64
        %v1062 = vpop.permute.xlu0 %1061
        %1063 = vrot.lane.b32.xlu0 %v1023, 48
        %v1064 = vpop.permute.xlu0 %1063
        %1065 = vrot.lane.b32.xlu0 %v1023, 32
        %v1066 = vpop.permute.xlu0 %1065
        %1067 = vrot.lane.b32.xlu0 %v1023, 16
        %v1068 = vpop.permute.xlu0 %1067
        %v1070 = vlaneseq
        %v1071 = vshrl.u32 %v1070, 7
        %v1072 = vsub.s32 0, %v1071
        %v1073 = vrot.slane %v690, %v1072
        %v1076 = vsel %vm645, %v1021, 0
        %v1079 = vsel %vm645, %v1022, 0
        %1081 = vmatprep.subr.bf16.mxu0 0
        %1082 = vmatpush1.bf16.xpose.msra.mxu0 %v1079
        %1083 = vmatprep.subr.bf16.mxu0 0
        %1084 = vmatpush1.bf16.xpose.msra.mxu0 0
        %1085 = vmatprep.subr.bf16.mxu0 0
        %1086 = vmatpush1.bf16.xpose.msra.mxu0 0
        %1087 = vmatprep.subr.bf16.mxu0 0
        %1088 = vmatpush1.bf16.xpose.msra.mxu0 0
        %1089 = vmatprep.subr.bf16.mxu0 0
        %1090 = vmatpush1.bf16.xpose.msra.mxu0 0
        %1091 = vmatprep.subr.bf16.mxu0 0
        %1092 = vmatpush1.bf16.xpose.msra.mxu0 0
        %1093 = vmatprep.subr.bf16.mxu0 0
        %1094 = vmatpush1.bf16.xpose.msra.mxu0 0
        %1095 = vmatprep.subr.bf16.mxu0 0
        %1096 = vmatpush1.bf16.xpose.msra.mxu0 0
        %1097 = vmatprep.subr.bf16.mxu0 0
        %1098 = vmatpush1.bf16.xpose.msra.mxu0 0
        %1099 = vmatprep.subr.bf16.mxu0 0
        %1100 = vmatpush1.bf16.xpose.msra.mxu0 0
        %1101 = vmatprep.subr.bf16.mxu0 0
        %1102 = vmatpush1.bf16.xpose.msra.mxu0 0
        %1103 = vmatprep.subr.bf16.mxu0 0
        %1104 = vmatpush1.bf16.xpose.msra.mxu0 0
        %1105 = vmatprep.subr.bf16.mxu0 0
        %1106 = vmatpush1.bf16.xpose.msra.mxu0 0
        %1107 = vmatprep.subr.bf16.mxu0 0
        %1108 = vmatpush1.bf16.xpose.msra.mxu0 0
        %1109 = vmatprep.subr.bf16.mxu0 0
        %1110 = vmatpush1.bf16.xpose.msra.mxu0 0
        %1111 = vmatprep.subr.bf16.mxu0 0
        %1112 = vmatpush1.bf16.xpose.msra.mxu0 0
        %1113 = vmatprep.mubr.bf16.mxu0 0
        %1114 = vmatmul.mubr.bf16.gmra.mrb[0].mxu0 %v1076
        %v1115 = vpop.f32.mrb[0].mxu0
        %v1116 = vadd.f32 %v1073, %v1115
        %v1117 = vpop.f32.mrb[0].mxu0
        %v1118 = vpop.f32.mrb[0].mxu0
        %v1119 = vpop.f32.mrb[0].mxu0
        %1120 = vdwg.mxu0
        %v1122 = vsel %vm645, %v1026, 0
        %v1125 = vsel %vm645, %v1041, 0
        %1127 = vmatprep.subr.bf16.mxu0 0
        %1128 = vmatpush1.bf16.xpose.msra.mxu0 %v1125
        %1129 = vmatprep.subr.bf16.mxu0 0
        %1130 = vmatpush1.bf16.xpose.msra.mxu0 0
        %1131 = vmatprep.subr.bf16.mxu0 0
        %1132 = vmatpush1.bf16.xpose.msra.mxu0 0
        %1133 = vmatprep.subr.bf16.mxu0 0
        %1134 = vmatpush1.bf16.xpose.msra.mxu0 0
        %1135 = vmatprep.subr.bf16.mxu0 0
        %1136 = vmatpush1.bf16.xpose.msra.mxu0 0
        %1137 = vmatprep.subr.bf16.mxu0 0
        %1138 = vmatpush1.bf16.xpose.msra.mxu0 0
        %1139 = vmatprep.subr.bf16.mxu0 0
        %1140 = vmatpush1.bf16.xpose.msra.mxu0 0
        %1141 = vmatprep.subr.bf16.mxu0 0
        %1142 = vmatpush1.bf16.xpose.msra.mxu0 0
        %1143 = vmatprep.subr.bf16.mxu0 0
        %1144 = vmatpush1.bf16.xpose.msra.mxu0 0
        %1145 = vmatprep.subr.bf16.mxu0 0
        %1146 = vmatpush1.bf16.xpose.msra.mxu0 0
        %1147 = vmatprep.subr.bf16.mxu0 0
        %1148 = vmatpush1.bf16.xpose.msra.mxu0 0
        %1149 = vmatprep.subr.bf16.mxu0 0
        %1150 = vmatpush1.bf16.xpose.msra.mxu0 0
        %1151 = vmatprep.subr.bf16.mxu0 0
        %1152 = vmatpush1.bf16.xpose.msra.mxu0 0
        %1153 = vmatprep.subr.bf16.mxu0 0
        %1154 = vmatpush1.bf16.xpose.msra.mxu0 0
        %1155 = vmatprep.subr.bf16.mxu0 0
        %1156 = vmatpush1.bf16.xpose.msra.mxu0 0
        %1157 = vmatprep.subr.bf16.mxu0 0
        %1158 = vmatpush1.bf16.xpose.msra.mxu0 0
        %1159 = vmatprep.mubr.bf16.mxu0 0
        %1160 = vmatmul.mubr.bf16.gmra.mrb[0].mxu0 %v1122
        %v1161 = vpop.f32.mrb[0].mxu0
        %v1162 = vadd.f32 %v1073, %v1161
        %v1163 = vpop.f32.mrb[0].mxu0
        %v1164 = vpop.f32.mrb[0].mxu0
        %v1165 = vpop.f32.mrb[0].mxu0
        %1166 = vdwg.mxu0
        %v1168 = vsel %vm645, %v1028, 0
        %v1171 = vsel %vm645, %v1043, 0
        %1173 = vmatprep.subr.bf16.mxu0 0
        %1174 = vmatpush1.bf16.xpose.msra.mxu0 %v1171
        %1175 = vmatprep.subr.bf16.mxu0 0
        %1176 = vmatpush1.bf16.xpose.msra.mxu0 0
        %1177 = vmatprep.subr.bf16.mxu0 0
        %1178 = vmatpush1.bf16.xpose.msra.mxu0 0
        %1179 = vmatprep.subr.bf16.mxu0 0
        %1180 = vmatpush1.bf16.xpose.msra.mxu0 0
        %1181 = vmatprep.subr.bf16.mxu0 0
        %1182 = vmatpush1.bf16.xpose.msra.mxu0 0
        %1183 = vmatprep.subr.bf16.mxu0 0
        %1184 = vmatpush1.bf16.xpose.msra.mxu0 0
        %1185 = vmatprep.subr.bf16.mxu0 0
        %1186 = vmatpush1.bf16.xpose.msra.mxu0 0
        %1187 = vmatprep.subr.bf16.mxu0 0
        %1188 = vmatpush1.bf16.xpose.msra.mxu0 0
        %1189 = vmatprep.subr.bf16.mxu0 0
        %1190 = vmatpush1.bf16.xpose.msra.mxu0 0
        %1191 = vmatprep.subr.bf16.mxu0 0
        %1192 = vmatpush1.bf16.xpose.msra.mxu0 0
        %1193 = vmatprep.subr.bf16.mxu0 0
        %1194 = vmatpush1.bf16.xpose.msra.mxu0 0
        %1195 = vmatprep.subr.bf16.mxu0 0
        %1196 = vmatpush1.bf16.xpose.msra.mxu0 0
        %1197 = vmatprep.subr.bf16.mxu0 0
        %1198 = vmatpush1.bf16.xpose.msra.mxu0 0
        %1199 = vmatprep.subr.bf16.mxu0 0
        %1200 = vmatpush1.bf16.xpose.msra.mxu0 0
        %1201 = vmatprep.subr.bf16.mxu0 0
        %1202 = vmatpush1.bf16.xpose.msra.mxu0 0
        %1203 = vmatprep.subr.bf16.mxu0 0
        %1204 = vmatpush1.bf16.xpose.msra.mxu0 0
        %1205 = vmatprep.mubr.bf16.mxu0 0
        %1206 = vmatmul.mubr.bf16.gmra.mrb[0].mxu0 %v1168
        %v1207 = vpop.f32.mrb[0].mxu0
        %v1208 = vadd.f32 %v1073, %v1207
        %v1209 = vpop.f32.mrb[0].mxu0
        %v1210 = vpop.f32.mrb[0].mxu0
        %v1211 = vpop.f32.mrb[0].mxu0
        %1212 = vdwg.mxu0
        %v1214 = vsel %vm645, %v1030, 0
        %v1217 = vsel %vm645, %v1045, 0
        %1219 = vmatprep.subr.bf16.mxu0 0
        %1220 = vmatpush1.bf16.xpose.msra.mxu0 %v1217
        %1221 = vmatprep.subr.bf16.mxu0 0
        %1222 = vmatpush1.bf16.xpose.msra.mxu0 0
        %1223 = vmatprep.subr.bf16.mxu0 0
        %1224 = vmatpush1.bf16.xpose.msra.mxu0 0
        %1225 = vmatprep.subr.bf16.mxu0 0
        %1226 = vmatpush1.bf16.xpose.msra.mxu0 0
        %1227 = vmatprep.subr.bf16.mxu0 0
        %1228 = vmatpush1.bf16.xpose.msra.mxu0 0
        %1229 = vmatprep.subr.bf16.mxu0 0
        %1230 = vmatpush1.bf16.xpose.msra.mxu0 0
        %1231 = vmatprep.subr.bf16.mxu0 0
        %1232 = vmatpush1.bf16.xpose.msra.mxu0 0
        %1233 = vmatprep.subr.bf16.mxu0 0
        %1234 = vmatpush1.bf16.xpose.msra.mxu0 0
        %1235 = vmatprep.subr.bf16.mxu0 0
        %1236 = vmatpush1.bf16.xpose.msra.mxu0 0
        %1237 = vmatprep.subr.bf16.mxu0 0
        %1238 = vmatpush1.bf16.xpose.msra.mxu0 0
        %1239 = vmatprep.subr.bf16.mxu0 0
        %1240 = vmatpush1.bf16.xpose.msra.mxu0 0
        %1241 = vmatprep.subr.bf16.mxu0 0
        %1242 = vmatpush1.bf16.xpose.msra.mxu0 0
        %1243 = vmatprep.subr.bf16.mxu0 0
        %1244 = vmatpush1.bf16.xpose.msra.mxu0 0
        %1245 = vmatprep.subr.bf16.mxu0 0
        %1246 = vmatpush1.bf16.xpose.msra.mxu0 0
        %1247 = vmatprep.subr.bf16.mxu0 0
        %1248 = vmatpush1.bf16.xpose.msra.mxu0 0
        %1249 = vmatprep.subr.bf16.mxu0 0
        %1250 = vmatpush1.bf16.xpose.msra.mxu0 0
        %1251 = vmatprep.mubr.bf16.mxu0 0
        %1252 = vmatmul.mubr.bf16.gmra.mrb[0].mxu0 %v1214
        %v1253 = vpop.f32.mrb[0].mxu0
        %v1254 = vadd.f32 %v1073, %v1253
        %v1255 = vpop.f32.mrb[0].mxu0
        %v1256 = vpop.f32.mrb[0].mxu0
        %v1257 = vpop.f32.mrb[0].mxu0
        %1258 = vdwg.mxu0
        %v1260 = vsel %vm645, %v1032, 0
        %v1263 = vsel %vm645, %v1047, 0
        %1265 = vmatprep.subr.bf16.mxu0 0
        %1266 = vmatpush1.bf16.xpose.msra.mxu0 %v1263
        %1267 = vmatprep.subr.bf16.mxu0 0
        %1268 = vmatpush1.bf16.xpose.msra.mxu0 0
        %1269 = vmatprep.subr.bf16.mxu0 0
        %1270 = vmatpush1.bf16.xpose.msra.mxu0 0
        %1271 = vmatprep.subr.bf16.mxu0 0
        %1272 = vmatpush1.bf16.xpose.msra.mxu0 0
        %1273 = vmatprep.subr.bf16.mxu0 0
        %1274 = vmatpush1.bf16.xpose.msra.mxu0 0
        %1275 = vmatprep.subr.bf16.mxu0 0
        %1276 = vmatpush1.bf16.xpose.msra.mxu0 0
        %1277 = vmatprep.subr.bf16.mxu0 0
        %1278 = vmatpush1.bf16.xpose.msra.mxu0 0
        %1279 = vmatprep.subr.bf16.mxu0 0
        %1280 = vmatpush1.bf16.xpose.msra.mxu0 0
        %1281 = vmatprep.subr.bf16.mxu0 0
        %1282 = vmatpush1.bf16.xpose.msra.mxu0 0
        %1283 = vmatprep.subr.bf16.mxu0 0
        %1284 = vmatpush1.bf16.xpose.msra.mxu0 0
        %1285 = vmatprep.subr.bf16.mxu0 0
        %1286 = vmatpush1.bf16.xpose.msra.mxu0 0
        %1287 = vmatprep.subr.bf16.mxu0 0
        %1288 = vmatpush1.bf16.xpose.msra.mxu0 0
        %1289 = vmatprep.subr.bf16.mxu0 0
        %1290 = vmatpush1.bf16.xpose.msra.mxu0 0
        %1291 = vmatprep.subr.bf16.mxu0 0
        %1292 = vmatpush1.bf16.xpose.msra.mxu0 0
        %1293 = vmatprep.subr.bf16.mxu0 0
        %1294 = vmatpush1.bf16.xpose.msra.mxu0 0
        %1295 = vmatprep.subr.bf16.mxu0 0
        %1296 = vmatpush1.bf16.xpose.msra.mxu0 0
        %1297 = vmatprep.mubr.bf16.mxu0 0
        %1298 = vmatmul.mubr.bf16.gmra.mrb[0].mxu0 %v1260
        %v1299 = vpop.f32.mrb[0].mxu0
        %v1300 = vadd.f32 %v1073, %v1299
        %v1301 = vpop.f32.mrb[0].mxu0
        %v1302 = vpop.f32.mrb[0].mxu0
        %v1303 = vpop.f32.mrb[0].mxu0
        %1304 = vdwg.mxu0
        %v1306 = vsel %vm645, %v1034, 0
        %v1309 = vsel %vm645, %v1049, 0
        %1311 = vmatprep.subr.bf16.mxu0 0
        %1312 = vmatpush1.bf16.xpose.msra.mxu0 %v1309
        %1313 = vmatprep.subr.bf16.mxu0 0
        %1314 = vmatpush1.bf16.xpose.msra.mxu0 0
        %1315 = vmatprep.subr.bf16.mxu0 0
        %1316 = vmatpush1.bf16.xpose.msra.mxu0 0
        %1317 = vmatprep.subr.bf16.mxu0 0
        %1318 = vmatpush1.bf16.xpose.msra.mxu0 0
        %1319 = vmatprep.subr.bf16.mxu0 0
        %1320 = vmatpush1.bf16.xpose.msra.mxu0 0
        %1321 = vmatprep.subr.bf16.mxu0 0
        %1322 = vmatpush1.bf16.xpose.msra.mxu0 0
        %1323 = vmatprep.subr.bf16.mxu0 0
        %1324 = vmatpush1.bf16.xpose.msra.mxu0 0
        %1325 = vmatprep.subr.bf16.mxu0 0
        %1326 = vmatpush1.bf16.xpose.msra.mxu0 0
        %1327 = vmatprep.subr.bf16.mxu0 0
        %1328 = vmatpush1.bf16.xpose.msra.mxu0 0
        %1329 = vmatprep.subr.bf16.mxu0 0
        %1330 = vmatpush1.bf16.xpose.msra.mxu0 0
        %1331 = vmatprep.subr.bf16.mxu0 0
        %1332 = vmatpush1.bf16.xpose.msra.mxu0 0
        %1333 = vmatprep.subr.bf16.mxu0 0
        %1334 = vmatpush1.bf16.xpose.msra.mxu0 0
        %1335 = vmatprep.subr.bf16.mxu0 0
        %1336 = vmatpush1.bf16.xpose.msra.mxu0 0
        %1337 = vmatprep.subr.bf16.mxu0 0
        %1338 = vmatpush1.bf16.xpose.msra.mxu0 0
        %1339 = vmatprep.subr.bf16.mxu0 0
        %1340 = vmatpush1.bf16.xpose.msra.mxu0 0
        %1341 = vmatprep.subr.bf16.mxu0 0
        %1342 = vmatpush1.bf16.xpose.msra.mxu0 0
        %1343 = vmatprep.mubr.bf16.mxu0 0
        %1344 = vmatmul.mubr.bf16.gmra.mrb[0].mxu0 %v1306
        %v1345 = vpop.f32.mrb[0].mxu0
        %v1346 = vadd.f32 %v1073, %v1345
        %v1347 = vpop.f32.mrb[0].mxu0
        %v1348 = vpop.f32.mrb[0].mxu0
        %v1349 = vpop.f32.mrb[0].mxu0
        %1350 = vdwg.mxu0
        %v1352 = vsel %vm645, %v1036, 0
        %v1355 = vsel %vm645, %v1051, 0
        %1357 = vmatprep.subr.bf16.mxu0 0
        %1358 = vmatpush1.bf16.xpose.msra.mxu0 %v1355
        %1359 = vmatprep.subr.bf16.mxu0 0
        %1360 = vmatpush1.bf16.xpose.msra.mxu0 0
        %1361 = vmatprep.subr.bf16.mxu0 0
        %1362 = vmatpush1.bf16.xpose.msra.mxu0 0
        %1363 = vmatprep.subr.bf16.mxu0 0
        %1364 = vmatpush1.bf16.xpose.msra.mxu0 0
        %1365 = vmatprep.subr.bf16.mxu0 0
        %1366 = vmatpush1.bf16.xpose.msra.mxu0 0
        %1367 = vmatprep.subr.bf16.mxu0 0
        %1368 = vmatpush1.bf16.xpose.msra.mxu0 0
        %1369 = vmatprep.subr.bf16.mxu0 0
        %1370 = vmatpush1.bf16.xpose.msra.mxu0 0
        %1371 = vmatprep.subr.bf16.mxu0 0
        %1372 = vmatpush1.bf16.xpose.msra.mxu0 0
        %1373 = vmatprep.subr.bf16.mxu0 0
        %1374 = vmatpush1.bf16.xpose.msra.mxu0 0
        %1375 = vmatprep.subr.bf16.mxu0 0
        %1376 = vmatpush1.bf16.xpose.msra.mxu0 0
        %1377 = vmatprep.subr.bf16.mxu0 0
        %1378 = vmatpush1.bf16.xpose.msra.mxu0 0
        %1379 = vmatprep.subr.bf16.mxu0 0
        %1380 = vmatpush1.bf16.xpose.msra.mxu0 0
        %1381 = vmatprep.subr.bf16.mxu0 0
        %1382 = vmatpush1.bf16.xpose.msra.mxu0 0
        %1383 = vmatprep.subr.bf16.mxu0 0
        %1384 = vmatpush1.bf16.xpose.msra.mxu0 0
        %1385 = vmatprep.subr.bf16.mxu0 0
        %1386 = vmatpush1.bf16.xpose.msra.mxu0 0
        %1387 = vmatprep.subr.bf16.mxu0 0
        %1388 = vmatpush1.bf16.xpose.msra.mxu0 0
        %1389 = vmatprep.mubr.bf16.mxu0 0
        %1390 = vmatmul.mubr.bf16.gmra.mrb[0].mxu0 %v1352
        %v1391 = vpop.f32.mrb[0].mxu0
        %v1392 = vadd.f32 %v1073, %v1391
        %v1393 = vpop.f32.mrb[0].mxu0
        %v1394 = vpop.f32.mrb[0].mxu0
        %v1395 = vpop.f32.mrb[0].mxu0
        %1396 = vdwg.mxu0
        %v1398 = vsel %vm645, %v1038, 0
        %v1401 = vsel %vm645, %v1053, 0
        %1403 = vmatprep.subr.bf16.mxu0 0
        %1404 = vmatpush1.bf16.xpose.msra.mxu0 %v1401
        %1405 = vmatprep.subr.bf16.mxu0 0
        %1406 = vmatpush1.bf16.xpose.msra.mxu0 0
        %1407 = vmatprep.subr.bf16.mxu0 0
        %1408 = vmatpush1.bf16.xpose.msra.mxu0 0
        %1409 = vmatprep.subr.bf16.mxu0 0
        %1410 = vmatpush1.bf16.xpose.msra.mxu0 0
        %1411 = vmatprep.subr.bf16.mxu0 0
        %1412 = vmatpush1.bf16.xpose.msra.mxu0 0
        %1413 = vmatprep.subr.bf16.mxu0 0
        %1414 = vmatpush1.bf16.xpose.msra.mxu0 0
        %1415 = vmatprep.subr.bf16.mxu0 0
        %1416 = vmatpush1.bf16.xpose.msra.mxu0 0
        %1417 = vmatprep.subr.bf16.mxu0 0
        %1418 = vmatpush1.bf16.xpose.msra.mxu0 0
        %1419 = vmatprep.subr.bf16.mxu0 0
        %1420 = vmatpush1.bf16.xpose.msra.mxu0 0
        %1421 = vmatprep.subr.bf16.mxu0 0
        %1422 = vmatpush1.bf16.xpose.msra.mxu0 0
        %1423 = vmatprep.subr.bf16.mxu0 0
        %1424 = vmatpush1.bf16.xpose.msra.mxu0 0
        %1425 = vmatprep.subr.bf16.mxu0 0
        %1426 = vmatpush1.bf16.xpose.msra.mxu0 0
        %1427 = vmatprep.subr.bf16.mxu0 0
        %1428 = vmatpush1.bf16.xpose.msra.mxu0 0
        %1429 = vmatprep.subr.bf16.mxu0 0
        %1430 = vmatpush1.bf16.xpose.msra.mxu0 0
        %1431 = vmatprep.subr.bf16.mxu0 0
        %1432 = vmatpush1.bf16.xpose.msra.mxu0 0
        %1433 = vmatprep.subr.bf16.mxu0 0
        %1434 = vmatpush1.bf16.xpose.msra.mxu0 0
        %1435 = vmatprep.mubr.bf16.mxu0 0
        %1436 = vmatmul.mubr.bf16.gmra.mrb[0].mxu0 %v1398
        %v1437 = vpop.f32.mrb[0].mxu0
        %v1438 = vadd.f32 %v1073, %v1437
        %v1439 = vpop.f32.mrb[0].mxu0
        %v1440 = vpop.f32.mrb[0].mxu0
        %v1441 = vpop.f32.mrb[0].mxu0
        %1442 = vdwg.mxu0
        %vm1443 = vcmask 64512
        %v1444 = vsel %vm1443, %v1116, -inf
        %1445 = vmax.xlane.f32.xlu0 %v1444
        %v1446 = vpop.xlane.xlu0 %1445
        %v1447 = vsel %vm1443, %v1162, -inf
        %1448 = vmax.xlane.f32.xlu0 %v1447
        %v1449 = vpop.xlane.xlu0 %1448
        %v1450 = vsel %vm1443, %v1208, -inf
        %1451 = vmax.xlane.f32.xlu0 %v1450
        %v1452 = vpop.xlane.xlu0 %1451
        %v1453 = vsel %vm1443, %v1254, -inf
        %1454 = vmax.xlane.f32.xlu0 %v1453
        %v1455 = vpop.xlane.xlu0 %1454
        %v1456 = vsel %vm1443, %v1300, -inf
        %1457 = vmax.xlane.f32.xlu0 %v1456
        %v1458 = vpop.xlane.xlu0 %1457
        %v1459 = vsel %vm1443, %v1346, -inf
        %1460 = vmax.xlane.f32.xlu0 %v1459
        %v1461 = vpop.xlane.xlu0 %1460
        %v1462 = vsel %vm1443, %v1392, -inf
        %1463 = vmax.xlane.f32.xlu0 %v1462
        %v1464 = vpop.xlane.xlu0 %1463
        %v1465 = vsel %vm1443, %v1438, -inf
        %1466 = vmax.xlane.f32.xlu0 %v1465
        %v1467 = vpop.xlane.xlu0 %1466
        %v1468 = vsub.f32 %v1116, %v1446
        %v1469 = vsub.f32 %v1162, %v1449
        %v1470 = vsub.f32 %v1208, %v1452
        %v1471 = vsub.f32 %v1254, %v1455
        %v1472 = vsub.f32 %v1300, %v1458
        %v1473 = vsub.f32 %v1346, %v1461
        %v1474 = vsub.f32 %v1392, %v1464
        %v1475 = vsub.f32 %v1438, %v1467
        %v1476 = vmul.f32 %v1468, 1.442695
        %v1477 = vpow.pop %v1476
        %v1478 = vmul.f32 %v1469, 1.442695
        %v1479 = vpow.pop %v1478
        %v1480 = vmul.f32 %v1470, 1.442695
        %v1481 = vpow.pop %v1480
        %v1482 = vmul.f32 %v1471, 1.442695
        %v1483 = vpow.pop %v1482
        %v1484 = vmul.f32 %v1472, 1.442695
        %v1485 = vpow.pop %v1484
        %v1486 = vmul.f32 %v1473, 1.442695
        %v1487 = vpow.pop %v1486
        %v1488 = vmul.f32 %v1474, 1.442695
        %v1489 = vpow.pop %v1488
        %v1490 = vmul.f32 %v1475, 1.442695
        %v1491 = vpow.pop %v1490
        %v1492 = vsel %vm1443, %v1477, 0.0
        %1493 = vadd.xlane.f32.xlu0 %v1492
        %v1494 = vpop.xlane.xlu0 %1493
        %v1495 = vsel %vm1443, %v1479, 0.0
        %1496 = vadd.xlane.f32.xlu0 %v1495
        %v1497 = vpop.xlane.xlu0 %1496
        %v1498 = vsel %vm1443, %v1481, 0.0
        %1499 = vadd.xlane.f32.xlu0 %v1498
        %v1500 = vpop.xlane.xlu0 %1499
        %v1501 = vsel %vm1443, %v1483, 0.0
        %1502 = vadd.xlane.f32.xlu0 %v1501
        %v1503 = vpop.xlane.xlu0 %1502
        %v1504 = vsel %vm1443, %v1485, 0.0
        %1505 = vadd.xlane.f32.xlu0 %v1504
        %v1506 = vpop.xlane.xlu0 %1505
        %v1507 = vsel %vm1443, %v1487, 0.0
        %1508 = vadd.xlane.f32.xlu0 %v1507
        %v1509 = vpop.xlane.xlu0 %1508
        %v1510 = vsel %vm1443, %v1489, 0.0
        %1511 = vadd.xlane.f32.xlu0 %v1510
        %v1512 = vpop.xlane.xlu0 %1511
        %v1513 = vsel %vm1443, %v1491, 0.0
        %1514 = vadd.xlane.f32.xlu0 %v1513
        %v1515 = vpop.xlane.xlu0 %1514
        %v1516 = vrcp.pop %v1494
        %v1517 = vrcp.pop %v1497
        %v1518 = vrcp.pop %v1500
        %v1519 = vrcp.pop %v1503
        %v1520 = vrcp.pop %v1506
        %v1521 = vrcp.pop %v1509
        %v1522 = vrcp.pop %v1512
        %v1523 = vrcp.pop %v1515
        %v1524 = vmul.f32 %v1477, %v1516
        %v1525 = vmul.f32 %v1479, %v1517
        %v1526 = vmul.f32 %v1481, %v1518
        %v1527 = vmul.f32 %v1483, %v1519
        %v1528 = vmul.f32 %v1485, %v1520
        %v1529 = vmul.f32 %v1487, %v1521
        %v1530 = vmul.f32 %v1489, %v1522
        %v1531 = vmul.f32 %v1491, %v1523
        %v1532 = vpack.c.bf16 %v1524, %v1524
        %v1533 = vpack.c.bf16 %v1525, %v1525
        %v1534 = vpack.c.bf16 %v1526, %v1526
        %v1535 = vpack.c.bf16 %v1527, %v1527
        %v1536 = vpack.c.bf16 %v1528, %v1528
        %v1537 = vpack.c.bf16 %v1529, %v1529
        %v1538 = vpack.c.bf16 %v1530, %v1530
        %v1539 = vpack.c.bf16 %v1531, %v1531
        %v1541 = vsel %vm1443, %v1532, 0
        %vm1543 = vcmask 1043456
        %v1545 = vsel %vm1543, %v1023, 0
        %1547 = vmatprep.subr.bf16.mxu0 0
        %1548 = vmatpush1.bf16.msra.mxu0 %v1545
        %1549 = vmatprep.subr.bf16.mxu0 0
        %1550 = vmatpush1.bf16.msra.mxu0 0
        %1551 = vmatprep.subr.bf16.mxu0 0
        %1552 = vmatpush1.bf16.msra.mxu0 0
        %1553 = vmatprep.subr.bf16.mxu0 0
        %1554 = vmatpush1.bf16.msra.mxu0 0
        %1555 = vmatprep.subr.bf16.mxu0 0
        %1556 = vmatpush1.bf16.msra.mxu0 0
        %1557 = vmatprep.subr.bf16.mxu0 0
        %1558 = vmatpush1.bf16.msra.mxu0 0
        %1559 = vmatprep.subr.bf16.mxu0 0
        %1560 = vmatpush1.bf16.msra.mxu0 0
        %1561 = vmatprep.subr.bf16.mxu0 0
        %1562 = vmatpush1.bf16.msra.mxu0 0
        %1563 = vmatprep.subr.bf16.mxu0 0
        %1564 = vmatpush1.bf16.msra.mxu0 0
        %1565 = vmatprep.subr.bf16.mxu0 0
        %1566 = vmatpush1.bf16.msra.mxu0 0
        %1567 = vmatprep.subr.bf16.mxu0 0
        %1568 = vmatpush1.bf16.msra.mxu0 0
        %1569 = vmatprep.subr.bf16.mxu0 0
        %1570 = vmatpush1.bf16.msra.mxu0 0
        %1571 = vmatprep.subr.bf16.mxu0 0
        %1572 = vmatpush1.bf16.msra.mxu0 0
        %1573 = vmatprep.subr.bf16.mxu0 0
        %1574 = vmatpush1.bf16.msra.mxu0 0
        %1575 = vmatprep.subr.bf16.mxu0 0
        %1576 = vmatpush1.bf16.msra.mxu0 0
        %1577 = vmatprep.subr.bf16.mxu0 0
        %1578 = vmatpush1.bf16.msra.mxu0 0
        %1579 = vmatprep.mubr.bf16.mxu0 0
        %1580 = vmatmul.mubr.bf16.gmra.mrb[0].mxu0 %v1541
        %v1581 = vpop.f32.mrb[0].mxu0
        %v1582 = vadd.f32 0.0, %v1581
        %v1583 = vpop.f32.mrb[0].mxu0
        %v1584 = vpop.f32.mrb[0].mxu0
        %v1585 = vpop.f32.mrb[0].mxu0
        %1586 = vdwg.mxu0
        %v1588 = vsel %vm1443, %v1533, 0
        %v1591 = vsel %vm1543, %v1056, 0
        %1593 = vmatprep.subr.bf16.mxu0 0
        %1594 = vmatpush1.bf16.msra.mxu0 %v1591
        %1595 = vmatprep.subr.bf16.mxu0 0
        %1596 = vmatpush1.bf16.msra.mxu0 0
        %1597 = vmatprep.subr.bf16.mxu0 0
        %1598 = vmatpush1.bf16.msra.mxu0 0
        %1599 = vmatprep.subr.bf16.mxu0 0
        %1600 = vmatpush1.bf16.msra.mxu0 0
        %1601 = vmatprep.subr.bf16.mxu0 0
        %1602 = vmatpush1.bf16.msra.mxu0 0
        %1603 = vmatprep.subr.bf16.mxu0 0
        %1604 = vmatpush1.bf16.msra.mxu0 0
        %1605 = vmatprep.subr.bf16.mxu0 0
        %1606 = vmatpush1.bf16.msra.mxu0 0
        %1607 = vmatprep.subr.bf16.mxu0 0
        %1608 = vmatpush1.bf16.msra.mxu0 0
        %1609 = vmatprep.subr.bf16.mxu0 0
        %1610 = vmatpush1.bf16.msra.mxu0 0
        %1611 = vmatprep.subr.bf16.mxu0 0
        %1612 = vmatpush1.bf16.msra.mxu0 0
        %1613 = vmatprep.subr.bf16.mxu0 0
        %1614 = vmatpush1.bf16.msra.mxu0 0
        %1615 = vmatprep.subr.bf16.mxu0 0
        %1616 = vmatpush1.bf16.msra.mxu0 0
        %1617 = vmatprep.subr.bf16.mxu0 0
        %1618 = vmatpush1.bf16.msra.mxu0 0
        %1619 = vmatprep.subr.bf16.mxu0 0
        %1620 = vmatpush1.bf16.msra.mxu0 0
        %1621 = vmatprep.subr.bf16.mxu0 0
        %1622 = vmatpush1.bf16.msra.mxu0 0
        %1623 = vmatprep.subr.bf16.mxu0 0
        %1624 = vmatpush1.bf16.msra.mxu0 0
        %1625 = vmatprep.mubr.bf16.mxu0 0
        %1626 = vmatmul.mubr.bf16.gmra.mrb[0].mxu0 %v1588
        %v1627 = vpop.f32.mrb[0].mxu0
        %v1628 = vadd.f32 0.0, %v1627
        %v1629 = vpop.f32.mrb[0].mxu0
        %v1630 = vpop.f32.mrb[0].mxu0
        %v1631 = vpop.f32.mrb[0].mxu0
        %1632 = vdwg.mxu0
        %v1634 = vsel %vm1443, %v1534, 0
        %v1637 = vsel %vm1543, %v1058, 0
        %1639 = vmatprep.subr.bf16.mxu0 0
        %1640 = vmatpush1.bf16.msra.mxu0 %v1637
        %1641 = vmatprep.subr.bf16.mxu0 0
        %1642 = vmatpush1.bf16.msra.mxu0 0
        %1643 = vmatprep.subr.bf16.mxu0 0
        %1644 = vmatpush1.bf16.msra.mxu0 0
        %1645 = vmatprep.subr.bf16.mxu0 0
        %1646 = vmatpush1.bf16.msra.mxu0 0
        %1647 = vmatprep.subr.bf16.mxu0 0
        %1648 = vmatpush1.bf16.msra.mxu0 0
        %1649 = vmatprep.subr.bf16.mxu0 0
        %1650 = vmatpush1.bf16.msra.mxu0 0
        %1651 = vmatprep.subr.bf16.mxu0 0
        %1652 = vmatpush1.bf16.msra.mxu0 0
        %1653 = vmatprep.subr.bf16.mxu0 0
        %1654 = vmatpush1.bf16.msra.mxu0 0
        %1655 = vmatprep.subr.bf16.mxu0 0
        %1656 = vmatpush1.bf16.msra.mxu0 0
        %1657 = vmatprep.subr.bf16.mxu0 0
        %1658 = vmatpush1.bf16.msra.mxu0 0
        %1659 = vmatprep.subr.bf16.mxu0 0
        %1660 = vmatpush1.bf16.msra.mxu0 0
        %1661 = vmatprep.subr.bf16.mxu0 0
        %1662 = vmatpush1.bf16.msra.mxu0 0
        %1663 = vmatprep.subr.bf16.mxu0 0
        %1664 = vmatpush1.bf16.msra.mxu0 0
        %1665 = vmatprep.subr.bf16.mxu0 0
        %1666 = vmatpush1.bf16.msra.mxu0 0
        %1667 = vmatprep.subr.bf16.mxu0 0
        %1668 = vmatpush1.bf16.msra.mxu0 0
        %1669 = vmatprep.subr.bf16.mxu0 0
        %1670 = vmatpush1.bf16.msra.mxu0 0
        %1671 = vmatprep.mubr.bf16.mxu0 0
        %1672 = vmatmul.mubr.bf16.gmra.mrb[0].mxu0 %v1634
        %v1673 = vpop.f32.mrb[0].mxu0
        %v1674 = vadd.f32 0.0, %v1673
        %v1675 = vpop.f32.mrb[0].mxu0
        %v1676 = vpop.f32.mrb[0].mxu0
        %v1677 = vpop.f32.mrb[0].mxu0
        %1678 = vdwg.mxu0
        %v1680 = vsel %vm1443, %v1535, 0
        %v1683 = vsel %vm1543, %v1060, 0
        %1685 = vmatprep.subr.bf16.mxu0 0
        %1686 = vmatpush1.bf16.msra.mxu0 %v1683
        %1687 = vmatprep.subr.bf16.mxu0 0
        %1688 = vmatpush1.bf16.msra.mxu0 0
        %1689 = vmatprep.subr.bf16.mxu0 0
        %1690 = vmatpush1.bf16.msra.mxu0 0
        %1691 = vmatprep.subr.bf16.mxu0 0
        %1692 = vmatpush1.bf16.msra.mxu0 0
        %1693 = vmatprep.subr.bf16.mxu0 0
        %1694 = vmatpush1.bf16.msra.mxu0 0
        %1695 = vmatprep.subr.bf16.mxu0 0
        %1696 = vmatpush1.bf16.msra.mxu0 0
        %1697 = vmatprep.subr.bf16.mxu0 0
        %1698 = vmatpush1.bf16.msra.mxu0 0
        %1699 = vmatprep.subr.bf16.mxu0 0
        %1700 = vmatpush1.bf16.msra.mxu0 0
        %1701 = vmatprep.subr.bf16.mxu0 0
        %1702 = vmatpush1.bf16.msra.mxu0 0
        %1703 = vmatprep.subr.bf16.mxu0 0
        %1704 = vmatpush1.bf16.msra.mxu0 0
        %1705 = vmatprep.subr.bf16.mxu0 0
        %1706 = vmatpush1.bf16.msra.mxu0 0
        %1707 = vmatprep.subr.bf16.mxu0 0
        %1708 = vmatpush1.bf16.msra.mxu0 0
        %1709 = vmatprep.subr.bf16.mxu0 0
        %1710 = vmatpush1.bf16.msra.mxu0 0
        %1711 = vmatprep.subr.bf16.mxu0 0
        %1712 = vmatpush1.bf16.msra.mxu0 0
        %1713 = vmatprep.subr.bf16.mxu0 0
        %1714 = vmatpush1.bf16.msra.mxu0 0
        %1715 = vmatprep.subr.bf16.mxu0 0
        %1716 = vmatpush1.bf16.msra.mxu0 0
        %1717 = vmatprep.mubr.bf16.mxu0 0
        %1718 = vmatmul.mubr.bf16.gmra.mrb[0].mxu0 %v1680
        %v1719 = vpop.f32.mrb[0].mxu0
        %v1720 = vadd.f32 0.0, %v1719
        %v1721 = vpop.f32.mrb[0].mxu0
        %v1722 = vpop.f32.mrb[0].mxu0
        %v1723 = vpop.f32.mrb[0].mxu0
        %1724 = vdwg.mxu0
        %v1726 = vsel %vm1443, %v1536, 0
        %v1729 = vsel %vm1543, %v1062, 0
        %1731 = vmatprep.subr.bf16.mxu0 0
        %1732 = vmatpush1.bf16.msra.mxu0 %v1729
        %1733 = vmatprep.subr.bf16.mxu0 0
        %1734 = vmatpush1.bf16.msra.mxu0 0
        %1735 = vmatprep.subr.bf16.mxu0 0
        %1736 = vmatpush1.bf16.msra.mxu0 0
        %1737 = vmatprep.subr.bf16.mxu0 0
        %1738 = vmatpush1.bf16.msra.mxu0 0
        %1739 = vmatprep.subr.bf16.mxu0 0
        %1740 = vmatpush1.bf16.msra.mxu0 0
        %1741 = vmatprep.subr.bf16.mxu0 0
        %1742 = vmatpush1.bf16.msra.mxu0 0
        %1743 = vmatprep.subr.bf16.mxu0 0
        %1744 = vmatpush1.bf16.msra.mxu0 0
        %1745 = vmatprep.subr.bf16.mxu0 0
        %1746 = vmatpush1.bf16.msra.mxu0 0
        %1747 = vmatprep.subr.bf16.mxu0 0
        %1748 = vmatpush1.bf16.msra.mxu0 0
        %1749 = vmatprep.subr.bf16.mxu0 0
        %1750 = vmatpush1.bf16.msra.mxu0 0
        %1751 = vmatprep.subr.bf16.mxu0 0
        %1752 = vmatpush1.bf16.msra.mxu0 0
        %1753 = vmatprep.subr.bf16.mxu0 0
        %1754 = vmatpush1.bf16.msra.mxu0 0
        %1755 = vmatprep.subr.bf16.mxu0 0
        %1756 = vmatpush1.bf16.msra.mxu0 0
        %1757 = vmatprep.subr.bf16.mxu0 0
        %1758 = vmatpush1.bf16.msra.mxu0 0
        %1759 = vmatprep.subr.bf16.mxu0 0
        %1760 = vmatpush1.bf16.msra.mxu0 0
        %1761 = vmatprep.subr.bf16.mxu0 0
        %1762 = vmatpush1.bf16.msra.mxu0 0
        %1763 = vmatprep.mubr.bf16.mxu0 0
        %1764 = vmatmul.mubr.bf16.gmra.mrb[0].mxu0 %v1726
        %v1765 = vpop.f32.mrb[0].mxu0
        %v1766 = vadd.f32 0.0, %v1765
        %v1767 = vpop.f32.mrb[0].mxu0
        %v1768 = vpop.f32.mrb[0].mxu0
        %v1769 = vpop.f32.mrb[0].mxu0
        %1770 = vdwg.mxu0
        %v1772 = vsel %vm1443, %v1537, 0
        %v1775 = vsel %vm1543, %v1064, 0
        %1777 = vmatprep.subr.bf16.mxu0 0
        %1778 = vmatpush1.bf16.msra.mxu0 %v1775
        %1779 = vmatprep.subr.bf16.mxu0 0
        %1780 = vmatpush1.bf16.msra.mxu0 0
        %1781 = vmatprep.subr.bf16.mxu0 0
        %1782 = vmatpush1.bf16.msra.mxu0 0
        %1783 = vmatprep.subr.bf16.mxu0 0
        %1784 = vmatpush1.bf16.msra.mxu0 0
        %1785 = vmatprep.subr.bf16.mxu0 0
        %1786 = vmatpush1.bf16.msra.mxu0 0
        %1787 = vmatprep.subr.bf16.mxu0 0
        %1788 = vmatpush1.bf16.msra.mxu0 0
        %1789 = vmatprep.subr.bf16.mxu0 0
        %1790 = vmatpush1.bf16.msra.mxu0 0
        %1791 = vmatprep.subr.bf16.mxu0 0
        %1792 = vmatpush1.bf16.msra.mxu0 0
        %1793 = vmatprep.subr.bf16.mxu0 0
        %1794 = vmatpush1.bf16.msra.mxu0 0
        %1795 = vmatprep.subr.bf16.mxu0 0
        %1796 = vmatpush1.bf16.msra.mxu0 0
        %1797 = vmatprep.subr.bf16.mxu0 0
        %1798 = vmatpush1.bf16.msra.mxu0 0
        %1799 = vmatprep.subr.bf16.mxu0 0
        %1800 = vmatpush1.bf16.msra.mxu0 0
        %1801 = vmatprep.subr.bf16.mxu0 0
        %1802 = vmatpush1.bf16.msra.mxu0 0
        %1803 = vmatprep.subr.bf16.mxu0 0
        %1804 = vmatpush1.bf16.msra.mxu0 0
        %1805 = vmatprep.subr.bf16.mxu0 0
        %1806 = vmatpush1.bf16.msra.mxu0 0
        %1807 = vmatprep.subr.bf16.mxu0 0
        %1808 = vmatpush1.bf16.msra.mxu0 0
        %1809 = vmatprep.mubr.bf16.mxu0 0
        %1810 = vmatmul.mubr.bf16.gmra.mrb[0].mxu0 %v1772
        %v1811 = vpop.f32.mrb[0].mxu0
        %v1812 = vadd.f32 0.0, %v1811
        %v1813 = vpop.f32.mrb[0].mxu0
        %v1814 = vpop.f32.mrb[0].mxu0
        %v1815 = vpop.f32.mrb[0].mxu0
        %1816 = vdwg.mxu0
        %v1818 = vsel %vm1443, %v1538, 0
        %v1821 = vsel %vm1543, %v1066, 0
        %1823 = vmatprep.subr.bf16.mxu0 0
        %1824 = vmatpush1.bf16.msra.mxu0 %v1821
        %1825 = vmatprep.subr.bf16.mxu0 0
        %1826 = vmatpush1.bf16.msra.mxu0 0
        %1827 = vmatprep.subr.bf16.mxu0 0
        %1828 = vmatpush1.bf16.msra.mxu0 0
        %1829 = vmatprep.subr.bf16.mxu0 0
        %1830 = vmatpush1.bf16.msra.mxu0 0
        %1831 = vmatprep.subr.bf16.mxu0 0
        %1832 = vmatpush1.bf16.msra.mxu0 0
        %1833 = vmatprep.subr.bf16.mxu0 0
        %1834 = vmatpush1.bf16.msra.mxu0 0
        %1835 = vmatprep.subr.bf16.mxu0 0
        %1836 = vmatpush1.bf16.msra.mxu0 0
        %1837 = vmatprep.subr.bf16.mxu0 0
        %1838 = vmatpush1.bf16.msra.mxu0 0
        %1839 = vmatprep.subr.bf16.mxu0 0
        %1840 = vmatpush1.bf16.msra.mxu0 0
        %1841 = vmatprep.subr.bf16.mxu0 0
        %1842 = vmatpush1.bf16.msra.mxu0 0
        %1843 = vmatprep.subr.bf16.mxu0 0
        %1844 = vmatpush1.bf16.msra.mxu0 0
        %1845 = vmatprep.subr.bf16.mxu0 0
        %1846 = vmatpush1.bf16.msra.mxu0 0
        %1847 = vmatprep.subr.bf16.mxu0 0
        %1848 = vmatpush1.bf16.msra.mxu0 0
        %1849 = vmatprep.subr.bf16.mxu0 0
        %1850 = vmatpush1.bf16.msra.mxu0 0
        %1851 = vmatprep.subr.bf16.mxu0 0
        %1852 = vmatpush1.bf16.msra.mxu0 0
        %1853 = vmatprep.subr.bf16.mxu0 0
        %1854 = vmatpush1.bf16.msra.mxu0 0
        %1855 = vmatprep.mubr.bf16.mxu0 0
        %1856 = vmatmul.mubr.bf16.gmra.mrb[0].mxu0 %v1818
        %v1857 = vpop.f32.mrb[0].mxu0
        %v1858 = vadd.f32 0.0, %v1857
        %v1859 = vpop.f32.mrb[0].mxu0
        %v1860 = vpop.f32.mrb[0].mxu0
        %v1861 = vpop.f32.mrb[0].mxu0
        %1862 = vdwg.mxu0
        %v1864 = vsel %vm1443, %v1539, 0
        %v1867 = vsel %vm1543, %v1068, 0
        %1869 = vmatprep.subr.bf16.mxu0 0
        %1870 = vmatpush1.bf16.msra.mxu0 %v1867
        %1871 = vmatprep.subr.bf16.mxu0 0
        %1872 = vmatpush1.bf16.msra.mxu0 0
        %1873 = vmatprep.subr.bf16.mxu0 0
        %1874 = vmatpush1.bf16.msra.mxu0 0
        %1875 = vmatprep.subr.bf16.mxu0 0
        %1876 = vmatpush1.bf16.msra.mxu0 0
        %1877 = vmatprep.subr.bf16.mxu0 0
        %1878 = vmatpush1.bf16.msra.mxu0 0
        %1879 = vmatprep.subr.bf16.mxu0 0
        %1880 = vmatpush1.bf16.msra.mxu0 0
        %1881 = vmatprep.subr.bf16.mxu0 0
        %1882 = vmatpush1.bf16.msra.mxu0 0
        %1883 = vmatprep.subr.bf16.mxu0 0
        %1884 = vmatpush1.bf16.msra.mxu0 0
        %1885 = vmatprep.subr.bf16.mxu0 0
        %1886 = vmatpush1.bf16.msra.mxu0 0
        %1887 = vmatprep.subr.bf16.mxu0 0
        %1888 = vmatpush1.bf16.msra.mxu0 0
        %1889 = vmatprep.subr.bf16.mxu0 0
        %1890 = vmatpush1.bf16.msra.mxu0 0
        %1891 = vmatprep.subr.bf16.mxu0 0
        %1892 = vmatpush1.bf16.msra.mxu0 0
        %1893 = vmatprep.subr.bf16.mxu0 0
        %1894 = vmatpush1.bf16.msra.mxu0 0
        %1895 = vmatprep.subr.bf16.mxu0 0
        %1896 = vmatpush1.bf16.msra.mxu0 0
        %1897 = vmatprep.subr.bf16.mxu0 0
        %1898 = vmatpush1.bf16.msra.mxu0 0
        %1899 = vmatprep.subr.bf16.mxu0 0
        %1900 = vmatpush1.bf16.msra.mxu0 0
        %1901 = vmatprep.mubr.bf16.mxu0 0
        %1902 = vmatmul.mubr.bf16.gmra.mrb[0].mxu0 %v1864
        %v1903 = vpop.f32.mrb[0].mxu0
        %v1904 = vadd.f32 0.0, %v1903
        %v1905 = vpop.f32.mrb[0].mxu0
        %v1906 = vpop.f32.mrb[0].mxu0
        %v1907 = vpop.f32.mrb[0].mxu0
        %1908 = vdwg.mxu0
        %1910 = vrot.lane.b32.xlu0 %v1628, 16
        %v1911 = vpop.permute.xlu0 %1910
        %1914 = vrot.lane.b32.xlu0 %v1674, 32
        %v1915 = vpop.permute.xlu0 %1914
        %1918 = vrot.lane.b32.xlu0 %v1720, 48
        %v1919 = vpop.permute.xlu0 %1918
        %1922 = vrot.lane.b32.xlu0 %v1766, 64
        %v1923 = vpop.permute.xlu0 %1922
        %1926 = vrot.lane.b32.xlu0 %v1812, 80
        %v1927 = vpop.permute.xlu0 %1926
        %1930 = vrot.lane.b32.xlu0 %v1858, 96
        %v1931 = vpop.permute.xlu0 %1930
        %1934 = vrot.lane.b32.xlu0 %v1904, 112
        %v1935 = vpop.permute.xlu0 %1934
        %v1937 = vsel %vm645, %v1582, %v1911
        %vm1938 = vcmask 261120
        %v1939 = vsel %vm1938, %v1937, %v1915
        %vm1940 = vcmask 392192
        %v1941 = vsel %vm1940, %v1939, %v1919
        %vm1942 = vcmask 523264
        %v1943 = vsel %vm1942, %v1941, %v1923
        %vm1944 = vcmask 654336
        %v1945 = vsel %vm1944, %v1943, %v1927
        %vm1946 = vcmask 785408
        %v1947 = vsel %vm1946, %v1945, %v1931
        %vm1948 = vcmask 916480
        %v1949 = vsel %vm1948, %v1947, %v1935
        %v1950 = vpack.c.bf16 %v1949, %v1949
        %v1952 = vlaneseq
        %v1953 = vshrl.u32 %v1952, 7
        %v1954 = vsub.s32 0, %v1953
        %v1955 = vrot.slane %v740, %v1954
        %v1973 = vunpack.c.l.b16 %v724
        %v1974 = vunpack.c.l.b16 %v725
        %v1975 = vunpack.c.l.b16 %v726
        %v1976 = vunpack.c.l.b16 %v727
        %v1977 = vunpack.c.l.b16 %v728
        %v1978 = vunpack.c.l.b16 %v729
        %v1979 = vunpack.c.l.b16 %v730
        %v1980 = vunpack.c.l.b16 %v731
        %v1981 = vunpack.c.l.b16 %v732
        %v1982 = vunpack.c.l.b16 %v733
        %v1983 = vunpack.c.l.b16 %v734
        %v1984 = vunpack.c.l.b16 %v735
        %v1985 = vunpack.c.l.b16 %v736
        %v1986 = vunpack.c.l.b16 %v737
        %v1987 = vunpack.c.l.b16 %v738
        %v1988 = vunpack.c.l.b16 %v739
        %v1989 = vpack.c.b16 %v1974, %v1973
        %v1990 = vpack.c.b16 %v1976, %v1975
        %v1991 = vpack.c.b16 %v1978, %v1977
        %v1992 = vpack.c.b16 %v1980, %v1979
        %v1993 = vpack.c.b16 %v1982, %v1981
        %v1994 = vpack.c.b16 %v1984, %v1983
        %v1995 = vpack.c.b16 %v1986, %v1985
        %v1996 = vpack.c.b16 %v1988, %v1987
        %2005 = vmatprep.subr.bf16.mxu0 0
        %2006 = vmatpush1.bf16.msra.mxu0 %v1989
        %2007 = vmatprep.subr.bf16.mxu0 0
        %2008 = vmatpush1.bf16.msra.mxu0 %v1990
        %2009 = vmatprep.subr.bf16.mxu0 0
        %2010 = vmatpush1.bf16.msra.mxu0 %v1991
        %2011 = vmatprep.subr.bf16.mxu0 0
        %2012 = vmatpush1.bf16.msra.mxu0 %v1992
        %2013 = vmatprep.subr.bf16.mxu0 0
        %2014 = vmatpush1.bf16.msra.mxu0 %v1993
        %2015 = vmatprep.subr.bf16.mxu0 0
        %2016 = vmatpush1.bf16.msra.mxu0 %v1994
        %2017 = vmatprep.subr.bf16.mxu0 0
        %2018 = vmatpush1.bf16.msra.mxu0 %v1995
        %2019 = vmatprep.subr.bf16.mxu0 0
        %2020 = vmatpush1.bf16.msra.mxu0 %v1996
        %2021 = vmatprep.subr.bf16.mxu0 0
        %2022 = vmatpush1.bf16.msra.mxu0 0
        %2023 = vmatprep.subr.bf16.mxu0 0
        %2024 = vmatpush1.bf16.msra.mxu0 0
        %2025 = vmatprep.subr.bf16.mxu0 0
        %2026 = vmatpush1.bf16.msra.mxu0 0
        %2027 = vmatprep.subr.bf16.mxu0 0
        %2028 = vmatpush1.bf16.msra.mxu0 0
        %2029 = vmatprep.subr.bf16.mxu0 0
        %2030 = vmatpush1.bf16.msra.mxu0 0
        %2031 = vmatprep.subr.bf16.mxu0 0
        %2032 = vmatpush1.bf16.msra.mxu0 0
        %2033 = vmatprep.subr.bf16.mxu0 0
        %2034 = vmatpush1.bf16.msra.mxu0 0
        %2035 = vmatprep.subr.bf16.mxu0 0
        %2036 = vmatpush1.bf16.msra.mxu0 0
        %2037 = vmatprep.mubr.bf16.mxu0 0
        %2038 = vmatmul.mubr.bf16.gmra.mrb[0].mxu0 %v1950
        %v2039 = vpop.f32.mrb[0].mxu0
        %v2040 = vadd.f32 %v1955, %v2039
        %v2041 = vpop.f32.mrb[0].mxu0
        %v2042 = vpop.f32.mrb[0].mxu0
        %v2043 = vpop.f32.mrb[0].mxu0
        %2044 = vdwg.mxu0
        %v2045 = vadd.f32 %v689, %v2040
        %2046 = vadd.xlane.f32.xlu0 %v2045
        %v2047 = vpop.xlane.xlu0 %2046
        %v2048 = vrcp.pop 128.0
        %v2049 = vmul.f32 %v2047, %v2048
        %v2050 = vsub.f32 %v2045, %v2049
        %v2051 = vmul.f32 %v2050, %v2050
        %2052 = vadd.xlane.f32.xlu0 %v2051
        %v2053 = vpop.xlane.xlu0 %2052
        %v2054 = vmul.f32 %v2053, %v2048
        %v2055 = vadd.f32 %v2054, 1e-05
        %v2056 = vrsqrt.pop %v2055
        %v2057 = vmul.f32 %v2050, %v2056
        %v2059 = vlaneseq
        %v2060 = vshrl.u32 %v2059, 7
        %v2061 = vsub.s32 0, %v2060
        %v2062 = vrot.slane %v791, %v2061
        %v2064 = vmul.f32 %v2057, %v2062
        %v2066 = vlaneseq
        %v2067 = vshrl.u32 %v2066, 7
        %v2068 = vsub.s32 0, %v2067
        %v2069 = vrot.slane %v792, %v2068
        %v2071 = vadd.f32 %v2064, %v2069
        %v2072 = vpack.c.bf16 %v2071, %v2071
        %v2074 = vlaneseq
        %v2075 = vshrl.u32 %v2074, 7
        %v2076 = vsub.s32 0, %v2075
        %v2077 = vrot.slane %v757, %v2076
        %v2078 = vlaneseq
        %v2079 = vshrl.u32 %v2078, 7
        %v2080 = vsub.s32 1, %v2079
        %v2081 = vrot.slane %v757, %v2080
        %v2100 = vunpack.c.l.b16 %v741
        %v2101 = vunpack.c.h.b16 %v741
        %v2102 = vunpack.c.l.b16 %v742
        %v2103 = vunpack.c.h.b16 %v742
        %v2104 = vunpack.c.l.b16 %v743
        %v2105 = vunpack.c.h.b16 %v743
        %v2106 = vunpack.c.l.b16 %v744
        %v2107 = vunpack.c.h.b16 %v744
        %v2108 = vunpack.c.l.b16 %v745
        %v2109 = vunpack.c.h.b16 %v745
        %v2110 = vunpack.c.l.b16 %v746
        %v2111 = vunpack.c.h.b16 %v746
        %v2112 = vunpack.c.l.b16 %v747
        %v2113 = vunpack.c.h.b16 %v747
        %v2114 = vunpack.c.l.b16 %v748
        %v2115 = vunpack.c.h.b16 %v748
        %v2116 = vunpack.c.l.b16 %v749
        %v2117 = vunpack.c.h.b16 %v749
        %v2118 = vunpack.c.l.b16 %v750
        %v2119 = vunpack.c.h.b16 %v750
        %v2120 = vunpack.c.l.b16 %v751
        %v2121 = vunpack.c.h.b16 %v751
        %v2122 = vunpack.c.l.b16 %v752
        %v2123 = vunpack.c.h.b16 %v752
        %v2124 = vunpack.c.l.b16 %v753
        %v2125 = vunpack.c.h.b16 %v753
        %v2126 = vunpack.c.l.b16 %v754
        %v2127 = vunpack.c.h.b16 %v754
        %v2128 = vunpack.c.l.b16 %v755
        %v2129 = vunpack.c.h.b16 %v755
        %v2130 = vunpack.c.l.b16 %v756
        %v2131 = vunpack.c.h.b16 %v756
        %v2132 = vpack.c.b16 %v2102, %v2100
        %v2133 = vpack.c.b16 %v2103, %v2101
        %v2134 = vpack.c.b16 %v2106, %v2104
        %v2135 = vpack.c.b16 %v2107, %v2105
        %v2136 = vpack.c.b16 %v2110, %v2108
        %v2137 = vpack.c.b16 %v2111, %v2109
        %v2138 = vpack.c.b16 %v2114, %v2112
        %v2139 = vpack.c.b16 %v2115, %v2113
        %v2140 = vpack.c.b16 %v2118, %v2116
        %v2141 = vpack.c.b16 %v2119, %v2117
        %v2142 = vpack.c.b16 %v2122, %v2120
        %v2143 = vpack.c.b16 %v2123, %v2121
        %v2144 = vpack.c.b16 %v2126, %v2124
        %v2145 = vpack.c.b16 %v2127, %v2125
        %v2146 = vpack.c.b16 %v2130, %v2128
        %v2147 = vpack.c.b16 %v2131, %v2129
        %2164 = vmatprep.subr.bf16.mxu0 %v2133
        %2165 = vmatpush1.bf16.msra.mxu0 %v2132
        %2166 = vmatprep.subr.bf16.mxu0 %v2135
        %2167 = vmatpush1.bf16.msra.mxu0 %v2134
        %2168 = vmatprep.subr.bf16.mxu0 %v2137
        %2169 = vmatpush1.bf16.msra.mxu0 %v2136
        %2170 = vmatprep.subr.bf16.mxu0 %v2139
        %2171 = vmatpush1.bf16.msra.mxu0 %v2138
        %2172 = vmatprep.subr.bf16.mxu0 %v2141
        %2173 = vmatpush1.bf16.msra.mxu0 %v2140
        %2174 = vmatprep.subr.bf16.mxu0 %v2143
        %2175 = vmatpush1.bf16.msra.mxu0 %v2142
        %2176 = vmatprep.subr.bf16.mxu0 %v2145
        %2177 = vmatpush1.bf16.msra.mxu0 %v2144
        %2178 = vmatprep.subr.bf16.mxu0 %v2147
        %2179 = vmatpush1.bf16.msra.mxu0 %v2146
        %2180 = vmatprep.subr.bf16.mxu0 0
        %2181 = vmatpush1.bf16.msra.mxu0 0
        %2182 = vmatprep.subr.bf16.mxu0 0
        %2183 = vmatpush1.bf16.msra.mxu0 0
        %2184 = vmatprep.subr.bf16.mxu0 0
        %2185 = vmatpush1.bf16.msra.mxu0 0
        %2186 = vmatprep.subr.bf16.mxu0 0
        %2187 = vmatpush1.bf16.msra.mxu0 0
        %2188 = vmatprep.subr.bf16.mxu0 0
        %2189 = vmatpush1.bf16.msra.mxu0 0
        %2190 = vmatprep.subr.bf16.mxu0 0
        %2191 = vmatpush1.bf16.msra.mxu0 0
        %2192 = vmatprep.subr.bf16.mxu0 0
        %2193 = vmatpush1.bf16.msra.mxu0 0
        %2194 = vmatprep.subr.bf16.mxu0 0
        %2195 = vmatpush1.bf16.msra.mxu0 0
        %2196 = vmatprep.mubr.bf16.mxu0 0
        %2197 = vmatmul.mubr.bf16.gmra.mrb[0].mxu0 %v2072
        %v2198 = vpop.f32.mrb[0].mxu0
        %v2199 = vadd.f32 %v2077, %v2198
        %v2200 = vpop.f32.mrb[0].mxu0
        %v2201 = vadd.f32 %v2081, %v2200
        %v2202 = vpop.f32.mrb[0].mxu0
        %v2203 = vpop.f32.mrb[0].mxu0
        %2204 = vdwg.mxu0
        %v2205 = vmax.f32 %v2199, 0.0
        %v2206 = vmax.f32 %v2201, 0.0
        %v2207 = vpack.c.bf16 %v2205, %v2205
        %v2208 = vpack.c.bf16 %v2206, %v2206
        %v2210 = vlaneseq
        %v2211 = vshrl.u32 %v2210, 7
        %v2212 = vsub.s32 0, %v2211
        %v2213 = vrot.slane %v790, %v2212
        %v2247 = vunpack.c.l.b16 %v758
        %v2248 = vunpack.c.l.b16 %v759
        %v2249 = vunpack.c.l.b16 %v760
        %v2250 = vunpack.c.l.b16 %v761
        %v2251 = vunpack.c.l.b16 %v762
        %v2252 = vunpack.c.l.b16 %v763
        %v2253 = vunpack.c.l.b16 %v764
        %v2254 = vunpack.c.l.b16 %v765
        %v2255 = vunpack.c.l.b16 %v766
        %v2256 = vunpack.c.l.b16 %v767
        %v2257 = vunpack.c.l.b16 %v768
        %v2258 = vunpack.c.l.b16 %v769
        %v2259 = vunpack.c.l.b16 %v770
        %v2260 = vunpack.c.l.b16 %v771
        %v2261 = vunpack.c.l.b16 %v772
        %v2262 = vunpack.c.l.b16 %v773
        %v2263 = vunpack.c.l.b16 %v774
        %v2264 = vunpack.c.l.b16 %v775
        %v2265 = vunpack.c.l.b16 %v776
        %v2266 = vunpack.c.l.b16 %v777
        %v2267 = vunpack.c.l.b16 %v778
        %v2268 = vunpack.c.l.b16 %v779
        %v2269 = vunpack.c.l.b16 %v780
        %v2270 = vunpack.c.l.b16 %v781
        %v2271 = vunpack.c.l.b16 %v782
        %v2272 = vunpack.c.l.b16 %v783
        %v2273 = vunpack.c.l.b16 %v784
        %v2274 = vunpack.c.l.b16 %v785
        %v2275 = vunpack.c.l.b16 %v786
        %v2276 = vunpack.c.l.b16 %v787
        %v2277 = vunpack.c.l.b16 %v788
        %v2278 = vunpack.c.l.b16 %v789
        %v2279 = vpack.c.b16 %v2248, %v2247
        %v2280 = vpack.c.b16 %v2250, %v2249
        %v2281 = vpack.c.b16 %v2252, %v2251
        %v2282 = vpack.c.b16 %v2254, %v2253
        %v2283 = vpack.c.b16 %v2256, %v2255
        %v2284 = vpack.c.b16 %v2258, %v2257
        %v2285 = vpack.c.b16 %v2260, %v2259
        %v2286 = vpack.c.b16 %v2262, %v2261
        %v2287 = vpack.c.b16 %v2264, %v2263
        %v2288 = vpack.c.b16 %v2266, %v2265
        %v2289 = vpack.c.b16 %v2268, %v2267
        %v2290 = vpack.c.b16 %v2270, %v2269
        %v2291 = vpack.c.b16 %v2272, %v2271
        %v2292 = vpack.c.b16 %v2274, %v2273
        %v2293 = vpack.c.b16 %v2276, %v2275
        %v2294 = vpack.c.b16 %v2278, %v2277
        %2311 = vmatprep.subr.bf16.mxu0 0
        %2312 = vmatpush1.bf16.msra.mxu0 %v2279
        %2313 = vmatprep.subr.bf16.mxu0 0
        %2314 = vmatpush1.bf16.msra.mxu0 %v2280
        %2315 = vmatprep.subr.bf16.mxu0 0
        %2316 = vmatpush1.bf16.msra.mxu0 %v2281
        %2317 = vmatprep.subr.bf16.mxu0 0
        %2318 = vmatpush1.bf16.msra.mxu0 %v2282
        %2319 = vmatprep.subr.bf16.mxu0 0
        %2320 = vmatpush1.bf16.msra.mxu0 %v2283
        %2321 = vmatprep.subr.bf16.mxu0 0
        %2322 = vmatpush1.bf16.msra.mxu0 %v2284
        %2323 = vmatprep.subr.bf16.mxu0 0
        %2324 = vmatpush1.bf16.msra.mxu0 %v2285
        %2325 = vmatprep.subr.bf16.mxu0 0
        %2326 = vmatpush1.bf16.msra.mxu0 %v2286
        %2327 = vmatprep.subr.bf16.mxu0 0
        %2328 = vmatpush1.bf16.msra.mxu0 %v2287
        %2329 = vmatprep.subr.bf16.mxu0 0
        %2330 = vmatpush1.bf16.msra.mxu0 %v2288
        %2331 = vmatprep.subr.bf16.mxu0 0
        %2332 = vmatpush1.bf16.msra.mxu0 %v2289
        %2333 = vmatprep.subr.bf16.mxu0 0
        %2334 = vmatpush1.bf16.msra.mxu0 %v2290
        %2335 = vmatprep.subr.bf16.mxu0 0
        %2336 = vmatpush1.bf16.msra.mxu0 %v2291
        %2337 = vmatprep.subr.bf16.mxu0 0
        %2338 = vmatpush1.bf16.msra.mxu0 %v2292
        %2339 = vmatprep.subr.bf16.mxu0 0
        %2340 = vmatpush1.bf16.msra.mxu0 %v2293
        %2341 = vmatprep.subr.bf16.mxu0 0
        %2342 = vmatpush1.bf16.msra.mxu0 %v2294
        %2343 = vmatprep.mubr.bf16.mxu0 %v2208
        %2344 = vmatmul.mubr.bf16.gmra.mrb[0].mxu0 %v2207
        %v2345 = vpop.f32.mrb[0].mxu0
        %v2346 = vadd.f32 %v2213, %v2345
        %v2347 = vpop.f32.mrb[0].mxu0
        %v2348 = vpop.f32.mrb[0].mxu0
        %v2349 = vpop.f32.mrb[0].mxu0
        %2350 = vdwg.mxu0
        %v2351 = vadd.f32 %v2071, %v2346
        %2352 = vadd.xlane.f32.xlu0 %v2351
        %v2353 = vpop.xlane.xlu0 %2352
        %v2354 = vmul.f32 %v2353, %v2048
        %v2355 = vsub.f32 %v2351, %v2354
        %v2356 = vmul.f32 %v2355, %v2355
        %2357 = vadd.xlane.f32.xlu0 %v2356
        %v2358 = vpop.xlane.xlu0 %2357
        %v2359 = vmul.f32 %v2358, %v2048
        %v2360 = vadd.f32 %v2359, 1e-05
        %v2361 = vrsqrt.pop %v2360
        %v2362 = vmul.f32 %v2355, %v2361
        %v2364 = vlaneseq
        %v2365 = vshrl.u32 %v2364, 7
        %v2366 = vsub.s32 0, %v2365
        %v2367 = vrot.slane %v793, %v2366
        %v2369 = vmul.f32 %v2362, %v2367
        %v2371 = vlaneseq
        %v2372 = vshrl.u32 %v2371, 7
        %v2373 = vsub.s32 0, %v2372
        %v2374 = vrot.slane %v794, %v2373
        %v2376 = vadd.f32 %v2369, %v2374
        %s2377 = scalar_lea.vmem [#allocation2], 192
        %v2378 = vld [vmem:[%s2377] sm:$0xff]
        %v2379 = vld [vmem:[%s2377 + $0x8] sm:$0xf]
        %v2380 = vld [vmem:[%s2377 + $0xc] sm:$0xff]
        %v2381 = vld [vmem:[%s2377 + $0x14] sm:$0xf]
        %v2382 = vld [vmem:[%s2377 + $0x18] sm:$0xff]
        %v2383 = vld [vmem:[%s2377 + $0x20] sm:$0xf]
        %v2384 = vld [vmem:[%s2377 + $0x24] sm:$0xff]
        %v2385 = vld [vmem:[%s2377 + $0x2c] sm:$0xf]
        %v2386 = vld [vmem:[%s2377 + $0x30] sm:$0xff]
        %v2387 = vld [vmem:[%s2377 + $0x38] sm:$0xf]
        %v2388 = vld [vmem:[%s2377 + $0x3c] sm:$0xff]
        %v2389 = vld [vmem:[%s2377 + $0x44] sm:$0xf]
        %v2390 = vld [vmem:[%s2377 + $0x48] sm:$0xff]
        %v2391 = vld [vmem:[%s2377 + $0x50] sm:$0xf]
        %v2392 = vld [vmem:[%s2377 + $0x54] sm:$0xff]
        %v2393 = vld [vmem:[%s2377 + $0x5c] sm:$0xf]
        %v2394 = vld [vmem:[%s2377 + $0x60] sm:$0xff]
        %v2395 = vld [vmem:[%s2377 + $0x68] sm:$0xf]
        %v2396 = vld [vmem:[%s2377 + $0x6c] sm:$0xff]
        %v2397 = vld [vmem:[%s2377 + $0x74] sm:$0xf]
        %v2398 = vld [vmem:[%s2377 + $0x78] sm:$0xff]
        %v2399 = vld [vmem:[%s2377 + $0x80] sm:$0xf]
        %v2400 = vld [vmem:[%s2377 + $0x84] sm:$0xff]
        %v2401 = vld [vmem:[%s2377 + $0x8c] sm:$0xf]
        %v2402 = vld [vmem:[%s2377 + $0x90] sm:$0xff]
        %v2403 = vld [vmem:[%s2377 + $0x98] sm:$0xf]
        %v2404 = vld [vmem:[%s2377 + $0x9c] sm:$0xff]
        %v2405 = vld [vmem:[%s2377 + $0xa4] sm:$0xf]
        %v2406 = vld [vmem:[%s2377 + $0xa8] sm:$0xff]
        %v2407 = vld [vmem:[%s2377 + $0xb0] sm:$0xf]
        %v2408 = vld [vmem:[%s2377 + $0xb4] sm:$0xff]
        %v2409 = vld [vmem:[%s2377 + $0xbc] sm:$0xf]
        %s2410 = scalar_lea.vmem %s5, 3
        %v2411 = vld [vmem:[%s2410] sm:$0x7]
        %s2412 = scalar_lea.vmem [#allocation5], 64
        %v2413 = vld [vmem:[%s2412] sm:$0xf]
        %v2414 = vld [vmem:[%s2412 + $0x4] sm:$0xf]
        %v2415 = vld [vmem:[%s2412 + $0x8] sm:$0xf]
        %v2416 = vld [vmem:[%s2412 + $0xc] sm:$0xf]
        %v2417 = vld [vmem:[%s2412 + $0x10] sm:$0xf]
        %v2418 = vld [vmem:[%s2412 + $0x14] sm:$0xf]
        %v2419 = vld [vmem:[%s2412 + $0x18] sm:$0xf]
        %v2420 = vld [vmem:[%s2412 + $0x1c] sm:$0xf]
        %v2421 = vld [vmem:[%s2412 + $0x20] sm:$0xf]
        %v2422 = vld [vmem:[%s2412 + $0x24] sm:$0xf]
        %v2423 = vld [vmem:[%s2412 + $0x28] sm:$0xf]
        %v2424 = vld [vmem:[%s2412 + $0x2c] sm:$0xf]
        %v2425 = vld [vmem:[%s2412 + $0x30] sm:$0xf]
        %v2426 = vld [vmem:[%s2412 + $0x34] sm:$0xf]
        %v2427 = vld [vmem:[%s2412 + $0x38] sm:$0xf]
        %v2428 = vld [vmem:[%s2412 + $0x3c] sm:$0xf]
        %s2429 = scalar_lea.vmem %s7, 1
        %v2430 = vld [vmem:[%s2429] sm:$0x1]
        %s2431 = scalar_lea.vmem [#allocation7], 128
        %v2432 = vld [vmem:[%s2431] sm:$0xff]
        %v2433 = vld [vmem:[%s2431 + $0x8] sm:$0xff]
        %v2434 = vld [vmem:[%s2431 + $0x10] sm:$0xff]
        %v2435 = vld [vmem:[%s2431 + $0x18] sm:$0xff]
        %v2436 = vld [vmem:[%s2431 + $0x20] sm:$0xff]
        %v2437 = vld [vmem:[%s2431 + $0x28] sm:$0xff]
        %v2438 = vld [vmem:[%s2431 + $0x30] sm:$0xff]
        %v2439 = vld [vmem:[%s2431 + $0x38] sm:$0xff]
        %v2440 = vld [vmem:[%s2431 + $0x40] sm:$0xff]
        %v2441 = vld [vmem:[%s2431 + $0x48] sm:$0xff]
        %v2442 = vld [vmem:[%s2431 + $0x50] sm:$0xff]
        %v2443 = vld [vmem:[%s2431 + $0x58] sm:$0xff]
        %v2444 = vld [vmem:[%s2431 + $0x60] sm:$0xff]
        %v2445 = vld [vmem:[%s2431 + $0x68] sm:$0xff]
        %v2446 = vld [vmem:[%s2431 + $0x70] sm:$0xff]
        %v2447 = vld [vmem:[%s2431 + $0x78] sm:$0xff]
        %s2448 = scalar_lea.vmem %s9, 2
        %v2449 = vld [vmem:[%s2448] sm:$0x3]
        %s2450 = scalar_lea.vmem [#allocation8], 128
        %v2451 = vld [vmem:[%s2450] sm:$0xf]
        %v2452 = vld [vmem:[%s2450 + $0x4] sm:$0xf]
        %v2453 = vld [vmem:[%s2450 + $0x8] sm:$0xf]
        %v2454 = vld [vmem:[%s2450 + $0xc] sm:$0xf]
        %v2455 = vld [vmem:[%s2450 + $0x10] sm:$0xf]
        %v2456 = vld [vmem:[%s2450 + $0x14] sm:$0xf]
        %v2457 = vld [vmem:[%s2450 + $0x18] sm:$0xf]
        %v2458 = vld [vmem:[%s2450 + $0x1c] sm:$0xf]
        %v2459 = vld [vmem:[%s2450 + $0x20] sm:$0xf]
        %v2460 = vld [vmem:[%s2450 + $0x24] sm:$0xf]
        %v2461 = vld [vmem:[%s2450 + $0x28] sm:$0xf]
        %v2462 = vld [vmem:[%s2450 + $0x2c] sm:$0xf]
        %v2463 = vld [vmem:[%s2450 + $0x30] sm:$0xf]
        %v2464 = vld [vmem:[%s2450 + $0x34] sm:$0xf]
        %v2465 = vld [vmem:[%s2450 + $0x38] sm:$0xf]
        %v2466 = vld [vmem:[%s2450 + $0x3c] sm:$0xf]
        %v2467 = vld [vmem:[%s2450 + $0x40] sm:$0xf]
        %v2468 = vld [vmem:[%s2450 + $0x44] sm:$0xf]
        %v2469 = vld [vmem:[%s2450 + $0x48] sm:$0xf]
        %v2470 = vld [vmem:[%s2450 + $0x4c] sm:$0xf]
        %v2471 = vld [vmem:[%s2450 + $0x50] sm:$0xf]
        %v2472 = vld [vmem:[%s2450 + $0x54] sm:$0xf]
        %v2473 = vld [vmem:[%s2450 + $0x58] sm:$0xf]
        %v2474 = vld [vmem:[%s2450 + $0x5c] sm:$0xf]
        %v2475 = vld [vmem:[%s2450 + $0x60] sm:$0xf]
        %v2476 = vld [vmem:[%s2450 + $0x64] sm:$0xf]
        %v2477 = vld [vmem:[%s2450 + $0x68] sm:$0xf]
        %v2478 = vld [vmem:[%s2450 + $0x6c] sm:$0xf]
        %v2479 = vld [vmem:[%s2450 + $0x70] sm:$0xf]
        %v2480 = vld [vmem:[%s2450 + $0x74] sm:$0xf]
        %v2481 = vld [vmem:[%s2450 + $0x78] sm:$0xf]
        %v2482 = vld [vmem:[%s2450 + $0x7c] sm:$0xf]
        %s2483 = scalar_lea.vmem %s11, 1
        %v2484 = vld [vmem:[%s2483] sm:$0x1]
        %s2485 = scalar_lea.vmem %s12, 1
        %v2486 = vld [vmem:[%s2485] sm:$0x1]
        %s2487 = scalar_lea.vmem %s13, 1
        %v2488 = vld [vmem:[%s2487] sm:$0x1]
        %s2489 = scalar_lea.vmem %s14, 1
        %v2490 = vld [vmem:[%s2489] sm:$0x1]
        %s2491 = scalar_lea.vmem %s15, 1
        %v2492 = vld [vmem:[%s2491] sm:$0x1]
        %v2493 = vpack.c.bf16 %v2376, %v2376
        %v2495 = vlaneseq
        %v2496 = vshrl.u32 %v2495, 7
        %v2497 = vsub.s32 0, %v2496
        %v2498 = vrot.slane %v2411, %v2497
        %v2499 = vlaneseq
        %v2500 = vshrl.u32 %v2499, 7
        %v2501 = vsub.s32 1, %v2500
        %v2502 = vrot.slane %v2411, %v2501
        %v2503 = vlaneseq
        %v2504 = vshrl.u32 %v2503, 7
        %v2505 = vsub.s32 2, %v2504
        %v2506 = vrot.slane %v2411, %v2505
        %v2542 = vunpack.c.l.b16 %v2378
        %v2543 = vunpack.c.h.b16 %v2378
        %v2544 = vunpack.c.l.b16 %v2379
        %v2545 = vunpack.c.l.b16 %v2380
        %v2546 = vunpack.c.h.b16 %v2380
        %v2547 = vunpack.c.l.b16 %v2381
        %v2548 = vunpack.c.l.b16 %v2382
        %v2549 = vunpack.c.h.b16 %v2382
        %v2550 = vunpack.c.l.b16 %v2383
        %v2551 = vunpack.c.l.b16 %v2384
        %v2552 = vunpack.c.h.b16 %v2384
        %v2553 = vunpack.c.l.b16 %v2385
        %v2554 = vunpack.c.l.b16 %v2386
        %v2555 = vunpack.c.h.b16 %v2386
        %v2556 = vunpack.c.l.b16 %v2387
        %v2557 = vunpack.c.l.b16 %v2388
        %v2558 = vunpack.c.h.b16 %v2388
        %v2559 = vunpack.c.l.b16 %v2389
        %v2560 = vunpack.c.l.b16 %v2390
        %v2561 = vunpack.c.h.b16 %v2390
        %v2562 = vunpack.c.l.b16 %v2391
        %v2563 = vunpack.c.l.b16 %v2392
        %v2564 = vunpack.c.h.b16 %v2392
        %v2565 = vunpack.c.l.b16 %v2393
        %v2566 = vunpack.c.l.b16 %v2394
        %v2567 = vunpack.c.h.b16 %v2394
        %v2568 = vunpack.c.l.b16 %v2395
        %v2569 = vunpack.c.l.b16 %v2396
        %v2570 = vunpack.c.h.b16 %v2396
        %v2571 = vunpack.c.l.b16 %v2397
        %v2572 = vunpack.c.l.b16 %v2398
        %v2573 = vunpack.c.h.b16 %v2398
        %v2574 = vunpack.c.l.b16 %v2399
        %v2575 = vunpack.c.l.b16 %v2400
        %v2576 = vunpack.c.h.b16 %v2400
        %v2577 = vunpack.c.l.b16 %v2401
        %v2578 = vunpack.c.l.b16 %v2402
        %v2579 = vunpack.c.h.b16 %v2402
        %v2580 = vunpack.c.l.b16 %v2403
        %v2581 = vunpack.c.l.b16 %v2404
        %v2582 = vunpack.c.h.b16 %v2404
        %v2583 = vunpack.c.l.b16 %v2405
        %v2584 = vunpack.c.l.b16 %v2406
        %v2585 = vunpack.c.h.b16 %v2406
        %v2586 = vunpack.c.l.b16 %v2407
        %v2587 = vunpack.c.l.b16 %v2408
        %v2588 = vunpack.c.h.b16 %v2408
        %v2589 = vunpack.c.l.b16 %v2409
        %v2590 = vpack.c.b16 %v2545, %v2542
        %v2591 = vpack.c.b16 %v2546, %v2543
        %v2592 = vpack.c.b16 %v2547, %v2544
        %v2593 = vpack.c.b16 %v2551, %v2548
        %v2594 = vpack.c.b16 %v2552, %v2549
        %v2595 = vpack.c.b16 %v2553, %v2550
        %v2596 = vpack.c.b16 %v2557, %v2554
        %v2597 = vpack.c.b16 %v2558, %v2555
        %v2598 = vpack.c.b16 %v2559, %v2556
        %v2599 = vpack.c.b16 %v2563, %v2560
        %v2600 = vpack.c.b16 %v2564, %v2561
        %v2601 = vpack.c.b16 %v2565, %v2562
        %v2602 = vpack.c.b16 %v2569, %v2566
        %v2603 = vpack.c.b16 %v2570, %v2567
        %v2604 = vpack.c.b16 %v2571, %v2568
        %v2605 = vpack.c.b16 %v2575, %v2572
        %v2606 = vpack.c.b16 %v2576, %v2573
        %v2607 = vpack.c.b16 %v2577, %v2574
        %v2608 = vpack.c.b16 %v2581, %v2578
        %v2609 = vpack.c.b16 %v2582, %v2579
        %v2610 = vpack.c.b16 %v2583, %v2580
        %v2611 = vpack.c.b16 %v2587, %v2584
        %v2612 = vpack.c.b16 %v2588, %v2585
        %v2613 = vpack.c.b16 %v2589, %v2586
        %2638 = vmatprep.subr.bf16.mxu0 %v2591
        %2639 = vmatpush1.bf16.msra.mxu0 %v2590
        %2640 = vmatprep.subr.bf16.mxu0 %v2594
        %2641 = vmatpush1.bf16.msra.mxu0 %v2593
        %2642 = vmatprep.subr.bf16.mxu0 %v2597
        %2643 = vmatpush1.bf16.msra.mxu0 %v2596
        %2644 = vmatprep.subr.bf16.mxu0 %v2600
        %2645 = vmatpush1.bf16.msra.mxu0 %v2599
        %2646 = vmatprep.subr.bf16.mxu0 %v2603
        %2647 = vmatpush1.bf16.msra.mxu0 %v2602
        %2648 = vmatprep.subr.bf16.mxu0 %v2606
        %2649 = vmatpush1.bf16.msra.mxu0 %v2605
        %2650 = vmatprep.subr.bf16.mxu0 %v2609
        %2651 = vmatpush1.bf16.msra.mxu0 %v2608
        %2652 = vmatprep.subr.bf16.mxu0 %v2612
        %2653 = vmatpush1.bf16.msra.mxu0 %v2611
        %2654 = vmatprep.subr.bf16.mxu0 0
        %2655 = vmatpush1.bf16.msra.mxu0 0
        %2656 = vmatprep.subr.bf16.mxu0 0
        %2657 = vmatpush1.bf16.msra.mxu0 0
        %2658 = vmatprep.subr.bf16.mxu0 0
        %2659 = vmatpush1.bf16.msra.mxu0 0
        %2660 = vmatprep.subr.bf16.mxu0 0
        %2661 = vmatpush1.bf16.msra.mxu0 0
        %2662 = vmatprep.subr.bf16.mxu0 0
        %2663 = vmatpush1.bf16.msra.mxu0 0
        %2664 = vmatprep.subr.bf16.mxu0 0
        %2665 = vmatpush1.bf16.msra.mxu0 0
        %2666 = vmatprep.subr.bf16.mxu0 0
        %2667 = vmatpush1.bf16.msra.mxu0 0
        %2668 = vmatprep.subr.bf16.mxu0 0
        %2669 = vmatpush1.bf16.msra.mxu0 0
        %2670 = vmatprep.mubr.bf16.mxu0 0
        %2671 = vmatmul.mubr.bf16.gmra.mrb[0].mxu0 %v2493
        %v2672 = vpop.f32.mrb[0].mxu0
        %v2673 = vadd.f32 %v2498, %v2672
        %v2674 = vpop.f32.mrb[0].mxu0
        %v2675 = vadd.f32 %v2502, %v2674
        %v2676 = vpop.f32.mrb[0].mxu0
        %v2677 = vpop.f32.mrb[0].mxu0
        %2678 = vdwg.mxu0
        %2679 = vmatprep.subr.bf16.mxu0 0
        %2680 = vmatpush1.bf16.msra.mxu0 %v2592
        %2681 = vmatprep.subr.bf16.mxu0 0
        %2682 = vmatpush1.bf16.msra.mxu0 %v2595
        %2683 = vmatprep.subr.bf16.mxu0 0
        %2684 = vmatpush1.bf16.msra.mxu0 %v2598
        %2685 = vmatprep.subr.bf16.mxu0 0
        %2686 = vmatpush1.bf16.msra.mxu0 %v2601
        %2687 = vmatprep.subr.bf16.mxu0 0
        %2688 = vmatpush1.bf16.msra.mxu0 %v2604
        %2689 = vmatprep.subr.bf16.mxu0 0
        %2690 = vmatpush1.bf16.msra.mxu0 %v2607
        %2691 = vmatprep.subr.bf16.mxu0 0
        %2692 = vmatpush1.bf16.msra.mxu0 %v2610
        %2693 = vmatprep.subr.bf16.mxu0 0
        %2694 = vmatpush1.bf16.msra.mxu0 %v2613
        %2695 = vmatprep.subr.bf16.mxu0 0
        %2696 = vmatpush1.bf16.msra.mxu0 0
        %2697 = vmatprep.subr.bf16.mxu0 0
        %2698 = vmatpush1.bf16.msra.mxu0 0
        %2699 = vmatprep.subr.bf16.mxu0 0
        %2700 = vmatpush1.bf16.msra.mxu0 0
        %2701 = vmatprep.subr.bf16.mxu0 0
        %2702 = vmatpush1.bf16.msra.mxu0 0
        %2703 = vmatprep.subr.bf16.mxu0 0
        %2704 = vmatpush1.bf16.msra.mxu0 0
        %2705 = vmatprep.subr.bf16.mxu0 0
        %2706 = vmatpush1.bf16.msra.mxu0 0
        %2707 = vmatprep.subr.bf16.mxu0 0
        %2708 = vmatpush1.bf16.msra.mxu0 0
        %2709 = vmatprep.subr.bf16.mxu0 0
        %2710 = vmatpush1.bf16.msra.mxu0 0
        %2711 = vmatprep.mubr.bf16.mxu0 0
        %2712 = vmatmul.mubr.bf16.gmra.mrb[0].mxu0 %v2493
        %v2713 = vpop.f32.mrb[0].mxu0
        %v2714 = vadd.f32 %v2506, %v2713
        %v2715 = vpop.f32.mrb[0].mxu0
        %v2716 = vpop.f32.mrb[0].mxu0
        %v2717 = vpop.f32.mrb[0].mxu0
        %2718 = vdwg.mxu0
        %v2719 = vpack.c.bf16 %v2673, %v2673
        %v2720 = vpack.c.bf16 %v2675, %v2675
        %v2721 = vpack.c.bf16 %v2714, %v2714
        %2723 = vrot.lane.b32.xlu0 %v2719, 112
        %v2724 = vpop.permute.xlu0 %2723
        %2725 = vrot.lane.b32.xlu0 %v2719, 96
        %v2726 = vpop.permute.xlu0 %2725
        %2727 = vrot.lane.b32.xlu0 %v2719, 80
        %v2728 = vpop.permute.xlu0 %2727
        %2729 = vrot.lane.b32.xlu0 %v2719, 64
        %v2730 = vpop.permute.xlu0 %2729
        %2731 = vrot.lane.b32.xlu0 %v2719, 48
        %v2732 = vpop.permute.xlu0 %2731
        %2733 = vrot.lane.b32.xlu0 %v2719, 32
        %v2734 = vpop.permute.xlu0 %2733
        %2735 = vrot.lane.b32.xlu0 %v2719, 16
        %v2736 = vpop.permute.xlu0 %2735
        %2738 = vrot.lane.b32.xlu0 %v2720, 112
        %v2739 = vpop.permute.xlu0 %2738
        %2740 = vrot.lane.b32.xlu0 %v2720, 96
        %v2741 = vpop.permute.xlu0 %2740
        %2742 = vrot.lane.b32.xlu0 %v2720, 80
        %v2743 = vpop.permute.xlu0 %2742
        %2744 = vrot.lane.b32.xlu0 %v2720, 64
        %v2745 = vpop.permute.xlu0 %2744
        %2746 = vrot.lane.b32.xlu0 %v2720, 48
        %v2747 = vpop.permute.xlu0 %2746
        %2748 = vrot.lane.b32.xlu0 %v2720, 32
        %v2749 = vpop.permute.xlu0 %2748
        %2750 = vrot.lane.b32.xlu0 %v2720, 16
        %v2751 = vpop.permute.xlu0 %2750
        %2753 = vrot.lane.b32.xlu0 %v2721, 112
        %v2754 = vpop.permute.xlu0 %2753
        %2755 = vrot.lane.b32.xlu0 %v2721, 96
        %v2756 = vpop.permute.xlu0 %2755
        %2757 = vrot.lane.b32.xlu0 %v2721, 80
        %v2758 = vpop.permute.xlu0 %2757
        %2759 = vrot.lane.b32.xlu0 %v2721, 64
        %v2760 = vpop.permute.xlu0 %2759
        %2761 = vrot.lane.b32.xlu0 %v2721, 48
        %v2762 = vpop.permute.xlu0 %2761
        %2763 = vrot.lane.b32.xlu0 %v2721, 32
        %v2764 = vpop.permute.xlu0 %2763
        %2765 = vrot.lane.b32.xlu0 %v2721, 16
        %v2766 = vpop.permute.xlu0 %2765
        %v2768 = vsel %vm645, %v2719, 0
        %v2771 = vsel %vm645, %v2720, 0
        %2773 = vmatprep.subr.bf16.mxu0 0
        %2774 = vmatpush1.bf16.xpose.msra.mxu0 %v2771
        %2775 = vmatprep.subr.bf16.mxu0 0
        %2776 = vmatpush1.bf16.xpose.msra.mxu0 0
        %2777 = vmatprep.subr.bf16.mxu0 0
        %2778 = vmatpush1.bf16.xpose.msra.mxu0 0
        %2779 = vmatprep.subr.bf16.mxu0 0
        %2780 = vmatpush1.bf16.xpose.msra.mxu0 0
        %2781 = vmatprep.subr.bf16.mxu0 0
        %2782 = vmatpush1.bf16.xpose.msra.mxu0 0
        %2783 = vmatprep.subr.bf16.mxu0 0
        %2784 = vmatpush1.bf16.xpose.msra.mxu0 0
        %2785 = vmatprep.subr.bf16.mxu0 0
        %2786 = vmatpush1.bf16.xpose.msra.mxu0 0
        %2787 = vmatprep.subr.bf16.mxu0 0
        %2788 = vmatpush1.bf16.xpose.msra.mxu0 0
        %2789 = vmatprep.subr.bf16.mxu0 0
        %2790 = vmatpush1.bf16.xpose.msra.mxu0 0
        %2791 = vmatprep.subr.bf16.mxu0 0
        %2792 = vmatpush1.bf16.xpose.msra.mxu0 0
        %2793 = vmatprep.subr.bf16.mxu0 0
        %2794 = vmatpush1.bf16.xpose.msra.mxu0 0
        %2795 = vmatprep.subr.bf16.mxu0 0
        %2796 = vmatpush1.bf16.xpose.msra.mxu0 0
        %2797 = vmatprep.subr.bf16.mxu0 0
        %2798 = vmatpush1.bf16.xpose.msra.mxu0 0
        %2799 = vmatprep.subr.bf16.mxu0 0
        %2800 = vmatpush1.bf16.xpose.msra.mxu0 0
        %2801 = vmatprep.subr.bf16.mxu0 0
        %2802 = vmatpush1.bf16.xpose.msra.mxu0 0
        %2803 = vmatprep.subr.bf16.mxu0 0
        %2804 = vmatpush1.bf16.xpose.msra.mxu0 0
        %2805 = vmatprep.mubr.bf16.mxu0 0
        %2806 = vmatmul.mubr.bf16.gmra.mrb[0].mxu0 %v2768
        %v2807 = vpop.f32.mrb[0].mxu0
        %v2808 = vadd.f32 %v1073, %v2807
        %v2809 = vpop.f32.mrb[0].mxu0
        %v2810 = vpop.f32.mrb[0].mxu0
        %v2811 = vpop.f32.mrb[0].mxu0
        %2812 = vdwg.mxu0
        %v2814 = vsel %vm645, %v2724, 0
        %v2817 = vsel %vm645, %v2739, 0
        %2819 = vmatprep.subr.bf16.mxu0 0
        %2820 = vmatpush1.bf16.xpose.msra.mxu0 %v2817
        %2821 = vmatprep.subr.bf16.mxu0 0
        %2822 = vmatpush1.bf16.xpose.msra.mxu0 0
        %2823 = vmatprep.subr.bf16.mxu0 0
        %2824 = vmatpush1.bf16.xpose.msra.mxu0 0
        %2825 = vmatprep.subr.bf16.mxu0 0
        %2826 = vmatpush1.bf16.xpose.msra.mxu0 0
        %2827 = vmatprep.subr.bf16.mxu0 0
        %2828 = vmatpush1.bf16.xpose.msra.mxu0 0
        %2829 = vmatprep.subr.bf16.mxu0 0
        %2830 = vmatpush1.bf16.xpose.msra.mxu0 0
        %2831 = vmatprep.subr.bf16.mxu0 0
        %2832 = vmatpush1.bf16.xpose.msra.mxu0 0
        %2833 = vmatprep.subr.bf16.mxu0 0
        %2834 = vmatpush1.bf16.xpose.msra.mxu0 0
        %2835 = vmatprep.subr.bf16.mxu0 0
        %2836 = vmatpush1.bf16.xpose.msra.mxu0 0
        %2837 = vmatprep.subr.bf16.mxu0 0
        %2838 = vmatpush1.bf16.xpose.msra.mxu0 0
        %2839 = vmatprep.subr.bf16.mxu0 0
        %2840 = vmatpush1.bf16.xpose.msra.mxu0 0
        %2841 = vmatprep.subr.bf16.mxu0 0
        %2842 = vmatpush1.bf16.xpose.msra.mxu0 0
        %2843 = vmatprep.subr.bf16.mxu0 0
        %2844 = vmatpush1.bf16.xpose.msra.mxu0 0
        %2845 = vmatprep.subr.bf16.mxu0 0
        %2846 = vmatpush1.bf16.xpose.msra.mxu0 0
        %2847 = vmatprep.subr.bf16.mxu0 0
        %2848 = vmatpush1.bf16.xpose.msra.mxu0 0
        %2849 = vmatprep.subr.bf16.mxu0 0
        %2850 = vmatpush1.bf16.xpose.msra.mxu0 0
        %2851 = vmatprep.mubr.bf16.mxu0 0
        %2852 = vmatmul.mubr.bf16.gmra.mrb[0].mxu0 %v2814
        %v2853 = vpop.f32.mrb[0].mxu0
        %v2854 = vadd.f32 %v1073, %v2853
        %v2855 = vpop.f32.mrb[0].mxu0
        %v2856 = vpop.f32.mrb[0].mxu0
        %v2857 = vpop.f32.mrb[0].mxu0
        %2858 = vdwg.mxu0
        %v2860 = vsel %vm645, %v2726, 0
        %v2863 = vsel %vm645, %v2741, 0
        %2865 = vmatprep.subr.bf16.mxu0 0
        %2866 = vmatpush1.bf16.xpose.msra.mxu0 %v2863
        %2867 = vmatprep.subr.bf16.mxu0 0
        %2868 = vmatpush1.bf16.xpose.msra.mxu0 0
        %2869 = vmatprep.subr.bf16.mxu0 0
        %2870 = vmatpush1.bf16.xpose.msra.mxu0 0
        %2871 = vmatprep.subr.bf16.mxu0 0
        %2872 = vmatpush1.bf16.xpose.msra.mxu0 0
        %2873 = vmatprep.subr.bf16.mxu0 0
        %2874 = vmatpush1.bf16.xpose.msra.mxu0 0
        %2875 = vmatprep.subr.bf16.mxu0 0
        %2876 = vmatpush1.bf16.xpose.msra.mxu0 0
        %2877 = vmatprep.subr.bf16.mxu0 0
        %2878 = vmatpush1.bf16.xpose.msra.mxu0 0
        %2879 = vmatprep.subr.bf16.mxu0 0
        %2880 = vmatpush1.bf16.xpose.msra.mxu0 0
        %2881 = vmatprep.subr.bf16.mxu0 0
        %2882 = vmatpush1.bf16.xpose.msra.mxu0 0
        %2883 = vmatprep.subr.bf16.mxu0 0
        %2884 = vmatpush1.bf16.xpose.msra.mxu0 0
        %2885 = vmatprep.subr.bf16.mxu0 0
        %2886 = vmatpush1.bf16.xpose.msra.mxu0 0
        %2887 = vmatprep.subr.bf16.mxu0 0
        %2888 = vmatpush1.bf16.xpose.msra.mxu0 0
        %2889 = vmatprep.subr.bf16.mxu0 0
        %2890 = vmatpush1.bf16.xpose.msra.mxu0 0
        %2891 = vmatprep.subr.bf16.mxu0 0
        %2892 = vmatpush1.bf16.xpose.msra.mxu0 0
        %2893 = vmatprep.subr.bf16.mxu0 0
        %2894 = vmatpush1.bf16.xpose.msra.mxu0 0
        %2895 = vmatprep.subr.bf16.mxu0 0
        %2896 = vmatpush1.bf16.xpose.msra.mxu0 0
        %2897 = vmatprep.mubr.bf16.mxu0 0
        %2898 = vmatmul.mubr.bf16.gmra.mrb[0].mxu0 %v2860
        %v2899 = vpop.f32.mrb[0].mxu0
        %v2900 = vadd.f32 %v1073, %v2899
        %v2901 = vpop.f32.mrb[0].mxu0
        %v2902 = vpop.f32.mrb[0].mxu0
        %v2903 = vpop.f32.mrb[0].mxu0
        %2904 = vdwg.mxu0
        %v2906 = vsel %vm645, %v2728, 0
        %v2909 = vsel %vm645, %v2743, 0
        %2911 = vmatprep.subr.bf16.mxu0 0
        %2912 = vmatpush1.bf16.xpose.msra.mxu0 %v2909
        %2913 = vmatprep.subr.bf16.mxu0 0
        %2914 = vmatpush1.bf16.xpose.msra.mxu0 0
        %2915 = vmatprep.subr.bf16.mxu0 0
        %2916 = vmatpush1.bf16.xpose.msra.mxu0 0
        %2917 = vmatprep.subr.bf16.mxu0 0
        %2918 = vmatpush1.bf16.xpose.msra.mxu0 0
        %2919 = vmatprep.subr.bf16.mxu0 0
        %2920 = vmatpush1.bf16.xpose.msra.mxu0 0
        %2921 = vmatprep.subr.bf16.mxu0 0
        %2922 = vmatpush1.bf16.xpose.msra.mxu0 0
        %2923 = vmatprep.subr.bf16.mxu0 0
        %2924 = vmatpush1.bf16.xpose.msra.mxu0 0
        %2925 = vmatprep.subr.bf16.mxu0 0
        %2926 = vmatpush1.bf16.xpose.msra.mxu0 0
        %2927 = vmatprep.subr.bf16.mxu0 0
        %2928 = vmatpush1.bf16.xpose.msra.mxu0 0
        %2929 = vmatprep.subr.bf16.mxu0 0
        %2930 = vmatpush1.bf16.xpose.msra.mxu0 0
        %2931 = vmatprep.subr.bf16.mxu0 0
        %2932 = vmatpush1.bf16.xpose.msra.mxu0 0
        %2933 = vmatprep.subr.bf16.mxu0 0
        %2934 = vmatpush1.bf16.xpose.msra.mxu0 0
        %2935 = vmatprep.subr.bf16.mxu0 0
        %2936 = vmatpush1.bf16.xpose.msra.mxu0 0
        %2937 = vmatprep.subr.bf16.mxu0 0
        %2938 = vmatpush1.bf16.xpose.msra.mxu0 0
        %2939 = vmatprep.subr.bf16.mxu0 0
        %2940 = vmatpush1.bf16.xpose.msra.mxu0 0
        %2941 = vmatprep.subr.bf16.mxu0 0
        %2942 = vmatpush1.bf16.xpose.msra.mxu0 0
        %2943 = vmatprep.mubr.bf16.mxu0 0
        %2944 = vmatmul.mubr.bf16.gmra.mrb[0].mxu0 %v2906
        %v2945 = vpop.f32.mrb[0].mxu0
        %v2946 = vadd.f32 %v1073, %v2945
        %v2947 = vpop.f32.mrb[0].mxu0
        %v2948 = vpop.f32.mrb[0].mxu0
        %v2949 = vpop.f32.mrb[0].mxu0
        %2950 = vdwg.mxu0
        %v2952 = vsel %vm645, %v2730, 0
        %v2955 = vsel %vm645, %v2745, 0
        %2957 = vmatprep.subr.bf16.mxu0 0
        %2958 = vmatpush1.bf16.xpose.msra.mxu0 %v2955
        %2959 = vmatprep.subr.bf16.mxu0 0
        %2960 = vmatpush1.bf16.xpose.msra.mxu0 0
        %2961 = vmatprep.subr.bf16.mxu0 0
        %2962 = vmatpush1.bf16.xpose.msra.mxu0 0
        %2963 = vmatprep.subr.bf16.mxu0 0
        %2964 = vmatpush1.bf16.xpose.msra.mxu0 0
        %2965 = vmatprep.subr.bf16.mxu0 0
        %2966 = vmatpush1.bf16.xpose.msra.mxu0 0
        %2967 = vmatprep.subr.bf16.mxu0 0
        %2968 = vmatpush1.bf16.xpose.msra.mxu0 0
        %2969 = vmatprep.subr.bf16.mxu0 0
        %2970 = vmatpush1.bf16.xpose.msra.mxu0 0
        %2971 = vmatprep.subr.bf16.mxu0 0
        %2972 = vmatpush1.bf16.xpose.msra.mxu0 0
        %2973 = vmatprep.subr.bf16.mxu0 0
        %2974 = vmatpush1.bf16.xpose.msra.mxu0 0
        %2975 = vmatprep.subr.bf16.mxu0 0
        %2976 = vmatpush1.bf16.xpose.msra.mxu0 0
        %2977 = vmatprep.subr.bf16.mxu0 0
        %2978 = vmatpush1.bf16.xpose.msra.mxu0 0
        %2979 = vmatprep.subr.bf16.mxu0 0
        %2980 = vmatpush1.bf16.xpose.msra.mxu0 0
        %2981 = vmatprep.subr.bf16.mxu0 0
        %2982 = vmatpush1.bf16.xpose.msra.mxu0 0
        %2983 = vmatprep.subr.bf16.mxu0 0
        %2984 = vmatpush1.bf16.xpose.msra.mxu0 0
        %2985 = vmatprep.subr.bf16.mxu0 0
        %2986 = vmatpush1.bf16.xpose.msra.mxu0 0
        %2987 = vmatprep.subr.bf16.mxu0 0
        %2988 = vmatpush1.bf16.xpose.msra.mxu0 0
        %2989 = vmatprep.mubr.bf16.mxu0 0
        %2990 = vmatmul.mubr.bf16.gmra.mrb[0].mxu0 %v2952
        %v2991 = vpop.f32.mrb[0].mxu0
        %v2992 = vadd.f32 %v1073, %v2991
        %v2993 = vpop.f32.mrb[0].mxu0
        %v2994 = vpop.f32.mrb[0].mxu0
        %v2995 = vpop.f32.mrb[0].mxu0
        %2996 = vdwg.mxu0
        %v2998 = vsel %vm645, %v2732, 0
        %v3001 = vsel %vm645, %v2747, 0
        %3003 = vmatprep.subr.bf16.mxu0 0
        %3004 = vmatpush1.bf16.xpose.msra.mxu0 %v3001
        %3005 = vmatprep.subr.bf16.mxu0 0
        %3006 = vmatpush1.bf16.xpose.msra.mxu0 0
        %3007 = vmatprep.subr.bf16.mxu0 0
        %3008 = vmatpush1.bf16.xpose.msra.mxu0 0
        %3009 = vmatprep.subr.bf16.mxu0 0
        %3010 = vmatpush1.bf16.xpose.msra.mxu0 0
        %3011 = vmatprep.subr.bf16.mxu0 0
        %3012 = vmatpush1.bf16.xpose.msra.mxu0 0
        %3013 = vmatprep.subr.bf16.mxu0 0
        %3014 = vmatpush1.bf16.xpose.msra.mxu0 0
        %3015 = vmatprep.subr.bf16.mxu0 0
        %3016 = vmatpush1.bf16.xpose.msra.mxu0 0
        %3017 = vmatprep.subr.bf16.mxu0 0
        %3018 = vmatpush1.bf16.xpose.msra.mxu0 0
        %3019 = vmatprep.subr.bf16.mxu0 0
        %3020 = vmatpush1.bf16.xpose.msra.mxu0 0
        %3021 = vmatprep.subr.bf16.mxu0 0
        %3022 = vmatpush1.bf16.xpose.msra.mxu0 0
        %3023 = vmatprep.subr.bf16.mxu0 0
        %3024 = vmatpush1.bf16.xpose.msra.mxu0 0
        %3025 = vmatprep.subr.bf16.mxu0 0
        %3026 = vmatpush1.bf16.xpose.msra.mxu0 0
        %3027 = vmatprep.subr.bf16.mxu0 0
        %3028 = vmatpush1.bf16.xpose.msra.mxu0 0
        %3029 = vmatprep.subr.bf16.mxu0 0
        %3030 = vmatpush1.bf16.xpose.msra.mxu0 0
        %3031 = vmatprep.subr.bf16.mxu0 0
        %3032 = vmatpush1.bf16.xpose.msra.mxu0 0
        %3033 = vmatprep.subr.bf16.mxu0 0
        %3034 = vmatpush1.bf16.xpose.msra.mxu0 0
        %3035 = vmatprep.mubr.bf16.mxu0 0
        %3036 = vmatmul.mubr.bf16.gmra.mrb[0].mxu0 %v2998
        %v3037 = vpop.f32.mrb[0].mxu0
        %v3038 = vadd.f32 %v1073, %v3037
        %v3039 = vpop.f32.mrb[0].mxu0
        %v3040 = vpop.f32.mrb[0].mxu0
        %v3041 = vpop.f32.mrb[0].mxu0
        %3042 = vdwg.mxu0
        %v3044 = vsel %vm645, %v2734, 0
        %v3047 = vsel %vm645, %v2749, 0
        %3049 = vmatprep.subr.bf16.mxu0 0
        %3050 = vmatpush1.bf16.xpose.msra.mxu0 %v3047
        %3051 = vmatprep.subr.bf16.mxu0 0
        %3052 = vmatpush1.bf16.xpose.msra.mxu0 0
        %3053 = vmatprep.subr.bf16.mxu0 0
        %3054 = vmatpush1.bf16.xpose.msra.mxu0 0
        %3055 = vmatprep.subr.bf16.mxu0 0
        %3056 = vmatpush1.bf16.xpose.msra.mxu0 0
        %3057 = vmatprep.subr.bf16.mxu0 0
        %3058 = vmatpush1.bf16.xpose.msra.mxu0 0
        %3059 = vmatprep.subr.bf16.mxu0 0
        %3060 = vmatpush1.bf16.xpose.msra.mxu0 0
        %3061 = vmatprep.subr.bf16.mxu0 0
        %3062 = vmatpush1.bf16.xpose.msra.mxu0 0
        %3063 = vmatprep.subr.bf16.mxu0 0
        %3064 = vmatpush1.bf16.xpose.msra.mxu0 0
        %3065 = vmatprep.subr.bf16.mxu0 0
        %3066 = vmatpush1.bf16.xpose.msra.mxu0 0
        %3067 = vmatprep.subr.bf16.mxu0 0
        %3068 = vmatpush1.bf16.xpose.msra.mxu0 0
        %3069 = vmatprep.subr.bf16.mxu0 0
        %3070 = vmatpush1.bf16.xpose.msra.mxu0 0
        %3071 = vmatprep.subr.bf16.mxu0 0
        %3072 = vmatpush1.bf16.xpose.msra.mxu0 0
        %3073 = vmatprep.subr.bf16.mxu0 0
        %3074 = vmatpush1.bf16.xpose.msra.mxu0 0
        %3075 = vmatprep.subr.bf16.mxu0 0
        %3076 = vmatpush1.bf16.xpose.msra.mxu0 0
        %3077 = vmatprep.subr.bf16.mxu0 0
        %3078 = vmatpush1.bf16.xpose.msra.mxu0 0
        %3079 = vmatprep.subr.bf16.mxu0 0
        %3080 = vmatpush1.bf16.xpose.msra.mxu0 0
        %3081 = vmatprep.mubr.bf16.mxu0 0
        %3082 = vmatmul.mubr.bf16.gmra.mrb[0].mxu0 %v3044
        %v3083 = vpop.f32.mrb[0].mxu0
        %v3084 = vadd.f32 %v1073, %v3083
        %v3085 = vpop.f32.mrb[0].mxu0
        %v3086 = vpop.f32.mrb[0].mxu0
        %v3087 = vpop.f32.mrb[0].mxu0
        %3088 = vdwg.mxu0
        %v3090 = vsel %vm645, %v2736, 0
        %v3093 = vsel %vm645, %v2751, 0
        %3095 = vmatprep.subr.bf16.mxu0 0
        %3096 = vmatpush1.bf16.xpose.msra.mxu0 %v3093
        %3097 = vmatprep.subr.bf16.mxu0 0
        %3098 = vmatpush1.bf16.xpose.msra.mxu0 0
        %3099 = vmatprep.subr.bf16.mxu0 0
        %3100 = vmatpush1.bf16.xpose.msra.mxu0 0
        %3101 = vmatprep.subr.bf16.mxu0 0
        %3102 = vmatpush1.bf16.xpose.msra.mxu0 0
        %3103 = vmatprep.subr.bf16.mxu0 0
        %3104 = vmatpush1.bf16.xpose.msra.mxu0 0
        %3105 = vmatprep.subr.bf16.mxu0 0
        %3106 = vmatpush1.bf16.xpose.msra.mxu0 0
        %3107 = vmatprep.subr.bf16.mxu0 0
        %3108 = vmatpush1.bf16.xpose.msra.mxu0 0
        %3109 = vmatprep.subr.bf16.mxu0 0
        %3110 = vmatpush1.bf16.xpose.msra.mxu0 0
        %3111 = vmatprep.subr.bf16.mxu0 0
        %3112 = vmatpush1.bf16.xpose.msra.mxu0 0
        %3113 = vmatprep.subr.bf16.mxu0 0
        %3114 = vmatpush1.bf16.xpose.msra.mxu0 0
        %3115 = vmatprep.subr.bf16.mxu0 0
        %3116 = vmatpush1.bf16.xpose.msra.mxu0 0
        %3117 = vmatprep.subr.bf16.mxu0 0
        %3118 = vmatpush1.bf16.xpose.msra.mxu0 0
        %3119 = vmatprep.subr.bf16.mxu0 0
        %3120 = vmatpush1.bf16.xpose.msra.mxu0 0
        %3121 = vmatprep.subr.bf16.mxu0 0
        %3122 = vmatpush1.bf16.xpose.msra.mxu0 0
        %3123 = vmatprep.subr.bf16.mxu0 0
        %3124 = vmatpush1.bf16.xpose.msra.mxu0 0
        %3125 = vmatprep.subr.bf16.mxu0 0
        %3126 = vmatpush1.bf16.xpose.msra.mxu0 0
        %3127 = vmatprep.mubr.bf16.mxu0 0
        %3128 = vmatmul.mubr.bf16.gmra.mrb[0].mxu0 %v3090
        %v3129 = vpop.f32.mrb[0].mxu0
        %v3130 = vadd.f32 %v1073, %v3129
        %v3131 = vpop.f32.mrb[0].mxu0
        %v3132 = vpop.f32.mrb[0].mxu0
        %v3133 = vpop.f32.mrb[0].mxu0
        %3134 = vdwg.mxu0
        %v3135 = vsel %vm1443, %v2808, -inf
        %3136 = vmax.xlane.f32.xlu0 %v3135
        %v3137 = vpop.xlane.xlu0 %3136
        %v3138 = vsel %vm1443, %v2854, -inf
        %3139 = vmax.xlane.f32.xlu0 %v3138
        %v3140 = vpop.xlane.xlu0 %3139
        %v3141 = vsel %vm1443, %v2900, -inf
        %3142 = vmax.xlane.f32.xlu0 %v3141
        %v3143 = vpop.xlane.xlu0 %3142
        %v3144 = vsel %vm1443, %v2946, -inf
        %3145 = vmax.xlane.f32.xlu0 %v3144
        %v3146 = vpop.xlane.xlu0 %3145
        %v3147 = vsel %vm1443, %v2992, -inf
        %3148 = vmax.xlane.f32.xlu0 %v3147
        %v3149 = vpop.xlane.xlu0 %3148
        %v3150 = vsel %vm1443, %v3038, -inf
        %3151 = vmax.xlane.f32.xlu0 %v3150
        %v3152 = vpop.xlane.xlu0 %3151
        %v3153 = vsel %vm1443, %v3084, -inf
        %3154 = vmax.xlane.f32.xlu0 %v3153
        %v3155 = vpop.xlane.xlu0 %3154
        %v3156 = vsel %vm1443, %v3130, -inf
        %3157 = vmax.xlane.f32.xlu0 %v3156
        %v3158 = vpop.xlane.xlu0 %3157
        %v3159 = vsub.f32 %v2808, %v3137
        %v3160 = vsub.f32 %v2854, %v3140
        %v3161 = vsub.f32 %v2900, %v3143
        %v3162 = vsub.f32 %v2946, %v3146
        %v3163 = vsub.f32 %v2992, %v3149
        %v3164 = vsub.f32 %v3038, %v3152
        %v3165 = vsub.f32 %v3084, %v3155
        %v3166 = vsub.f32 %v3130, %v3158
        %v3167 = vmul.f32 %v3159, 1.442695
        %v3168 = vpow.pop %v3167
        %v3169 = vmul.f32 %v3160, 1.442695
        %v3170 = vpow.pop %v3169
        %v3171 = vmul.f32 %v3161, 1.442695
        %v3172 = vpow.pop %v3171
        %v3173 = vmul.f32 %v3162, 1.442695
        %v3174 = vpow.pop %v3173
        %v3175 = vmul.f32 %v3163, 1.442695
        %v3176 = vpow.pop %v3175
        %v3177 = vmul.f32 %v3164, 1.442695
        %v3178 = vpow.pop %v3177
        %v3179 = vmul.f32 %v3165, 1.442695
        %v3180 = vpow.pop %v3179
        %v3181 = vmul.f32 %v3166, 1.442695
        %v3182 = vpow.pop %v3181
        %v3183 = vsel %vm1443, %v3168, 0.0
        %3184 = vadd.xlane.f32.xlu0 %v3183
        %v3185 = vpop.xlane.xlu0 %3184
        %v3186 = vsel %vm1443, %v3170, 0.0
        %3187 = vadd.xlane.f32.xlu0 %v3186
        %v3188 = vpop.xlane.xlu0 %3187
        %v3189 = vsel %vm1443, %v3172, 0.0
        %3190 = vadd.xlane.f32.xlu0 %v3189
        %v3191 = vpop.xlane.xlu0 %3190
        %v3192 = vsel %vm1443, %v3174, 0.0
        %3193 = vadd.xlane.f32.xlu0 %v3192
        %v3194 = vpop.xlane.xlu0 %3193
        %v3195 = vsel %vm1443, %v3176, 0.0
        %3196 = vadd.xlane.f32.xlu0 %v3195
        %v3197 = vpop.xlane.xlu0 %3196
        %v3198 = vsel %vm1443, %v3178, 0.0
        %3199 = vadd.xlane.f32.xlu0 %v3198
        %v3200 = vpop.xlane.xlu0 %3199
        %v3201 = vsel %vm1443, %v3180, 0.0
        %3202 = vadd.xlane.f32.xlu0 %v3201
        %v3203 = vpop.xlane.xlu0 %3202
        %v3204 = vsel %vm1443, %v3182, 0.0
        %3205 = vadd.xlane.f32.xlu0 %v3204
        %v3206 = vpop.xlane.xlu0 %3205
        %v3207 = vrcp.pop %v3185
        %v3208 = vrcp.pop %v3188
        %v3209 = vrcp.pop %v3191
        %v3210 = vrcp.pop %v3194
        %v3211 = vrcp.pop %v3197
        %v3212 = vrcp.pop %v3200
        %v3213 = vrcp.pop %v3203
        %v3214 = vrcp.pop %v3206
        %v3215 = vmul.f32 %v3168, %v3207
        %v3216 = vmul.f32 %v3170, %v3208
        %v3217 = vmul.f32 %v3172, %v3209
        %v3218 = vmul.f32 %v3174, %v3210
        %v3219 = vmul.f32 %v3176, %v3211
        %v3220 = vmul.f32 %v3178, %v3212
        %v3221 = vmul.f32 %v3180, %v3213
        %v3222 = vmul.f32 %v3182, %v3214
        %v3223 = vpack.c.bf16 %v3215, %v3215
        %v3224 = vpack.c.bf16 %v3216, %v3216
        %v3225 = vpack.c.bf16 %v3217, %v3217
        %v3226 = vpack.c.bf16 %v3218, %v3218
        %v3227 = vpack.c.bf16 %v3219, %v3219
        %v3228 = vpack.c.bf16 %v3220, %v3220
        %v3229 = vpack.c.bf16 %v3221, %v3221
        %v3230 = vpack.c.bf16 %v3222, %v3222
        %v3232 = vsel %vm1443, %v3223, 0
        %v3235 = vsel %vm1543, %v2721, 0
        %3237 = vmatprep.subr.bf16.mxu0 0
        %3238 = vmatpush1.bf16.msra.mxu0 %v3235
        %3239 = vmatprep.subr.bf16.mxu0 0
        %3240 = vmatpush1.bf16.msra.mxu0 0
        %3241 = vmatprep.subr.bf16.mxu0 0
        %3242 = vmatpush1.bf16.msra.mxu0 0
        %3243 = vmatprep.subr.bf16.mxu0 0
        %3244 = vmatpush1.bf16.msra.mxu0 0
        %3245 = vmatprep.subr.bf16.mxu0 0
        %3246 = vmatpush1.bf16.msra.mxu0 0
        %3247 = vmatprep.subr.bf16.mxu0 0
        %3248 = vmatpush1.bf16.msra.mxu0 0
        %3249 = vmatprep.subr.bf16.mxu0 0
        %3250 = vmatpush1.bf16.msra.mxu0 0
        %3251 = vmatprep.subr.bf16.mxu0 0
        %3252 = vmatpush1.bf16.msra.mxu0 0
        %3253 = vmatprep.subr.bf16.mxu0 0
        %3254 = vmatpush1.bf16.msra.mxu0 0
        %3255 = vmatprep.subr.bf16.mxu0 0
        %3256 = vmatpush1.bf16.msra.mxu0 0
        %3257 = vmatprep.subr.bf16.mxu0 0
        %3258 = vmatpush1.bf16.msra.mxu0 0
        %3259 = vmatprep.subr.bf16.mxu0 0
        %3260 = vmatpush1.bf16.msra.mxu0 0
        %3261 = vmatprep.subr.bf16.mxu0 0
        %3262 = vmatpush1.bf16.msra.mxu0 0
        %3263 = vmatprep.subr.bf16.mxu0 0
        %3264 = vmatpush1.bf16.msra.mxu0 0
        %3265 = vmatprep.subr.bf16.mxu0 0
        %3266 = vmatpush1.bf16.msra.mxu0 0
        %3267 = vmatprep.subr.bf16.mxu0 0
        %3268 = vmatpush1.bf16.msra.mxu0 0
        %3269 = vmatprep.mubr.bf16.mxu0 0
        %3270 = vmatmul.mubr.bf16.gmra.mrb[0].mxu0 %v3232
        %v3271 = vpop.f32.mrb[0].mxu0
        %v3272 = vadd.f32 0.0, %v3271
        %v3273 = vpop.f32.mrb[0].mxu0
        %v3274 = vpop.f32.mrb[0].mxu0
        %v3275 = vpop.f32.mrb[0].mxu0
        %3276 = vdwg.mxu0
        %v3278 = vsel %vm1443, %v3224, 0
        %v3281 = vsel %vm1543, %v2754, 0
        %3283 = vmatprep.subr.bf16.mxu0 0
        %3284 = vmatpush1.bf16.msra.mxu0 %v3281
        %3285 = vmatprep.subr.bf16.mxu0 0
        %3286 = vmatpush1.bf16.msra.mxu0 0
        %3287 = vmatprep.subr.bf16.mxu0 0
        %3288 = vmatpush1.bf16.msra.mxu0 0
        %3289 = vmatprep.subr.bf16.mxu0 0
        %3290 = vmatpush1.bf16.msra.mxu0 0
        %3291 = vmatprep.subr.bf16.mxu0 0
        %3292 = vmatpush1.bf16.msra.mxu0 0
        %3293 = vmatprep.subr.bf16.mxu0 0
        %3294 = vmatpush1.bf16.msra.mxu0 0
        %3295 = vmatprep.subr.bf16.mxu0 0
        %3296 = vmatpush1.bf16.msra.mxu0 0
        %3297 = vmatprep.subr.bf16.mxu0 0
        %3298 = vmatpush1.bf16.msra.mxu0 0
        %3299 = vmatprep.subr.bf16.mxu0 0
        %3300 = vmatpush1.bf16.msra.mxu0 0
        %3301 = vmatprep.subr.bf16.mxu0 0
        %3302 = vmatpush1.bf16.msra.mxu0 0
        %3303 = vmatprep.subr.bf16.mxu0 0
        %3304 = vmatpush1.bf16.msra.mxu0 0
        %3305 = vmatprep.subr.bf16.mxu0 0
        %3306 = vmatpush1.bf16.msra.mxu0 0
        %3307 = vmatprep.subr.bf16.mxu0 0
        %3308 = vmatpush1.bf16.msra.mxu0 0
        %3309 = vmatprep.subr.bf16.mxu0 0
        %3310 = vmatpush1.bf16.msra.mxu0 0
        %3311 = vmatprep.subr.bf16.mxu0 0
        %3312 = vmatpush1.bf16.msra.mxu0 0
        %3313 = vmatprep.subr.bf16.mxu0 0
        %3314 = vmatpush1.bf16.msra.mxu0 0
        %3315 = vmatprep.mubr.bf16.mxu0 0
        %3316 = vmatmul.mubr.bf16.gmra.mrb[0].mxu0 %v3278
        %v3317 = vpop.f32.mrb[0].mxu0
        %v3318 = vadd.f32 0.0, %v3317
        %v3319 = vpop.f32.mrb[0].mxu0
        %v3320 = vpop.f32.mrb[0].mxu0
        %v3321 = vpop.f32.mrb[0].mxu0
        %3322 = vdwg.mxu0
        %v3324 = vsel %vm1443, %v3225, 0
        %v3327 = vsel %vm1543, %v2756, 0
        %3329 = vmatprep.subr.bf16.mxu0 0
        %3330 = vmatpush1.bf16.msra.mxu0 %v3327
        %3331 = vmatprep.subr.bf16.mxu0 0
        %3332 = vmatpush1.bf16.msra.mxu0 0
        %3333 = vmatprep.subr.bf16.mxu0 0
        %3334 = vmatpush1.bf16.msra.mxu0 0
        %3335 = vmatprep.subr.bf16.mxu0 0
        %3336 = vmatpush1.bf16.msra.mxu0 0
        %3337 = vmatprep.subr.bf16.mxu0 0
        %3338 = vmatpush1.bf16.msra.mxu0 0
        %3339 = vmatprep.subr.bf16.mxu0 0
        %3340 = vmatpush1.bf16.msra.mxu0 0
        %3341 = vmatprep.subr.bf16.mxu0 0
        %3342 = vmatpush1.bf16.msra.mxu0 0
        %3343 = vmatprep.subr.bf16.mxu0 0
        %3344 = vmatpush1.bf16.msra.mxu0 0
        %3345 = vmatprep.subr.bf16.mxu0 0
        %3346 = vmatpush1.bf16.msra.mxu0 0
        %3347 = vmatprep.subr.bf16.mxu0 0
        %3348 = vmatpush1.bf16.msra.mxu0 0
        %3349 = vmatprep.subr.bf16.mxu0 0
        %3350 = vmatpush1.bf16.msra.mxu0 0
        %3351 = vmatprep.subr.bf16.mxu0 0
        %3352 = vmatpush1.bf16.msra.mxu0 0
        %3353 = vmatprep.subr.bf16.mxu0 0
        %3354 = vmatpush1.bf16.msra.mxu0 0
        %3355 = vmatprep.subr.bf16.mxu0 0
        %3356 = vmatpush1.bf16.msra.mxu0 0
        %3357 = vmatprep.subr.bf16.mxu0 0
        %3358 = vmatpush1.bf16.msra.mxu0 0
        %3359 = vmatprep.subr.bf16.mxu0 0
        %3360 = vmatpush1.bf16.msra.mxu0 0
        %3361 = vmatprep.mubr.bf16.mxu0 0
        %3362 = vmatmul.mubr.bf16.gmra.mrb[0].mxu0 %v3324
        %v3363 = vpop.f32.mrb[0].mxu0
        %v3364 = vadd.f32 0.0, %v3363
        %v3365 = vpop.f32.mrb[0].mxu0
        %v3366 = vpop.f32.mrb[0].mxu0
        %v3367 = vpop.f32.mrb[0].mxu0
        %3368 = vdwg.mxu0
        %v3370 = vsel %vm1443, %v3226, 0
        %v3373 = vsel %vm1543, %v2758, 0
        %3375 = vmatprep.subr.bf16.mxu0 0
        %3376 = vmatpush1.bf16.msra.mxu0 %v3373
        %3377 = vmatprep.subr.bf16.mxu0 0
        %3378 = vmatpush1.bf16.msra.mxu0 0
        %3379 = vmatprep.subr.bf16.mxu0 0
        %3380 = vmatpush1.bf16.msra.mxu0 0
        %3381 = vmatprep.subr.bf16.mxu0 0
        %3382 = vmatpush1.bf16.msra.mxu0 0
        %3383 = vmatprep.subr.bf16.mxu0 0
        %3384 = vmatpush1.bf16.msra.mxu0 0
        %3385 = vmatprep.subr.bf16.mxu0 0
        %3386 = vmatpush1.bf16.msra.mxu0 0
        %3387 = vmatprep.subr.bf16.mxu0 0
        %3388 = vmatpush1.bf16.msra.mxu0 0
        %3389 = vmatprep.subr.bf16.mxu0 0
        %3390 = vmatpush1.bf16.msra.mxu0 0
        %3391 = vmatprep.subr.bf16.mxu0 0
        %3392 = vmatpush1.bf16.msra.mxu0 0
        %3393 = vmatprep.subr.bf16.mxu0 0
        %3394 = vmatpush1.bf16.msra.mxu0 0
        %3395 = vmatprep.subr.bf16.mxu0 0
        %3396 = vmatpush1.bf16.msra.mxu0 0
        %3397 = vmatprep.subr.bf16.mxu0 0
        %3398 = vmatpush1.bf16.msra.mxu0 0
        %3399 = vmatprep.subr.bf16.mxu0 0
        %3400 = vmatpush1.bf16.msra.mxu0 0
        %3401 = vmatprep.subr.bf16.mxu0 0
        %3402 = vmatpush1.bf16.msra.mxu0 0
        %3403 = vmatprep.subr.bf16.mxu0 0
        %3404 = vmatpush1.bf16.msra.mxu0 0
        %3405 = vmatprep.subr.bf16.mxu0 0
        %3406 = vmatpush1.bf16.msra.mxu0 0
        %3407 = vmatprep.mubr.bf16.mxu0 0
        %3408 = vmatmul.mubr.bf16.gmra.mrb[0].mxu0 %v3370
        %v3409 = vpop.f32.mrb[0].mxu0
        %v3410 = vadd.f32 0.0, %v3409
        %v3411 = vpop.f32.mrb[0].mxu0
        %v3412 = vpop.f32.mrb[0].mxu0
        %v3413 = vpop.f32.mrb[0].mxu0
        %3414 = vdwg.mxu0
        %v3416 = vsel %vm1443, %v3227, 0
        %v3419 = vsel %vm1543, %v2760, 0
        %3421 = vmatprep.subr.bf16.mxu0 0
        %3422 = vmatpush1.bf16.msra.mxu0 %v3419
        %3423 = vmatprep.subr.bf16.mxu0 0
        %3424 = vmatpush1.bf16.msra.mxu0 0
        %3425 = vmatprep.subr.bf16.mxu0 0
        %3426 = vmatpush1.bf16.msra.mxu0 0
        %3427 = vmatprep.subr.bf16.mxu0 0
        %3428 = vmatpush1.bf16.msra.mxu0 0
        %3429 = vmatprep.subr.bf16.mxu0 0
        %3430 = vmatpush1.bf16.msra.mxu0 0
        %3431 = vmatprep.subr.bf16.mxu0 0
        %3432 = vmatpush1.bf16.msra.mxu0 0
        %3433 = vmatprep.subr.bf16.mxu0 0
        %3434 = vmatpush1.bf16.msra.mxu0 0
        %3435 = vmatprep.subr.bf16.mxu0 0
        %3436 = vmatpush1.bf16.msra.mxu0 0
        %3437 = vmatprep.subr.bf16.mxu0 0
        %3438 = vmatpush1.bf16.msra.mxu0 0
        %3439 = vmatprep.subr.bf16.mxu0 0
        %3440 = vmatpush1.bf16.msra.mxu0 0
        %3441 = vmatprep.subr.bf16.mxu0 0
        %3442 = vmatpush1.bf16.msra.mxu0 0
        %3443 = vmatprep.subr.bf16.mxu0 0
        %3444 = vmatpush1.bf16.msra.mxu0 0
        %3445 = vmatprep.subr.bf16.mxu0 0
        %3446 = vmatpush1.bf16.msra.mxu0 0
        %3447 = vmatprep.subr.bf16.mxu0 0
        %3448 = vmatpush1.bf16.msra.mxu0 0
        %3449 = vmatprep.subr.bf16.mxu0 0
        %3450 = vmatpush1.bf16.msra.mxu0 0
        %3451 = vmatprep.subr.bf16.mxu0 0
        %3452 = vmatpush1.bf16.msra.mxu0 0
        %3453 = vmatprep.mubr.bf16.mxu0 0
        %3454 = vmatmul.mubr.bf16.gmra.mrb[0].mxu0 %v3416
        %v3455 = vpop.f32.mrb[0].mxu0
        %v3456 = vadd.f32 0.0, %v3455
        %v3457 = vpop.f32.mrb[0].mxu0
        %v3458 = vpop.f32.mrb[0].mxu0
        %v3459 = vpop.f32.mrb[0].mxu0
        %3460 = vdwg.mxu0
        %v3462 = vsel %vm1443, %v3228, 0
        %v3465 = vsel %vm1543, %v2762, 0
        %3467 = vmatprep.subr.bf16.mxu0 0
        %3468 = vmatpush1.bf16.msra.mxu0 %v3465
        %3469 = vmatprep.subr.bf16.mxu0 0
        %3470 = vmatpush1.bf16.msra.mxu0 0
        %3471 = vmatprep.subr.bf16.mxu0 0
        %3472 = vmatpush1.bf16.msra.mxu0 0
        %3473 = vmatprep.subr.bf16.mxu0 0
        %3474 = vmatpush1.bf16.msra.mxu0 0
        %3475 = vmatprep.subr.bf16.mxu0 0
        %3476 = vmatpush1.bf16.msra.mxu0 0
        %3477 = vmatprep.subr.bf16.mxu0 0
        %3478 = vmatpush1.bf16.msra.mxu0 0
        %3479 = vmatprep.subr.bf16.mxu0 0
        %3480 = vmatpush1.bf16.msra.mxu0 0
        %3481 = vmatprep.subr.bf16.mxu0 0
        %3482 = vmatpush1.bf16.msra.mxu0 0
        %3483 = vmatprep.subr.bf16.mxu0 0
        %3484 = vmatpush1.bf16.msra.mxu0 0
        %3485 = vmatprep.subr.bf16.mxu0 0
        %3486 = vmatpush1.bf16.msra.mxu0 0
        %3487 = vmatprep.subr.bf16.mxu0 0
        %3488 = vmatpush1.bf16.msra.mxu0 0
        %3489 = vmatprep.subr.bf16.mxu0 0
        %3490 = vmatpush1.bf16.msra.mxu0 0
        %3491 = vmatprep.subr.bf16.mxu0 0
        %3492 = vmatpush1.bf16.msra.mxu0 0
        %3493 = vmatprep.subr.bf16.mxu0 0
        %3494 = vmatpush1.bf16.msra.mxu0 0
        %3495 = vmatprep.subr.bf16.mxu0 0
        %3496 = vmatpush1.bf16.msra.mxu0 0
        %3497 = vmatprep.subr.bf16.mxu0 0
        %3498 = vmatpush1.bf16.msra.mxu0 0
        %3499 = vmatprep.mubr.bf16.mxu0 0
        %3500 = vmatmul.mubr.bf16.gmra.mrb[0].mxu0 %v3462
        %v3501 = vpop.f32.mrb[0].mxu0
        %v3502 = vadd.f32 0.0, %v3501
        %v3503 = vpop.f32.mrb[0].mxu0
        %v3504 = vpop.f32.mrb[0].mxu0
        %v3505 = vpop.f32.mrb[0].mxu0
        %3506 = vdwg.mxu0
        %v3508 = vsel %vm1443, %v3229, 0
        %v3511 = vsel %vm1543, %v2764, 0
        %3513 = vmatprep.subr.bf16.mxu0 0
        %3514 = vmatpush1.bf16.msra.mxu0 %v3511
        %3515 = vmatprep.subr.bf16.mxu0 0
        %3516 = vmatpush1.bf16.msra.mxu0 0
        %3517 = vmatprep.subr.bf16.mxu0 0
        %3518 = vmatpush1.bf16.msra.mxu0 0
        %3519 = vmatprep.subr.bf16.mxu0 0
        %3520 = vmatpush1.bf16.msra.mxu0 0
        %3521 = vmatprep.subr.bf16.mxu0 0
        %3522 = vmatpush1.bf16.msra.mxu0 0
        %3523 = vmatprep.subr.bf16.mxu0 0
        %3524 = vmatpush1.bf16.msra.mxu0 0
        %3525 = vmatprep.subr.bf16.mxu0 0
        %3526 = vmatpush1.bf16.msra.mxu0 0
        %3527 = vmatprep.subr.bf16.mxu0 0
        %3528 = vmatpush1.bf16.msra.mxu0 0
        %3529 = vmatprep.subr.bf16.mxu0 0
        %3530 = vmatpush1.bf16.msra.mxu0 0
        %3531 = vmatprep.subr.bf16.mxu0 0
        %3532 = vmatpush1.bf16.msra.mxu0 0
        %3533 = vmatprep.subr.bf16.mxu0 0
        %3534 = vmatpush1.bf16.msra.mxu0 0
        %3535 = vmatprep.subr.bf16.mxu0 0
        %3536 = vmatpush1.bf16.msra.mxu0 0
        %3537 = vmatprep.subr.bf16.mxu0 0
        %3538 = vmatpush1.bf16.msra.mxu0 0
        %3539 = vmatprep.subr.bf16.mxu0 0
        %3540 = vmatpush1.bf16.msra.mxu0 0
        %3541 = vmatprep.subr.bf16.mxu0 0
        %3542 = vmatpush1.bf16.msra.mxu0 0
        %3543 = vmatprep.subr.bf16.mxu0 0
        %3544 = vmatpush1.bf16.msra.mxu0 0
        %3545 = vmatprep.mubr.bf16.mxu0 0
        %3546 = vmatmul.mubr.bf16.gmra.mrb[0].mxu0 %v3508
        %v3547 = vpop.f32.mrb[0].mxu0
        %v3548 = vadd.f32 0.0, %v3547
        %v3549 = vpop.f32.mrb[0].mxu0
        %v3550 = vpop.f32.mrb[0].mxu0
        %v3551 = vpop.f32.mrb[0].mxu0
        %3552 = vdwg.mxu0
        %v3554 = vsel %vm1443, %v3230, 0
        %v3557 = vsel %vm1543, %v2766, 0
        %3559 = vmatprep.subr.bf16.mxu0 0
        %3560 = vmatpush1.bf16.msra.mxu0 %v3557
        %3561 = vmatprep.subr.bf16.mxu0 0
        %3562 = vmatpush1.bf16.msra.mxu0 0
        %3563 = vmatprep.subr.bf16.mxu0 0
        %3564 = vmatpush1.bf16.msra.mxu0 0
        %3565 = vmatprep.subr.bf16.mxu0 0
        %3566 = vmatpush1.bf16.msra.mxu0 0
        %3567 = vmatprep.subr.bf16.mxu0 0
        %3568 = vmatpush1.bf16.msra.mxu0 0
        %3569 = vmatprep.subr.bf16.mxu0 0
        %3570 = vmatpush1.bf16.msra.mxu0 0
        %3571 = vmatprep.subr.bf16.mxu0 0
        %3572 = vmatpush1.bf16.msra.mxu0 0
        %3573 = vmatprep.subr.bf16.mxu0 0
        %3574 = vmatpush1.bf16.msra.mxu0 0
        %3575 = vmatprep.subr.bf16.mxu0 0
        %3576 = vmatpush1.bf16.msra.mxu0 0
        %3577 = vmatprep.subr.bf16.mxu0 0
        %3578 = vmatpush1.bf16.msra.mxu0 0
        %3579 = vmatprep.subr.bf16.mxu0 0
        %3580 = vmatpush1.bf16.msra.mxu0 0
        %3581 = vmatprep.subr.bf16.mxu0 0
        %3582 = vmatpush1.bf16.msra.mxu0 0
        %3583 = vmatprep.subr.bf16.mxu0 0
        %3584 = vmatpush1.bf16.msra.mxu0 0
        %3585 = vmatprep.subr.bf16.mxu0 0
        %3586 = vmatpush1.bf16.msra.mxu0 0
        %3587 = vmatprep.subr.bf16.mxu0 0
        %3588 = vmatpush1.bf16.msra.mxu0 0
        %3589 = vmatprep.subr.bf16.mxu0 0
        %3590 = vmatpush1.bf16.msra.mxu0 0
        %3591 = vmatprep.mubr.bf16.mxu0 0
        %3592 = vmatmul.mubr.bf16.gmra.mrb[0].mxu0 %v3554
        %v3593 = vpop.f32.mrb[0].mxu0
        %v3594 = vadd.f32 0.0, %v3593
        %v3595 = vpop.f32.mrb[0].mxu0
        %v3596 = vpop.f32.mrb[0].mxu0
        %v3597 = vpop.f32.mrb[0].mxu0
        %3598 = vdwg.mxu0
        %3600 = vrot.lane.b32.xlu0 %v3318, 16
        %v3601 = vpop.permute.xlu0 %3600
        %3604 = vrot.lane.b32.xlu0 %v3364, 32
        %v3605 = vpop.permute.xlu0 %3604
        %3608 = vrot.lane.b32.xlu0 %v3410, 48
        %v3609 = vpop.permute.xlu0 %3608
        %3612 = vrot.lane.b32.xlu0 %v3456, 64
        %v3613 = vpop.permute.xlu0 %3612
        %3616 = vrot.lane.b32.xlu0 %v3502, 80
        %v3617 = vpop.permute.xlu0 %3616
        %3620 = vrot.lane.b32.xlu0 %v3548, 96
        %v3621 = vpop.permute.xlu0 %3620
        %3624 = vrot.lane.b32.xlu0 %v3594, 112
        %v3625 = vpop.permute.xlu0 %3624
        %v3627 = vsel %vm645, %v3272, %v3601
        %v3628 = vsel %vm1938, %v3627, %v3605
        %v3629 = vsel %vm1940, %v3628, %v3609
        %v3630 = vsel %vm1942, %v3629, %v3613
        %v3631 = vsel %vm1944, %v3630, %v3617
        %v3632 = vsel %vm1946, %v3631, %v3621
        %v3633 = vsel %vm1948, %v3632, %v3625
        %v3634 = vpack.c.bf16 %v3633, %v3633
        %v3636 = vlaneseq
        %v3637 = vshrl.u32 %v3636, 7
        %v3638 = vsub.s32 0, %v3637
        %v3639 = vrot.slane %v2430, %v3638
        %v3657 = vunpack.c.l.b16 %v2413
        %v3658 = vunpack.c.l.b16 %v2414
        %v3659 = vunpack.c.l.b16 %v2415
        %v3660 = vunpack.c.l.b16 %v2416
        %v3661 = vunpack.c.l.b16 %v2417
        %v3662 = vunpack.c.l.b16 %v2418
        %v3663 = vunpack.c.l.b16 %v2419
        %v3664 = vunpack.c.l.b16 %v2420
        %v3665 = vunpack.c.l.b16 %v2421
        %v3666 = vunpack.c.l.b16 %v2422
        %v3667 = vunpack.c.l.b16 %v2423
        %v3668 = vunpack.c.l.b16 %v2424
        %v3669 = vunpack.c.l.b16 %v2425
        %v3670 = vunpack.c.l.b16 %v2426
        %v3671 = vunpack.c.l.b16 %v2427
        %v3672 = vunpack.c.l.b16 %v2428
        %v3673 = vpack.c.b16 %v3658, %v3657
        %v3674 = vpack.c.b16 %v3660, %v3659
        %v3675 = vpack.c.b16 %v3662, %v3661
        %v3676 = vpack.c.b16 %v3664, %v3663
        %v3677 = vpack.c.b16 %v3666, %v3665
        %v3678 = vpack.c.b16 %v3668, %v3667
        %v3679 = vpack.c.b16 %v3670, %v3669
        %v3680 = vpack.c.b16 %v3672, %v3671
        %3689 = vmatprep.subr.bf16.mxu0 0
        %3690 = vmatpush1.bf16.msra.mxu0 %v3673
        %3691 = vmatprep.subr.bf16.mxu0 0
        %3692 = vmatpush1.bf16.msra.mxu0 %v3674
        %3693 = vmatprep.subr.bf16.mxu0 0
        %3694 = vmatpush1.bf16.msra.mxu0 %v3675
        %3695 = vmatprep.subr.bf16.mxu0 0
        %3696 = vmatpush1.bf16.msra.mxu0 %v3676
        %3697 = vmatprep.subr.bf16.mxu0 0
        %3698 = vmatpush1.bf16.msra.mxu0 %v3677
        %3699 = vmatprep.subr.bf16.mxu0 0
        %3700 = vmatpush1.bf16.msra.mxu0 %v3678
        %3701 = vmatprep.subr.bf16.mxu0 0
        %3702 = vmatpush1.bf16.msra.mxu0 %v3679
        %3703 = vmatprep.subr.bf16.mxu0 0
        %3704 = vmatpush1.bf16.msra.mxu0 %v3680
        %3705 = vmatprep.subr.bf16.mxu0 0
        %3706 = vmatpush1.bf16.msra.mxu0 0
        %3707 = vmatprep.subr.bf16.mxu0 0
        %3708 = vmatpush1.bf16.msra.mxu0 0
        %3709 = vmatprep.subr.bf16.mxu0 0
        %3710 = vmatpush1.bf16.msra.mxu0 0
        %3711 = vmatprep.subr.bf16.mxu0 0
        %3712 = vmatpush1.bf16.msra.mxu0 0
        %3713 = vmatprep.subr.bf16.mxu0 0
        %3714 = vmatpush1.bf16.msra.mxu0 0
        %3715 = vmatprep.subr.bf16.mxu0 0
        %3716 = vmatpush1.bf16.msra.mxu0 0
        %3717 = vmatprep.subr.bf16.mxu0 0
        %3718 = vmatpush1.bf16.msra.mxu0 0
        %3719 = vmatprep.subr.bf16.mxu0 0
        %3720 = vmatpush1.bf16.msra.mxu0 0
        %3721 = vmatprep.mubr.bf16.mxu0 0
        %3722 = vmatmul.mubr.bf16.gmra.mrb[0].mxu0 %v3634
        %v3723 = vpop.f32.mrb[0].mxu0
        %v3724 = vadd.f32 %v3639, %v3723
        %v3725 = vpop.f32.mrb[0].mxu0
        %v3726 = vpop.f32.mrb[0].mxu0
        %v3727 = vpop.f32.mrb[0].mxu0
        %3728 = vdwg.mxu0
        %v3729 = vadd.f32 %v2376, %v3724
        %3730 = vadd.xlane.f32.xlu0 %v3729
        %v3731 = vpop.xlane.xlu0 %3730
        %v3732 = vmul.f32 %v3731, %v2048
        %v3733 = vsub.f32 %v3729, %v3732
        %v3734 = vmul.f32 %v3733, %v3733
        %3735 = vadd.xlane.f32.xlu0 %v3734
        %v3736 = vpop.xlane.xlu0 %3735
        %v3737 = vmul.f32 %v3736, %v2048
        %v3738 = vadd.f32 %v3737, 1e-05
        %v3739 = vrsqrt.pop %v3738
        %v3740 = vmul.f32 %v3733, %v3739
        %v3742 = vlaneseq
        %v3743 = vshrl.u32 %v3742, 7
        %v3744 = vsub.s32 0, %v3743
        %v3745 = vrot.slane %v2486, %v3744
        %v3747 = vmul.f32 %v3740, %v3745
        %v3749 = vlaneseq
        %v3750 = vshrl.u32 %v3749, 7
        %v3751 = vsub.s32 0, %v3750
        %v3752 = vrot.slane %v2488, %v3751
        %v3754 = vadd.f32 %v3747, %v3752
        %v3755 = vpack.c.bf16 %v3754, %v3754
        %v3757 = vlaneseq
        %v3758 = vshrl.u32 %v3757, 7
        %v3759 = vsub.s32 0, %v3758
        %v3760 = vrot.slane %v2449, %v3759
        %v3761 = vlaneseq
        %v3762 = vshrl.u32 %v3761, 7
        %v3763 = vsub.s32 1, %v3762
        %v3764 = vrot.slane %v2449, %v3763
        %v3783 = vunpack.c.l.b16 %v2432
        %v3784 = vunpack.c.h.b16 %v2432
        %v3785 = vunpack.c.l.b16 %v2433
        %v3786 = vunpack.c.h.b16 %v2433
        %v3787 = vunpack.c.l.b16 %v2434
        %v3788 = vunpack.c.h.b16 %v2434
        %v3789 = vunpack.c.l.b16 %v2435
        %v3790 = vunpack.c.h.b16 %v2435
        %v3791 = vunpack.c.l.b16 %v2436
        %v3792 = vunpack.c.h.b16 %v2436
        %v3793 = vunpack.c.l.b16 %v2437
        %v3794 = vunpack.c.h.b16 %v2437
        %v3795 = vunpack.c.l.b16 %v2438
        %v3796 = vunpack.c.h.b16 %v2438
        %v3797 = vunpack.c.l.b16 %v2439
        %v3798 = vunpack.c.h.b16 %v2439
        %v3799 = vunpack.c.l.b16 %v2440
        %v3800 = vunpack.c.h.b16 %v2440
        %v3801 = vunpack.c.l.b16 %v2441
        %v3802 = vunpack.c.h.b16 %v2441
        %v3803 = vunpack.c.l.b16 %v2442
        %v3804 = vunpack.c.h.b16 %v2442
        %v3805 = vunpack.c.l.b16 %v2443
        %v3806 = vunpack.c.h.b16 %v2443
        %v3807 = vunpack.c.l.b16 %v2444
        %v3808 = vunpack.c.h.b16 %v2444
        %v3809 = vunpack.c.l.b16 %v2445
        %v3810 = vunpack.c.h.b16 %v2445
        %v3811 = vunpack.c.l.b16 %v2446
        %v3812 = vunpack.c.h.b16 %v2446
        %v3813 = vunpack.c.l.b16 %v2447
        %v3814 = vunpack.c.h.b16 %v2447
        %v3815 = vpack.c.b16 %v3785, %v3783
        %v3816 = vpack.c.b16 %v3786, %v3784
        %v3817 = vpack.c.b16 %v3789, %v3787
        %v3818 = vpack.c.b16 %v3790, %v3788
        %v3819 = vpack.c.b16 %v3793, %v3791
        %v3820 = vpack.c.b16 %v3794, %v3792
        %v3821 = vpack.c.b16 %v3797, %v3795
        %v3822 = vpack.c.b16 %v3798, %v3796
        %v3823 = vpack.c.b16 %v3801, %v3799
        %v3824 = vpack.c.b16 %v3802, %v3800
        %v3825 = vpack.c.b16 %v3805, %v3803
        %v3826 = vpack.c.b16 %v3806, %v3804
        %v3827 = vpack.c.b16 %v3809, %v3807
        %v3828 = vpack.c.b16 %v3810, %v3808
        %v3829 = vpack.c.b16 %v3813, %v3811
        %v3830 = vpack.c.b16 %v3814, %v3812
        %3847 = vmatprep.subr.bf16.mxu0 %v3816
        %3848 = vmatpush1.bf16.msra.mxu0 %v3815
        %3849 = vmatprep.subr.bf16.mxu0 %v3818
        %3850 = vmatpush1.bf16.msra.mxu0 %v3817
        %3851 = vmatprep.subr.bf16.mxu0 %v3820
        %3852 = vmatpush1.bf16.msra.mxu0 %v3819
        %3853 = vmatprep.subr.bf16.mxu0 %v3822
        %3854 = vmatpush1.bf16.msra.mxu0 %v3821
        %3855 = vmatprep.subr.bf16.mxu0 %v3824
        %3856 = vmatpush1.bf16.msra.mxu0 %v3823
        %3857 = vmatprep.subr.bf16.mxu0 %v3826
        %3858 = vmatpush1.bf16.msra.mxu0 %v3825
        %3859 = vmatprep.subr.bf16.mxu0 %v3828
        %3860 = vmatpush1.bf16.msra.mxu0 %v3827
        %3861 = vmatprep.subr.bf16.mxu0 %v3830
        %3862 = vmatpush1.bf16.msra.mxu0 %v3829
        %3863 = vmatprep.subr.bf16.mxu0 0
        %3864 = vmatpush1.bf16.msra.mxu0 0
        %3865 = vmatprep.subr.bf16.mxu0 0
        %3866 = vmatpush1.bf16.msra.mxu0 0
        %3867 = vmatprep.subr.bf16.mxu0 0
        %3868 = vmatpush1.bf16.msra.mxu0 0
        %3869 = vmatprep.subr.bf16.mxu0 0
        %3870 = vmatpush1.bf16.msra.mxu0 0
        %3871 = vmatprep.subr.bf16.mxu0 0
        %3872 = vmatpush1.bf16.msra.mxu0 0
        %3873 = vmatprep.subr.bf16.mxu0 0
        %3874 = vmatpush1.bf16.msra.mxu0 0
        %3875 = vmatprep.subr.bf16.mxu0 0
        %3876 = vmatpush1.bf16.msra.mxu0 0
        %3877 = vmatprep.subr.bf16.mxu0 0
        %3878 = vmatpush1.bf16.msra.mxu0 0
        %3879 = vmatprep.mubr.bf16.mxu0 0
        %3880 = vmatmul.mubr.bf16.gmra.mrb[0].mxu0 %v3755
        %v3881 = vpop.f32.mrb[0].mxu0
        %v3882 = vadd.f32 %v3760, %v3881
        %v3883 = vpop.f32.mrb[0].mxu0
        %v3884 = vadd.f32 %v3764, %v3883
        %v3885 = vpop.f32.mrb[0].mxu0
        %v3886 = vpop.f32.mrb[0].mxu0
        %3887 = vdwg.mxu0
        %v3888 = vmax.f32 %v3882, 0.0
        %v3889 = vmax.f32 %v3884, 0.0
        %v3890 = vpack.c.bf16 %v3888, %v3888
        %v3891 = vpack.c.bf16 %v3889, %v3889
        %v3893 = vlaneseq
        %v3894 = vshrl.u32 %v3893, 7
        %v3895 = vsub.s32 0, %v3894
        %v3896 = vrot.slane %v2484, %v3895
        %v3930 = vunpack.c.l.b16 %v2451
        %v3931 = vunpack.c.l.b16 %v2452
        %v3932 = vunpack.c.l.b16 %v2453
        %v3933 = vunpack.c.l.b16 %v2454
        %v3934 = vunpack.c.l.b16 %v2455
        %v3935 = vunpack.c.l.b16 %v2456
        %v3936 = vunpack.c.l.b16 %v2457
        %v3937 = vunpack.c.l.b16 %v2458
        %v3938 = vunpack.c.l.b16 %v2459
        %v3939 = vunpack.c.l.b16 %v2460
        %v3940 = vunpack.c.l.b16 %v2461
        %v3941 = vunpack.c.l.b16 %v2462
        %v3942 = vunpack.c.l.b16 %v2463
        %v3943 = vunpack.c.l.b16 %v2464
        %v3944 = vunpack.c.l.b16 %v2465
        %v3945 = vunpack.c.l.b16 %v2466
        %v3946 = vunpack.c.l.b16 %v2467
        %v3947 = vunpack.c.l.b16 %v2468
        %v3948 = vunpack.c.l.b16 %v2469
        %v3949 = vunpack.c.l.b16 %v2470
        %v3950 = vunpack.c.l.b16 %v2471
        %v3951 = vunpack.c.l.b16 %v2472
        %v3952 = vunpack.c.l.b16 %v2473
        %v3953 = vunpack.c.l.b16 %v2474
        %v3954 = vunpack.c.l.b16 %v2475
        %v3955 = vunpack.c.l.b16 %v2476
        %v3956 = vunpack.c.l.b16 %v2477
        %v3957 = vunpack.c.l.b16 %v2478
        %v3958 = vunpack.c.l.b16 %v2479
        %v3959 = vunpack.c.l.b16 %v2480
        %v3960 = vunpack.c.l.b16 %v2481
        %v3961 = vunpack.c.l.b16 %v2482
        %v3962 = vpack.c.b16 %v3931, %v3930
        %v3963 = vpack.c.b16 %v3933, %v3932
        %v3964 = vpack.c.b16 %v3935, %v3934
        %v3965 = vpack.c.b16 %v3937, %v3936
        %v3966 = vpack.c.b16 %v3939, %v3938
        %v3967 = vpack.c.b16 %v3941, %v3940
        %v3968 = vpack.c.b16 %v3943, %v3942
        %v3969 = vpack.c.b16 %v3945, %v3944
        %v3970 = vpack.c.b16 %v3947, %v3946
        %v3971 = vpack.c.b16 %v3949, %v3948
        %v3972 = vpack.c.b16 %v3951, %v3950
        %v3973 = vpack.c.b16 %v3953, %v3952
        %v3974 = vpack.c.b16 %v3955, %v3954
        %v3975 = vpack.c.b16 %v3957, %v3956
        %v3976 = vpack.c.b16 %v3959, %v3958
        %v3977 = vpack.c.b16 %v3961, %v3960
        %3994 = vmatprep.subr.bf16.mxu0 0
        %3995 = vmatpush1.bf16.msra.mxu0 %v3962
        %3996 = vmatprep.subr.bf16.mxu0 0
        %3997 = vmatpush1.bf16.msra.mxu0 %v3963
        %3998 = vmatprep.subr.bf16.mxu0 0
        %3999 = vmatpush1.bf16.msra.mxu0 %v3964
        %4000 = vmatprep.subr.bf16.mxu0 0
        %4001 = vmatpush1.bf16.msra.mxu0 %v3965
        %4002 = vmatprep.subr.bf16.mxu0 0
        %4003 = vmatpush1.bf16.msra.mxu0 %v3966
        %4004 = vmatprep.subr.bf16.mxu0 0
        %4005 = vmatpush1.bf16.msra.mxu0 %v3967
        %4006 = vmatprep.subr.bf16.mxu0 0
        %4007 = vmatpush1.bf16.msra.mxu0 %v3968
        %4008 = vmatprep.subr.bf16.mxu0 0
        %4009 = vmatpush1.bf16.msra.mxu0 %v3969
        %4010 = vmatprep.subr.bf16.mxu0 0
        %4011 = vmatpush1.bf16.msra.mxu0 %v3970
        %4012 = vmatprep.subr.bf16.mxu0 0
        %4013 = vmatpush1.bf16.msra.mxu0 %v3971
        %4014 = vmatprep.subr.bf16.mxu0 0
        %4015 = vmatpush1.bf16.msra.mxu0 %v3972
        %4016 = vmatprep.subr.bf16.mxu0 0
        %4017 = vmatpush1.bf16.msra.mxu0 %v3973
        %4018 = vmatprep.subr.bf16.mxu0 0
        %4019 = vmatpush1.bf16.msra.mxu0 %v3974
        %4020 = vmatprep.subr.bf16.mxu0 0
        %4021 = vmatpush1.bf16.msra.mxu0 %v3975
        %4022 = vmatprep.subr.bf16.mxu0 0
        %4023 = vmatpush1.bf16.msra.mxu0 %v3976
        %4024 = vmatprep.subr.bf16.mxu0 0
        %4025 = vmatpush1.bf16.msra.mxu0 %v3977
        %4026 = vmatprep.mubr.bf16.mxu0 %v3891
        %4027 = vmatmul.mubr.bf16.gmra.mrb[0].mxu0 %v3890
        %v4028 = vpop.f32.mrb[0].mxu0
        %v4029 = vadd.f32 %v3896, %v4028
        %v4030 = vpop.f32.mrb[0].mxu0
        %v4031 = vpop.f32.mrb[0].mxu0
        %v4032 = vpop.f32.mrb[0].mxu0
        %4033 = vdwg.mxu0
        %v4034 = vadd.f32 %v3754, %v4029
        %4035 = vadd.xlane.f32.xlu0 %v4034
        %v4036 = vpop.xlane.xlu0 %4035
        %v4037 = vmul.f32 %v4036, %v2048
        %v4038 = vsub.f32 %v4034, %v4037
        %v4039 = vmul.f32 %v4038, %v4038
        %4040 = vadd.xlane.f32.xlu0 %v4039
        %v4041 = vpop.xlane.xlu0 %4040
        %v4042 = vmul.f32 %v4041, %v2048
        %v4043 = vadd.f32 %v4042, 1e-05
        %v4044 = vrsqrt.pop %v4043
        %v4045 = vmul.f32 %v4038, %v4044
        %v4047 = vlaneseq
        %v4048 = vshrl.u32 %v4047, 7
        %v4049 = vsub.s32 0, %v4048
        %v4050 = vrot.slane %v2490, %v4049
        %v4052 = vmul.f32 %v4045, %v4050
        %v4054 = vlaneseq
        %v4055 = vshrl.u32 %v4054, 7
        %v4056 = vsub.s32 0, %v4055
        %v4057 = vrot.slane %v2492, %v4056
        %v4059 = vadd.f32 %v4052, %v4057
        %s4060 = scalar_lea.vmem [#allocation2], 384
        %v4061 = vld [vmem:[%s4060] sm:$0xff]
        %v4062 = vld [vmem:[%s4060 + $0x8] sm:$0xf]
        %v4063 = vld [vmem:[%s4060 + $0xc] sm:$0xff]
        %v4064 = vld [vmem:[%s4060 + $0x14] sm:$0xf]
        %v4065 = vld [vmem:[%s4060 + $0x18] sm:$0xff]
        %v4066 = vld [vmem:[%s4060 + $0x20] sm:$0xf]
        %v4067 = vld [vmem:[%s4060 + $0x24] sm:$0xff]
        %v4068 = vld [vmem:[%s4060 + $0x2c] sm:$0xf]
        %v4069 = vld [vmem:[%s4060 + $0x30] sm:$0xff]
        %v4070 = vld [vmem:[%s4060 + $0x38] sm:$0xf]
        %v4071 = vld [vmem:[%s4060 + $0x3c] sm:$0xff]
        %v4072 = vld [vmem:[%s4060 + $0x44] sm:$0xf]
        %v4073 = vld [vmem:[%s4060 + $0x48] sm:$0xff]
        %v4074 = vld [vmem:[%s4060 + $0x50] sm:$0xf]
        %v4075 = vld [vmem:[%s4060 + $0x54] sm:$0xff]
        %v4076 = vld [vmem:[%s4060 + $0x5c] sm:$0xf]
        %v4077 = vld [vmem:[%s4060 + $0x60] sm:$0xff]
        %v4078 = vld [vmem:[%s4060 + $0x68] sm:$0xf]
        %v4079 = vld [vmem:[%s4060 + $0x6c] sm:$0xff]
        %v4080 = vld [vmem:[%s4060 + $0x74] sm:$0xf]
        %v4081 = vld [vmem:[%s4060 + $0x78] sm:$0xff]
        %v4082 = vld [vmem:[%s4060 + $0x80] sm:$0xf]
        %v4083 = vld [vmem:[%s4060 + $0x84] sm:$0xff]
        %v4084 = vld [vmem:[%s4060 + $0x8c] sm:$0xf]
        %v4085 = vld [vmem:[%s4060 + $0x90] sm:$0xff]
        %v4086 = vld [vmem:[%s4060 + $0x98] sm:$0xf]
        %v4087 = vld [vmem:[%s4060 + $0x9c] sm:$0xff]
        %v4088 = vld [vmem:[%s4060 + $0xa4] sm:$0xf]
        %v4089 = vld [vmem:[%s4060 + $0xa8] sm:$0xff]
        %v4090 = vld [vmem:[%s4060 + $0xb0] sm:$0xf]
        %v4091 = vld [vmem:[%s4060 + $0xb4] sm:$0xff]
        %v4092 = vld [vmem:[%s4060 + $0xbc] sm:$0xf]
        %s4093 = scalar_lea.vmem %s5, 6
        %v4094 = vld [vmem:[%s4093] sm:$0x7]
        %s4095 = scalar_lea.vmem [#allocation5], 128
        %v4096 = vld [vmem:[%s4095] sm:$0xf]
        %v4097 = vld [vmem:[%s4095 + $0x4] sm:$0xf]
        %v4098 = vld [vmem:[%s4095 + $0x8] sm:$0xf]
        %v4099 = vld [vmem:[%s4095 + $0xc] sm:$0xf]
        %v4100 = vld [vmem:[%s4095 + $0x10] sm:$0xf]
        %v4101 = vld [vmem:[%s4095 + $0x14] sm:$0xf]
        %v4102 = vld [vmem:[%s4095 + $0x18] sm:$0xf]
        %v4103 = vld [vmem:[%s4095 + $0x1c] sm:$0xf]
        %v4104 = vld [vmem:[%s4095 + $0x20] sm:$0xf]
        %v4105 = vld [vmem:[%s4095 + $0x24] sm:$0xf]
        %v4106 = vld [vmem:[%s4095 + $0x28] sm:$0xf]
        %v4107 = vld [vmem:[%s4095 + $0x2c] sm:$0xf]
        %v4108 = vld [vmem:[%s4095 + $0x30] sm:$0xf]
        %v4109 = vld [vmem:[%s4095 + $0x34] sm:$0xf]
        %v4110 = vld [vmem:[%s4095 + $0x38] sm:$0xf]
        %v4111 = vld [vmem:[%s4095 + $0x3c] sm:$0xf]
        %s4112 = scalar_lea.vmem %s7, 2
        %v4113 = vld [vmem:[%s4112] sm:$0x1]
        %s4114 = scalar_lea.vmem [#allocation7], 256
        %v4115 = vld [vmem:[%s4114] sm:$0xff]
        %v4116 = vld [vmem:[%s4114 + $0x8] sm:$0xff]
        %v4117 = vld [vmem:[%s4114 + $0x10] sm:$0xff]
        %v4118 = vld [vmem:[%s4114 + $0x18] sm:$0xff]
        %v4119 = vld [vmem:[%s4114 + $0x20] sm:$0xff]
        %v4120 = vld [vmem:[%s4114 + $0x28] sm:$0xff]
        %v4121 = vld [vmem:[%s4114 + $0x30] sm:$0xff]
        %v4122 = vld [vmem:[%s4114 + $0x38] sm:$0xff]
        %v4123 = vld [vmem:[%s4114 + $0x40] sm:$0xff]
        %v4124 = vld [vmem:[%s4114 + $0x48] sm:$0xff]
        %v4125 = vld [vmem:[%s4114 + $0x50] sm:$0xff]
        %v4126 = vld [vmem:[%s4114 + $0x58] sm:$0xff]
        %v4127 = vld [vmem:[%s4114 + $0x60] sm:$0xff]
        %v4128 = vld [vmem:[%s4114 + $0x68] sm:$0xff]
        %v4129 = vld [vmem:[%s4114 + $0x70] sm:$0xff]
        %v4130 = vld [vmem:[%s4114 + $0x78] sm:$0xff]
        %s4131 = scalar_lea.vmem %s9, 4
        %v4132 = vld [vmem:[%s4131] sm:$0x3]
        %s4133 = scalar_lea.vmem [#allocation8], 256
        %v4134 = vld [vmem:[%s4133] sm:$0xf]
        %v4135 = vld [vmem:[%s4133 + $0x4] sm:$0xf]
        %v4136 = vld [vmem:[%s4133 + $0x8] sm:$0xf]
        %v4137 = vld [vmem:[%s4133 + $0xc] sm:$0xf]
        %v4138 = vld [vmem:[%s4133 + $0x10] sm:$0xf]
        %v4139 = vld [vmem:[%s4133 + $0x14] sm:$0xf]
        %v4140 = vld [vmem:[%s4133 + $0x18] sm:$0xf]
        %v4141 = vld [vmem:[%s4133 + $0x1c] sm:$0xf]
        %v4142 = vld [vmem:[%s4133 + $0x20] sm:$0xf]
        %v4143 = vld [vmem:[%s4133 + $0x24] sm:$0xf]
        %v4144 = vld [vmem:[%s4133 + $0x28] sm:$0xf]
        %v4145 = vld [vmem:[%s4133 + $0x2c] sm:$0xf]
        %v4146 = vld [vmem:[%s4133 + $0x30] sm:$0xf]
        %v4147 = vld [vmem:[%s4133 + $0x34] sm:$0xf]
        %v4148 = vld [vmem:[%s4133 + $0x38] sm:$0xf]
        %v4149 = vld [vmem:[%s4133 + $0x3c] sm:$0xf]
        %v4150 = vld [vmem:[%s4133 + $0x40] sm:$0xf]
        %v4151 = vld [vmem:[%s4133 + $0x44] sm:$0xf]
        %v4152 = vld [vmem:[%s4133 + $0x48] sm:$0xf]
        %v4153 = vld [vmem:[%s4133 + $0x4c] sm:$0xf]
        %v4154 = vld [vmem:[%s4133 + $0x50] sm:$0xf]
        %v4155 = vld [vmem:[%s4133 + $0x54] sm:$0xf]
        %v4156 = vld [vmem:[%s4133 + $0x58] sm:$0xf]
        %v4157 = vld [vmem:[%s4133 + $0x5c] sm:$0xf]
        %v4158 = vld [vmem:[%s4133 + $0x60] sm:$0xf]
        %v4159 = vld [vmem:[%s4133 + $0x64] sm:$0xf]
        %v4160 = vld [vmem:[%s4133 + $0x68] sm:$0xf]
        %v4161 = vld [vmem:[%s4133 + $0x6c] sm:$0xf]
        %v4162 = vld [vmem:[%s4133 + $0x70] sm:$0xf]
        %v4163 = vld [vmem:[%s4133 + $0x74] sm:$0xf]
        %v4164 = vld [vmem:[%s4133 + $0x78] sm:$0xf]
        %v4165 = vld [vmem:[%s4133 + $0x7c] sm:$0xf]
        %s4166 = scalar_lea.vmem %s11, 2
        %v4167 = vld [vmem:[%s4166] sm:$0x1]
        %s4168 = scalar_lea.vmem %s12, 2
        %v4169 = vld [vmem:[%s4168] sm:$0x1]
        %s4170 = scalar_lea.vmem %s13, 2
        %v4171 = vld [vmem:[%s4170] sm:$0x1]
        %s4172 = scalar_lea.vmem %s14, 2
        %v4173 = vld [vmem:[%s4172] sm:$0x1]
        %s4174 = scalar_lea.vmem %s15, 2
        %v4175 = vld [vmem:[%s4174] sm:$0x1]
        %v4176 = vpack.c.bf16 %v4059, %v4059
        %v4178 = vlaneseq
        %v4179 = vshrl.u32 %v4178, 7
        %v4180 = vsub.s32 0, %v4179
        %v4181 = vrot.slane %v4094, %v4180
        %v4182 = vlaneseq
        %v4183 = vshrl.u32 %v4182, 7
        %v4184 = vsub.s32 1, %v4183
        %v4185 = vrot.slane %v4094, %v4184
        %v4186 = vlaneseq
        %v4187 = vshrl.u32 %v4186, 7
        %v4188 = vsub.s32 2, %v4187
        %v4189 = vrot.slane %v4094, %v4188
        %v4225 = vunpack.c.l.b16 %v4061
        %v4226 = vunpack.c.h.b16 %v4061
        %v4227 = vunpack.c.l.b16 %v4062
        %v4228 = vunpack.c.l.b16 %v4063
        %v4229 = vunpack.c.h.b16 %v4063
        %v4230 = vunpack.c.l.b16 %v4064
        %v4231 = vunpack.c.l.b16 %v4065
        %v4232 = vunpack.c.h.b16 %v4065
        %v4233 = vunpack.c.l.b16 %v4066
        %v4234 = vunpack.c.l.b16 %v4067
        %v4235 = vunpack.c.h.b16 %v4067
        %v4236 = vunpack.c.l.b16 %v4068
        %v4237 = vunpack.c.l.b16 %v4069
        %v4238 = vunpack.c.h.b16 %v4069
        %v4239 = vunpack.c.l.b16 %v4070
        %v4240 = vunpack.c.l.b16 %v4071
        %v4241 = vunpack.c.h.b16 %v4071
        %v4242 = vunpack.c.l.b16 %v4072
        %v4243 = vunpack.c.l.b16 %v4073
        %v4244 = vunpack.c.h.b16 %v4073
        %v4245 = vunpack.c.l.b16 %v4074
        %v4246 = vunpack.c.l.b16 %v4075
        %v4247 = vunpack.c.h.b16 %v4075
        %v4248 = vunpack.c.l.b16 %v4076
        %v4249 = vunpack.c.l.b16 %v4077
        %v4250 = vunpack.c.h.b16 %v4077
        %v4251 = vunpack.c.l.b16 %v4078
        %v4252 = vunpack.c.l.b16 %v4079
        %v4253 = vunpack.c.h.b16 %v4079
        %v4254 = vunpack.c.l.b16 %v4080
        %v4255 = vunpack.c.l.b16 %v4081
        %v4256 = vunpack.c.h.b16 %v4081
        %v4257 = vunpack.c.l.b16 %v4082
        %v4258 = vunpack.c.l.b16 %v4083
        %v4259 = vunpack.c.h.b16 %v4083
        %v4260 = vunpack.c.l.b16 %v4084
        %v4261 = vunpack.c.l.b16 %v4085
        %v4262 = vunpack.c.h.b16 %v4085
        %v4263 = vunpack.c.l.b16 %v4086
        %v4264 = vunpack.c.l.b16 %v4087
        %v4265 = vunpack.c.h.b16 %v4087
        %v4266 = vunpack.c.l.b16 %v4088
        %v4267 = vunpack.c.l.b16 %v4089
        %v4268 = vunpack.c.h.b16 %v4089
        %v4269 = vunpack.c.l.b16 %v4090
        %v4270 = vunpack.c.l.b16 %v4091
        %v4271 = vunpack.c.h.b16 %v4091
        %v4272 = vunpack.c.l.b16 %v4092
        %v4273 = vpack.c.b16 %v4228, %v4225
        %v4274 = vpack.c.b16 %v4229, %v4226
        %v4275 = vpack.c.b16 %v4230, %v4227
        %v4276 = vpack.c.b16 %v4234, %v4231
        %v4277 = vpack.c.b16 %v4235, %v4232
        %v4278 = vpack.c.b16 %v4236, %v4233
        %v4279 = vpack.c.b16 %v4240, %v4237
        %v4280 = vpack.c.b16 %v4241, %v4238
        %v4281 = vpack.c.b16 %v4242, %v4239
        %v4282 = vpack.c.b16 %v4246, %v4243
        %v4283 = vpack.c.b16 %v4247, %v4244
        %v4284 = vpack.c.b16 %v4248, %v4245
        %v4285 = vpack.c.b16 %v4252, %v4249
        %v4286 = vpack.c.b16 %v4253, %v4250
        %v4287 = vpack.c.b16 %v4254, %v4251
        %v4288 = vpack.c.b16 %v4258, %v4255
        %v4289 = vpack.c.b16 %v4259, %v4256
        %v4290 = vpack.c.b16 %v4260, %v4257
        %v4291 = vpack.c.b16 %v4264, %v4261
        %v4292 = vpack.c.b16 %v4265, %v4262
        %v4293 = vpack.c.b16 %v4266, %v4263
        %v4294 = vpack.c.b16 %v4270, %v4267
        %v4295 = vpack.c.b16 %v4271, %v4268
        %v4296 = vpack.c.b16 %v4272, %v4269
        %4321 = vmatprep.subr.bf16.mxu0 %v4274
        %4322 = vmatpush1.bf16.msra.mxu0 %v4273
        %4323 = vmatprep.subr.bf16.mxu0 %v4277
        %4324 = vmatpush1.bf16.msra.mxu0 %v4276
        %4325 = vmatprep.subr.bf16.mxu0 %v4280
        %4326 = vmatpush1.bf16.msra.mxu0 %v4279
        %4327 = vmatprep.subr.bf16.mxu0 %v4283
        %4328 = vmatpush1.bf16.msra.mxu0 %v4282
        %4329 = vmatprep.subr.bf16.mxu0 %v4286
        %4330 = vmatpush1.bf16.msra.mxu0 %v4285
        %4331 = vmatprep.subr.bf16.mxu0 %v4289
        %4332 = vmatpush1.bf16.msra.mxu0 %v4288
        %4333 = vmatprep.subr.bf16.mxu0 %v4292
        %4334 = vmatpush1.bf16.msra.mxu0 %v4291
        %4335 = vmatprep.subr.bf16.mxu0 %v4295
        %4336 = vmatpush1.bf16.msra.mxu0 %v4294
        %4337 = vmatprep.subr.bf16.mxu0 0
        %4338 = vmatpush1.bf16.msra.mxu0 0
        %4339 = vmatprep.subr.bf16.mxu0 0
        %4340 = vmatpush1.bf16.msra.mxu0 0
        %4341 = vmatprep.subr.bf16.mxu0 0
        %4342 = vmatpush1.bf16.msra.mxu0 0
        %4343 = vmatprep.subr.bf16.mxu0 0
        %4344 = vmatpush1.bf16.msra.mxu0 0
        %4345 = vmatprep.subr.bf16.mxu0 0
        %4346 = vmatpush1.bf16.msra.mxu0 0
        %4347 = vmatprep.subr.bf16.mxu0 0
        %4348 = vmatpush1.bf16.msra.mxu0 0
        %4349 = vmatprep.subr.bf16.mxu0 0
        %4350 = vmatpush1.bf16.msra.mxu0 0
        %4351 = vmatprep.subr.bf16.mxu0 0
        %4352 = vmatpush1.bf16.msra.mxu0 0
        %4353 = vmatprep.mubr.bf16.mxu0 0
        %4354 = vmatmul.mubr.bf16.gmra.mrb[0].mxu0 %v4176
        %v4355 = vpop.f32.mrb[0].mxu0
        %v4356 = vadd.f32 %v4181, %v4355
        %v4357 = vpop.f32.mrb[0].mxu0
        %v4358 = vadd.f32 %v4185, %v4357
        %v4359 = vpop.f32.mrb[0].mxu0
        %v4360 = vpop.f32.mrb[0].mxu0
        %4361 = vdwg.mxu0
        %4362 = vmatprep.subr.bf16.mxu0 0
        %4363 = vmatpush1.bf16.msra.mxu0 %v4275
        %4364 = vmatprep.subr.bf16.mxu0 0
        %4365 = vmatpush1.bf16.msra.mxu0 %v4278
        %4366 = vmatprep.subr.bf16.mxu0 0
        %4367 = vmatpush1.bf16.msra.mxu0 %v4281
        %4368 = vmatprep.subr.bf16.mxu0 0
        %4369 = vmatpush1.bf16.msra.mxu0 %v4284
        %4370 = vmatprep.subr.bf16.mxu0 0
        %4371 = vmatpush1.bf16.msra.mxu0 %v4287
        %4372 = vmatprep.subr.bf16.mxu0 0
        %4373 = vmatpush1.bf16.msra.mxu0 %v4290
        %4374 = vmatprep.subr.bf16.mxu0 0
        %4375 = vmatpush1.bf16.msra.mxu0 %v4293
        %4376 = vmatprep.subr.bf16.mxu0 0
        %4377 = vmatpush1.bf16.msra.mxu0 %v4296
        %4378 = vmatprep.subr.bf16.mxu0 0
        %4379 = vmatpush1.bf16.msra.mxu0 0
        %4380 = vmatprep.subr.bf16.mxu0 0
        %4381 = vmatpush1.bf16.msra.mxu0 0
        %4382 = vmatprep.subr.bf16.mxu0 0
        %4383 = vmatpush1.bf16.msra.mxu0 0
        %4384 = vmatprep.subr.bf16.mxu0 0
        %4385 = vmatpush1.bf16.msra.mxu0 0
        %4386 = vmatprep.subr.bf16.mxu0 0
        %4387 = vmatpush1.bf16.msra.mxu0 0
        %4388 = vmatprep.subr.bf16.mxu0 0
        %4389 = vmatpush1.bf16.msra.mxu0 0
        %4390 = vmatprep.subr.bf16.mxu0 0
        %4391 = vmatpush1.bf16.msra.mxu0 0
        %4392 = vmatprep.subr.bf16.mxu0 0
        %4393 = vmatpush1.bf16.msra.mxu0 0
        %4394 = vmatprep.mubr.bf16.mxu0 0
        %4395 = vmatmul.mubr.bf16.gmra.mrb[0].mxu0 %v4176
        %v4396 = vpop.f32.mrb[0].mxu0
        %v4397 = vadd.f32 %v4189, %v4396
        %v4398 = vpop.f32.mrb[0].mxu0
        %v4399 = vpop.f32.mrb[0].mxu0
        %v4400 = vpop.f32.mrb[0].mxu0
        %4401 = vdwg.mxu0
        %v4402 = vpack.c.bf16 %v4356, %v4356
        %v4403 = vpack.c.bf16 %v4358, %v4358
        %v4404 = vpack.c.bf16 %v4397, %v4397
        %4406 = vrot.lane.b32.xlu0 %v4402, 112
        %v4407 = vpop.permute.xlu0 %4406
        %4408 = vrot.lane.b32.xlu0 %v4402, 96
        %v4409 = vpop.permute.xlu0 %4408
        %4410 = vrot.lane.b32.xlu0 %v4402, 80
        %v4411 = vpop.permute.xlu0 %4410
        %4412 = vrot.lane.b32.xlu0 %v4402, 64
        %v4413 = vpop.permute.xlu0 %4412
        %4414 = vrot.lane.b32.xlu0 %v4402, 48
        %v4415 = vpop.permute.xlu0 %4414
        %4416 = vrot.lane.b32.xlu0 %v4402, 32
        %v4417 = vpop.permute.xlu0 %4416
        %4418 = vrot.lane.b32.xlu0 %v4402, 16
        %v4419 = vpop.permute.xlu0 %4418
        %4421 = vrot.lane.b32.xlu0 %v4403, 112
        %v4422 = vpop.permute.xlu0 %4421
        %4423 = vrot.lane.b32.xlu0 %v4403, 96
        %v4424 = vpop.permute.xlu0 %4423
        %4425 = vrot.lane.b32.xlu0 %v4403, 80
        %v4426 = vpop.permute.xlu0 %4425
        %4427 = vrot.lane.b32.xlu0 %v4403, 64
        %v4428 = vpop.permute.xlu0 %4427
        %4429 = vrot.lane.b32.xlu0 %v4403, 48
        %v4430 = vpop.permute.xlu0 %4429
        %4431 = vrot.lane.b32.xlu0 %v4403, 32
        %v4432 = vpop.permute.xlu0 %4431
        %4433 = vrot.lane.b32.xlu0 %v4403, 16
        %v4434 = vpop.permute.xlu0 %4433
        %4436 = vrot.lane.b32.xlu0 %v4404, 112
        %v4437 = vpop.permute.xlu0 %4436
        %4438 = vrot.lane.b32.xlu0 %v4404, 96
        %v4439 = vpop.permute.xlu0 %4438
        %4440 = vrot.lane.b32.xlu0 %v4404, 80
        %v4441 = vpop.permute.xlu0 %4440
        %4442 = vrot.lane.b32.xlu0 %v4404, 64
        %v4443 = vpop.permute.xlu0 %4442
        %4444 = vrot.lane.b32.xlu0 %v4404, 48
        %v4445 = vpop.permute.xlu0 %4444
        %4446 = vrot.lane.b32.xlu0 %v4404, 32
        %v4447 = vpop.permute.xlu0 %4446
        %4448 = vrot.lane.b32.xlu0 %v4404, 16
        %v4449 = vpop.permute.xlu0 %4448
        %v4451 = vsel %vm645, %v4402, 0
        %v4454 = vsel %vm645, %v4403, 0
        %4456 = vmatprep.subr.bf16.mxu0 0
        %4457 = vmatpush1.bf16.xpose.msra.mxu0 %v4454
        %4458 = vmatprep.subr.bf16.mxu0 0
        %4459 = vmatpush1.bf16.xpose.msra.mxu0 0
        %4460 = vmatprep.subr.bf16.mxu0 0
        %4461 = vmatpush1.bf16.xpose.msra.mxu0 0
        %4462 = vmatprep.subr.bf16.mxu0 0
        %4463 = vmatpush1.bf16.xpose.msra.mxu0 0
        %4464 = vmatprep.subr.bf16.mxu0 0
        %4465 = vmatpush1.bf16.xpose.msra.mxu0 0
        %4466 = vmatprep.subr.bf16.mxu0 0
        %4467 = vmatpush1.bf16.xpose.msra.mxu0 0
        %4468 = vmatprep.subr.bf16.mxu0 0
        %4469 = vmatpush1.bf16.xpose.msra.mxu0 0
        %4470 = vmatprep.subr.bf16.mxu0 0
        %4471 = vmatpush1.bf16.xpose.msra.mxu0 0
        %4472 = vmatprep.subr.bf16.mxu0 0
        %4473 = vmatpush1.bf16.xpose.msra.mxu0 0
        %4474 = vmatprep.subr.bf16.mxu0 0
        %4475 = vmatpush1.bf16.xpose.msra.mxu0 0
        %4476 = vmatprep.subr.bf16.mxu0 0
        %4477 = vmatpush1.bf16.xpose.msra.mxu0 0
        %4478 = vmatprep.subr.bf16.mxu0 0
        %4479 = vmatpush1.bf16.xpose.msra.mxu0 0
        %4480 = vmatprep.subr.bf16.mxu0 0
        %4481 = vmatpush1.bf16.xpose.msra.mxu0 0
        %4482 = vmatprep.subr.bf16.mxu0 0
        %4483 = vmatpush1.bf16.xpose.msra.mxu0 0
        %4484 = vmatprep.subr.bf16.mxu0 0
        %4485 = vmatpush1.bf16.xpose.msra.mxu0 0
        %4486 = vmatprep.subr.bf16.mxu0 0
        %4487 = vmatpush1.bf16.xpose.msra.mxu0 0
        %4488 = vmatprep.mubr.bf16.mxu0 0
        %4489 = vmatmul.mubr.bf16.gmra.mrb[0].mxu0 %v4451
        %v4490 = vpop.f32.mrb[0].mxu0
        %v4491 = vadd.f32 %v1073, %v4490
        %v4492 = vpop.f32.mrb[0].mxu0
        %v4493 = vpop.f32.mrb[0].mxu0
        %v4494 = vpop.f32.mrb[0].mxu0
        %4495 = vdwg.mxu0
        %v4497 = vsel %vm645, %v4407, 0
        %v4500 = vsel %vm645, %v4422, 0
        %4502 = vmatprep.subr.bf16.mxu0 0
        %4503 = vmatpush1.bf16.xpose.msra.mxu0 %v4500
        %4504 = vmatprep.subr.bf16.mxu0 0
        %4505 = vmatpush1.bf16.xpose.msra.mxu0 0
        %4506 = vmatprep.subr.bf16.mxu0 0
        %4507 = vmatpush1.bf16.xpose.msra.mxu0 0
        %4508 = vmatprep.subr.bf16.mxu0 0
        %4509 = vmatpush1.bf16.xpose.msra.mxu0 0
        %4510 = vmatprep.subr.bf16.mxu0 0
        %4511 = vmatpush1.bf16.xpose.msra.mxu0 0
        %4512 = vmatprep.subr.bf16.mxu0 0
        %4513 = vmatpush1.bf16.xpose.msra.mxu0 0
        %4514 = vmatprep.subr.bf16.mxu0 0
        %4515 = vmatpush1.bf16.xpose.msra.mxu0 0
        %4516 = vmatprep.subr.bf16.mxu0 0
        %4517 = vmatpush1.bf16.xpose.msra.mxu0 0
        %4518 = vmatprep.subr.bf16.mxu0 0
        %4519 = vmatpush1.bf16.xpose.msra.mxu0 0
        %4520 = vmatprep.subr.bf16.mxu0 0
        %4521 = vmatpush1.bf16.xpose.msra.mxu0 0
        %4522 = vmatprep.subr.bf16.mxu0 0
        %4523 = vmatpush1.bf16.xpose.msra.mxu0 0
        %4524 = vmatprep.subr.bf16.mxu0 0
        %4525 = vmatpush1.bf16.xpose.msra.mxu0 0
        %4526 = vmatprep.subr.bf16.mxu0 0
        %4527 = vmatpush1.bf16.xpose.msra.mxu0 0
        %4528 = vmatprep.subr.bf16.mxu0 0
        %4529 = vmatpush1.bf16.xpose.msra.mxu0 0
        %4530 = vmatprep.subr.bf16.mxu0 0
        %4531 = vmatpush1.bf16.xpose.msra.mxu0 0
        %4532 = vmatprep.subr.bf16.mxu0 0
        %4533 = vmatpush1.bf16.xpose.msra.mxu0 0
        %4534 = vmatprep.mubr.bf16.mxu0 0
        %4535 = vmatmul.mubr.bf16.gmra.mrb[0].mxu0 %v4497
        %v4536 = vpop.f32.mrb[0].mxu0
        %v4537 = vadd.f32 %v1073, %v4536
        %v4538 = vpop.f32.mrb[0].mxu0
        %v4539 = vpop.f32.mrb[0].mxu0
        %v4540 = vpop.f32.mrb[0].mxu0
        %4541 = vdwg.mxu0
        %v4543 = vsel %vm645, %v4409, 0
        %v4546 = vsel %vm645, %v4424, 0
        %4548 = vmatprep.subr.bf16.mxu0 0
        %4549 = vmatpush1.bf16.xpose.msra.mxu0 %v4546
        %4550 = vmatprep.subr.bf16.mxu0 0
        %4551 = vmatpush1.bf16.xpose.msra.mxu0 0
        %4552 = vmatprep.subr.bf16.mxu0 0
        %4553 = vmatpush1.bf16.xpose.msra.mxu0 0
        %4554 = vmatprep.subr.bf16.mxu0 0
        %4555 = vmatpush1.bf16.xpose.msra.mxu0 0
        %4556 = vmatprep.subr.bf16.mxu0 0
        %4557 = vmatpush1.bf16.xpose.msra.mxu0 0
        %4558 = vmatprep.subr.bf16.mxu0 0
        %4559 = vmatpush1.bf16.xpose.msra.mxu0 0
        %4560 = vmatprep.subr.bf16.mxu0 0
        %4561 = vmatpush1.bf16.xpose.msra.mxu0 0
        %4562 = vmatprep.subr.bf16.mxu0 0
        %4563 = vmatpush1.bf16.xpose.msra.mxu0 0
        %4564 = vmatprep.subr.bf16.mxu0 0
        %4565 = vmatpush1.bf16.xpose.msra.mxu0 0
        %4566 = vmatprep.subr.bf16.mxu0 0
        %4567 = vmatpush1.bf16.xpose.msra.mxu0 0
        %4568 = vmatprep.subr.bf16.mxu0 0
        %4569 = vmatpush1.bf16.xpose.msra.mxu0 0
        %4570 = vmatprep.subr.bf16.mxu0 0
        %4571 = vmatpush1.bf16.xpose.msra.mxu0 0
        %4572 = vmatprep.subr.bf16.mxu0 0
        %4573 = vmatpush1.bf16.xpose.msra.mxu0 0
        %4574 = vmatprep.subr.bf16.mxu0 0
        %4575 = vmatpush1.bf16.xpose.msra.mxu0 0
        %4576 = vmatprep.subr.bf16.mxu0 0
        %4577 = vmatpush1.bf16.xpose.msra.mxu0 0
        %4578 = vmatprep.subr.bf16.mxu0 0
        %4579 = vmatpush1.bf16.xpose.msra.mxu0 0
        %4580 = vmatprep.mubr.bf16.mxu0 0
        %4581 = vmatmul.mubr.bf16.gmra.mrb[0].mxu0 %v4543
        %v4582 = vpop.f32.mrb[0].mxu0
        %v4583 = vadd.f32 %v1073, %v4582
        %v4584 = vpop.f32.mrb[0].mxu0
        %v4585 = vpop.f32.mrb[0].mxu0
        %v4586 = vpop.f32.mrb[0].mxu0
        %4587 = vdwg.mxu0
        %v4589 = vsel %vm645, %v4411, 0
        %v4592 = vsel %vm645, %v4426, 0
        %4594 = vmatprep.subr.bf16.mxu0 0
        %4595 = vmatpush1.bf16.xpose.msra.mxu0 %v4592
        %4596 = vmatprep.subr.bf16.mxu0 0
        %4597 = vmatpush1.bf16.xpose.msra.mxu0 0
        %4598 = vmatprep.subr.bf16.mxu0 0
        %4599 = vmatpush1.bf16.xpose.msra.mxu0 0
        %4600 = vmatprep.subr.bf16.mxu0 0
        %4601 = vmatpush1.bf16.xpose.msra.mxu0 0
        %4602 = vmatprep.subr.bf16.mxu0 0
        %4603 = vmatpush1.bf16.xpose.msra.mxu0 0
        %4604 = vmatprep.subr.bf16.mxu0 0
        %4605 = vmatpush1.bf16.xpose.msra.mxu0 0
        %4606 = vmatprep.subr.bf16.mxu0 0
        %4607 = vmatpush1.bf16.xpose.msra.mxu0 0
        %4608 = vmatprep.subr.bf16.mxu0 0
        %4609 = vmatpush1.bf16.xpose.msra.mxu0 0
        %4610 = vmatprep.subr.bf16.mxu0 0
        %4611 = vmatpush1.bf16.xpose.msra.mxu0 0
        %4612 = vmatprep.subr.bf16.mxu0 0
        %4613 = vmatpush1.bf16.xpose.msra.mxu0 0
        %4614 = vmatprep.subr.bf16.mxu0 0
        %4615 = vmatpush1.bf16.xpose.msra.mxu0 0
        %4616 = vmatprep.subr.bf16.mxu0 0
        %4617 = vmatpush1.bf16.xpose.msra.mxu0 0
        %4618 = vmatprep.subr.bf16.mxu0 0
        %4619 = vmatpush1.bf16.xpose.msra.mxu0 0
        %4620 = vmatprep.subr.bf16.mxu0 0
        %4621 = vmatpush1.bf16.xpose.msra.mxu0 0
        %4622 = vmatprep.subr.bf16.mxu0 0
        %4623 = vmatpush1.bf16.xpose.msra.mxu0 0
        %4624 = vmatprep.subr.bf16.mxu0 0
        %4625 = vmatpush1.bf16.xpose.msra.mxu0 0
        %4626 = vmatprep.mubr.bf16.mxu0 0
        %4627 = vmatmul.mubr.bf16.gmra.mrb[0].mxu0 %v4589
        %v4628 = vpop.f32.mrb[0].mxu0
        %v4629 = vadd.f32 %v1073, %v4628
        %v4630 = vpop.f32.mrb[0].mxu0
        %v4631 = vpop.f32.mrb[0].mxu0
        %v4632 = vpop.f32.mrb[0].mxu0
        %4633 = vdwg.mxu0
        %v4635 = vsel %vm645, %v4413, 0
        %v4638 = vsel %vm645, %v4428, 0
        %4640 = vmatprep.subr.bf16.mxu0 0
        %4641 = vmatpush1.bf16.xpose.msra.mxu0 %v4638
        %4642 = vmatprep.subr.bf16.mxu0 0
        %4643 = vmatpush1.bf16.xpose.msra.mxu0 0
        %4644 = vmatprep.subr.bf16.mxu0 0
        %4645 = vmatpush1.bf16.xpose.msra.mxu0 0
        %4646 = vmatprep.subr.bf16.mxu0 0
        %4647 = vmatpush1.bf16.xpose.msra.mxu0 0
        %4648 = vmatprep.subr.bf16.mxu0 0
        %4649 = vmatpush1.bf16.xpose.msra.mxu0 0
        %4650 = vmatprep.subr.bf16.mxu0 0
        %4651 = vmatpush1.bf16.xpose.msra.mxu0 0
        %4652 = vmatprep.subr.bf16.mxu0 0
        %4653 = vmatpush1.bf16.xpose.msra.mxu0 0
        %4654 = vmatprep.subr.bf16.mxu0 0
        %4655 = vmatpush1.bf16.xpose.msra.mxu0 0
        %4656 = vmatprep.subr.bf16.mxu0 0
        %4657 = vmatpush1.bf16.xpose.msra.mxu0 0
        %4658 = vmatprep.subr.bf16.mxu0 0
        %4659 = vmatpush1.bf16.xpose.msra.mxu0 0
        %4660 = vmatprep.subr.bf16.mxu0 0
        %4661 = vmatpush1.bf16.xpose.msra.mxu0 0
        %4662 = vmatprep.subr.bf16.mxu0 0
        %4663 = vmatpush1.bf16.xpose.msra.mxu0 0
        %4664 = vmatprep.subr.bf16.mxu0 0
        %4665 = vmatpush1.bf16.xpose.msra.mxu0 0
        %4666 = vmatprep.subr.bf16.mxu0 0
        %4667 = vmatpush1.bf16.xpose.msra.mxu0 0
        %4668 = vmatprep.subr.bf16.mxu0 0
        %4669 = vmatpush1.bf16.xpose.msra.mxu0 0
        %4670 = vmatprep.subr.bf16.mxu0 0
        %4671 = vmatpush1.bf16.xpose.msra.mxu0 0
        %4672 = vmatprep.mubr.bf16.mxu0 0
        %4673 = vmatmul.mubr.bf16.gmra.mrb[0].mxu0 %v4635
        %v4674 = vpop.f32.mrb[0].mxu0
        %v4675 = vadd.f32 %v1073, %v4674
        %v4676 = vpop.f32.mrb[0].mxu0
        %v4677 = vpop.f32.mrb[0].mxu0
        %v4678 = vpop.f32.mrb[0].mxu0
        %4679 = vdwg.mxu0
        %v4681 = vsel %vm645, %v4415, 0
        %v4684 = vsel %vm645, %v4430, 0
        %4686 = vmatprep.subr.bf16.mxu0 0
        %4687 = vmatpush1.bf16.xpose.msra.mxu0 %v4684
        %4688 = vmatprep.subr.bf16.mxu0 0
        %4689 = vmatpush1.bf16.xpose.msra.mxu0 0
        %4690 = vmatprep.subr.bf16.mxu0 0
        %4691 = vmatpush1.bf16.xpose.msra.mxu0 0
        %4692 = vmatprep.subr.bf16.mxu0 0
        %4693 = vmatpush1.bf16.xpose.msra.mxu0 0
        %4694 = vmatprep.subr.bf16.mxu0 0
        %4695 = vmatpush1.bf16.xpose.msra.mxu0 0
        %4696 = vmatprep.subr.bf16.mxu0 0
        %4697 = vmatpush1.bf16.xpose.msra.mxu0 0
        %4698 = vmatprep.subr.bf16.mxu0 0
        %4699 = vmatpush1.bf16.xpose.msra.mxu0 0
        %4700 = vmatprep.subr.bf16.mxu0 0
        %4701 = vmatpush1.bf16.xpose.msra.mxu0 0
        %4702 = vmatprep.subr.bf16.mxu0 0
        %4703 = vmatpush1.bf16.xpose.msra.mxu0 0
        %4704 = vmatprep.subr.bf16.mxu0 0
        %4705 = vmatpush1.bf16.xpose.msra.mxu0 0
        %4706 = vmatprep.subr.bf16.mxu0 0
        %4707 = vmatpush1.bf16.xpose.msra.mxu0 0
        %4708 = vmatprep.subr.bf16.mxu0 0
        %4709 = vmatpush1.bf16.xpose.msra.mxu0 0
        %4710 = vmatprep.subr.bf16.mxu0 0
        %4711 = vmatpush1.bf16.xpose.msra.mxu0 0
        %4712 = vmatprep.subr.bf16.mxu0 0
        %4713 = vmatpush1.bf16.xpose.msra.mxu0 0
        %4714 = vmatprep.subr.bf16.mxu0 0
        %4715 = vmatpush1.bf16.xpose.msra.mxu0 0
        %4716 = vmatprep.subr.bf16.mxu0 0
        %4717 = vmatpush1.bf16.xpose.msra.mxu0 0
        %4718 = vmatprep.mubr.bf16.mxu0 0
        %4719 = vmatmul.mubr.bf16.gmra.mrb[0].mxu0 %v4681
        %v4720 = vpop.f32.mrb[0].mxu0
        %v4721 = vadd.f32 %v1073, %v4720
        %v4722 = vpop.f32.mrb[0].mxu0
        %v4723 = vpop.f32.mrb[0].mxu0
        %v4724 = vpop.f32.mrb[0].mxu0
        %4725 = vdwg.mxu0
        %v4727 = vsel %vm645, %v4417, 0
        %v4730 = vsel %vm645, %v4432, 0
        %4732 = vmatprep.subr.bf16.mxu0 0
        %4733 = vmatpush1.bf16.xpose.msra.mxu0 %v4730
        %4734 = vmatprep.subr.bf16.mxu0 0
        %4735 = vmatpush1.bf16.xpose.msra.mxu0 0
        %4736 = vmatprep.subr.bf16.mxu0 0
        %4737 = vmatpush1.bf16.xpose.msra.mxu0 0
        %4738 = vmatprep.subr.bf16.mxu0 0
        %4739 = vmatpush1.bf16.xpose.msra.mxu0 0
        %4740 = vmatprep.subr.bf16.mxu0 0
        %4741 = vmatpush1.bf16.xpose.msra.mxu0 0
        %4742 = vmatprep.subr.bf16.mxu0 0
        %4743 = vmatpush1.bf16.xpose.msra.mxu0 0
        %4744 = vmatprep.subr.bf16.mxu0 0
        %4745 = vmatpush1.bf16.xpose.msra.mxu0 0
        %4746 = vmatprep.subr.bf16.mxu0 0
        %4747 = vmatpush1.bf16.xpose.msra.mxu0 0
        %4748 = vmatprep.subr.bf16.mxu0 0
        %4749 = vmatpush1.bf16.xpose.msra.mxu0 0
        %4750 = vmatprep.subr.bf16.mxu0 0
        %4751 = vmatpush1.bf16.xpose.msra.mxu0 0
        %4752 = vmatprep.subr.bf16.mxu0 0
        %4753 = vmatpush1.bf16.xpose.msra.mxu0 0
        %4754 = vmatprep.subr.bf16.mxu0 0
        %4755 = vmatpush1.bf16.xpose.msra.mxu0 0
        %4756 = vmatprep.subr.bf16.mxu0 0
        %4757 = vmatpush1.bf16.xpose.msra.mxu0 0
        %4758 = vmatprep.subr.bf16.mxu0 0
        %4759 = vmatpush1.bf16.xpose.msra.mxu0 0
        %4760 = vmatprep.subr.bf16.mxu0 0
        %4761 = vmatpush1.bf16.xpose.msra.mxu0 0
        %4762 = vmatprep.subr.bf16.mxu0 0
        %4763 = vmatpush1.bf16.xpose.msra.mxu0 0
        %4764 = vmatprep.mubr.bf16.mxu0 0
        %4765 = vmatmul.mubr.bf16.gmra.mrb[0].mxu0 %v4727
        %v4766 = vpop.f32.mrb[0].mxu0
        %v4767 = vadd.f32 %v1073, %v4766
        %v4768 = vpop.f32.mrb[0].mxu0
        %v4769 = vpop.f32.mrb[0].mxu0
        %v4770 = vpop.f32.mrb[0].mxu0
        %4771 = vdwg.mxu0
        %v4773 = vsel %vm645, %v4419, 0
        %v4776 = vsel %vm645, %v4434, 0
        %4778 = vmatprep.subr.bf16.mxu0 0
        %4779 = vmatpush1.bf16.xpose.msra.mxu0 %v4776
        %4780 = vmatprep.subr.bf16.mxu0 0
        %4781 = vmatpush1.bf16.xpose.msra.mxu0 0
        %4782 = vmatprep.subr.bf16.mxu0 0
        %4783 = vmatpush1.bf16.xpose.msra.mxu0 0
        %4784 = vmatprep.subr.bf16.mxu0 0
        %4785 = vmatpush1.bf16.xpose.msra.mxu0 0
        %4786 = vmatprep.subr.bf16.mxu0 0
        %4787 = vmatpush1.bf16.xpose.msra.mxu0 0
        %4788 = vmatprep.subr.bf16.mxu0 0
        %4789 = vmatpush1.bf16.xpose.msra.mxu0 0
        %4790 = vmatprep.subr.bf16.mxu0 0
        %4791 = vmatpush1.bf16.xpose.msra.mxu0 0
        %4792 = vmatprep.subr.bf16.mxu0 0
        %4793 = vmatpush1.bf16.xpose.msra.mxu0 0
        %4794 = vmatprep.subr.bf16.mxu0 0
        %4795 = vmatpush1.bf16.xpose.msra.mxu0 0
        %4796 = vmatprep.subr.bf16.mxu0 0
        %4797 = vmatpush1.bf16.xpose.msra.mxu0 0
        %4798 = vmatprep.subr.bf16.mxu0 0
        %4799 = vmatpush1.bf16.xpose.msra.mxu0 0
        %4800 = vmatprep.subr.bf16.mxu0 0
        %4801 = vmatpush1.bf16.xpose.msra.mxu0 0
        %4802 = vmatprep.subr.bf16.mxu0 0
        %4803 = vmatpush1.bf16.xpose.msra.mxu0 0
        %4804 = vmatprep.subr.bf16.mxu0 0
        %4805 = vmatpush1.bf16.xpose.msra.mxu0 0
        %4806 = vmatprep.subr.bf16.mxu0 0
        %4807 = vmatpush1.bf16.xpose.msra.mxu0 0
        %4808 = vmatprep.subr.bf16.mxu0 0
        %4809 = vmatpush1.bf16.xpose.msra.mxu0 0
        %4810 = vmatprep.mubr.bf16.mxu0 0
        %4811 = vmatmul.mubr.bf16.gmra.mrb[0].mxu0 %v4773
        %v4812 = vpop.f32.mrb[0].mxu0
        %v4813 = vadd.f32 %v1073, %v4812
        %v4814 = vpop.f32.mrb[0].mxu0
        %v4815 = vpop.f32.mrb[0].mxu0
        %v4816 = vpop.f32.mrb[0].mxu0
        %4817 = vdwg.mxu0
        %v4818 = vsel %vm1443, %v4491, -inf
        %4819 = vmax.xlane.f32.xlu0 %v4818
        %v4820 = vpop.xlane.xlu0 %4819
        %v4821 = vsel %vm1443, %v4537, -inf
        %4822 = vmax.xlane.f32.xlu0 %v4821
        %v4823 = vpop.xlane.xlu0 %4822
        %v4824 = vsel %vm1443, %v4583, -inf
        %4825 = vmax.xlane.f32.xlu0 %v4824
        %v4826 = vpop.xlane.xlu0 %4825
        %v4827 = vsel %vm1443, %v4629, -inf
        %4828 = vmax.xlane.f32.xlu0 %v4827
        %v4829 = vpop.xlane.xlu0 %4828
        %v4830 = vsel %vm1443, %v4675, -inf
        %4831 = vmax.xlane.f32.xlu0 %v4830
        %v4832 = vpop.xlane.xlu0 %4831
        %v4833 = vsel %vm1443, %v4721, -inf
        %4834 = vmax.xlane.f32.xlu0 %v4833
        %v4835 = vpop.xlane.xlu0 %4834
        %v4836 = vsel %vm1443, %v4767, -inf
        %4837 = vmax.xlane.f32.xlu0 %v4836
        %v4838 = vpop.xlane.xlu0 %4837
        %v4839 = vsel %vm1443, %v4813, -inf
        %4840 = vmax.xlane.f32.xlu0 %v4839
        %v4841 = vpop.xlane.xlu0 %4840
        %v4842 = vsub.f32 %v4491, %v4820
        %v4843 = vsub.f32 %v4537, %v4823
        %v4844 = vsub.f32 %v4583, %v4826
        %v4845 = vsub.f32 %v4629, %v4829
        %v4846 = vsub.f32 %v4675, %v4832
        %v4847 = vsub.f32 %v4721, %v4835
        %v4848 = vsub.f32 %v4767, %v4838
        %v4849 = vsub.f32 %v4813, %v4841
        %v4850 = vmul.f32 %v4842, 1.442695
        %v4851 = vpow.pop %v4850
        %v4852 = vmul.f32 %v4843, 1.442695
        %v4853 = vpow.pop %v4852
        %v4854 = vmul.f32 %v4844, 1.442695
        %v4855 = vpow.pop %v4854
        %v4856 = vmul.f32 %v4845, 1.442695
        %v4857 = vpow.pop %v4856
        %v4858 = vmul.f32 %v4846, 1.442695
        %v4859 = vpow.pop %v4858
        %v4860 = vmul.f32 %v4847, 1.442695
        %v4861 = vpow.pop %v4860
        %v4862 = vmul.f32 %v4848, 1.442695
        %v4863 = vpow.pop %v4862
        %v4864 = vmul.f32 %v4849, 1.442695
        %v4865 = vpow.pop %v4864
        %v4866 = vsel %vm1443, %v4851, 0.0
        %4867 = vadd.xlane.f32.xlu0 %v4866
        %v4868 = vpop.xlane.xlu0 %4867
        %v4869 = vsel %vm1443, %v4853, 0.0
        %4870 = vadd.xlane.f32.xlu0 %v4869
        %v4871 = vpop.xlane.xlu0 %4870
        %v4872 = vsel %vm1443, %v4855, 0.0
        %4873 = vadd.xlane.f32.xlu0 %v4872
        %v4874 = vpop.xlane.xlu0 %4873
        %v4875 = vsel %vm1443, %v4857, 0.0
        %4876 = vadd.xlane.f32.xlu0 %v4875
        %v4877 = vpop.xlane.xlu0 %4876
        %v4878 = vsel %vm1443, %v4859, 0.0
        %4879 = vadd.xlane.f32.xlu0 %v4878
        %v4880 = vpop.xlane.xlu0 %4879
        %v4881 = vsel %vm1443, %v4861, 0.0
        %4882 = vadd.xlane.f32.xlu0 %v4881
        %v4883 = vpop.xlane.xlu0 %4882
        %v4884 = vsel %vm1443, %v4863, 0.0
        %4885 = vadd.xlane.f32.xlu0 %v4884
        %v4886 = vpop.xlane.xlu0 %4885
        %v4887 = vsel %vm1443, %v4865, 0.0
        %4888 = vadd.xlane.f32.xlu0 %v4887
        %v4889 = vpop.xlane.xlu0 %4888
        %v4890 = vrcp.pop %v4868
        %v4891 = vrcp.pop %v4871
        %v4892 = vrcp.pop %v4874
        %v4893 = vrcp.pop %v4877
        %v4894 = vrcp.pop %v4880
        %v4895 = vrcp.pop %v4883
        %v4896 = vrcp.pop %v4886
        %v4897 = vrcp.pop %v4889
        %v4898 = vmul.f32 %v4851, %v4890
        %v4899 = vmul.f32 %v4853, %v4891
        %v4900 = vmul.f32 %v4855, %v4892
        %v4901 = vmul.f32 %v4857, %v4893
        %v4902 = vmul.f32 %v4859, %v4894
        %v4903 = vmul.f32 %v4861, %v4895
        %v4904 = vmul.f32 %v4863, %v4896
        %v4905 = vmul.f32 %v4865, %v4897
        %v4906 = vpack.c.bf16 %v4898, %v4898
        %v4907 = vpack.c.bf16 %v4899, %v4899
        %v4908 = vpack.c.bf16 %v4900, %v4900
        %v4909 = vpack.c.bf16 %v4901, %v4901
        %v4910 = vpack.c.bf16 %v4902, %v4902
        %v4911 = vpack.c.bf16 %v4903, %v4903
        %v4912 = vpack.c.bf16 %v4904, %v4904
        %v4913 = vpack.c.bf16 %v4905, %v4905
        %v4915 = vsel %vm1443, %v4906, 0
        %v4918 = vsel %vm1543, %v4404, 0
        %4920 = vmatprep.subr.bf16.mxu0 0
        %4921 = vmatpush1.bf16.msra.mxu0 %v4918
        %4922 = vmatprep.subr.bf16.mxu0 0
        %4923 = vmatpush1.bf16.msra.mxu0 0
        %4924 = vmatprep.subr.bf16.mxu0 0
        %4925 = vmatpush1.bf16.msra.mxu0 0
        %4926 = vmatprep.subr.bf16.mxu0 0
        %4927 = vmatpush1.bf16.msra.mxu0 0
        %4928 = vmatprep.subr.bf16.mxu0 0
        %4929 = vmatpush1.bf16.msra.mxu0 0
        %4930 = vmatprep.subr.bf16.mxu0 0
        %4931 = vmatpush1.bf16.msra.mxu0 0
        %4932 = vmatprep.subr.bf16.mxu0 0
        %4933 = vmatpush1.bf16.msra.mxu0 0
        %4934 = vmatprep.subr.bf16.mxu0 0
        %4935 = vmatpush1.bf16.msra.mxu0 0
        %4936 = vmatprep.subr.bf16.mxu0 0
        %4937 = vmatpush1.bf16.msra.mxu0 0
        %4938 = vmatprep.subr.bf16.mxu0 0
        %4939 = vmatpush1.bf16.msra.mxu0 0
        %4940 = vmatprep.subr.bf16.mxu0 0
        %4941 = vmatpush1.bf16.msra.mxu0 0
        %4942 = vmatprep.subr.bf16.mxu0 0
        %4943 = vmatpush1.bf16.msra.mxu0 0
        %4944 = vmatprep.subr.bf16.mxu0 0
        %4945 = vmatpush1.bf16.msra.mxu0 0
        %4946 = vmatprep.subr.bf16.mxu0 0
        %4947 = vmatpush1.bf16.msra.mxu0 0
        %4948 = vmatprep.subr.bf16.mxu0 0
        %4949 = vmatpush1.bf16.msra.mxu0 0
        %4950 = vmatprep.subr.bf16.mxu0 0
        %4951 = vmatpush1.bf16.msra.mxu0 0
        %4952 = vmatprep.mubr.bf16.mxu0 0
        %4953 = vmatmul.mubr.bf16.gmra.mrb[0].mxu0 %v4915
        %v4954 = vpop.f32.mrb[0].mxu0
        %v4955 = vadd.f32 0.0, %v4954
        %v4956 = vpop.f32.mrb[0].mxu0
        %v4957 = vpop.f32.mrb[0].mxu0
        %v4958 = vpop.f32.mrb[0].mxu0
        %4959 = vdwg.mxu0
        %v4961 = vsel %vm1443, %v4907, 0
        %v4964 = vsel %vm1543, %v4437, 0
        %4966 = vmatprep.subr.bf16.mxu0 0
        %4967 = vmatpush1.bf16.msra.mxu0 %v4964
        %4968 = vmatprep.subr.bf16.mxu0 0
        %4969 = vmatpush1.bf16.msra.mxu0 0
        %4970 = vmatprep.subr.bf16.mxu0 0
        %4971 = vmatpush1.bf16.msra.mxu0 0
        %4972 = vmatprep.subr.bf16.mxu0 0
        %4973 = vmatpush1.bf16.msra.mxu0 0
        %4974 = vmatprep.subr.bf16.mxu0 0
        %4975 = vmatpush1.bf16.msra.mxu0 0
        %4976 = vmatprep.subr.bf16.mxu0 0
        %4977 = vmatpush1.bf16.msra.mxu0 0
        %4978 = vmatprep.subr.bf16.mxu0 0
        %4979 = vmatpush1.bf16.msra.mxu0 0
        %4980 = vmatprep.subr.bf16.mxu0 0
        %4981 = vmatpush1.bf16.msra.mxu0 0
        %4982 = vmatprep.subr.bf16.mxu0 0
        %4983 = vmatpush1.bf16.msra.mxu0 0
        %4984 = vmatprep.subr.bf16.mxu0 0
        %4985 = vmatpush1.bf16.msra.mxu0 0
        %4986 = vmatprep.subr.bf16.mxu0 0
        %4987 = vmatpush1.bf16.msra.mxu0 0
        %4988 = vmatprep.subr.bf16.mxu0 0
        %4989 = vmatpush1.bf16.msra.mxu0 0
        %4990 = vmatprep.subr.bf16.mxu0 0
        %4991 = vmatpush1.bf16.msra.mxu0 0
        %4992 = vmatprep.subr.bf16.mxu0 0
        %4993 = vmatpush1.bf16.msra.mxu0 0
        %4994 = vmatprep.subr.bf16.mxu0 0
        %4995 = vmatpush1.bf16.msra.mxu0 0
        %4996 = vmatprep.subr.bf16.mxu0 0
        %4997 = vmatpush1.bf16.msra.mxu0 0
        %4998 = vmatprep.mubr.bf16.mxu0 0
        %4999 = vmatmul.mubr.bf16.gmra.mrb[0].mxu0 %v4961
        %v5000 = vpop.f32.mrb[0].mxu0
        %v5001 = vadd.f32 0.0, %v5000
        %v5002 = vpop.f32.mrb[0].mxu0
        %v5003 = vpop.f32.mrb[0].mxu0
        %v5004 = vpop.f32.mrb[0].mxu0
        %5005 = vdwg.mxu0
        %v5007 = vsel %vm1443, %v4908, 0
        %v5010 = vsel %vm1543, %v4439, 0
        %5012 = vmatprep.subr.bf16.mxu0 0
        %5013 = vmatpush1.bf16.msra.mxu0 %v5010
        %5014 = vmatprep.subr.bf16.mxu0 0
        %5015 = vmatpush1.bf16.msra.mxu0 0
        %5016 = vmatprep.subr.bf16.mxu0 0
        %5017 = vmatpush1.bf16.msra.mxu0 0
        %5018 = vmatprep.subr.bf16.mxu0 0
        %5019 = vmatpush1.bf16.msra.mxu0 0
        %5020 = vmatprep.subr.bf16.mxu0 0
        %5021 = vmatpush1.bf16.msra.mxu0 0
        %5022 = vmatprep.subr.bf16.mxu0 0
        %5023 = vmatpush1.bf16.msra.mxu0 0
        %5024 = vmatprep.subr.bf16.mxu0 0
        %5025 = vmatpush1.bf16.msra.mxu0 0
        %5026 = vmatprep.subr.bf16.mxu0 0
        %5027 = vmatpush1.bf16.msra.mxu0 0
        %5028 = vmatprep.subr.bf16.mxu0 0
        %5029 = vmatpush1.bf16.msra.mxu0 0
        %5030 = vmatprep.subr.bf16.mxu0 0
        %5031 = vmatpush1.bf16.msra.mxu0 0
        %5032 = vmatprep.subr.bf16.mxu0 0
        %5033 = vmatpush1.bf16.msra.mxu0 0
        %5034 = vmatprep.subr.bf16.mxu0 0
        %5035 = vmatpush1.bf16.msra.mxu0 0
        %5036 = vmatprep.subr.bf16.mxu0 0
        %5037 = vmatpush1.bf16.msra.mxu0 0
        %5038 = vmatprep.subr.bf16.mxu0 0
        %5039 = vmatpush1.bf16.msra.mxu0 0
        %5040 = vmatprep.subr.bf16.mxu0 0
        %5041 = vmatpush1.bf16.msra.mxu0 0
        %5042 = vmatprep.subr.bf16.mxu0 0
        %5043 = vmatpush1.bf16.msra.mxu0 0
        %5044 = vmatprep.mubr.bf16.mxu0 0
        %5045 = vmatmul.mubr.bf16.gmra.mrb[0].mxu0 %v5007
        %v5046 = vpop.f32.mrb[0].mxu0
        %v5047 = vadd.f32 0.0, %v5046
        %v5048 = vpop.f32.mrb[0].mxu0
        %v5049 = vpop.f32.mrb[0].mxu0
        %v5050 = vpop.f32.mrb[0].mxu0
        %5051 = vdwg.mxu0
        %v5053 = vsel %vm1443, %v4909, 0
        %v5056 = vsel %vm1543, %v4441, 0
        %5058 = vmatprep.subr.bf16.mxu0 0
        %5059 = vmatpush1.bf16.msra.mxu0 %v5056
        %5060 = vmatprep.subr.bf16.mxu0 0
        %5061 = vmatpush1.bf16.msra.mxu0 0
        %5062 = vmatprep.subr.bf16.mxu0 0
        %5063 = vmatpush1.bf16.msra.mxu0 0
        %5064 = vmatprep.subr.bf16.mxu0 0
        %5065 = vmatpush1.bf16.msra.mxu0 0
        %5066 = vmatprep.subr.bf16.mxu0 0
        %5067 = vmatpush1.bf16.msra.mxu0 0
        %5068 = vmatprep.subr.bf16.mxu0 0
        %5069 = vmatpush1.bf16.msra.mxu0 0
        %5070 = vmatprep.subr.bf16.mxu0 0
        %5071 = vmatpush1.bf16.msra.mxu0 0
        %5072 = vmatprep.subr.bf16.mxu0 0
        %5073 = vmatpush1.bf16.msra.mxu0 0
        %5074 = vmatprep.subr.bf16.mxu0 0
        %5075 = vmatpush1.bf16.msra.mxu0 0
        %5076 = vmatprep.subr.bf16.mxu0 0
        %5077 = vmatpush1.bf16.msra.mxu0 0
        %5078 = vmatprep.subr.bf16.mxu0 0
        %5079 = vmatpush1.bf16.msra.mxu0 0
        %5080 = vmatprep.subr.bf16.mxu0 0
        %5081 = vmatpush1.bf16.msra.mxu0 0
        %5082 = vmatprep.subr.bf16.mxu0 0
        %5083 = vmatpush1.bf16.msra.mxu0 0
        %5084 = vmatprep.subr.bf16.mxu0 0
        %5085 = vmatpush1.bf16.msra.mxu0 0
        %5086 = vmatprep.subr.bf16.mxu0 0
        %5087 = vmatpush1.bf16.msra.mxu0 0
        %5088 = vmatprep.subr.bf16.mxu0 0
        %5089 = vmatpush1.bf16.msra.mxu0 0
        %5090 = vmatprep.mubr.bf16.mxu0 0
        %5091 = vmatmul.mubr.bf16.gmra.mrb[0].mxu0 %v5053
        %v5092 = vpop.f32.mrb[0].mxu0
        %v5093 = vadd.f32 0.0, %v5092
        %v5094 = vpop.f32.mrb[0].mxu0
        %v5095 = vpop.f32.mrb[0].mxu0
        %v5096 = vpop.f32.mrb[0].mxu0
        %5097 = vdwg.mxu0
        %v5099 = vsel %vm1443, %v4910, 0
        %v5102 = vsel %vm1543, %v4443, 0
        %5104 = vmatprep.subr.bf16.mxu0 0
        %5105 = vmatpush1.bf16.msra.mxu0 %v5102
        %5106 = vmatprep.subr.bf16.mxu0 0
        %5107 = vmatpush1.bf16.msra.mxu0 0
        %5108 = vmatprep.subr.bf16.mxu0 0
        %5109 = vmatpush1.bf16.msra.mxu0 0
        %5110 = vmatprep.subr.bf16.mxu0 0
        %5111 = vmatpush1.bf16.msra.mxu0 0
        %5112 = vmatprep.subr.bf16.mxu0 0
        %5113 = vmatpush1.bf16.msra.mxu0 0
        %5114 = vmatprep.subr.bf16.mxu0 0
        %5115 = vmatpush1.bf16.msra.mxu0 0
        %5116 = vmatprep.subr.bf16.mxu0 0
        %5117 = vmatpush1.bf16.msra.mxu0 0
        %5118 = vmatprep.subr.bf16.mxu0 0
        %5119 = vmatpush1.bf16.msra.mxu0 0
        %5120 = vmatprep.subr.bf16.mxu0 0
        %5121 = vmatpush1.bf16.msra.mxu0 0
        %5122 = vmatprep.subr.bf16.mxu0 0
        %5123 = vmatpush1.bf16.msra.mxu0 0
        %5124 = vmatprep.subr.bf16.mxu0 0
        %5125 = vmatpush1.bf16.msra.mxu0 0
        %5126 = vmatprep.subr.bf16.mxu0 0
        %5127 = vmatpush1.bf16.msra.mxu0 0
        %5128 = vmatprep.subr.bf16.mxu0 0
        %5129 = vmatpush1.bf16.msra.mxu0 0
        %5130 = vmatprep.subr.bf16.mxu0 0
        %5131 = vmatpush1.bf16.msra.mxu0 0
        %5132 = vmatprep.subr.bf16.mxu0 0
        %5133 = vmatpush1.bf16.msra.mxu0 0
        %5134 = vmatprep.subr.bf16.mxu0 0
        %5135 = vmatpush1.bf16.msra.mxu0 0
        %5136 = vmatprep.mubr.bf16.mxu0 0
        %5137 = vmatmul.mubr.bf16.gmra.mrb[0].mxu0 %v5099
        %v5138 = vpop.f32.mrb[0].mxu0
        %v5139 = vadd.f32 0.0, %v5138
        %v5140 = vpop.f32.mrb[0].mxu0
        %v5141 = vpop.f32.mrb[0].mxu0
        %v5142 = vpop.f32.mrb[0].mxu0
        %5143 = vdwg.mxu0
        %v5145 = vsel %vm1443, %v4911, 0
        %v5148 = vsel %vm1543, %v4445, 0
        %5150 = vmatprep.subr.bf16.mxu0 0
        %5151 = vmatpush1.bf16.msra.mxu0 %v5148
        %5152 = vmatprep.subr.bf16.mxu0 0
        %5153 = vmatpush1.bf16.msra.mxu0 0
        %5154 = vmatprep.subr.bf16.mxu0 0
        %5155 = vmatpush1.bf16.msra.mxu0 0
        %5156 = vmatprep.subr.bf16.mxu0 0
        %5157 = vmatpush1.bf16.msra.mxu0 0
        %5158 = vmatprep.subr.bf16.mxu0 0
        %5159 = vmatpush1.bf16.msra.mxu0 0
        %5160 = vmatprep.subr.bf16.mxu0 0
        %5161 = vmatpush1.bf16.msra.mxu0 0
        %5162 = vmatprep.subr.bf16.mxu0 0
        %5163 = vmatpush1.bf16.msra.mxu0 0
        %5164 = vmatprep.subr.bf16.mxu0 0
        %5165 = vmatpush1.bf16.msra.mxu0 0
        %5166 = vmatprep.subr.bf16.mxu0 0
        %5167 = vmatpush1.bf16.msra.mxu0 0
        %5168 = vmatprep.subr.bf16.mxu0 0
        %5169 = vmatpush1.bf16.msra.mxu0 0
        %5170 = vmatprep.subr.bf16.mxu0 0
        %5171 = vmatpush1.bf16.msra.mxu0 0
        %5172 = vmatprep.subr.bf16.mxu0 0
        %5173 = vmatpush1.bf16.msra.mxu0 0
        %5174 = vmatprep.subr.bf16.mxu0 0
        %5175 = vmatpush1.bf16.msra.mxu0 0
        %5176 = vmatprep.subr.bf16.mxu0 0
        %5177 = vmatpush1.bf16.msra.mxu0 0
        %5178 = vmatprep.subr.bf16.mxu0 0
        %5179 = vmatpush1.bf16.msra.mxu0 0
        %5180 = vmatprep.subr.bf16.mxu0 0
        %5181 = vmatpush1.bf16.msra.mxu0 0
        %5182 = vmatprep.mubr.bf16.mxu0 0
        %5183 = vmatmul.mubr.bf16.gmra.mrb[0].mxu0 %v5145
        %v5184 = vpop.f32.mrb[0].mxu0
        %v5185 = vadd.f32 0.0, %v5184
        %v5186 = vpop.f32.mrb[0].mxu0
        %v5187 = vpop.f32.mrb[0].mxu0
        %v5188 = vpop.f32.mrb[0].mxu0
        %5189 = vdwg.mxu0
        %v5191 = vsel %vm1443, %v4912, 0
        %v5194 = vsel %vm1543, %v4447, 0
        %5196 = vmatprep.subr.bf16.mxu0 0
        %5197 = vmatpush1.bf16.msra.mxu0 %v5194
        %5198 = vmatprep.subr.bf16.mxu0 0
        %5199 = vmatpush1.bf16.msra.mxu0 0
        %5200 = vmatprep.subr.bf16.mxu0 0
        %5201 = vmatpush1.bf16.msra.mxu0 0
        %5202 = vmatprep.subr.bf16.mxu0 0
        %5203 = vmatpush1.bf16.msra.mxu0 0
        %5204 = vmatprep.subr.bf16.mxu0 0
        %5205 = vmatpush1.bf16.msra.mxu0 0
        %5206 = vmatprep.subr.bf16.mxu0 0
        %5207 = vmatpush1.bf16.msra.mxu0 0
        %5208 = vmatprep.subr.bf16.mxu0 0
        %5209 = vmatpush1.bf16.msra.mxu0 0
        %5210 = vmatprep.subr.bf16.mxu0 0
        %5211 = vmatpush1.bf16.msra.mxu0 0
        %5212 = vmatprep.subr.bf16.mxu0 0
        %5213 = vmatpush1.bf16.msra.mxu0 0
        %5214 = vmatprep.subr.bf16.mxu0 0
        %5215 = vmatpush1.bf16.msra.mxu0 0
        %5216 = vmatprep.subr.bf16.mxu0 0
        %5217 = vmatpush1.bf16.msra.mxu0 0
        %5218 = vmatprep.subr.bf16.mxu0 0
        %5219 = vmatpush1.bf16.msra.mxu0 0
        %5220 = vmatprep.subr.bf16.mxu0 0
        %5221 = vmatpush1.bf16.msra.mxu0 0
        %5222 = vmatprep.subr.bf16.mxu0 0
        %5223 = vmatpush1.bf16.msra.mxu0 0
        %5224 = vmatprep.subr.bf16.mxu0 0
        %5225 = vmatpush1.bf16.msra.mxu0 0
        %5226 = vmatprep.subr.bf16.mxu0 0
        %5227 = vmatpush1.bf16.msra.mxu0 0
        %5228 = vmatprep.mubr.bf16.mxu0 0
        %5229 = vmatmul.mubr.bf16.gmra.mrb[0].mxu0 %v5191
        %v5230 = vpop.f32.mrb[0].mxu0
        %v5231 = vadd.f32 0.0, %v5230
        %v5232 = vpop.f32.mrb[0].mxu0
        %v5233 = vpop.f32.mrb[0].mxu0
        %v5234 = vpop.f32.mrb[0].mxu0
        %5235 = vdwg.mxu0
        %v5237 = vsel %vm1443, %v4913, 0
        %v5240 = vsel %vm1543, %v4449, 0
        %5242 = vmatprep.subr.bf16.mxu0 0
        %5243 = vmatpush1.bf16.msra.mxu0 %v5240
        %5244 = vmatprep.subr.bf16.mxu0 0
        %5245 = vmatpush1.bf16.msra.mxu0 0
        %5246 = vmatprep.subr.bf16.mxu0 0
        %5247 = vmatpush1.bf16.msra.mxu0 0
        %5248 = vmatprep.subr.bf16.mxu0 0
        %5249 = vmatpush1.bf16.msra.mxu0 0
        %5250 = vmatprep.subr.bf16.mxu0 0
        %5251 = vmatpush1.bf16.msra.mxu0 0
        %5252 = vmatprep.subr.bf16.mxu0 0
        %5253 = vmatpush1.bf16.msra.mxu0 0
        %5254 = vmatprep.subr.bf16.mxu0 0
        %5255 = vmatpush1.bf16.msra.mxu0 0
        %5256 = vmatprep.subr.bf16.mxu0 0
        %5257 = vmatpush1.bf16.msra.mxu0 0
        %5258 = vmatprep.subr.bf16.mxu0 0
        %5259 = vmatpush1.bf16.msra.mxu0 0
        %5260 = vmatprep.subr.bf16.mxu0 0
        %5261 = vmatpush1.bf16.msra.mxu0 0
        %5262 = vmatprep.subr.bf16.mxu0 0
        %5263 = vmatpush1.bf16.msra.mxu0 0
        %5264 = vmatprep.subr.bf16.mxu0 0
        %5265 = vmatpush1.bf16.msra.mxu0 0
        %5266 = vmatprep.subr.bf16.mxu0 0
        %5267 = vmatpush1.bf16.msra.mxu0 0
        %5268 = vmatprep.subr.bf16.mxu0 0
        %5269 = vmatpush1.bf16.msra.mxu0 0
        %5270 = vmatprep.subr.bf16.mxu0 0
        %5271 = vmatpush1.bf16.msra.mxu0 0
        %5272 = vmatprep.subr.bf16.mxu0 0
        %5273 = vmatpush1.bf16.msra.mxu0 0
        %5274 = vmatprep.mubr.bf16.mxu0 0
        %5275 = vmatmul.mubr.bf16.gmra.mrb[0].mxu0 %v5237
        %v5276 = vpop.f32.mrb[0].mxu0
        %v5277 = vadd.f32 0.0, %v5276
        %v5278 = vpop.f32.mrb[0].mxu0
        %v5279 = vpop.f32.mrb[0].mxu0
        %v5280 = vpop.f32.mrb[0].mxu0
        %5281 = vdwg.mxu0
        %5283 = vrot.lane.b32.xlu0 %v5001, 16
        %v5284 = vpop.permute.xlu0 %5283
        %5287 = vrot.lane.b32.xlu0 %v5047, 32
        %v5288 = vpop.permute.xlu0 %5287
        %5291 = vrot.lane.b32.xlu0 %v5093, 48
        %v5292 = vpop.permute.xlu0 %5291
        %5295 = vrot.lane.b32.xlu0 %v5139, 64
        %v5296 = vpop.permute.xlu0 %5295
        %5299 = vrot.lane.b32.xlu0 %v5185, 80
        %v5300 = vpop.permute.xlu0 %5299
        %5303 = vrot.lane.b32.xlu0 %v5231, 96
        %v5304 = vpop.permute.xlu0 %5303
        %5307 = vrot.lane.b32.xlu0 %v5277, 112
        %v5308 = vpop.permute.xlu0 %5307
        %v5310 = vsel %vm645, %v4955, %v5284
        %v5311 = vsel %vm1938, %v5310, %v5288
        %v5312 = vsel %vm1940, %v5311, %v5292
        %v5313 = vsel %vm1942, %v5312, %v5296
        %v5314 = vsel %vm1944, %v5313, %v5300
        %v5315 = vsel %vm1946, %v5314, %v5304
        %v5316 = vsel %vm1948, %v5315, %v5308
        %v5317 = vpack.c.bf16 %v5316, %v5316
        %v5319 = vlaneseq
        %v5320 = vshrl.u32 %v5319, 7
        %v5321 = vsub.s32 0, %v5320
        %v5322 = vrot.slane %v4113, %v5321
        %v5340 = vunpack.c.l.b16 %v4096
        %v5341 = vunpack.c.l.b16 %v4097
        %v5342 = vunpack.c.l.b16 %v4098
        %v5343 = vunpack.c.l.b16 %v4099
        %v5344 = vunpack.c.l.b16 %v4100
        %v5345 = vunpack.c.l.b16 %v4101
        %v5346 = vunpack.c.l.b16 %v4102
        %v5347 = vunpack.c.l.b16 %v4103
        %v5348 = vunpack.c.l.b16 %v4104
        %v5349 = vunpack.c.l.b16 %v4105
        %v5350 = vunpack.c.l.b16 %v4106
        %v5351 = vunpack.c.l.b16 %v4107
        %v5352 = vunpack.c.l.b16 %v4108
        %v5353 = vunpack.c.l.b16 %v4109
        %v5354 = vunpack.c.l.b16 %v4110
        %v5355 = vunpack.c.l.b16 %v4111
        %v5356 = vpack.c.b16 %v5341, %v5340
        %v5357 = vpack.c.b16 %v5343, %v5342
        %v5358 = vpack.c.b16 %v5345, %v5344
        %v5359 = vpack.c.b16 %v5347, %v5346
        %v5360 = vpack.c.b16 %v5349, %v5348
        %v5361 = vpack.c.b16 %v5351, %v5350
        %v5362 = vpack.c.b16 %v5353, %v5352
        %v5363 = vpack.c.b16 %v5355, %v5354
        %5372 = vmatprep.subr.bf16.mxu0 0
        %5373 = vmatpush1.bf16.msra.mxu0 %v5356
        %5374 = vmatprep.subr.bf16.mxu0 0
        %5375 = vmatpush1.bf16.msra.mxu0 %v5357
        %5376 = vmatprep.subr.bf16.mxu0 0
        %5377 = vmatpush1.bf16.msra.mxu0 %v5358
        %5378 = vmatprep.subr.bf16.mxu0 0
        %5379 = vmatpush1.bf16.msra.mxu0 %v5359
        %5380 = vmatprep.subr.bf16.mxu0 0
        %5381 = vmatpush1.bf16.msra.mxu0 %v5360
        %5382 = vmatprep.subr.bf16.mxu0 0
        %5383 = vmatpush1.bf16.msra.mxu0 %v5361
        %5384 = vmatprep.subr.bf16.mxu0 0
        %5385 = vmatpush1.bf16.msra.mxu0 %v5362
        %5386 = vmatprep.subr.bf16.mxu0 0
        %5387 = vmatpush1.bf16.msra.mxu0 %v5363
        %5388 = vmatprep.subr.bf16.mxu0 0
        %5389 = vmatpush1.bf16.msra.mxu0 0
        %5390 = vmatprep.subr.bf16.mxu0 0
        %5391 = vmatpush1.bf16.msra.mxu0 0
        %5392 = vmatprep.subr.bf16.mxu0 0
        %5393 = vmatpush1.bf16.msra.mxu0 0
        %5394 = vmatprep.subr.bf16.mxu0 0
        %5395 = vmatpush1.bf16.msra.mxu0 0
        %5396 = vmatprep.subr.bf16.mxu0 0
        %5397 = vmatpush1.bf16.msra.mxu0 0
        %5398 = vmatprep.subr.bf16.mxu0 0
        %5399 = vmatpush1.bf16.msra.mxu0 0
        %5400 = vmatprep.subr.bf16.mxu0 0
        %5401 = vmatpush1.bf16.msra.mxu0 0
        %5402 = vmatprep.subr.bf16.mxu0 0
        %5403 = vmatpush1.bf16.msra.mxu0 0
        %5404 = vmatprep.mubr.bf16.mxu0 0
        %5405 = vmatmul.mubr.bf16.gmra.mrb[0].mxu0 %v5317
        %v5406 = vpop.f32.mrb[0].mxu0
        %v5407 = vadd.f32 %v5322, %v5406
        %v5408 = vpop.f32.mrb[0].mxu0
        %v5409 = vpop.f32.mrb[0].mxu0
        %v5410 = vpop.f32.mrb[0].mxu0
        %5411 = vdwg.mxu0
        %v5412 = vadd.f32 %v4059, %v5407
        %5413 = vadd.xlane.f32.xlu0 %v5412
        %v5414 = vpop.xlane.xlu0 %5413
        %v5415 = vmul.f32 %v5414, %v2048
        %v5416 = vsub.f32 %v5412, %v5415
        %v5417 = vmul.f32 %v5416, %v5416
        %5418 = vadd.xlane.f32.xlu0 %v5417
        %v5419 = vpop.xlane.xlu0 %5418
        %v5420 = vmul.f32 %v5419, %v2048
        %v5421 = vadd.f32 %v5420, 1e-05
        %v5422 = vrsqrt.pop %v5421
        %v5423 = vmul.f32 %v5416, %v5422
        %v5425 = vlaneseq
        %v5426 = vshrl.u32 %v5425, 7
        %v5427 = vsub.s32 0, %v5426
        %v5428 = vrot.slane %v4169, %v5427
        %v5430 = vmul.f32 %v5423, %v5428
        %v5432 = vlaneseq
        %v5433 = vshrl.u32 %v5432, 7
        %v5434 = vsub.s32 0, %v5433
        %v5435 = vrot.slane %v4171, %v5434
        %v5437 = vadd.f32 %v5430, %v5435
        %v5438 = vpack.c.bf16 %v5437, %v5437
        %v5440 = vlaneseq
        %v5441 = vshrl.u32 %v5440, 7
        %v5442 = vsub.s32 0, %v5441
        %v5443 = vrot.slane %v4132, %v5442
        %v5444 = vlaneseq
        %v5445 = vshrl.u32 %v5444, 7
        %v5446 = vsub.s32 1, %v5445
        %v5447 = vrot.slane %v4132, %v5446
        %v5466 = vunpack.c.l.b16 %v4115
        %v5467 = vunpack.c.h.b16 %v4115
        %v5468 = vunpack.c.l.b16 %v4116
        %v5469 = vunpack.c.h.b16 %v4116
        %v5470 = vunpack.c.l.b16 %v4117
        %v5471 = vunpack.c.h.b16 %v4117
        %v5472 = vunpack.c.l.b16 %v4118
        %v5473 = vunpack.c.h.b16 %v4118
        %v5474 = vunpack.c.l.b16 %v4119
        %v5475 = vunpack.c.h.b16 %v4119
        %v5476 = vunpack.c.l.b16 %v4120
        %v5477 = vunpack.c.h.b16 %v4120
        %v5478 = vunpack.c.l.b16 %v4121
        %v5479 = vunpack.c.h.b16 %v4121
        %v5480 = vunpack.c.l.b16 %v4122
        %v5481 = vunpack.c.h.b16 %v4122
        %v5482 = vunpack.c.l.b16 %v4123
        %v5483 = vunpack.c.h.b16 %v4123
        %v5484 = vunpack.c.l.b16 %v4124
        %v5485 = vunpack.c.h.b16 %v4124
        %v5486 = vunpack.c.l.b16 %v4125
        %v5487 = vunpack.c.h.b16 %v4125
        %v5488 = vunpack.c.l.b16 %v4126
        %v5489 = vunpack.c.h.b16 %v4126
        %v5490 = vunpack.c.l.b16 %v4127
        %v5491 = vunpack.c.h.b16 %v4127
        %v5492 = vunpack.c.l.b16 %v4128
        %v5493 = vunpack.c.h.b16 %v4128
        %v5494 = vunpack.c.l.b16 %v4129
        %v5495 = vunpack.c.h.b16 %v4129
        %v5496 = vunpack.c.l.b16 %v4130
        %v5497 = vunpack.c.h.b16 %v4130
        %v5498 = vpack.c.b16 %v5468, %v5466
        %v5499 = vpack.c.b16 %v5469, %v5467
        %v5500 = vpack.c.b16 %v5472, %v5470
        %v5501 = vpack.c.b16 %v5473, %v5471
        %v5502 = vpack.c.b16 %v5476, %v5474
        %v5503 = vpack.c.b16 %v5477, %v5475
        %v5504 = vpack.c.b16 %v5480, %v5478
        %v5505 = vpack.c.b16 %v5481, %v5479
        %v5506 = vpack.c.b16 %v5484, %v5482
        %v5507 = vpack.c.b16 %v5485, %v5483
        %v5508 = vpack.c.b16 %v5488, %v5486
        %v5509 = vpack.c.b16 %v5489, %v5487
        %v5510 = vpack.c.b16 %v5492, %v5490
        %v5511 = vpack.c.b16 %v5493, %v5491
        %v5512 = vpack.c.b16 %v5496, %v5494
        %v5513 = vpack.c.b16 %v5497, %v5495
        %5530 = vmatprep.subr.bf16.mxu0 %v5499
        %5531 = vmatpush1.bf16.msra.mxu0 %v5498
        %5532 = vmatprep.subr.bf16.mxu0 %v5501
        %5533 = vmatpush1.bf16.msra.mxu0 %v5500
        %5534 = vmatprep.subr.bf16.mxu0 %v5503
        %5535 = vmatpush1.bf16.msra.mxu0 %v5502
        %5536 = vmatprep.subr.bf16.mxu0 %v5505
        %5537 = vmatpush1.bf16.msra.mxu0 %v5504
        %5538 = vmatprep.subr.bf16.mxu0 %v5507
        %5539 = vmatpush1.bf16.msra.mxu0 %v5506
        %5540 = vmatprep.subr.bf16.mxu0 %v5509
        %5541 = vmatpush1.bf16.msra.mxu0 %v5508
        %5542 = vmatprep.subr.bf16.mxu0 %v5511
        %5543 = vmatpush1.bf16.msra.mxu0 %v5510
        %5544 = vmatprep.subr.bf16.mxu0 %v5513
        %5545 = vmatpush1.bf16.msra.mxu0 %v5512
        %5546 = vmatprep.subr.bf16.mxu0 0
        %5547 = vmatpush1.bf16.msra.mxu0 0
        %5548 = vmatprep.subr.bf16.mxu0 0
        %5549 = vmatpush1.bf16.msra.mxu0 0
        %5550 = vmatprep.subr.bf16.mxu0 0
        %5551 = vmatpush1.bf16.msra.mxu0 0
        %5552 = vmatprep.subr.bf16.mxu0 0
        %5553 = vmatpush1.bf16.msra.mxu0 0
        %5554 = vmatprep.subr.bf16.mxu0 0
        %5555 = vmatpush1.bf16.msra.mxu0 0
        %5556 = vmatprep.subr.bf16.mxu0 0
        %5557 = vmatpush1.bf16.msra.mxu0 0
        %5558 = vmatprep.subr.bf16.mxu0 0
        %5559 = vmatpush1.bf16.msra.mxu0 0
        %5560 = vmatprep.subr.bf16.mxu0 0
        %5561 = vmatpush1.bf16.msra.mxu0 0
        %5562 = vmatprep.mubr.bf16.mxu0 0
        %5563 = vmatmul.mubr.bf16.gmra.mrb[0].mxu0 %v5438
        %v5564 = vpop.f32.mrb[0].mxu0
        %v5565 = vadd.f32 %v5443, %v5564
        %v5566 = vpop.f32.mrb[0].mxu0
        %v5567 = vadd.f32 %v5447, %v5566
        %v5568 = vpop.f32.mrb[0].mxu0
        %v5569 = vpop.f32.mrb[0].mxu0
        %5570 = vdwg.mxu0
        %v5571 = vmax.f32 %v5565, 0.0
        %v5572 = vmax.f32 %v5567, 0.0
        %v5573 = vpack.c.bf16 %v5571, %v5571
        %v5574 = vpack.c.bf16 %v5572, %v5572
        %v5576 = vlaneseq
        %v5577 = vshrl.u32 %v5576, 7
        %v5578 = vsub.s32 0, %v5577
        %v5579 = vrot.slane %v4167, %v5578
        %v5613 = vunpack.c.l.b16 %v4134
        %v5614 = vunpack.c.l.b16 %v4135
        %v5615 = vunpack.c.l.b16 %v4136
        %v5616 = vunpack.c.l.b16 %v4137
        %v5617 = vunpack.c.l.b16 %v4138
        %v5618 = vunpack.c.l.b16 %v4139
        %v5619 = vunpack.c.l.b16 %v4140
        %v5620 = vunpack.c.l.b16 %v4141
        %v5621 = vunpack.c.l.b16 %v4142
        %v5622 = vunpack.c.l.b16 %v4143
        %v5623 = vunpack.c.l.b16 %v4144
        %v5624 = vunpack.c.l.b16 %v4145
        %v5625 = vunpack.c.l.b16 %v4146
        %v5626 = vunpack.c.l.b16 %v4147
        %v5627 = vunpack.c.l.b16 %v4148
        %v5628 = vunpack.c.l.b16 %v4149
        %v5629 = vunpack.c.l.b16 %v4150
        %v5630 = vunpack.c.l.b16 %v4151
        %v5631 = vunpack.c.l.b16 %v4152
        %v5632 = vunpack.c.l.b16 %v4153
        %v5633 = vunpack.c.l.b16 %v4154
        %v5634 = vunpack.c.l.b16 %v4155
        %v5635 = vunpack.c.l.b16 %v4156
        %v5636 = vunpack.c.l.b16 %v4157
        %v5637 = vunpack.c.l.b16 %v4158
        %v5638 = vunpack.c.l.b16 %v4159
        %v5639 = vunpack.c.l.b16 %v4160
        %v5640 = vunpack.c.l.b16 %v4161
        %v5641 = vunpack.c.l.b16 %v4162
        %v5642 = vunpack.c.l.b16 %v4163
        %v5643 = vunpack.c.l.b16 %v4164
        %v5644 = vunpack.c.l.b16 %v4165
        %v5645 = vpack.c.b16 %v5614, %v5613
        %v5646 = vpack.c.b16 %v5616, %v5615
        %v5647 = vpack.c.b16 %v5618, %v5617
        %v5648 = vpack.c.b16 %v5620, %v5619
        %v5649 = vpack.c.b16 %v5622, %v5621
        %v5650 = vpack.c.b16 %v5624, %v5623
        %v5651 = vpack.c.b16 %v5626, %v5625
        %v5652 = vpack.c.b16 %v5628, %v5627
        %v5653 = vpack.c.b16 %v5630, %v5629
        %v5654 = vpack.c.b16 %v5632, %v5631
        %v5655 = vpack.c.b16 %v5634, %v5633
        %v5656 = vpack.c.b16 %v5636, %v5635
        %v5657 = vpack.c.b16 %v5638, %v5637
        %v5658 = vpack.c.b16 %v5640, %v5639
        %v5659 = vpack.c.b16 %v5642, %v5641
        %v5660 = vpack.c.b16 %v5644, %v5643
        %5677 = vmatprep.subr.bf16.mxu0 0
        %5678 = vmatpush1.bf16.msra.mxu0 %v5645
        %5679 = vmatprep.subr.bf16.mxu0 0
        %5680 = vmatpush1.bf16.msra.mxu0 %v5646
        %5681 = vmatprep.subr.bf16.mxu0 0
        %5682 = vmatpush1.bf16.msra.mxu0 %v5647
        %5683 = vmatprep.subr.bf16.mxu0 0
        %5684 = vmatpush1.bf16.msra.mxu0 %v5648
        %5685 = vmatprep.subr.bf16.mxu0 0
        %5686 = vmatpush1.bf16.msra.mxu0 %v5649
        %5687 = vmatprep.subr.bf16.mxu0 0
        %5688 = vmatpush1.bf16.msra.mxu0 %v5650
        %5689 = vmatprep.subr.bf16.mxu0 0
        %5690 = vmatpush1.bf16.msra.mxu0 %v5651
        %5691 = vmatprep.subr.bf16.mxu0 0
        %5692 = vmatpush1.bf16.msra.mxu0 %v5652
        %5693 = vmatprep.subr.bf16.mxu0 0
        %5694 = vmatpush1.bf16.msra.mxu0 %v5653
        %5695 = vmatprep.subr.bf16.mxu0 0
        %5696 = vmatpush1.bf16.msra.mxu0 %v5654
        %5697 = vmatprep.subr.bf16.mxu0 0
        %5698 = vmatpush1.bf16.msra.mxu0 %v5655
        %5699 = vmatprep.subr.bf16.mxu0 0
        %5700 = vmatpush1.bf16.msra.mxu0 %v5656
        %5701 = vmatprep.subr.bf16.mxu0 0
        %5702 = vmatpush1.bf16.msra.mxu0 %v5657
        %5703 = vmatprep.subr.bf16.mxu0 0
        %5704 = vmatpush1.bf16.msra.mxu0 %v5658
        %5705 = vmatprep.subr.bf16.mxu0 0
        %5706 = vmatpush1.bf16.msra.mxu0 %v5659
        %5707 = vmatprep.subr.bf16.mxu0 0
        %5708 = vmatpush1.bf16.msra.mxu0 %v5660
        %5709 = vmatprep.mubr.bf16.mxu0 %v5574
        %5710 = vmatmul.mubr.bf16.gmra.mrb[0].mxu0 %v5573
        %v5711 = vpop.f32.mrb[0].mxu0
        %v5712 = vadd.f32 %v5579, %v5711
        %v5713 = vpop.f32.mrb[0].mxu0
        %v5714 = vpop.f32.mrb[0].mxu0
        %v5715 = vpop.f32.mrb[0].mxu0
        %5716 = vdwg.mxu0
        %v5717 = vadd.f32 %v5437, %v5712
        %5718 = vadd.xlane.f32.xlu0 %v5717
        %v5719 = vpop.xlane.xlu0 %5718
        %v5720 = vmul.f32 %v5719, %v2048
        %v5721 = vsub.f32 %v5717, %v5720
        %v5722 = vmul.f32 %v5721, %v5721
        %5723 = vadd.xlane.f32.xlu0 %v5722
        %v5724 = vpop.xlane.xlu0 %5723
        %v5725 = vmul.f32 %v5724, %v2048
        %v5726 = vadd.f32 %v5725, 1e-05
        %v5727 = vrsqrt.pop %v5726
        %v5728 = vmul.f32 %v5721, %v5727
        %v5730 = vlaneseq
        %v5731 = vshrl.u32 %v5730, 7
        %v5732 = vsub.s32 0, %v5731
        %v5733 = vrot.slane %v4173, %v5732
        %v5735 = vmul.f32 %v5728, %v5733
        %v5737 = vlaneseq
        %v5738 = vshrl.u32 %v5737, 7
        %v5739 = vsub.s32 0, %v5738
        %v5740 = vrot.slane %v4175, %v5739
        %v5742 = vadd.f32 %v5735, %v5740
        %5743 = vst [vmem:[%s626] sm:$0xff] %v5742
        %v5744 = vrot.slane %v5742, 4
        %v5745 = vadd.f32 %v5742, %v5744
        %v5746 = vrot.slane %v5745, 2
        %v5747 = vadd.f32 %v5745, %v5746
        %v5748 = vrot.slane %v5747, 1
        %v5749 = vadd.f32 %v5747, %v5748
        %v5750 = vrcp.pop 8.0
        %v5751 = vmul.f32 %v5749, %v5750
        %5752 = vst [vmem:[%s615] sm:$0x1] %v5751
        %p5753 = scmp.lt.s32.totalorder %s35, 1
        %s5754 = scalar_select %p5753, %s35, 1
        %s5755 = smul.addr %s5754, 8
        %s5756 = scalar_lea.vmem %s16, %s5755
        %s5757 = sand.u32 %s415, 1
        %s5758 = scalar_lea.sflag [#allocation4], %s5757
        %s5759 = sand.u32 %s415, 1
        %s5760 = scalar_lea.vmem [#allocation10], %s5759
        // Predicated region
        $region101: #{transformer_encoder_forward.1} parent=83 // pred_check
          %p5761 = pneg %p399
        $region102: #{transformer_encoder_forward.1} parent=83 // pred_check_branch
          %5763 = sbr.rel (%p5761) target = $region104
        $region103: #{transformer_encoder_forward.1} parent=83 // pred_region
          _
        $region104: #{transformer_encoder_forward.1} parent=83 // pred_fallthru
          _
        // Predicated region
        $region105: #{transformer_encoder_forward.1} parent=83 // pred_check
          %p5764 = pneg %p425
        $region106: #{transformer_encoder_forward.1} parent=83 // pred_check_branch
          %5766 = sbr.rel (%p5764) target = $region108
        $region107: #{transformer_encoder_forward.1} parent=83 // pred_region
          %s5768 = ssub.s32 16, 16
          %5769 = vsyncadd %s5758, %s5768
          %s5770 = smul.addr %s35, 16
          %s5771 = scalar_lea.hbm %s17, %s5770
          %s5773 = sshll.u32 %s5760, 4
          %s5774 = int_to_ptr.vmem [resolvable:$true] %s5773
          %5776 = dma.vmem_to_hbm [thread:$0]  %s5774, 16, %s5771, %s5758
        $region108: #{transformer_encoder_forward.1} parent=83 // pred_fallthru
          _
      $region84: #{transformer_encoder_forward.1} parent=5 // pred_fallthru
        _
      %p5777 = scmp.le.s32.totalorder 2, %s30
      // Predicated region
      $region109: #{transformer_encoder_forward.1} parent=5 // pred_check
        %p5778 = pneg %p5777
      $region110: #{transformer_encoder_forward.1} parent=5 // pred_check_branch
        %5780 = sbr.rel (%p5778) target = $region112
      $region111: #{transformer_encoder_forward.1} parent=5 // pred_region
        %s5781 = ssub.s32 %s30, 2
        // Predicated region
        $region113: #{transformer_encoder_forward.1} parent=111 // pred_check
          %p5782 = pneg %p405
        $region114: #{transformer_encoder_forward.1} parent=111 // pred_check_branch
          %5784 = sbr.rel (%p5782) target = $region116
        $region115: #{transformer_encoder_forward.1} parent=111 // pred_region
          %p5785 = scmp.lt.s32.totalorder %s36, 1
          %s5786 = scalar_select %p5785, %s36, 1
          %s5787 = smul.addr %s5786, 8
          %s5788 = scalar_lea.vmem %s16, %s5787
        $region116: #{transformer_encoder_forward.1} parent=111 // pred_fallthru
          _
        // Predicated region
        $region117: #{transformer_encoder_forward.1} parent=111 // pred_check
          %p5789 = pneg %p431
        $region118: #{transformer_encoder_forward.1} parent=111 // pred_check_branch
          %5791 = sbr.rel (%p5789) target = $region120
        $region119: #{transformer_encoder_forward.1} parent=111 // pred_region
          %s5792 = sand.u32 %s416, 1
          %s5793 = scalar_lea.sflag [#allocation4], %s5792
          %s5794 = sand.u32 %s416, 1
          %s5795 = scalar_lea.vmem [#allocation10], %s5794
          %5796 = dma.done %s5793, 16
        $region120: #{transformer_encoder_forward.1} parent=111 // pred_fallthru
          _
      $region112: #{transformer_encoder_forward.1} parent=5 // pred_fallthru
        _
    $region6: #{transformer_encoder_forward.1} parent=1 // loop_footer
      %s34 = sadd.s32 1, %s30
    $region7: #{transformer_encoder_forward.1} parent=1 // loop_footer_branch
      %29 = sbr.rel target = $region3
    $region8: #{transformer_encoder_forward.1} parent=1 // loop_exit
      _
    %5797 = vsyncpa [#allocation3], 1
    %s5798 = scalar_lea.sflag [#allocation3], 1
    %5799 = vsyncpa %s5798, 1
    %5800 = vsyncpa [#allocation6], 1
    %5801 = vsyncpa [#allocation9], 1
    %5802 = vsyncpa [#allocation4], 1
    %s5803 = scalar_lea.sflag [#allocation4], 1
    %5804 = vsyncpa %s5803, 1

</llo_original>
